<compile_context>
chip_gen: v7x
topology: tpu7x:2x2x1
jax: 0.10.0
libtpu: 0.0.40
codegen_flags: <defaults>
</compile_context>

<pallas_src>
import functools

import jax
import jax.numpy as jnp
from jax import lax
from jax.experimental import pallas as pl
from jax.experimental.pallas import tpu as pltpu

BN_EPS = 1e-5
LANE = 128
SUBLANE = 8
VMEM_LIMIT = 40 * 1024 * 1024    # explicit scoped-VMEM limit (fits all gens)
VMEM_BUDGET = 24 * 1024 * 1024   # working-set budget used by the tile pickers


def _round_up(x, m):
    return (x + m - 1) // m * m


# ------------------------------ tile pickers ---------------------------------
def _pick_tile_h_conv(H, Wp, Cin, Cout, budget=VMEM_BUDGET):
    """Largest TH dividing H whose per-step conv working set fits the budget.

    Counts double-buffered body/top/bot/y/stat blocks, the (grid-invariant but
    double-buffered) bf16 weights, and the in-kernel temporaries (xt + two
    W-shifted bf16 copies, f32 accumulator + masked copy)."""
    fixed = (2 * 9 * Cin * Cout * 2          # weights, bf16, double buffered
             + 2 * 2 * Wp * Cin * 2          # top+bot halo rows, double buffered
             + 2 * 2 * Cout * 4)             # stats block
    per_row = (2 * Wp * Cin * 2              # body block   (bf16, x2 buffers)
               + 2 * Wp * Cout * 2           # y block      (bf16, x2 buffers)
               + 3 * Wp * Cin * 2            # xt + 2 shifted copies (bf16)
               + 2 * Wp * Cout * 4)          # f32 acc + zero-masked copy
    best = 1
    for th in range(1, H + 1):
        if H % th == 0 and fixed + th * per_row <= budget:
            best = th
    return best


def _pick_tile_h_epilogue(H, W, Wp, C, budget=VMEM_BUDGET):
    per_row = (2 * W * C * 2      # y2 block (bf16, x2 buffers)
               + 2 * Wp * C * 2   # residual block (bf16, x2 buffers)
               + 2 * W * C * 4    # f32 output block (x2 buffers)
               + 4 * W * C * 4)   # in-kernel f32 temps
    best = 1
    for th in range(1, H + 1):
        if H % th == 0 and th * per_row <= budget:
            best = th
    return best


# --------------- fused (affine+relu) -> conv3x3 -> BN-stats kernel -----------
def _conv3x3_kernel(apply_in_affine, store_halo, W, *refs):
    # refs (affine):    xb, xt, xbt, sc, sh, w, y, st
    # refs (no affine): xb, xt, xbt, w, y, st
    if apply_in_affine:
        xb_ref, xt_ref, xbt_ref, sc_ref, sh_ref, w_ref, y_ref, st_ref = refs
    else:
        xb_ref, xt_ref, xbt_ref, w_ref, y_ref, st_ref = refs
        sc_ref = sh_ref = None

    h = pl.program_id(1)
    n_h = pl.num_programs(1)
    TH = xb_ref.shape[1]
    Wp = xb_ref.shape[2]
    Cin = xb_ref.shape[3]
    Cout = y_ref.shape[3]

    body = xb_ref[0]          # (TH, Wp, Cin) bf16
    top = xt_ref[0]           # (1,  Wp, Cin) bf16
    bot = xbt_ref[0]          # (1,  Wp, Cin) bf16

    wi = lax.broadcasted_iota(jnp.int32, (1, Wp, 1), 1)
    col_ok = jnp.logical_and(wi >= 1, wi <= W)

    if apply_in_affine:
        # Fused bn1 + relu on the conv2 input tile (incl. halo rows).  The
        # conv's zero padding applies AFTER the affine, so re-zero halo/pad
        # columns afterwards.
        sc = sc_ref[0, 0, 0]
        sh = sh_ref[0, 0, 0]

        def aff(t):
            t = jnp.maximum(t.astype(jnp.float32) * sc + sh, 0.0)
            return jnp.where(col_ok, t, 0.0).astype(jnp.bfloat16)

        body, top, bot = aff(body), aff(top), aff(bot)

    # Rows outside the image are conv zero padding (post-affine).
    top = jnp.where(h > 0, top, jnp.zeros_like(top))
    bot = jnp.where(h < n_h - 1, bot, jnp.zeros_like(bot))

    xt = jnp.concatenate([top, body, bot], axis=0)      # (TH+2, Wp, Cin) bf16

    # W-shifted copies for the kw=0 / kw=2 taps (zero-filled boundary).
    zcol = jnp.zeros((TH + 2, 1, Cin), xt.dtype)
    x_m = jnp.concatenate([zcol, xt[:, :Wp - 1, :]], axis=1)  # [:, j] = xt[:, j-1]
    x_p = jnp.concatenate([xt[:, 1:, :], zcol], axis=1)       # [:, j] = xt[:, j+1]
    shifted = (x_m, xt, x_p)

    # 3x3 conv as 9 accumulating MXU matmuls (TH*Wp, Cin) @ (Cin, Cout), f32
    # accumulation.  H taps are free leading-axis slices; the reshape is free
    # because Wp % 8 == 0.
    acc = None
    for kh in range(3):
        for kw in range(3):
            lhs = shifted[kw][kh:kh + TH].reshape(TH * Wp, Cin)
            part = jnp.dot(lhs, w_ref[kh, kw],
                           preferred_element_type=jnp.float32)
            acc = part if acc is None else acc + part

    # Only columns 1..W are real outputs; zero the halo/pad columns so the
    # stored tile can be reused directly as the next conv's padded input.
    acc3 = jnp.where(col_ok, acc.reshape(TH, Wp, Cout), 0.0)

    # Fused BatchNorm statistics epilogue (halo columns are exactly zero, so
    # they contribute nothing to the sums).
    acc2 = acc3.reshape(TH * Wp, Cout)
    ssum = jnp.sum(acc2, axis=0, keepdims=True)         # (1, Cout)
    ssq = jnp.sum(acc2 * acc2, axis=0, keepdims=True)   # (1, Cout)
    st_ref[0, 0] = jnp.concatenate([ssum, ssq], axis=0)

    if store_halo:
        y_ref[0] = acc3.astype(y_ref.dtype)             # keep zero halo cols
    else:
        y_ref[0] = acc3[:, 1:W + 1, :].astype(y_ref.dtype)


def conv3x3_bn_stats(xp, w, in_scale=None, in_shift=None, *,
                     tile_h, out_w, store_halo):
    """xp: (N, H, Wp, Cin) bf16 NHWC; W halo-padded to a sublane multiple,
    channels lane-padded; halo/pad columns must be zero.  w: (3,3,Cin,Cout)
    bf16.  Returns (y, stats): y is (N, H, Wp or out_w, Cout) bf16, stats is
    (N, nH, 2, Cout) f32 per-tile [sum, sum-of-squares] over real pixels."""
    N, H, Wp, Cin = xp.shape
    Cout = w.shape[-1]
    TH = tile_h
    nH = H // TH
    Wo = Wp if store_halo else out_w
    apply_affine = in_scale is not None

    body_spec = pl.BlockSpec((1, TH, Wp, Cin), lambda n, h: (n, h, 0, 0))
    top_spec = pl.BlockSpec(
        (1, 1, Wp, Cin), lambda n, h: (n, jnp.maximum(h * TH - 1, 0), 0, 0))
    bot_spec = pl.BlockSpec(
        (1, 1, Wp, Cin), lambda n, h: (n, jnp.minimum(h * TH + TH, H - 1), 0, 0))
    w_spec = pl.BlockSpec((3, 3, Cin, Cout), lambda n, h: (0, 0, 0, 0))
    y_spec = pl.BlockSpec((1, TH, Wo, Cout), lambda n, h: (n, h, 0, 0))
    st_spec = pl.BlockSpec((1, 1, 2, Cout), lambda n, h: (n, h, 0, 0))

    in_specs = [body_spec, top_spec, bot_spec]
    args = [xp, xp, xp]
    if apply_affine:
        par_spec = pl.BlockSpec((1, 1, 1, Cin), lambda n, h: (0, 0, 0, 0))
        in_specs += [par_spec, par_spec]
        args += [in_scale.reshape(1, 1, 1, Cin).astype(jnp.float32),
                 in_shift.reshape(1, 1, 1, Cin).astype(jnp.float32)]
    in_specs.append(w_spec)
    args.append(w)

    return pl.pallas_call(
        functools.partial(_conv3x3_kernel, apply_affine, store_halo, out_w),
        grid=(N, nH),
        in_specs=in_specs,
        out_specs=(y_spec, st_spec),
        out_shape=(jax.ShapeDtypeStruct((N, H, Wo, Cout), jnp.bfloat16),
                   jax.ShapeDtypeStruct((N, nH, 2, Cout), jnp.float32)),
        compiler_params=pltpu.CompilerParams(
            dimension_semantics=("parallel", "parallel"),
            vmem_limit_bytes=VMEM_LIMIT),
    )(*args)


# --------------------- fused bn2 + residual add + relu ----------------------
def _bn2_add_relu_kernel(W, y_ref, x_ref, sc_ref, sh_ref, o_ref):
    y = y_ref[0].astype(jnp.float32)                       # (TH, W, C)
    res = x_ref[0][:, 1:W + 1, :].astype(jnp.float32)      # crop the W halo
    sc = sc_ref[0, 0, 0]
    sh = sh_ref[0, 0, 0]
    o_ref[0] = jnp.maximum(y * sc + sh + res, 0.0).astype(o_ref.dtype)


def bn_add_relu(y2, xp, scale, shift, *, tile_h, W):
    N, H, _, C = y2.shape
    Wp = xp.shape[2]
    TH = tile_h
    nH = H // TH
    sc4 = scale.reshape(1, 1, 1, C).astype(jnp.float32)
    sh4 = shift.reshape(1, 1, 1, C).astype(jnp.float32)
    y_spec = pl.BlockSpec((1, TH, W, C), lambda n, h: (n, h, 0, 0))
    x_spec = pl.BlockSpec((1, TH, Wp, C), lambda n, h: (n, h, 0, 0))
    par = pl.BlockSpec((1, 1, 1, C), lambda n, h: (0, 0, 0, 0))
    o_spec = pl.BlockSpec((1, TH, W, C), lambda n, h: (n, h, 0, 0))
    return pl.pallas_call(
        functools.partial(_bn2_add_relu_kernel, W),
        grid=(N, nH),
        in_specs=[y_spec, x_spec, par, par],
        out_specs=o_spec,
        out_shape=jax.ShapeDtypeStruct((N, H, W, C), jnp.float32),
        compiler_params=pltpu.CompilerParams(
            dimension_semantics=("parallel", "parallel"),
            vmem_limit_bytes=VMEM_LIMIT),
    )(y2, xp, sc4, sh4)


# --------------------------------- helpers ----------------------------------
def _fold_bn(stats, count, gamma, beta):
    """Fold training-mode BatchNorm into per-channel (scale, shift).
    TODO(synk): E[x^2]-E[x]^2 in f32 can lose precision for large-mean
    activations; a centered/Welford reduction would be more robust."""
    tot = jnp.sum(stats, axis=(0, 1))                      # (2, C)
    mean = tot[0] / count
    var = jnp.maximum(tot[1] / count - mean * mean, 0.0)   # biased variance
    scale = gamma * lax.rsqrt(var + BN_EPS)
    return scale, beta - mean * scale


def _prep_weight(w, cin_p, cout_p):
    kh, kw, cin, cout = w.shape
    wp = jnp.pad(w, ((0, 0), (0, 0), (0, cin_p - cin), (0, cout_p - cout)))
    return wp.astype(jnp.bfloat16)                         # (3, 3, Cp, Cp)


def _pad_vec(v, cp):
    v = v.astype(jnp.float32)
    return jnp.pad(v, (0, cp - v.shape[0]))


# ------------------------------- BasicBlock ---------------------------------
def basic_block_forward(x_nchw, params):
    # NCHW (PyTorch) -> NHWC; pad W halo to a sublane multiple and channels to
    # a lane multiple once; cast the whole data path to bf16 once.
    x = jnp.transpose(x_nchw, (0, 2, 3, 1)).astype(jnp.float32)
    N, H, W, C = x.shape
    Cp = _round_up(C, LANE)
    Wp = _round_up(W + 2, SUBLANE)
    count = float(N * H * W)

    xp = jnp.pad(x, ((0, 0), (0, 0), (1, Wp - W - 1), (0, Cp - C)))
    xp = xp.astype(jnp.bfloat16)                           # (N, H, Wp, Cp)

    w1 = _prep_weight(params["w1"], Cp, Cp)
    w2 = _prep_weight(params["w2"], Cp, Cp)
    g1, b1 = _pad_vec(params["g1"], Cp), _pad_vec(params["b1"], Cp)
    g2, b2 = _pad_vec(params["g2"], Cp), _pad_vec(params["b2"], Cp)

    th_conv = _pick_tile_h_conv(H, Wp, Cp, Cp)
    th_epi = _pick_tile_h_epilogue(H, W, Wp, Cp)

    # conv1 (+ fused bn1 statistics); output keeps the zero W halo so it can be
    # consumed directly as conv2's padded input.
    y1, st1 = conv3x3_bn_stats(xp, w1, tile_h=th_conv, out_w=W, store_halo=True)
    sc1, sh1 = _fold_bn(st1, count, g1, b1)

    # conv2 with bn1 + relu fused into its input path (+ fused bn2 statistics);
    # output stored without the halo (feeds the epilogue only).
    y2, st2 = conv3x3_bn_stats(y1, w2, sc1, sh1,
                               tile_h=th_conv, out_w=W, store_halo=False)
    sc2, sh2 = _fold_bn(st2, count, g2, b2)

    # bn2 + residual add + relu, written halo-free.
    out = bn_add_relu(y2, xp, sc2, sh2, tile_h=th_epi, W=W)

    out = out[:, :, :, :C]                                 # drop channel padding
    return jnp.transpose(out, (0, 3, 1, 2))


def init_params(key, inplanes, planes):
    k1, k2 = jax.random.split(key)
    fan_in = 3 * 3 * inplanes
    bound = 1.0 / (fan_in ** 0.5)
    # conv weights stored as (kh, kw, Cin, Cout) for the NHWC kernels
    w1 = jax.random.uniform(k1, (3, 3, inplanes, planes), jnp.float32,
                            -bound, bound)
    w2 = jax.random.uniform(k2, (3, 3, planes, planes), jnp.float32,
                            -bound, bound)
    g1 = jnp.ones((planes,), jnp.float32)
    b1 = jnp.zeros((planes,), jnp.float32)
    g2 = jnp.ones((planes,), jnp.float32)
    b2 = jnp.zeros((planes,), jnp.float32)
    return dict(w1=w1, w2=w2, g1=g1, b1=b1, g2=g2, b2=b2)


# ------------------------- pure-JAX reference (f32) --------------------------
def _reference_forward(x_nchw, params):
    def conv(x, w):
        return lax.conv_general_dilated(
            x, w, window_strides=(1, 1), padding=((1, 1), (1, 1)),
            dimension_numbers=("NCHW", "HWIO", "NCHW"))

    def bn(y, g, b):
        mean = jnp.mean(y, axis=(0, 2, 3), keepdims=True)
        var = jnp.mean((y - mean) ** 2, axis=(0, 2, 3), keepdims=True)
        yhat = (y - mean) * lax.rsqrt(var + BN_EPS)
        return yhat * g.reshape(1, -1, 1, 1) + b.reshape(1, -1, 1, 1)

    out = jax.nn.relu(bn(conv(x_nchw, params["w1"]), params["g1"], params["b1"]))
    out = bn(conv(out, params["w2"]), params["g2"], params["b2"])
    return jax.nn.relu(out + x_nchw)


if __name__ == "__main__":
    key = jax.random.PRNGKey(0)
    kx, kp = jax.random.split(key)

    N, C, Hdim, Wdim = 2, 4, 16, 16          # inplanes = planes = 4
    x = jax.random.normal(kx, (N, C, Hdim, Wdim), jnp.float32)
    params = init_params(kp, inplanes=C, planes=C)

    fwd = jax.jit(basic_block_forward)
    out = jax.block_until_ready(fwd(x, params))

    assert out.shape == (N, C, Hdim, Wdim)
    assert bool(jnp.all(jnp.isfinite(out)))
    assert bool(jnp.all(out >= 0.0))          # final ReLU

    ref = _reference_forward(x, params)       # bf16 data path vs f32 reference
    assert bool(jnp.allclose(out, ref, rtol=1e-1, atol=1e-1))

    print("KERNEL_OK")
</pallas_src>

<mosaic_0001>
module attributes {stable_mosaic.version = 11 : i64} {
  func.func @_conv3x3_kernel(%arg0: i32, %arg1: i32, %arg2: memref<1x16x24x128xbf16, #tpu.memory_space<vmem>>, %arg3: memref<1x1x24x128xbf16, #tpu.memory_space<vmem>>, %arg4: memref<1x1x24x128xbf16, #tpu.memory_space<vmem>>, %arg5: memref<3x3x128x128xbf16, #tpu.memory_space<vmem>>, %arg6: memref<1x16x24x128xbf16, #tpu.memory_space<vmem>>, %arg7: memref<1x1x2x128xf32, #tpu.memory_space<vmem>>) attributes {dimension_semantics = [#tpu.dimension_semantics<parallel>, #tpu.dimension_semantics<parallel>], iteration_bounds = array<i64: 2, 1>, scalar_prefetch = 0 : i64, scratch_operands = 0 : i64, tpu.core_type = #tpu.core_type<tc>, window_params = [{transform_indices = @transform_0, window_bounds = array<i64: 1, 16, 24, 128>}, {transform_indices = @transform_1, window_bounds = array<i64: 1, 1, 24, 128>}, {transform_indices = @transform_2, window_bounds = array<i64: 1, 1, 24, 128>}, {pipeline_mode = #tpu.pipeline_mode<synchronous>, transform_indices = @transform_3, window_bounds = array<i64: 3, 3, 128, 128>}, {transform_indices = @transform_4, window_bounds = array<i64: 1, 16, 24, 128>}, {transform_indices = @transform_5, window_bounds = array<i64: 1, 1, 2, 128>}]} {
    %c0 = arith.constant 0 : index
    %c0_0 = arith.constant 0 : index
    %c0_1 = arith.constant 0 : index
    %c0_2 = arith.constant 0 : index
    %0 = vector.load %arg2[%c0, %c0_0, %c0_1, %c0_2] : memref<1x16x24x128xbf16, #tpu.memory_space<vmem>>, vector<1x16x24x128xbf16>
    %1 = vector.shape_cast %0 : vector<1x16x24x128xbf16> to vector<16x24x128xbf16>
    %c0_3 = arith.constant 0 : index
    %c0_4 = arith.constant 0 : index
    %c0_5 = arith.constant 0 : index
    %c0_6 = arith.constant 0 : index
    %2 = vector.load %arg3[%c0_3, %c0_4, %c0_5, %c0_6] : memref<1x1x24x128xbf16, #tpu.memory_space<vmem>>, vector<1x1x24x128xbf16>
    %3 = vector.shape_cast %2 : vector<1x1x24x128xbf16> to vector<1x24x128xbf16>
    %c0_7 = arith.constant 0 : index
    %c0_8 = arith.constant 0 : index
    %c0_9 = arith.constant 0 : index
    %c0_10 = arith.constant 0 : index
    %4 = vector.load %arg4[%c0_7, %c0_8, %c0_9, %c0_10] : memref<1x1x24x128xbf16, #tpu.memory_space<vmem>>, vector<1x1x24x128xbf16>
    %5 = vector.shape_cast %4 : vector<1x1x24x128xbf16> to vector<1x24x128xbf16>
    %6 = tpu.iota {dimensions = array<i32: 1>} : vector<1x24x1xi32>
    %c1_i32 = arith.constant 1 : i32
    %7 = vector.broadcast %c1_i32 : i32 to vector<1x24x1xi32>
    %8 = arith.cmpi sge, %6, %7 : vector<1x24x1xi32>
    %c16_i32 = arith.constant 16 : i32
    %9 = vector.broadcast %c16_i32 : i32 to vector<1x24x1xi32>
    %10 = arith.cmpi sle, %6, %9 : vector<1x24x1xi32>
    %11 = arith.andi %8, %10 : vector<1x24x1xi1>
    %c0_i32 = arith.constant 0 : i32
    %12 = arith.cmpi sgt, %arg1, %c0_i32 : i32
    %cst = arith.constant 0.000000e+00 : bf16
    %13 = vector.broadcast %cst : bf16 to vector<1x24x128xbf16>
    %14 = arith.select %12, %3, %13 : vector<1x24x128xbf16>
    %c0_i32_11 = arith.constant 0 : i32
    %15 = arith.cmpi slt, %arg1, %c0_i32_11 : i32
    %cst_12 = arith.constant 0.000000e+00 : bf16
    %16 = vector.broadcast %cst_12 : bf16 to vector<1x24x128xbf16>
    %17 = arith.select %15, %5, %16 : vector<1x24x128xbf16>
    %18 = tpu.concatenate %14, %1, %17 in 0 : vector<1x24x128xbf16>, vector<16x24x128xbf16>, vector<1x24x128xbf16> -> vector<18x24x128xbf16>
    %cst_13 = arith.constant 0.000000e+00 : bf16
    %19 = vector.broadcast %cst_13 : bf16 to vector<18x1x128xbf16>
    %20 = vector.extract_strided_slice %18 {offsets = [0, 0, 0], sizes = [18, 23, 128], strides = [1, 1, 1]} : vector<18x24x128xbf16> to vector<18x23x128xbf16>
    %21 = tpu.concatenate %19, %20 in 1 : vector<18x1x128xbf16>, vector<18x23x128xbf16> -> vector<18x24x128xbf16>
    %22 = vector.extract_strided_slice %18 {offsets = [0, 1, 0], sizes = [18, 23, 128], strides = [1, 1, 1]} : vector<18x24x128xbf16> to vector<18x23x128xbf16>
    %23 = tpu.concatenate %22, %19 in 1 : vector<18x23x128xbf16>, vector<18x1x128xbf16> -> vector<18x24x128xbf16>
    %24 = vector.extract_strided_slice %21 {offsets = [0, 0, 0], sizes = [16, 24, 128], strides = [1, 1, 1]} : vector<18x24x128xbf16> to vector<16x24x128xbf16>
    %25 = vector.shape_cast %24 : vector<16x24x128xbf16> to vector<384x128xbf16>
    %c0_14 = arith.constant 0 : index
    %c0_15 = arith.constant 0 : index
    %c0_16 = arith.constant 0 : index
    %c0_17 = arith.constant 0 : index
    %26 = vector.load %arg5[%c0_14, %c0_15, %c0_16, %c0_17] : memref<3x3x128x128xbf16, #tpu.memory_space<vmem>>, vector<1x1x128x128xbf16>
    %27 = vector.shape_cast %26 : vector<1x1x128x128xbf16> to vector<128x128xbf16>
    %cst_18 = arith.constant dense<0.000000e+00> : vector<384x128xf32>
    %28 = tpu.matmul %25, %27, %cst_18 {dimension_numbers = #tpu.dot_dimension_numbers<[1], [0], [0], [1], [0, 0, 1, 1], [], []>} : vector<384x128xbf16>, vector<128x128xbf16>, vector<384x128xf32> -> vector<384x128xf32>
    %29 = vector.extract_strided_slice %18 {offsets = [0, 0, 0], sizes = [16, 24, 128], strides = [1, 1, 1]} : vector<18x24x128xbf16> to vector<16x24x128xbf16>
    %30 = vector.shape_cast %29 : vector<16x24x128xbf16> to vector<384x128xbf16>
    %c0_19 = arith.constant 0 : index
    %c1 = arith.constant 1 : index
    %c0_20 = arith.constant 0 : index
    %c0_21 = arith.constant 0 : index
    %31 = vector.load %arg5[%c0_19, %c1, %c0_20, %c0_21] : memref<3x3x128x128xbf16, #tpu.memory_space<vmem>>, vector<1x1x128x128xbf16>
    %32 = vector.shape_cast %31 : vector<1x1x128x128xbf16> to vector<128x128xbf16>
    %cst_22 = arith.constant dense<0.000000e+00> : vector<384x128xf32>
    %33 = tpu.matmul %30, %32, %cst_22 {dimension_numbers = #tpu.dot_dimension_numbers<[1], [0], [0], [1], [0, 0, 1, 1], [], []>} : vector<384x128xbf16>, vector<128x128xbf16>, vector<384x128xf32> -> vector<384x128xf32>
    %34 = arith.addf %28, %33 : vector<384x128xf32>
    %35 = vector.extract_strided_slice %23 {offsets = [0, 0, 0], sizes = [16, 24, 128], strides = [1, 1, 1]} : vector<18x24x128xbf16> to vector<16x24x128xbf16>
    %36 = vector.shape_cast %35 : vector<16x24x128xbf16> to vector<384x128xbf16>
    %c0_23 = arith.constant 0 : index
    %c2 = arith.constant 2 : index
    %c0_24 = arith.constant 0 : index
    %c0_25 = arith.constant 0 : index
    %37 = vector.load %arg5[%c0_23, %c2, %c0_24, %c0_25] : memref<3x3x128x128xbf16, #tpu.memory_space<vmem>>, vector<1x1x128x128xbf16>
    %38 = vector.shape_cast %37 : vector<1x1x128x128xbf16> to vector<128x128xbf16>
    %cst_26 = arith.constant dense<0.000000e+00> : vector<384x128xf32>
    %39 = tpu.matmul %36, %38, %cst_26 {dimension_numbers = #tpu.dot_dimension_numbers<[1], [0], [0], [1], [0, 0, 1, 1], [], []>} : vector<384x128xbf16>, vector<128x128xbf16>, vector<384x128xf32> -> vector<384x128xf32>
    %40 = arith.addf %34, %39 : vector<384x128xf32>
    %41 = vector.extract_strided_slice %21 {offsets = [1, 0, 0], sizes = [16, 24, 128], strides = [1, 1, 1]} : vector<18x24x128xbf16> to vector<16x24x128xbf16>
    %42 = vector.shape_cast %41 : vector<16x24x128xbf16> to vector<384x128xbf16>
    %c1_27 = arith.constant 1 : index
    %c0_28 = arith.constant 0 : index
    %c0_29 = arith.constant 0 : index
    %c0_30 = arith.constant 0 : index
    %43 = vector.load %arg5[%c1_27, %c0_28, %c0_29, %c0_30] : memref<3x3x128x128xbf16, #tpu.memory_space<vmem>>, vector<1x1x128x128xbf16>
    %44 = vector.shape_cast %43 : vector<1x1x128x128xbf16> to vector<128x128xbf16>
    %cst_31 = arith.constant dense<0.000000e+00> : vector<384x128xf32>
    %45 = tpu.matmul %42, %44, %cst_31 {dimension_numbers = #tpu.dot_dimension_numbers<[1], [0], [0], [1], [0, 0, 1, 1], [], []>} : vector<384x128xbf16>, vector<128x128xbf16>, vector<384x128xf32> -> vector<384x128xf32>
    %46 = arith.addf %40, %45 : vector<384x128xf32>
    %47 = vector.extract_strided_slice %18 {offsets = [1, 0, 0], sizes = [16, 24, 128], strides = [1, 1, 1]} : vector<18x24x128xbf16> to vector<16x24x128xbf16>
    %48 = vector.shape_cast %47 : vector<16x24x128xbf16> to vector<384x128xbf16>
    %c1_32 = arith.constant 1 : index
    %c1_33 = arith.constant 1 : index
    %c0_34 = arith.constant 0 : index
    %c0_35 = arith.constant 0 : index
    %49 = vector.load %arg5[%c1_32, %c1_33, %c0_34, %c0_35] : memref<3x3x128x128xbf16, #tpu.memory_space<vmem>>, vector<1x1x128x128xbf16>
    %50 = vector.shape_cast %49 : vector<1x1x128x128xbf16> to vector<128x128xbf16>
    %cst_36 = arith.constant dense<0.000000e+00> : vector<384x128xf32>
    %51 = tpu.matmul %48, %50, %cst_36 {dimension_numbers = #tpu.dot_dimension_numbers<[1], [0], [0], [1], [0, 0, 1, 1], [], []>} : vector<384x128xbf16>, vector<128x128xbf16>, vector<384x128xf32> -> vector<384x128xf32>
    %52 = arith.addf %46, %51 : vector<384x128xf32>
    %53 = vector.extract_strided_slice %23 {offsets = [1, 0, 0], sizes = [16, 24, 128], strides = [1, 1, 1]} : vector<18x24x128xbf16> to vector<16x24x128xbf16>
    %54 = vector.shape_cast %53 : vector<16x24x128xbf16> to vector<384x128xbf16>
    %c1_37 = arith.constant 1 : index
    %c2_38 = arith.constant 2 : index
    %c0_39 = arith.constant 0 : index
    %c0_40 = arith.constant 0 : index
    %55 = vector.load %arg5[%c1_37, %c2_38, %c0_39, %c0_40] : memref<3x3x128x128xbf16, #tpu.memory_space<vmem>>, vector<1x1x128x128xbf16>
    %56 = vector.shape_cast %55 : vector<1x1x128x128xbf16> to vector<128x128xbf16>
    %cst_41 = arith.constant dense<0.000000e+00> : vector<384x128xf32>
    %57 = tpu.matmul %54, %56, %cst_41 {dimension_numbers = #tpu.dot_dimension_numbers<[1], [0], [0], [1], [0, 0, 1, 1], [], []>} : vector<384x128xbf16>, vector<128x128xbf16>, vector<384x128xf32> -> vector<384x128xf32>
    %58 = arith.addf %52, %57 : vector<384x128xf32>
    %59 = vector.extract_strided_slice %21 {offsets = [2, 0, 0], sizes = [16, 24, 128], strides = [1, 1, 1]} : vector<18x24x128xbf16> to vector<16x24x128xbf16>
    %60 = vector.shape_cast %59 : vector<16x24x128xbf16> to vector<384x128xbf16>
    %c2_42 = arith.constant 2 : index
    %c0_43 = arith.constant 0 : index
    %c0_44 = arith.constant 0 : index
    %c0_45 = arith.constant 0 : index
    %61 = vector.load %arg5[%c2_42, %c0_43, %c0_44, %c0_45] : memref<3x3x128x128xbf16, #tpu.memory_space<vmem>>, vector<1x1x128x128xbf16>
    %62 = vector.shape_cast %61 : vector<1x1x128x128xbf16> to vector<128x128xbf16>
    %cst_46 = arith.constant dense<0.000000e+00> : vector<384x128xf32>
    %63 = tpu.matmul %60, %62, %cst_46 {dimension_numbers = #tpu.dot_dimension_numbers<[1], [0], [0], [1], [0, 0, 1, 1], [], []>} : vector<384x128xbf16>, vector<128x128xbf16>, vector<384x128xf32> -> vector<384x128xf32>
    %64 = arith.addf %58, %63 : vector<384x128xf32>
    %65 = vector.extract_strided_slice %18 {offsets = [2, 0, 0], sizes = [16, 24, 128], strides = [1, 1, 1]} : vector<18x24x128xbf16> to vector<16x24x128xbf16>
    %66 = vector.shape_cast %65 : vector<16x24x128xbf16> to vector<384x128xbf16>
    %c2_47 = arith.constant 2 : index
    %c1_48 = arith.constant 1 : index
    %c0_49 = arith.constant 0 : index
    %c0_50 = arith.constant 0 : index
    %67 = vector.load %arg5[%c2_47, %c1_48, %c0_49, %c0_50] : memref<3x3x128x128xbf16, #tpu.memory_space<vmem>>, vector<1x1x128x128xbf16>
    %68 = vector.shape_cast %67 : vector<1x1x128x128xbf16> to vector<128x128xbf16>
    %cst_51 = arith.constant dense<0.000000e+00> : vector<384x128xf32>
    %69 = tpu.matmul %66, %68, %cst_51 {dimension_numbers = #tpu.dot_dimension_numbers<[1], [0], [0], [1], [0, 0, 1, 1], [], []>} : vector<384x128xbf16>, vector<128x128xbf16>, vector<384x128xf32> -> vector<384x128xf32>
    %70 = arith.addf %64, %69 : vector<384x128xf32>
    %71 = vector.extract_strided_slice %23 {offsets = [2, 0, 0], sizes = [16, 24, 128], strides = [1, 1, 1]} : vector<18x24x128xbf16> to vector<16x24x128xbf16>
    %72 = vector.shape_cast %71 : vector<16x24x128xbf16> to vector<384x128xbf16>
    %c2_52 = arith.constant 2 : index
    %c2_53 = arith.constant 2 : index
    %c0_54 = arith.constant 0 : index
    %c0_55 = arith.constant 0 : index
    %73 = vector.load %arg5[%c2_52, %c2_53, %c0_54, %c0_55] : memref<3x3x128x128xbf16, #tpu.memory_space<vmem>>, vector<1x1x128x128xbf16>
    %74 = vector.shape_cast %73 : vector<1x1x128x128xbf16> to vector<128x128xbf16>
    %cst_56 = arith.constant dense<0.000000e+00> : vector<384x128xf32>
    %75 = tpu.matmul %72, %74, %cst_56 {dimension_numbers = #tpu.dot_dimension_numbers<[1], [0], [0], [1], [0, 0, 1, 1], [], []>} : vector<384x128xbf16>, vector<128x128xbf16>, vector<384x128xf32> -> vector<384x128xf32>
    %76 = arith.addf %70, %75 : vector<384x128xf32>
    %77 = vector.shape_cast %76 : vector<384x128xf32> to vector<16x24x128xf32>
    %cst_57 = arith.constant 0.000000e+00 : f32
    %78 = vector.shape_cast %11 : vector<1x24x1xi1> to vector<1x24x1xi1>
    %79 = vector.broadcast %78 : vector<1x24x1xi1> to vector<16x24x128xi1>
    %80 = vector.broadcast %cst_57 : f32 to vector<16x24x128xf32>
    %81 = arith.select %79, %77, %80 : vector<16x24x128xi1>, vector<16x24x128xf32>
    %82 = vector.shape_cast %81 : vector<16x24x128xf32> to vector<384x128xf32>
    %cst_58 = arith.constant dense<0.000000e+00> : vector<128xf32>
    %83 = vector.multi_reduction <add>, %82, %cst_58 [0] : vector<384x128xf32> to vector<128xf32>
    %84 = vector.shape_cast %83 : vector<128xf32> to vector<1x128xf32>
    %85 = arith.mulf %82, %82 : vector<384x128xf32>
    %cst_59 = arith.constant dense<0.000000e+00> : vector<128xf32>
    %86 = vector.multi_reduction <add>, %85, %cst_59 [0] : vector<384x128xf32> to vector<128xf32>
    %87 = vector.shape_cast %86 : vector<128xf32> to vector<1x128xf32>
    %88 = tpu.concatenate %84, %87 in 0 : vector<1x128xf32>, vector<1x128xf32> -> vector<2x128xf32>
    %c0_60 = arith.constant 0 : index
    %c0_61 = arith.constant 0 : index
    %c0_62 = arith.constant 0 : index
    %c0_63 = arith.constant 0 : index
    %89 = vector.load %arg7[%c0_60, %c0_61, %c0_62, %c0_63] : memref<1x1x2x128xf32, #tpu.memory_space<vmem>>, vector<1x1x2x128xf32>
    %90 = vector.shape_cast %89 : vector<1x1x2x128xf32> to vector<2x128xf32>
    %91 = vector.shape_cast %88 : vector<2x128xf32> to vector<1x1x2x128xf32>
    tpu.vector_store %arg7[%c0_60, %c0_61, %c0_62, %c0_63], %91 {strides = array<i32>} : memref<1x1x2x128xf32, #tpu.memory_space<vmem>>, vector<1x1x2x128xf32>,
    %92 = arith.truncf %81 : vector<16x24x128xf32> to vector<16x24x128xbf16>
    %c0_64 = arith.constant 0 : index
    %c0_65 = arith.constant 0 : index
    %c0_66 = arith.constant 0 : index
    %c0_67 = arith.constant 0 : index
    %93 = vector.load %arg6[%c0_64, %c0_65, %c0_66, %c0_67] : memref<1x16x24x128xbf16, #tpu.memory_space<vmem>>, vector<1x16x24x128xbf16>
    %94 = vector.shape_cast %93 : vector<1x16x24x128xbf16> to vector<16x24x128xbf16>
    %95 = vector.shape_cast %92 : vector<16x24x128xbf16> to vector<1x16x24x128xbf16>
    tpu.vector_store %arg6[%c0_64, %c0_65, %c0_66, %c0_67], %95 {strides = array<i32>} : memref<1x16x24x128xbf16, #tpu.memory_space<vmem>>, vector<1x16x24x128xbf16>,
    return
  }
  func.func @transform_0(%arg0: i32, %arg1: i32) -> (i32, i32, i32, i32) {
    %c0_i32 = arith.constant 0 : i32
    %c0_i32_0 = arith.constant 0 : i32
    %c0_i32_1 = arith.constant 0 : i32
    return %arg0, %arg1, %c0_i32, %c0_i32_0 : i32, i32, i32, i32
  }
  func.func @transform_1(%arg0: i32, %arg1: i32) -> (i32, i32, i32, i32) {
    %c16_i32 = arith.constant 16 : i32
    %0 = arith.muli %arg1, %c16_i32 : i32
    %c1_i32 = arith.constant 1 : i32
    %1 = arith.subi %0, %c1_i32 : i32
    %c0_i32 = arith.constant 0 : i32
    %2 = arith.maxsi %1, %c0_i32 : i32
    %c0_i32_0 = arith.constant 0 : i32
    %c0_i32_1 = arith.constant 0 : i32
    %c0_i32_2 = arith.constant 0 : i32
    return %arg0, %2, %c0_i32_0, %c0_i32_1 : i32, i32, i32, i32
  }
  func.func @transform_2(%arg0: i32, %arg1: i32) -> (i32, i32, i32, i32) {
    %c16_i32 = arith.constant 16 : i32
    %0 = arith.muli %arg1, %c16_i32 : i32
    %c16_i32_0 = arith.constant 16 : i32
    %1 = arith.addi %0, %c16_i32_0 : i32
    %c15_i32 = arith.constant 15 : i32
    %2 = arith.minsi %1, %c15_i32 : i32
    %c0_i32 = arith.constant 0 : i32
    %c0_i32_1 = arith.constant 0 : i32
    %c0_i32_2 = arith.constant 0 : i32
    return %arg0, %2, %c0_i32, %c0_i32_1 : i32, i32, i32, i32
  }
  func.func @transform_3(%arg0: i32, %arg1: i32) -> (i32, i32, i32, i32) {
    %c0_i32 = arith.constant 0 : i32
    %c0_i32_0 = arith.constant 0 : i32
    %c0_i32_1 = arith.constant 0 : i32
    %c0_i32_2 = arith.constant 0 : i32
    %c0_i32_3 = arith.constant 0 : i32
    return %c0_i32, %c0_i32_0, %c0_i32_1, %c0_i32_2 : i32, i32, i32, i32
  }
  func.func @transform_4(%arg0: i32, %arg1: i32) -> (i32, i32, i32, i32) {
    %c0_i32 = arith.constant 0 : i32
    %c0_i32_0 = arith.constant 0 : i32
    %c0_i32_1 = arith.constant 0 : i32
    return %arg0, %arg1, %c0_i32, %c0_i32_0 : i32, i32, i32, i32
  }
  func.func @transform_5(%arg0: i32, %arg1: i32) -> (i32, i32, i32, i32) {
    %c0_i32 = arith.constant 0 : i32
    %c0_i32_0 = arith.constant 0 : i32
    %c0_i32_1 = arith.constant 0 : i32
    return %arg0, %arg1, %c0_i32, %c0_i32_0 : i32, i32, i32, i32
  }
}

module attributes {stable_mosaic.version = 11 : i64} {
  func.func @_bn2_add_relu_kernel(%arg0: i32, %arg1: i32, %arg2: memref<1x16x16x128xbf16, #tpu.memory_space<vmem>>, %arg3: memref<1x16x24x128xbf16, #tpu.memory_space<vmem>>, %arg4: memref<1x1x1x128xf32, #tpu.memory_space<vmem>>, %arg5: memref<1x1x1x128xf32, #tpu.memory_space<vmem>>, %arg6: memref<1x16x16x128xf32, #tpu.memory_space<vmem>>) attributes {dimension_semantics = [#tpu.dimension_semantics<parallel>, #tpu.dimension_semantics<parallel>], iteration_bounds = array<i64: 2, 1>, scalar_prefetch = 0 : i64, scratch_operands = 0 : i64, tpu.core_type = #tpu.core_type<tc>, window_params = [{transform_indices = @transform_0, window_bounds = array<i64: 1, 16, 16, 128>}, {transform_indices = @transform_1, window_bounds = array<i64: 1, 16, 24, 128>}, {pipeline_mode = #tpu.pipeline_mode<synchronous>, transform_indices = @transform_2, window_bounds = array<i64: 1, 1, 1, 128>}, {pipeline_mode = #tpu.pipeline_mode<synchronous>, transform_indices = @transform_3, window_bounds = array<i64: 1, 1, 1, 128>}, {transform_indices = @transform_4, window_bounds = array<i64: 1, 16, 16, 128>}]} {
    %c0 = arith.constant 0 : index
    %c0_0 = arith.constant 0 : index
    %c0_1 = arith.constant 0 : index
    %c0_2 = arith.constant 0 : index
    %0 = vector.load %arg2[%c0, %c0_0, %c0_1, %c0_2] : memref<1x16x16x128xbf16, #tpu.memory_space<vmem>>, vector<1x16x16x128xbf16>
    %1 = vector.shape_cast %0 : vector<1x16x16x128xbf16> to vector<16x16x128xbf16>
    %2 = arith.extf %1 : vector<16x16x128xbf16> to vector<16x16x128xf32>
    %c0_3 = arith.constant 0 : index
    %c0_4 = arith.constant 0 : index
    %c0_5 = arith.constant 0 : index
    %c0_6 = arith.constant 0 : index
    %3 = vector.load %arg3[%c0_3, %c0_4, %c0_5, %c0_6] : memref<1x16x24x128xbf16, #tpu.memory_space<vmem>>, vector<1x16x24x128xbf16>
    %4 = vector.shape_cast %3 : vector<1x16x24x128xbf16> to vector<16x24x128xbf16>
    %5 = vector.extract_strided_slice %4 {offsets = [0, 1, 0], sizes = [16, 16, 128], strides = [1, 1, 1]} : vector<16x24x128xbf16> to vector<16x16x128xbf16>
    %6 = arith.extf %5 : vector<16x16x128xbf16> to vector<16x16x128xf32>
    %c0_7 = arith.constant 0 : index
    %c0_8 = arith.constant 0 : index
    %c0_9 = arith.constant 0 : index
    %c0_10 = arith.constant 0 : index
    %7 = vector.load %arg4[%c0_7, %c0_8, %c0_9, %c0_10] : memref<1x1x1x128xf32, #tpu.memory_space<vmem>>, vector<1x1x1x128xf32>
    %8 = vector.shape_cast %7 : vector<1x1x1x128xf32> to vector<128xf32>
    %c0_11 = arith.constant 0 : index
    %c0_12 = arith.constant 0 : index
    %c0_13 = arith.constant 0 : index
    %c0_14 = arith.constant 0 : index
    %9 = vector.load %arg5[%c0_11, %c0_12, %c0_13, %c0_14] : memref<1x1x1x128xf32, #tpu.memory_space<vmem>>, vector<1x1x1x128xf32>
    %10 = vector.shape_cast %9 : vector<1x1x1x128xf32> to vector<128xf32>
    %11 = vector.shape_cast %8 : vector<128xf32> to vector<1x1x128xf32>
    %12 = vector.broadcast %11 : vector<1x1x128xf32> to vector<16x16x128xf32>
    %13 = arith.mulf %2, %12 : vector<16x16x128xf32>
    %14 = vector.shape_cast %10 : vector<128xf32> to vector<1x1x128xf32>
    %15 = vector.broadcast %14 : vector<1x1x128xf32> to vector<16x16x128xf32>
    %16 = arith.addf %13, %15 : vector<16x16x128xf32>
    %17 = arith.addf %16, %6 : vector<16x16x128xf32>
    %cst = arith.constant 0.000000e+00 : f32
    %18 = vector.broadcast %cst : f32 to vector<16x16x128xf32>
    %19 = arith.maximumf %17, %18 : vector<16x16x128xf32>
    %c0_15 = arith.constant 0 : index
    %c0_16 = arith.constant 0 : index
    %c0_17 = arith.constant 0 : index
    %c0_18 = arith.constant 0 : index
    %20 = vector.load %arg6[%c0_15, %c0_16, %c0_17, %c0_18] : memref<1x16x16x128xf32, #tpu.memory_space<vmem>>, vector<1x16x16x128xf32>
    %21 = vector.shape_cast %20 : vector<1x16x16x128xf32> to vector<16x16x128xf32>
    %22 = vector.shape_cast %19 : vector<16x16x128xf32> to vector<1x16x16x128xf32>
    tpu.vector_store %arg6[%c0_15, %c0_16, %c0_17, %c0_18], %22 {strides = array<i32>} : memref<1x16x16x128xf32, #tpu.memory_space<vmem>>, vector<1x16x16x128xf32>,
    return
  }
  func.func @transform_0(%arg0: i32, %arg1: i32) -> (i32, i32, i32, i32) {
    %c0_i32 = arith.constant 0 : i32
    %c0_i32_0 = arith.constant 0 : i32
    %c0_i32_1 = arith.constant 0 : i32
    return %arg0, %arg1, %c0_i32, %c0_i32_0 : i32, i32, i32, i32
  }
  func.func @transform_1(%arg0: i32, %arg1: i32) -> (i32, i32, i32, i32) {
    %c0_i32 = arith.constant 0 : i32
    %c0_i32_0 = arith.constant 0 : i32
    %c0_i32_1 = arith.constant 0 : i32
    return %arg0, %arg1, %c0_i32, %c0_i32_0 : i32, i32, i32, i32
  }
  func.func @transform_2(%arg0: i32, %arg1: i32) -> (i32, i32, i32, i32) {
    %c0_i32 = arith.constant 0 : i32
    %c0_i32_0 = arith.constant 0 : i32
    %c0_i32_1 = arith.constant 0 : i32
    %c0_i32_2 = arith.constant 0 : i32
    %c0_i32_3 = arith.constant 0 : i32
    return %c0_i32, %c0_i32_0, %c0_i32_1, %c0_i32_2 : i32, i32, i32, i32
  }
  func.func @transform_3(%arg0: i32, %arg1: i32) -> (i32, i32, i32, i32) {
    %c0_i32 = arith.constant 0 : i32
    %c0_i32_0 = arith.constant 0 : i32
    %c0_i32_1 = arith.constant 0 : i32
    %c0_i32_2 = arith.constant 0 : i32
    %c0_i32_3 = arith.constant 0 : i32
    return %c0_i32, %c0_i32_0, %c0_i32_1, %c0_i32_2 : i32, i32, i32, i32
  }
  func.func @transform_4(%arg0: i32, %arg1: i32) -> (i32, i32, i32, i32) {
    %c0_i32 = arith.constant 0 : i32
    %c0_i32_0 = arith.constant 0 : i32
    %c0_i32_1 = arith.constant 0 : i32
    return %arg0, %arg1, %c0_i32, %c0_i32_0 : i32, i32, i32, i32
  }
}

module attributes {stable_mosaic.version = 11 : i64} {
  func.func @_conv3x3_kernel(%arg0: i32, %arg1: i32, %arg2: memref<1x16x24x128xbf16, #tpu.memory_space<vmem>>, %arg3: memref<1x1x24x128xbf16, #tpu.memory_space<vmem>>, %arg4: memref<1x1x24x128xbf16, #tpu.memory_space<vmem>>, %arg5: memref<1x1x1x128xf32, #tpu.memory_space<vmem>>, %arg6: memref<1x1x1x128xf32, #tpu.memory_space<vmem>>, %arg7: memref<3x3x128x128xbf16, #tpu.memory_space<vmem>>, %arg8: memref<1x16x16x128xbf16, #tpu.memory_space<vmem>>, %arg9: memref<1x1x2x128xf32, #tpu.memory_space<vmem>>) attributes {dimension_semantics = [#tpu.dimension_semantics<parallel>, #tpu.dimension_semantics<parallel>], iteration_bounds = array<i64: 2, 1>, scalar_prefetch = 0 : i64, scratch_operands = 0 : i64, tpu.core_type = #tpu.core_type<tc>, window_params = [{transform_indices = @transform_0, window_bounds = array<i64: 1, 16, 24, 128>}, {transform_indices = @transform_1, window_bounds = array<i64: 1, 1, 24, 128>}, {transform_indices = @transform_2, window_bounds = array<i64: 1, 1, 24, 128>}, {pipeline_mode = #tpu.pipeline_mode<synchronous>, transform_indices = @transform_3, window_bounds = array<i64: 1, 1, 1, 128>}, {pipeline_mode = #tpu.pipeline_mode<synchronous>, transform_indices = @transform_4, window_bounds = array<i64: 1, 1, 1, 128>}, {pipeline_mode = #tpu.pipeline_mode<synchronous>, transform_indices = @transform_5, window_bounds = array<i64: 3, 3, 128, 128>}, {transform_indices = @transform_6, window_bounds = array<i64: 1, 16, 16, 128>}, {transform_indices = @transform_7, window_bounds = array<i64: 1, 1, 2, 128>}]} {
    %c0 = arith.constant 0 : index
    %c0_0 = arith.constant 0 : index
    %c0_1 = arith.constant 0 : index
    %c0_2 = arith.constant 0 : index
    %0 = vector.load %arg2[%c0, %c0_0, %c0_1, %c0_2] : memref<1x16x24x128xbf16, #tpu.memory_space<vmem>>, vector<1x16x24x128xbf16>
    %1 = vector.shape_cast %0 : vector<1x16x24x128xbf16> to vector<16x24x128xbf16>
    %c0_3 = arith.constant 0 : index
    %c0_4 = arith.constant 0 : index
    %c0_5 = arith.constant 0 : index
    %c0_6 = arith.constant 0 : index
    %2 = vector.load %arg3[%c0_3, %c0_4, %c0_5, %c0_6] : memref<1x1x24x128xbf16, #tpu.memory_space<vmem>>, vector<1x1x24x128xbf16>
    %3 = vector.shape_cast %2 : vector<1x1x24x128xbf16> to vector<1x24x128xbf16>
    %c0_7 = arith.constant 0 : index
    %c0_8 = arith.constant 0 : index
    %c0_9 = arith.constant 0 : index
    %c0_10 = arith.constant 0 : index
    %4 = vector.load %arg4[%c0_7, %c0_8, %c0_9, %c0_10] : memref<1x1x24x128xbf16, #tpu.memory_space<vmem>>, vector<1x1x24x128xbf16>
    %5 = vector.shape_cast %4 : vector<1x1x24x128xbf16> to vector<1x24x128xbf16>
    %6 = tpu.iota {dimensions = array<i32: 1>} : vector<1x24x1xi32>
    %c1_i32 = arith.constant 1 : i32
    %7 = vector.broadcast %c1_i32 : i32 to vector<1x24x1xi32>
    %8 = arith.cmpi sge, %6, %7 : vector<1x24x1xi32>
    %c16_i32 = arith.constant 16 : i32
    %9 = vector.broadcast %c16_i32 : i32 to vector<1x24x1xi32>
    %10 = arith.cmpi sle, %6, %9 : vector<1x24x1xi32>
    %11 = arith.andi %8, %10 : vector<1x24x1xi1>
    %c0_11 = arith.constant 0 : index
    %c0_12 = arith.constant 0 : index
    %c0_13 = arith.constant 0 : index
    %c0_14 = arith.constant 0 : index
    %12 = vector.load %arg5[%c0_11, %c0_12, %c0_13, %c0_14] : memref<1x1x1x128xf32, #tpu.memory_space<vmem>>, vector<1x1x1x128xf32>
    %13 = vector.shape_cast %12 : vector<1x1x1x128xf32> to vector<128xf32>
    %c0_15 = arith.constant 0 : index
    %c0_16 = arith.constant 0 : index
    %c0_17 = arith.constant 0 : index
    %c0_18 = arith.constant 0 : index
    %14 = vector.load %arg6[%c0_15, %c0_16, %c0_17, %c0_18] : memref<1x1x1x128xf32, #tpu.memory_space<vmem>>, vector<1x1x1x128xf32>
    %15 = vector.shape_cast %14 : vector<1x1x1x128xf32> to vector<128xf32>
    %16 = arith.extf %1 : vector<16x24x128xbf16> to vector<16x24x128xf32>
    %17 = vector.shape_cast %13 : vector<128xf32> to vector<1x1x128xf32>
    %18 = vector.broadcast %17 : vector<1x1x128xf32> to vector<16x24x128xf32>
    %19 = arith.mulf %16, %18 : vector<16x24x128xf32>
    %20 = vector.shape_cast %15 : vector<128xf32> to vector<1x1x128xf32>
    %21 = vector.broadcast %20 : vector<1x1x128xf32> to vector<16x24x128xf32>
    %22 = arith.addf %19, %21 : vector<16x24x128xf32>
    %cst = arith.constant 0.000000e+00 : f32
    %23 = vector.broadcast %cst : f32 to vector<16x24x128xf32>
    %24 = arith.maximumf %22, %23 : vector<16x24x128xf32>
    %cst_19 = arith.constant 0.000000e+00 : f32
    %25 = vector.shape_cast %11 : vector<1x24x1xi1> to vector<1x24x1xi1>
    %26 = vector.broadcast %25 : vector<1x24x1xi1> to vector<16x24x128xi1>
    %27 = vector.broadcast %cst_19 : f32 to vector<16x24x128xf32>
    %28 = arith.select %26, %24, %27 : vector<16x24x128xi1>, vector<16x24x128xf32>
    %29 = arith.truncf %28 : vector<16x24x128xf32> to vector<16x24x128xbf16>
    %30 = arith.extf %3 : vector<1x24x128xbf16> to vector<1x24x128xf32>
    %31 = vector.shape_cast %13 : vector<128xf32> to vector<1x1x128xf32>
    %32 = vector.broadcast %31 : vector<1x1x128xf32> to vector<1x24x128xf32>
    %33 = arith.mulf %30, %32 : vector<1x24x128xf32>
    %34 = vector.shape_cast %15 : vector<128xf32> to vector<1x1x128xf32>
    %35 = vector.broadcast %34 : vector<1x1x128xf32> to vector<1x24x128xf32>
    %36 = arith.addf %33, %35 : vector<1x24x128xf32>
    %cst_20 = arith.constant 0.000000e+00 : f32
    %37 = vector.broadcast %cst_20 : f32 to vector<1x24x128xf32>
    %38 = arith.maximumf %36, %37 : vector<1x24x128xf32>
    %cst_21 = arith.constant 0.000000e+00 : f32
    %39 = vector.shape_cast %11 : vector<1x24x1xi1> to vector<1x24x1xi1>
    %40 = vector.broadcast %39 : vector<1x24x1xi1> to vector<1x24x128xi1>
    %41 = vector.broadcast %cst_21 : f32 to vector<1x24x128xf32>
    %42 = arith.select %40, %38, %41 : vector<1x24x128xi1>, vector<1x24x128xf32>
    %43 = arith.truncf %42 : vector<1x24x128xf32> to vector<1x24x128xbf16>
    %44 = arith.extf %5 : vector<1x24x128xbf16> to vector<1x24x128xf32>
    %45 = vector.shape_cast %13 : vector<128xf32> to vector<1x1x128xf32>
    %46 = vector.broadcast %45 : vector<1x1x128xf32> to vector<1x24x128xf32>
    %47 = arith.mulf %44, %46 : vector<1x24x128xf32>
    %48 = vector.shape_cast %15 : vector<128xf32> to vector<1x1x128xf32>
    %49 = vector.broadcast %48 : vector<1x1x128xf32> to vector<1x24x128xf32>
    %50 = arith.addf %47, %49 : vector<1x24x128xf32>
    %cst_22 = arith.constant 0.000000e+00 : f32
    %51 = vector.broadcast %cst_22 : f32 to vector<1x24x128xf32>
    %52 = arith.maximumf %50, %51 : vector<1x24x128xf32>
    %cst_23 = arith.constant 0.000000e+00 : f32
    %53 = vector.shape_cast %11 : vector<1x24x1xi1> to vector<1x24x1xi1>
    %54 = vector.broadcast %53 : vector<1x24x1xi1> to vector<1x24x128xi1>
    %55 = vector.broadcast %cst_23 : f32 to vector<1x24x128xf32>
    %56 = arith.select %54, %52, %55 : vector<1x24x128xi1>, vector<1x24x128xf32>
    %57 = arith.truncf %56 : vector<1x24x128xf32> to vector<1x24x128xbf16>
    %c0_i32 = arith.constant 0 : i32
    %58 = arith.cmpi sgt, %arg1, %c0_i32 : i32
    %cst_24 = arith.constant 0.000000e+00 : bf16
    %59 = vector.broadcast %cst_24 : bf16 to vector<1x24x128xbf16>
    %60 = arith.select %58, %43, %59 : vector<1x24x128xbf16>
    %c0_i32_25 = arith.constant 0 : i32
    %61 = arith.cmpi slt, %arg1, %c0_i32_25 : i32
    %cst_26 = arith.constant 0.000000e+00 : bf16
    %62 = vector.broadcast %cst_26 : bf16 to vector<1x24x128xbf16>
    %63 = arith.select %61, %57, %62 : vector<1x24x128xbf16>
    %64 = tpu.concatenate %60, %29, %63 in 0 : vector<1x24x128xbf16>, vector<16x24x128xbf16>, vector<1x24x128xbf16> -> vector<18x24x128xbf16>
    %cst_27 = arith.constant 0.000000e+00 : bf16
    %65 = vector.broadcast %cst_27 : bf16 to vector<18x1x128xbf16>
    %66 = vector.extract_strided_slice %64 {offsets = [0, 0, 0], sizes = [18, 23, 128], strides = [1, 1, 1]} : vector<18x24x128xbf16> to vector<18x23x128xbf16>
    %67 = tpu.concatenate %65, %66 in 1 : vector<18x1x128xbf16>, vector<18x23x128xbf16> -> vector<18x24x128xbf16>
    %68 = vector.extract_strided_slice %64 {offsets = [0, 1, 0], sizes = [18, 23, 128], strides = [1, 1, 1]} : vector<18x24x128xbf16> to vector<18x23x128xbf16>
    %69 = tpu.concatenate %68, %65 in 1 : vector<18x23x128xbf16>, vector<18x1x128xbf16> -> vector<18x24x128xbf16>
    %70 = vector.extract_strided_slice %67 {offsets = [0, 0, 0], sizes = [16, 24, 128], strides = [1, 1, 1]} : vector<18x24x128xbf16> to vector<16x24x128xbf16>
    %71 = vector.shape_cast %70 : vector<16x24x128xbf16> to vector<384x128xbf16>
    %c0_28 = arith.constant 0 : index
    %c0_29 = arith.constant 0 : index
    %c0_30 = arith.constant 0 : index
    %c0_31 = arith.constant 0 : index
    %72 = vector.load %arg7[%c0_28, %c0_29, %c0_30, %c0_31] : memref<3x3x128x128xbf16, #tpu.memory_space<vmem>>, vector<1x1x128x128xbf16>
    %73 = vector.shape_cast %72 : vector<1x1x128x128xbf16> to vector<128x128xbf16>
    %cst_32 = arith.constant dense<0.000000e+00> : vector<384x128xf32>
    %74 = tpu.matmul %71, %73, %cst_32 {dimension_numbers = #tpu.dot_dimension_numbers<[1], [0], [0], [1], [0, 0, 1, 1], [], []>} : vector<384x128xbf16>, vector<128x128xbf16>, vector<384x128xf32> -> vector<384x128xf32>
    %75 = vector.extract_strided_slice %64 {offsets = [0, 0, 0], sizes = [16, 24, 128], strides = [1, 1, 1]} : vector<18x24x128xbf16> to vector<16x24x128xbf16>
    %76 = vector.shape_cast %75 : vector<16x24x128xbf16> to vector<384x128xbf16>
    %c0_33 = arith.constant 0 : index
    %c1 = arith.constant 1 : index
    %c0_34 = arith.constant 0 : index
    %c0_35 = arith.constant 0 : index
    %77 = vector.load %arg7[%c0_33, %c1, %c0_34, %c0_35] : memref<3x3x128x128xbf16, #tpu.memory_space<vmem>>, vector<1x1x128x128xbf16>
    %78 = vector.shape_cast %77 : vector<1x1x128x128xbf16> to vector<128x128xbf16>
    %cst_36 = arith.constant dense<0.000000e+00> : vector<384x128xf32>
    %79 = tpu.matmul %76, %78, %cst_36 {dimension_numbers = #tpu.dot_dimension_numbers<[1], [0], [0], [1], [0, 0, 1, 1], [], []>} : vector<384x128xbf16>, vector<128x128xbf16>, vector<384x128xf32> -> vector<384x128xf32>
    %80 = arith.addf %74, %79 : vector<384x128xf32>
    %81 = vector.extract_strided_slice %69 {offsets = [0, 0, 0], sizes = [16, 24, 128], strides = [1, 1, 1]} : vector<18x24x128xbf16> to vector<16x24x128xbf16>
    %82 = vector.shape_cast %81 : vector<16x24x128xbf16> to vector<384x128xbf16>
    %c0_37 = arith.constant 0 : index
    %c2 = arith.constant 2 : index
    %c0_38 = arith.constant 0 : index
    %c0_39 = arith.constant 0 : index
    %83 = vector.load %arg7[%c0_37, %c2, %c0_38, %c0_39] : memref<3x3x128x128xbf16, #tpu.memory_space<vmem>>, vector<1x1x128x128xbf16>
    %84 = vector.shape_cast %83 : vector<1x1x128x128xbf16> to vector<128x128xbf16>
    %cst_40 = arith.constant dense<0.000000e+00> : vector<384x128xf32>
    %85 = tpu.matmul %82, %84, %cst_40 {dimension_numbers = #tpu.dot_dimension_numbers<[1], [0], [0], [1], [0, 0, 1, 1], [], []>} : vector<384x128xbf16>, vector<128x128xbf16>, vector<384x128xf32> -> vector<384x128xf32>
    %86 = arith.addf %80, %85 : vector<384x128xf32>
    %87 = vector.extract_strided_slice %67 {offsets = [1, 0, 0], sizes = [16, 24, 128], strides = [1, 1, 1]} : vector<18x24x128xbf16> to vector<16x24x128xbf16>
    %88 = vector.shape_cast %87 : vector<16x24x128xbf16> to vector<384x128xbf16>
    %c1_41 = arith.constant 1 : index
    %c0_42 = arith.constant 0 : index
    %c0_43 = arith.constant 0 : index
    %c0_44 = arith.constant 0 : index
    %89 = vector.load %arg7[%c1_41, %c0_42, %c0_43, %c0_44] : memref<3x3x128x128xbf16, #tpu.memory_space<vmem>>, vector<1x1x128x128xbf16>
    %90 = vector.shape_cast %89 : vector<1x1x128x128xbf16> to vector<128x128xbf16>
    %cst_45 = arith.constant dense<0.000000e+00> : vector<384x128xf32>
    %91 = tpu.matmul %88, %90, %cst_45 {dimension_numbers = #tpu.dot_dimension_numbers<[1], [0], [0], [1], [0, 0, 1, 1], [], []>} : vector<384x128xbf16>, vector<128x128xbf16>, vector<384x128xf32> -> vector<384x128xf32>
    %92 = arith.addf %86, %91 : vector<384x128xf32>
    %93 = vector.extract_strided_slice %64 {offsets = [1, 0, 0], sizes = [16, 24, 128], strides = [1, 1, 1]} : vector<18x24x128xbf16> to vector<16x24x128xbf16>
    %94 = vector.shape_cast %93 : vector<16x24x128xbf16> to vector<384x128xbf16>
    %c1_46 = arith.constant 1 : index
    %c1_47 = arith.constant 1 : index
    %c0_48 = arith.constant 0 : index
    %c0_49 = arith.constant 0 : index
    %95 = vector.load %arg7[%c1_46, %c1_47, %c0_48, %c0_49] : memref<3x3x128x128xbf16, #tpu.memory_space<vmem>>, vector<1x1x128x128xbf16>
    %96 = vector.shape_cast %95 : vector<1x1x128x128xbf16> to vector<128x128xbf16>
    %cst_50 = arith.constant dense<0.000000e+00> : vector<384x128xf32>
    %97 = tpu.matmul %94, %96, %cst_50 {dimension_numbers = #tpu.dot_dimension_numbers<[1], [0], [0], [1], [0, 0, 1, 1], [], []>} : vector<384x128xbf16>, vector<128x128xbf16>, vector<384x128xf32> -> vector<384x128xf32>
    %98 = arith.addf %92, %97 : vector<384x128xf32>
    %99 = vector.extract_strided_slice %69 {offsets = [1, 0, 0], sizes = [16, 24, 128], strides = [1, 1, 1]} : vector<18x24x128xbf16> to vector<16x24x128xbf16>
    %100 = vector.shape_cast %99 : vector<16x24x128xbf16> to vector<384x128xbf16>
    %c1_51 = arith.constant 1 : index
    %c2_52 = arith.constant 2 : index
    %c0_53 = arith.constant 0 : index
    %c0_54 = arith.constant 0 : index
    %101 = vector.load %arg7[%c1_51, %c2_52, %c0_53, %c0_54] : memref<3x3x128x128xbf16, #tpu.memory_space<vmem>>, vector<1x1x128x128xbf16>
    %102 = vector.shape_cast %101 : vector<1x1x128x128xbf16> to vector<128x128xbf16>
    %cst_55 = arith.constant dense<0.000000e+00> : vector<384x128xf32>
    %103 = tpu.matmul %100, %102, %cst_55 {dimension_numbers = #tpu.dot_dimension_numbers<[1], [0], [0], [1], [0, 0, 1, 1], [], []>} : vector<384x128xbf16>, vector<128x128xbf16>, vector<384x128xf32> -> vector<384x128xf32>
    %104 = arith.addf %98, %103 : vector<384x128xf32>
    %105 = vector.extract_strided_slice %67 {offsets = [2, 0, 0], sizes = [16, 24, 128], strides = [1, 1, 1]} : vector<18x24x128xbf16> to vector<16x24x128xbf16>
    %106 = vector.shape_cast %105 : vector<16x24x128xbf16> to vector<384x128xbf16>
    %c2_56 = arith.constant 2 : index
    %c0_57 = arith.constant 0 : index
    %c0_58 = arith.constant 0 : index
    %c0_59 = arith.constant 0 : index
    %107 = vector.load %arg7[%c2_56, %c0_57, %c0_58, %c0_59] : memref<3x3x128x128xbf16, #tpu.memory_space<vmem>>, vector<1x1x128x128xbf16>
    %108 = vector.shape_cast %107 : vector<1x1x128x128xbf16> to vector<128x128xbf16>
    %cst_60 = arith.constant dense<0.000000e+00> : vector<384x128xf32>
    %109 = tpu.matmul %106, %108, %cst_60 {dimension_numbers = #tpu.dot_dimension_numbers<[1], [0], [0], [1], [0, 0, 1, 1], [], []>} : vector<384x128xbf16>, vector<128x128xbf16>, vector<384x128xf32> -> vector<384x128xf32>
    %110 = arith.addf %104, %109 : vector<384x128xf32>
    %111 = vector.extract_strided_slice %64 {offsets = [2, 0, 0], sizes = [16, 24, 128], strides = [1, 1, 1]} : vector<18x24x128xbf16> to vector<16x24x128xbf16>
    %112 = vector.shape_cast %111 : vector<16x24x128xbf16> to vector<384x128xbf16>
    %c2_61 = arith.constant 2 : index
    %c1_62 = arith.constant 1 : index
    %c0_63 = arith.constant 0 : index
    %c0_64 = arith.constant 0 : index
    %113 = vector.load %arg7[%c2_61, %c1_62, %c0_63, %c0_64] : memref<3x3x128x128xbf16, #tpu.memory_space<vmem>>, vector<1x1x128x128xbf16>
    %114 = vector.shape_cast %113 : vector<1x1x128x128xbf16> to vector<128x128xbf16>
    %cst_65 = arith.constant dense<0.000000e+00> : vector<384x128xf32>
    %115 = tpu.matmul %112, %114, %cst_65 {dimension_numbers = #tpu.dot_dimension_numbers<[1], [0], [0], [1], [0, 0, 1, 1], [], []>} : vector<384x128xbf16>, vector<128x128xbf16>, vector<384x128xf32> -> vector<384x128xf32>
    %116 = arith.addf %110, %115 : vector<384x128xf32>
    %117 = vector.extract_strided_slice %69 {offsets = [2, 0, 0], sizes = [16, 24, 128], strides = [1, 1, 1]} : vector<18x24x128xbf16> to vector<16x24x128xbf16>
    %118 = vector.shape_cast %117 : vector<16x24x128xbf16> to vector<384x128xbf16>
    %c2_66 = arith.constant 2 : index
    %c2_67 = arith.constant 2 : index
    %c0_68 = arith.constant 0 : index
    %c0_69 = arith.constant 0 : index
    %119 = vector.load %arg7[%c2_66, %c2_67, %c0_68, %c0_69] : memref<3x3x128x128xbf16, #tpu.memory_space<vmem>>, vector<1x1x128x128xbf16>
    %120 = vector.shape_cast %119 : vector<1x1x128x128xbf16> to vector<128x128xbf16>
    %cst_70 = arith.constant dense<0.000000e+00> : vector<384x128xf32>
    %121 = tpu.matmul %118, %120, %cst_70 {dimension_numbers = #tpu.dot_dimension_numbers<[1], [0], [0], [1], [0, 0, 1, 1], [], []>} : vector<384x128xbf16>, vector<128x128xbf16>, vector<384x128xf32> -> vector<384x128xf32>
    %122 = arith.addf %116, %121 : vector<384x128xf32>
    %123 = vector.shape_cast %122 : vector<384x128xf32> to vector<16x24x128xf32>
    %cst_71 = arith.constant 0.000000e+00 : f32
    %124 = vector.shape_cast %11 : vector<1x24x1xi1> to vector<1x24x1xi1>
    %125 = vector.broadcast %124 : vector<1x24x1xi1> to vector<16x24x128xi1>
    %126 = vector.broadcast %cst_71 : f32 to vector<16x24x128xf32>
    %127 = arith.select %125, %123, %126 : vector<16x24x128xi1>, vector<16x24x128xf32>
    %128 = vector.shape_cast %127 : vector<16x24x128xf32> to vector<384x128xf32>
    %cst_72 = arith.constant dense<0.000000e+00> : vector<128xf32>
    %129 = vector.multi_reduction <add>, %128, %cst_72 [0] : vector<384x128xf32> to vector<128xf32>
    %130 = vector.shape_cast %129 : vector<128xf32> to vector<1x128xf32>
    %131 = arith.mulf %128, %128 : vector<384x128xf32>
    %cst_73 = arith.constant dense<0.000000e+00> : vector<128xf32>
    %132 = vector.multi_reduction <add>, %131, %cst_73 [0] : vector<384x128xf32> to vector<128xf32>
    %133 = vector.shape_cast %132 : vector<128xf32> to vector<1x128xf32>
    %134 = tpu.concatenate %130, %133 in 0 : vector<1x128xf32>, vector<1x128xf32> -> vector<2x128xf32>
    %c0_74 = arith.constant 0 : index
    %c0_75 = arith.constant 0 : index
    %c0_76 = arith.constant 0 : index
    %c0_77 = arith.constant 0 : index
    %135 = vector.load %arg9[%c0_74, %c0_75, %c0_76, %c0_77] : memref<1x1x2x128xf32, #tpu.memory_space<vmem>>, vector<1x1x2x128xf32>
    %136 = vector.shape_cast %135 : vector<1x1x2x128xf32> to vector<2x128xf32>
    %137 = vector.shape_cast %134 : vector<2x128xf32> to vector<1x1x2x128xf32>
    tpu.vector_store %arg9[%c0_74, %c0_75, %c0_76, %c0_77], %137 {strides = array<i32>} : memref<1x1x2x128xf32, #tpu.memory_space<vmem>>, vector<1x1x2x128xf32>,
    %138 = vector.extract_strided_slice %127 {offsets = [0, 1, 0], sizes = [16, 16, 128], strides = [1, 1, 1]} : vector<16x24x128xf32> to vector<16x16x128xf32>
    %139 = arith.truncf %138 : vector<16x16x128xf32> to vector<16x16x128xbf16>
    %c0_78 = arith.constant 0 : index
    %c0_79 = arith.constant 0 : index
    %c0_80 = arith.constant 0 : index
    %c0_81 = arith.constant 0 : index
    %140 = vector.load %arg8[%c0_78, %c0_79, %c0_80, %c0_81] : memref<1x16x16x128xbf16, #tpu.memory_space<vmem>>, vector<1x16x16x128xbf16>
    %141 = vector.shape_cast %140 : vector<1x16x16x128xbf16> to vector<16x16x128xbf16>
    %142 = vector.shape_cast %139 : vector<16x16x128xbf16> to vector<1x16x16x128xbf16>
    tpu.vector_store %arg8[%c0_78, %c0_79, %c0_80, %c0_81], %142 {strides = array<i32>} : memref<1x16x16x128xbf16, #tpu.memory_space<vmem>>, vector<1x16x16x128xbf16>,
    return
  }
  func.func @transform_0(%arg0: i32, %arg1: i32) -> (i32, i32, i32, i32) {
    %c0_i32 = arith.constant 0 : i32
    %c0_i32_0 = arith.constant 0 : i32
    %c0_i32_1 = arith.constant 0 : i32
    return %arg0, %arg1, %c0_i32, %c0_i32_0 : i32, i32, i32, i32
  }
  func.func @transform_1(%arg0: i32, %arg1: i32) -> (i32, i32, i32, i32) {
    %c16_i32 = arith.constant 16 : i32
    %0 = arith.muli %arg1, %c16_i32 : i32
    %c1_i32 = arith.constant 1 : i32
    %1 = arith.subi %0, %c1_i32 : i32
    %c0_i32 = arith.constant 0 : i32
    %2 = arith.maxsi %1, %c0_i32 : i32
    %c0_i32_0 = arith.constant 0 : i32
    %c0_i32_1 = arith.constant 0 : i32
    %c0_i32_2 = arith.constant 0 : i32
    return %arg0, %2, %c0_i32_0, %c0_i32_1 : i32, i32, i32, i32
  }
  func.func @transform_2(%arg0: i32, %arg1: i32) -> (i32, i32, i32, i32) {
    %c16_i32 = arith.constant 16 : i32
    %0 = arith.muli %arg1, %c16_i32 : i32
    %c16_i32_0 = arith.constant 16 : i32
    %1 = arith.addi %0, %c16_i32_0 : i32
    %c15_i32 = arith.constant 15 : i32
    %2 = arith.minsi %1, %c15_i32 : i32
    %c0_i32 = arith.constant 0 : i32
    %c0_i32_1 = arith.constant 0 : i32
    %c0_i32_2 = arith.constant 0 : i32
    return %arg0, %2, %c0_i32, %c0_i32_1 : i32, i32, i32, i32
  }
  func.func @transform_3(%arg0: i32, %arg1: i32) -> (i32, i32, i32, i32) {
    %c0_i32 = arith.constant 0 : i32
    %c0_i32_0 = arith.constant 0 : i32
    %c0_i32_1 = arith.constant 0 : i32
    %c0_i32_2 = arith.constant 0 : i32
    %c0_i32_3 = arith.constant 0 : i32
    return %c0_i32, %c0_i32_0, %c0_i32_1, %c0_i32_2 : i32, i32, i32, i32
  }
  func.func @transform_4(%arg0: i32, %arg1: i32) -> (i32, i32, i32, i32) {
    %c0_i32 = arith.constant 0 : i32
    %c0_i32_0 = arith.constant 0 : i32
    %c0_i32_1 = arith.constant 0 : i32
    %c0_i32_2 = arith.constant 0 : i32
    %c0_i32_3 = arith.constant 0 : i32
    return %c0_i32, %c0_i32_0, %c0_i32_1, %c0_i32_2 : i32, i32, i32, i32
  }
  func.func @transform_5(%arg0: i32, %arg1: i32) -> (i32, i32, i32, i32) {
    %c0_i32 = arith.constant 0 : i32
    %c0_i32_0 = arith.constant 0 : i32
    %c0_i32_1 = arith.constant 0 : i32
    %c0_i32_2 = arith.constant 0 : i32
    %c0_i32_3 = arith.constant 0 : i32
    return %c0_i32, %c0_i32_0, %c0_i32_1, %c0_i32_2 : i32, i32, i32, i32
  }
  func.func @transform_6(%arg0: i32, %arg1: i32) -> (i32, i32, i32, i32) {
    %c0_i32 = arith.constant 0 : i32
    %c0_i32_0 = arith.constant 0 : i32
    %c0_i32_1 = arith.constant 0 : i32
    return %arg0, %arg1, %c0_i32, %c0_i32_0 : i32, i32, i32, i32
  }
  func.func @transform_7(%arg0: i32, %arg1: i32) -> (i32, i32, i32, i32) {
    %c0_i32 = arith.constant 0 : i32
    %c0_i32_0 = arith.constant 0 : i32
    %c0_i32_1 = arith.constant 0 : i32
    return %arg0, %arg1, %c0_i32, %c0_i32_0 : i32, i32, i32, i32
  }
}

</mosaic_0001>

<llo_original>
// kernel: basic_block_forward.5
$region0: #{basic_block_forward.5}
  #allocation0 [shape = 'u32[]', space=smem, size = 0x4, offset = 0x4, fixed_abs, tag = 'smem constant byte address 0x4 - core index']
  #allocation1 [shape = 'u32[144,128]{1,0:T(1,128)}', space=vmem, size = 0x12000, scoped, tag = 'internal scratch']
  %s0 = inlined_call_operand.vmem [shape: bf16[2,16,16,128], index: 0, kind: input, shape index: {}]
  %s1 = inlined_call_operand.vmem [shape: bf16[2,16,24,128], index: 1, kind: input, shape index: {}]
  %s2 = inlined_call_operand.vmem [shape: f32[1,1,1,128], index: 2, kind: input, shape index: {}]
  %s3 = inlined_call_operand.vmem [shape: f32[1,1,1,128], index: 3, kind: input, shape index: {}]
  %s4 = inlined_call_operand.vmem [shape: f32[2,16,16,128], index: 4, kind: output, shape index: {}]
  %s5 = sld [smem:[#allocation0]]
  $region49: #{basic_block_forward.5} parent=0
    _
  %s7 = ssub.s32 1, %s5
  %s8 = scalar_select 0, %s7, %s5
  loop: start=0, step=1, limit=4
  $region2: #{basic_block_forward.5} parent=0 // loop_pre_header
    _
  $region3: #{basic_block_forward.5} parent=0 // loop_header
    %s10 = sphi 0, %s14
    %p11 = scmp.ge.s32.totalorder %s10, 4
    %s17 = sphi 0, %s29
    %s18 = sphi 0, %s25
    %s19 = sphi 0, %s17
    %s20 = sphi 0, %s18
    %s21 = sphi 0, %s19
    %s22 = sphi 0, %s20
    %s34 = sphi 0, %s36
    %s37 = sphi 0, %s34
    %s38 = sphi 0, %s37
    %s54 = sphi 0, %s38
    %s62 = sphi 0, %s64
    %s65 = sphi 0, %s62
    %s66 = sphi 0, %s65
    %s82 = sphi 0, %s66
    %s86 = sphi 0, %s86
    %s88 = sphi 0, %s86
    %s89 = sphi 0, %s88
    %s103 = sphi 0, %s89
    %s107 = sphi 0, %s107
    %s109 = sphi 0, %s107
    %s110 = sphi 0, %s109
    %s124 = sphi 0, %s110
    %s132 = sphi 0, %s134
    %s135 = sphi 0, %s132
    %s136 = sphi 0, %s135
    %s152 = sphi 0, %s136
  $region4: #{basic_block_forward.5} parent=0 // loop_header_branch
    %13 = sbr.rel (%p11) target = $region8
  $region5: #{basic_block_forward.5} parent=0 // loop_body
    %s15 = ssub.s32 %s10, 1
    %s16 = ssub.s32 %s10, 2
    %s23 = sadd.s32 1, %s18
    %p24 = scmp.ge.s32.totalorder %s23, 1
    %s25 = scalar_select %p24, 0, %s23
    %s26 = sadd.s32 1, %s17
    %s27 = scalar_select %p24, %s26, %s17
    %p28 = scmp.ge.s32.totalorder %s27, 2
    %s29 = scalar_select %p28, 0, %s27
    %s30 = ssub.s32 %s17, %s29
    %s31 = ssub.s32 %s18, %s25
    %s32 = sor.u32 %s30, %s31
    %p33 = scmp.eq.s32.totalorder %s32, 0
    %s35 = sadd.s32 %s34, 1
    %s36 = scalar_select %p33, %s34, %s35
    %p39 = pneg %p33
    %p40 = scmp.eq.s32.totalorder %s10, 1
    %p41 = por %p39, %p40
    %p42 = scmp.ne.s32.totalorder %s34, %s37
    %p43 = scmp.eq.s32.totalorder %s10, 0
    %p44 = por %p42, %p43
    %p45 = scmp.ne.s32.totalorder %s34, %s37
    %p46 = scmp.eq.s32.totalorder %s15, 1
    %p47 = por %p45, %p46
    %p48 = scmp.ne.s32.totalorder %s37, %s38
    %p49 = scmp.eq.s32.totalorder %s15, 0
    %p50 = por %p48, %p49
    %p51 = scmp.ne.s32.totalorder %s37, %s38
    %p52 = scmp.eq.s32.totalorder %s16, 1
    %p53 = por %p51, %p52
    %p55 = scmp.ne.s32.totalorder %s38, %s54
    %p56 = scmp.eq.s32.totalorder %s16, 0
    %p57 = por %p55, %p56
    %s58 = ssub.s32 %s17, %s29
    %s59 = ssub.s32 %s18, %s25
    %s60 = sor.u32 %s58, %s59
    %p61 = scmp.eq.s32.totalorder %s60, 0
    %s63 = sadd.s32 %s62, 1
    %s64 = scalar_select %p61, %s62, %s63
    %p67 = pneg %p61
    %p68 = scmp.eq.s32.totalorder %s10, 1
    %p69 = por %p67, %p68
    %p70 = scmp.ne.s32.totalorder %s62, %s65
    %p71 = scmp.eq.s32.totalorder %s10, 0
    %p72 = por %p70, %p71
    %p73 = scmp.ne.s32.totalorder %s62, %s65
    %p74 = scmp.eq.s32.totalorder %s15, 1
    %p75 = por %p73, %p74
    %p76 = scmp.ne.s32.totalorder %s65, %s66
    %p77 = scmp.eq.s32.totalorder %s15, 0
    %p78 = por %p76, %p77
    %p79 = scmp.ne.s32.totalorder %s65, %s66
    %p80 = scmp.eq.s32.totalorder %s16, 1
    %p81 = por %p79, %p80
    %p83 = scmp.ne.s32.totalorder %s66, %s82
    %p84 = scmp.eq.s32.totalorder %s16, 0
    %p85 = por %p83, %p84
    %s87 = sadd.s32 %s86, 1
    %p90 = scmp.eq.s32.totalorder %s10, 1
    %p91 = scmp.ne.s32.totalorder %s86, %s88
    %p92 = scmp.eq.s32.totalorder %s10, 0
    %p93 = por %p91, %p92
    %p94 = scmp.ne.s32.totalorder %s86, %s88
    %p95 = scmp.eq.s32.totalorder %s15, 1
    %p96 = por %p94, %p95
    %p97 = scmp.ne.s32.totalorder %s88, %s89
    %p98 = scmp.eq.s32.totalorder %s15, 0
    %p99 = por %p97, %p98
    %p100 = scmp.ne.s32.totalorder %s88, %s89
    %p101 = scmp.eq.s32.totalorder %s16, 1
    %p102 = por %p100, %p101
    %p104 = scmp.ne.s32.totalorder %s89, %s103
    %p105 = scmp.eq.s32.totalorder %s16, 0
    %p106 = por %p104, %p105
    %s108 = sadd.s32 %s107, 1
    %p111 = scmp.eq.s32.totalorder %s10, 1
    %p112 = scmp.ne.s32.totalorder %s107, %s109
    %p113 = scmp.eq.s32.totalorder %s10, 0
    %p114 = por %p112, %p113
    %p115 = scmp.ne.s32.totalorder %s107, %s109
    %p116 = scmp.eq.s32.totalorder %s15, 1
    %p117 = por %p115, %p116
    %p118 = scmp.ne.s32.totalorder %s109, %s110
    %p119 = scmp.eq.s32.totalorder %s15, 0
    %p120 = por %p118, %p119
    %p121 = scmp.ne.s32.totalorder %s109, %s110
    %p122 = scmp.eq.s32.totalorder %s16, 1
    %p123 = por %p121, %p122
    %p125 = scmp.ne.s32.totalorder %s110, %s124
    %p126 = scmp.eq.s32.totalorder %s16, 0
    %p127 = por %p125, %p126
    %s128 = ssub.s32 %s17, %s29
    %s129 = ssub.s32 %s18, %s25
    %s130 = sor.u32 %s128, %s129
    %p131 = scmp.eq.s32.totalorder %s130, 0
    %s133 = sadd.s32 %s132, 1
    %s134 = scalar_select %p131, %s132, %s133
    %p137 = pneg %p131
    %p138 = scmp.eq.s32.totalorder %s10, 1
    %p139 = por %p137, %p138
    %p140 = scmp.ne.s32.totalorder %s132, %s135
    %p141 = scmp.eq.s32.totalorder %s10, 0
    %p142 = por %p140, %p141
    %p143 = scmp.ne.s32.totalorder %s132, %s135
    %p144 = scmp.eq.s32.totalorder %s15, 1
    %p145 = por %p143, %p144
    %p146 = scmp.ne.s32.totalorder %s135, %s136
    %p147 = scmp.eq.s32.totalorder %s15, 0
    %p148 = por %p146, %p147
    %p149 = scmp.ne.s32.totalorder %s135, %s136
    %p150 = scmp.eq.s32.totalorder %s16, 1
    %p151 = por %p149, %p150
    %p153 = scmp.ne.s32.totalorder %s136, %s152
    %p154 = scmp.eq.s32.totalorder %s16, 0
    %p155 = por %p153, %p154
    %p156 = scmp.le.s32.totalorder 1, %s10
    %p157 = scmp.lt.s32.totalorder %s10, 3
    %p158 = pnand %p156, %p157
    %p159 = pneg %p158
    // Predicated region
    $region9: #{basic_block_forward.5} parent=5 // pred_check
      _
    $region10: #{basic_block_forward.5} parent=5 // pred_check_branch
      %161 = sbr.rel (%p158) target = $region12
    $region11: #{basic_block_forward.5} parent=5 // pred_region
      %s162 = ssub.s32 %s10, 1
      // Predicated region
      $region13: #{basic_block_forward.5} parent=11 // pred_check
        %p163 = pneg %p99
      $region14: #{basic_block_forward.5} parent=11 // pred_check_branch
        %165 = sbr.rel (%p163) target = $region16
      $region15: #{basic_block_forward.5} parent=11 // pred_region
        _
      $region16: #{basic_block_forward.5} parent=11 // pred_fallthru
        _
      // Predicated region
      $region17: #{basic_block_forward.5} parent=11 // pred_check
        %p166 = pneg %p120
      $region18: #{basic_block_forward.5} parent=11 // pred_check_branch
        %168 = sbr.rel (%p166) target = $region20
      $region19: #{basic_block_forward.5} parent=11 // pred_region
        _
      $region20: #{basic_block_forward.5} parent=11 // pred_fallthru
        _
    $region12: #{basic_block_forward.5} parent=5 // pred_fallthru
      _
    %p169 = scmp.lt.s32.totalorder %s10, 2
    // Predicated region
    $region21: #{basic_block_forward.5} parent=5 // pred_check
      %p170 = pneg %p169
    $region22: #{basic_block_forward.5} parent=5 // pred_check_branch
      %172 = sbr.rel (%p170) target = $region24
    $region23: #{basic_block_forward.5} parent=5 // pred_region
      // Predicated region
      $region25: #{basic_block_forward.5} parent=23 // pred_check
        %p173 = pneg %p44
      $region26: #{basic_block_forward.5} parent=23 // pred_check_branch
        %175 = sbr.rel (%p173) target = $region28
      $region27: #{basic_block_forward.5} parent=23 // pred_region
        %s176 = smul.u32 16, %s18
        %p177 = scmp.lt.s32.totalorder %s17, 1
        %s178 = scalar_select %p177, %s17, 1
        %p179 = scmp.lt.s32.totalorder %s176, 15
        %s180 = scalar_select %p179, %s176, 15
        %s181 = smul.addr %s180, 2
        %s182 = smul.addr %s178, 32
        %s183 = sadd.s32 %s181, %s182
        %s184 = smul.addr %s183, 4
        %s185 = scalar_lea.vmem %s0, %s184
        %s186 = smul.u32 16, %s18
      $region28: #{basic_block_forward.5} parent=23 // pred_fallthru
        _
      // Predicated region
      $region29: #{basic_block_forward.5} parent=23 // pred_check
        %p187 = pneg %p72
      $region30: #{basic_block_forward.5} parent=23 // pred_check_branch
        %189 = sbr.rel (%p187) target = $region32
      $region31: #{basic_block_forward.5} parent=23 // pred_region
        %s190 = smul.u32 16, %s18
        %p191 = scmp.lt.s32.totalorder %s17, 1
        %s192 = scalar_select %p191, %s17, 1
        %p193 = scmp.lt.s32.totalorder %s190, 15
        %s194 = scalar_select %p193, %s190, 15
        %s195 = smul.addr %s194, 3
        %s196 = smul.addr %s192, 48
        %s197 = sadd.s32 %s195, %s196
        %s198 = smul.addr %s197, 4
        %s199 = scalar_lea.vmem %s1, %s198
        %s200 = smul.u32 16, %s18
      $region32: #{basic_block_forward.5} parent=23 // pred_fallthru
        _
    $region24: #{basic_block_forward.5} parent=5 // pred_fallthru
      _
    %p201 = scmp.le.s32.totalorder 1, %s10
    %p202 = scmp.lt.s32.totalorder %s10, 3
    %p203 = pnand %p201, %p202
    %p204 = pneg %p203
    // Predicated region
    $region33: #{basic_block_forward.5} parent=5 // pred_check
      _
    $region34: #{basic_block_forward.5} parent=5 // pred_check_branch
      %206 = sbr.rel (%p203) target = $region36
    $region35: #{basic_block_forward.5} parent=5 // pred_region
      %s207 = ssub.s32 %s10, 1
      %s208 = smul.u32 16, %s20
      %p209 = scmp.lt.s32.totalorder %s19, 1
      %s210 = scalar_select %p209, %s19, 1
      %p211 = scmp.lt.s32.totalorder %s208, 15
      %s212 = scalar_select %p211, %s208, 15
      %s213 = smul.addr %s212, 2
      %s214 = smul.addr %s210, 32
      %s215 = sadd.s32 %s213, %s214
      %s216 = smul.addr %s215, 4
      %s217 = scalar_lea.vmem %s0, %s216
      %p218 = pneg %p50
      %p219 = pneg %p47
      %s220 = smul.u32 16, %s20
      %p221 = scmp.lt.s32.totalorder %s19, 1
      %s222 = scalar_select %p221, %s19, 1
      %p223 = scmp.lt.s32.totalorder %s220, 15
      %s224 = scalar_select %p223, %s220, 15
      %s225 = smul.addr %s224, 3
      %s226 = smul.addr %s222, 48
      %s227 = sadd.s32 %s225, %s226
      %s228 = smul.addr %s227, 4
      %s229 = scalar_lea.vmem %s1, %s228
      %p230 = pneg %p78
      %p231 = pneg %p75
      %p232 = pneg %p99
      %p233 = pneg %p96
      %p234 = pneg %p120
      %p235 = pneg %p117
      %p236 = pneg %p148
      %p237 = pneg %p145
      %s238 = smul.u32 16, %s20
      %p239 = scmp.lt.s32.totalorder %s19, 1
      %s240 = scalar_select %p239, %s19, 1
      %p241 = scmp.lt.s32.totalorder %s238, 15
      %s242 = scalar_select %p241, %s238, 15
      %s243 = smul.addr %s242, 2
      %s244 = smul.addr %s240, 32
      %s245 = sadd.s32 %s243, %s244
      %s246 = smul.addr %s245, 8
      %s247 = scalar_lea.vmem %s4, %s246
      %s248 = smul.u32 16, %s20
      %p249 = scmp.lt.s32.totalorder %s19, 1
      %s250 = scalar_select %p249, %s19, 1
      %p251 = scmp.lt.s32.totalorder %s248, 15
      %s252 = scalar_select %p251, %s248, 15
      %s253 = smul.addr %s252, 2
      %s254 = smul.addr %s250, 32
      %s255 = sadd.s32 %s253, %s254
      %s256 = smul.addr %s255, 4
      %s257 = scalar_lea.vmem %s0, %s256
      %s258 = smul.u32 16, %s20
      %s259 = smul.u32 16, %s20
      %p260 = scmp.lt.s32.totalorder %s19, 1
      %s261 = scalar_select %p260, %s19, 1
      %p262 = scmp.lt.s32.totalorder %s259, 15
      %s263 = scalar_select %p262, %s259, 15
      %s264 = smul.addr %s263, 3
      %s265 = smul.addr %s261, 48
      %s266 = sadd.s32 %s264, %s265
      %s267 = smul.addr %s266, 4
      %s268 = scalar_lea.vmem %s1, %s267
      %s269 = smul.u32 16, %s20
      %s270 = smul.u32 16, %s20
      %p271 = scmp.lt.s32.totalorder %s19, 1
      %s272 = scalar_select %p271, %s19, 1
      %p273 = scmp.lt.s32.totalorder %s270, 15
      %s274 = scalar_select %p273, %s270, 15
      %s275 = smul.addr %s274, 2
      %s276 = smul.addr %s272, 32
      %s277 = sadd.s32 %s275, %s276
      %s278 = smul.addr %s277, 8
      %s279 = scalar_lea.vmem %s4, %s278
      %s280 = smul.u32 16, %s20
      %v281 = vld [vmem:[%s257] sm:$0xf]
      %v282 = vld [vmem:[%s257 + $0x4] sm:$0xf]
      %v283 = vld [vmem:[%s257 + $0x8] sm:$0xf]
      %v284 = vld [vmem:[%s257 + $0xc] sm:$0xf]
      %v285 = vld [vmem:[%s257 + $0x10] sm:$0xf]
      %v286 = vld [vmem:[%s257 + $0x14] sm:$0xf]
      %v287 = vld [vmem:[%s257 + $0x18] sm:$0xf]
      %v288 = vld [vmem:[%s257 + $0x1c] sm:$0xf]
      %v289 = vld [vmem:[%s257 + $0x20] sm:$0xf]
      %v290 = vld [vmem:[%s257 + $0x24] sm:$0xf]
      %v291 = vld [vmem:[%s257 + $0x28] sm:$0xf]
      %v292 = vld [vmem:[%s257 + $0x2c] sm:$0xf]
      %v293 = vld [vmem:[%s257 + $0x30] sm:$0xf]
      %v294 = vld [vmem:[%s257 + $0x34] sm:$0xf]
      %v295 = vld [vmem:[%s257 + $0x38] sm:$0xf]
      %v296 = vld [vmem:[%s257 + $0x3c] sm:$0xf]
      %v297 = vld [vmem:[%s257 + $0x40] sm:$0xf]
      %v298 = vld [vmem:[%s257 + $0x44] sm:$0xf]
      %v299 = vld [vmem:[%s257 + $0x48] sm:$0xf]
      %v300 = vld [vmem:[%s257 + $0x4c] sm:$0xf]
      %v301 = vld [vmem:[%s257 + $0x50] sm:$0xf]
      %v302 = vld [vmem:[%s257 + $0x54] sm:$0xf]
      %v303 = vld [vmem:[%s257 + $0x58] sm:$0xf]
      %v304 = vld [vmem:[%s257 + $0x5c] sm:$0xf]
      %v305 = vld [vmem:[%s257 + $0x60] sm:$0xf]
      %v306 = vld [vmem:[%s257 + $0x64] sm:$0xf]
      %v307 = vld [vmem:[%s257 + $0x68] sm:$0xf]
      %v308 = vld [vmem:[%s257 + $0x6c] sm:$0xf]
      %v309 = vld [vmem:[%s257 + $0x70] sm:$0xf]
      %v310 = vld [vmem:[%s257 + $0x74] sm:$0xf]
      %v311 = vld [vmem:[%s257 + $0x78] sm:$0xf]
      %v312 = vld [vmem:[%s257 + $0x7c] sm:$0xf]
      %v313 = vunpack.c.l.bf16 %v281
      %v314 = vunpack.c.l.bf16 %v282
      %v315 = vunpack.c.l.bf16 %v283
      %v316 = vunpack.c.l.bf16 %v284
      %v317 = vunpack.c.l.bf16 %v285
      %v318 = vunpack.c.l.bf16 %v286
      %v319 = vunpack.c.l.bf16 %v287
      %v320 = vunpack.c.l.bf16 %v288
      %v321 = vunpack.c.l.bf16 %v289
      %v322 = vunpack.c.l.bf16 %v290
      %v323 = vunpack.c.l.bf16 %v291
      %v324 = vunpack.c.l.bf16 %v292
      %v325 = vunpack.c.l.bf16 %v293
      %v326 = vunpack.c.l.bf16 %v294
      %v327 = vunpack.c.l.bf16 %v295
      %v328 = vunpack.c.l.bf16 %v296
      %v329 = vunpack.c.l.bf16 %v297
      %v330 = vunpack.c.l.bf16 %v298
      %v331 = vunpack.c.l.bf16 %v299
      %v332 = vunpack.c.l.bf16 %v300
      %v333 = vunpack.c.l.bf16 %v301
      %v334 = vunpack.c.l.bf16 %v302
      %v335 = vunpack.c.l.bf16 %v303
      %v336 = vunpack.c.l.bf16 %v304
      %v337 = vunpack.c.l.bf16 %v305
      %v338 = vunpack.c.l.bf16 %v306
      %v339 = vunpack.c.l.bf16 %v307
      %v340 = vunpack.c.l.bf16 %v308
      %v341 = vunpack.c.l.bf16 %v309
      %v342 = vunpack.c.l.bf16 %v310
      %v343 = vunpack.c.l.bf16 %v311
      %v344 = vunpack.c.l.bf16 %v312
      %v345 = vld [vmem:[%s268] sm:$0xf]
      %v346 = vld [vmem:[%s268 + $0x4] sm:$0xf]
      %v347 = vld [vmem:[%s268 + $0x8] sm:$0xf]
      %v348 = vld [vmem:[%s268 + $0xc] sm:$0xf]
      %v349 = vld [vmem:[%s268 + $0x10] sm:$0xf]
      %v350 = vld [vmem:[%s268 + $0x14] sm:$0xf]
      %v351 = vld [vmem:[%s268 + $0x18] sm:$0xf]
      %v352 = vld [vmem:[%s268 + $0x1c] sm:$0xf]
      %v353 = vld [vmem:[%s268 + $0x20] sm:$0xf]
      %v354 = vld [vmem:[%s268 + $0x24] sm:$0xf]
      %v355 = vld [vmem:[%s268 + $0x28] sm:$0xf]
      %v356 = vld [vmem:[%s268 + $0x2c] sm:$0xf]
      %v357 = vld [vmem:[%s268 + $0x30] sm:$0xf]
      %v358 = vld [vmem:[%s268 + $0x34] sm:$0xf]
      %v359 = vld [vmem:[%s268 + $0x38] sm:$0xf]
      %v360 = vld [vmem:[%s268 + $0x3c] sm:$0xf]
      %v361 = vld [vmem:[%s268 + $0x40] sm:$0xf]
      %v362 = vld [vmem:[%s268 + $0x44] sm:$0xf]
      %v363 = vld [vmem:[%s268 + $0x48] sm:$0xf]
      %v364 = vld [vmem:[%s268 + $0x4c] sm:$0xf]
      %v365 = vld [vmem:[%s268 + $0x50] sm:$0xf]
      %v366 = vld [vmem:[%s268 + $0x54] sm:$0xf]
      %v367 = vld [vmem:[%s268 + $0x58] sm:$0xf]
      %v368 = vld [vmem:[%s268 + $0x5c] sm:$0xf]
      %v369 = vld [vmem:[%s268 + $0x60] sm:$0xf]
      %v370 = vld [vmem:[%s268 + $0x64] sm:$0xf]
      %v371 = vld [vmem:[%s268 + $0x68] sm:$0xf]
      %v372 = vld [vmem:[%s268 + $0x6c] sm:$0xf]
      %v373 = vld [vmem:[%s268 + $0x70] sm:$0xf]
      %v374 = vld [vmem:[%s268 + $0x74] sm:$0xf]
      %v375 = vld [vmem:[%s268 + $0x78] sm:$0xf]
      %v376 = vld [vmem:[%s268 + $0x7c] sm:$0xf]
      %v377 = vld [vmem:[%s268 + $0x80] sm:$0xf]
      %v378 = vld [vmem:[%s268 + $0x84] sm:$0xf]
      %v379 = vld [vmem:[%s268 + $0x88] sm:$0xf]
      %v380 = vld [vmem:[%s268 + $0x8c] sm:$0xf]
      %v381 = vld [vmem:[%s268 + $0x90] sm:$0xf]
      %v382 = vld [vmem:[%s268 + $0x94] sm:$0xf]
      %v383 = vld [vmem:[%s268 + $0x98] sm:$0xf]
      %v384 = vld [vmem:[%s268 + $0x9c] sm:$0xf]
      %v385 = vld [vmem:[%s268 + $0xa0] sm:$0xf]
      %v386 = vld [vmem:[%s268 + $0xa4] sm:$0xf]
      %v387 = vld [vmem:[%s268 + $0xa8] sm:$0xf]
      %v388 = vld [vmem:[%s268 + $0xac] sm:$0xf]
      %v389 = vld [vmem:[%s268 + $0xb0] sm:$0xf]
      %v390 = vld [vmem:[%s268 + $0xb4] sm:$0xf]
      %v391 = vld [vmem:[%s268 + $0xb8] sm:$0xf]
      %v392 = vld [vmem:[%s268 + $0xbc] sm:$0xf]
      %v393 = vunpack.c.l.bf16 %v345
      %v394 = vunpack.c.l.bf16 %v346
      %v395 = vunpack.c.l.bf16 %v347
      %v396 = vunpack.c.l.bf16 %v348
      %v397 = vunpack.c.l.bf16 %v349
      %v398 = vunpack.c.l.bf16 %v350
      %v399 = vunpack.c.l.bf16 %v351
      %v400 = vunpack.c.l.bf16 %v352
      %v401 = vunpack.c.l.bf16 %v353
      %v402 = vunpack.c.l.bf16 %v354
      %v403 = vunpack.c.l.bf16 %v355
      %v404 = vunpack.c.l.bf16 %v356
      %v405 = vunpack.c.l.bf16 %v357
      %v406 = vunpack.c.l.bf16 %v358
      %v407 = vunpack.c.l.bf16 %v359
      %v408 = vunpack.c.l.bf16 %v360
      %v409 = vunpack.c.l.bf16 %v361
      %v410 = vunpack.c.l.bf16 %v362
      %v411 = vunpack.c.l.bf16 %v363
      %v412 = vunpack.c.l.bf16 %v364
      %v413 = vunpack.c.l.bf16 %v365
      %v414 = vunpack.c.l.bf16 %v366
      %v415 = vunpack.c.l.bf16 %v367
      %v416 = vunpack.c.l.bf16 %v368
      %v417 = vunpack.c.l.bf16 %v369
      %v418 = vunpack.c.l.bf16 %v370
      %v419 = vunpack.c.l.bf16 %v371
      %v420 = vunpack.c.l.bf16 %v372
      %v421 = vunpack.c.l.bf16 %v373
      %v422 = vunpack.c.l.bf16 %v374
      %v423 = vunpack.c.l.bf16 %v375
      %v424 = vunpack.c.l.bf16 %v376
      %v425 = vunpack.c.l.bf16 %v377
      %v426 = vunpack.c.l.bf16 %v378
      %v427 = vunpack.c.l.bf16 %v379
      %v428 = vunpack.c.l.bf16 %v380
      %v429 = vunpack.c.l.bf16 %v381
      %v430 = vunpack.c.l.bf16 %v382
      %v431 = vunpack.c.l.bf16 %v383
      %v432 = vunpack.c.l.bf16 %v384
      %v433 = vunpack.c.l.bf16 %v385
      %v434 = vunpack.c.l.bf16 %v386
      %v435 = vunpack.c.l.bf16 %v387
      %v436 = vunpack.c.l.bf16 %v388
      %v437 = vunpack.c.l.bf16 %v389
      %v438 = vunpack.c.l.bf16 %v390
      %v439 = vunpack.c.l.bf16 %v391
      %v440 = vunpack.c.l.bf16 %v392
      %v441 = vld [vmem:[%s2] sm:$0x1]
      %v442 = vld [vmem:[%s3] sm:$0x1]
      %v444 = vlaneseq
      %v445 = vshrl.u32 %v444, 7
      %v446 = vsub.s32 0, %v445
      %v447 = vrot.slane %v441, %v446
      %v449 = vmul.f32 %v313, %v447
      %v450 = vmul.f32 %v314, %v447
      %v451 = vmul.f32 %v315, %v447
      %v452 = vmul.f32 %v316, %v447
      %v453 = vmul.f32 %v317, %v447
      %v454 = vmul.f32 %v318, %v447
      %v455 = vmul.f32 %v319, %v447
      %v456 = vmul.f32 %v320, %v447
      %v457 = vmul.f32 %v321, %v447
      %v458 = vmul.f32 %v322, %v447
      %v459 = vmul.f32 %v323, %v447
      %v460 = vmul.f32 %v324, %v447
      %v461 = vmul.f32 %v325, %v447
      %v462 = vmul.f32 %v326, %v447
      %v463 = vmul.f32 %v327, %v447
      %v464 = vmul.f32 %v328, %v447
      %v465 = vmul.f32 %v329, %v447
      %v466 = vmul.f32 %v330, %v447
      %v467 = vmul.f32 %v331, %v447
      %v468 = vmul.f32 %v332, %v447
      %v469 = vmul.f32 %v333, %v447
      %v470 = vmul.f32 %v334, %v447
      %v471 = vmul.f32 %v335, %v447
      %v472 = vmul.f32 %v336, %v447
      %v473 = vmul.f32 %v337, %v447
      %v474 = vmul.f32 %v338, %v447
      %v475 = vmul.f32 %v339, %v447
      %v476 = vmul.f32 %v340, %v447
      %v477 = vmul.f32 %v341, %v447
      %v478 = vmul.f32 %v342, %v447
      %v479 = vmul.f32 %v343, %v447
      %v480 = vmul.f32 %v344, %v447
      %v482 = vlaneseq
      %v483 = vshrl.u32 %v482, 7
      %v484 = vsub.s32 0, %v483
      %v485 = vrot.slane %v442, %v484
      %v487 = vadd.f32 %v449, %v485
      %v488 = vadd.f32 %v450, %v485
      %v489 = vadd.f32 %v451, %v485
      %v490 = vadd.f32 %v452, %v485
      %v491 = vadd.f32 %v453, %v485
      %v492 = vadd.f32 %v454, %v485
      %v493 = vadd.f32 %v455, %v485
      %v494 = vadd.f32 %v456, %v485
      %v495 = vadd.f32 %v457, %v485
      %v496 = vadd.f32 %v458, %v485
      %v497 = vadd.f32 %v459, %v485
      %v498 = vadd.f32 %v460, %v485
      %v499 = vadd.f32 %v461, %v485
      %v500 = vadd.f32 %v462, %v485
      %v501 = vadd.f32 %v463, %v485
      %v502 = vadd.f32 %v464, %v485
      %v503 = vadd.f32 %v465, %v485
      %v504 = vadd.f32 %v466, %v485
      %v505 = vadd.f32 %v467, %v485
      %v506 = vadd.f32 %v468, %v485
      %v507 = vadd.f32 %v469, %v485
      %v508 = vadd.f32 %v470, %v485
      %v509 = vadd.f32 %v471, %v485
      %v510 = vadd.f32 %v472, %v485
      %v511 = vadd.f32 %v473, %v485
      %v512 = vadd.f32 %v474, %v485
      %v513 = vadd.f32 %v475, %v485
      %v514 = vadd.f32 %v476, %v485
      %v515 = vadd.f32 %v477, %v485
      %v516 = vadd.f32 %v478, %v485
      %v517 = vadd.f32 %v479, %v485
      %v518 = vadd.f32 %v480, %v485
      %vm567 = vcmask 1046528
      %v568 = vrot.slane %v393, 1
      %v569 = vrot.slane %v394, 1
      %v570 = vsel %vm567, %v568, %v569
      %v571 = vrot.slane %v395, 1
      %v572 = vsel %vm567, %v569, %v571
      %v573 = vrot.slane %v396, 1
      %v574 = vrot.slane %v397, 1
      %v575 = vsel %vm567, %v573, %v574
      %v576 = vrot.slane %v398, 1
      %v577 = vsel %vm567, %v574, %v576
      %v578 = vrot.slane %v399, 1
      %v579 = vrot.slane %v400, 1
      %v580 = vsel %vm567, %v578, %v579
      %v581 = vrot.slane %v401, 1
      %v582 = vsel %vm567, %v579, %v581
      %v583 = vrot.slane %v402, 1
      %v584 = vrot.slane %v403, 1
      %v585 = vsel %vm567, %v583, %v584
      %v586 = vrot.slane %v404, 1
      %v587 = vsel %vm567, %v584, %v586
      %v588 = vrot.slane %v405, 1
      %v589 = vrot.slane %v406, 1
      %v590 = vsel %vm567, %v588, %v589
      %v591 = vrot.slane %v407, 1
      %v592 = vsel %vm567, %v589, %v591
      %v593 = vrot.slane %v408, 1
      %v594 = vrot.slane %v409, 1
      %v595 = vsel %vm567, %v593, %v594
      %v596 = vrot.slane %v410, 1
      %v597 = vsel %vm567, %v594, %v596
      %v598 = vrot.slane %v411, 1
      %v599 = vrot.slane %v412, 1
      %v600 = vsel %vm567, %v598, %v599
      %v601 = vrot.slane %v413, 1
      %v602 = vsel %vm567, %v599, %v601
      %v603 = vrot.slane %v414, 1
      %v604 = vrot.slane %v415, 1
      %v605 = vsel %vm567, %v603, %v604
      %v606 = vrot.slane %v416, 1
      %v607 = vsel %vm567, %v604, %v606
      %v608 = vrot.slane %v417, 1
      %v609 = vrot.slane %v418, 1
      %v610 = vsel %vm567, %v608, %v609
      %v611 = vrot.slane %v419, 1
      %v612 = vsel %vm567, %v609, %v611
      %v613 = vrot.slane %v420, 1
      %v614 = vrot.slane %v421, 1
      %v615 = vsel %vm567, %v613, %v614
      %v616 = vrot.slane %v422, 1
      %v617 = vsel %vm567, %v614, %v616
      %v618 = vrot.slane %v423, 1
      %v619 = vrot.slane %v424, 1
      %v620 = vsel %vm567, %v618, %v619
      %v621 = vrot.slane %v425, 1
      %v622 = vsel %vm567, %v619, %v621
      %v623 = vrot.slane %v426, 1
      %v624 = vrot.slane %v427, 1
      %v625 = vsel %vm567, %v623, %v624
      %v626 = vrot.slane %v428, 1
      %v627 = vsel %vm567, %v624, %v626
      %v628 = vrot.slane %v429, 1
      %v629 = vrot.slane %v430, 1
      %v630 = vsel %vm567, %v628, %v629
      %v631 = vrot.slane %v431, 1
      %v632 = vsel %vm567, %v629, %v631
      %v633 = vrot.slane %v432, 1
      %v634 = vrot.slane %v433, 1
      %v635 = vsel %vm567, %v633, %v634
      %v636 = vrot.slane %v434, 1
      %v637 = vsel %vm567, %v634, %v636
      %v638 = vrot.slane %v435, 1
      %v639 = vrot.slane %v436, 1
      %v640 = vsel %vm567, %v638, %v639
      %v641 = vrot.slane %v437, 1
      %v642 = vsel %vm567, %v639, %v641
      %v643 = vrot.slane %v438, 1
      %v644 = vrot.slane %v439, 1
      %v645 = vsel %vm567, %v643, %v644
      %v646 = vrot.slane %v440, 1
      %v647 = vsel %vm567, %v644, %v646
      %v680 = vadd.f32 %v487, %v570
      %v681 = vadd.f32 %v488, %v572
      %v682 = vadd.f32 %v489, %v575
      %v683 = vadd.f32 %v490, %v577
      %v684 = vadd.f32 %v491, %v580
      %v685 = vadd.f32 %v492, %v582
      %v686 = vadd.f32 %v493, %v585
      %v687 = vadd.f32 %v494, %v587
      %v688 = vadd.f32 %v495, %v590
      %v689 = vadd.f32 %v496, %v592
      %v690 = vadd.f32 %v497, %v595
      %v691 = vadd.f32 %v498, %v597
      %v692 = vadd.f32 %v499, %v600
      %v693 = vadd.f32 %v500, %v602
      %v694 = vadd.f32 %v501, %v605
      %v695 = vadd.f32 %v502, %v607
      %v696 = vadd.f32 %v503, %v610
      %v697 = vadd.f32 %v504, %v612
      %v698 = vadd.f32 %v505, %v615
      %v699 = vadd.f32 %v506, %v617
      %v700 = vadd.f32 %v507, %v620
      %v701 = vadd.f32 %v508, %v622
      %v702 = vadd.f32 %v509, %v625
      %v703 = vadd.f32 %v510, %v627
      %v704 = vadd.f32 %v511, %v630
      %v705 = vadd.f32 %v512, %v632
      %v706 = vadd.f32 %v513, %v635
      %v707 = vadd.f32 %v514, %v637
      %v708 = vadd.f32 %v515, %v640
      %v709 = vadd.f32 %v516, %v642
      %v710 = vadd.f32 %v517, %v645
      %v711 = vadd.f32 %v518, %v647
      %v712 = vmax.f32 %v680, 0.0
      %v713 = vmax.f32 %v681, 0.0
      %v714 = vmax.f32 %v682, 0.0
      %v715 = vmax.f32 %v683, 0.0
      %v716 = vmax.f32 %v684, 0.0
      %v717 = vmax.f32 %v685, 0.0
      %v718 = vmax.f32 %v686, 0.0
      %v719 = vmax.f32 %v687, 0.0
      %v720 = vmax.f32 %v688, 0.0
      %v721 = vmax.f32 %v689, 0.0
      %v722 = vmax.f32 %v690, 0.0
      %v723 = vmax.f32 %v691, 0.0
      %v724 = vmax.f32 %v692, 0.0
      %v725 = vmax.f32 %v693, 0.0
      %v726 = vmax.f32 %v694, 0.0
      %v727 = vmax.f32 %v695, 0.0
      %v728 = vmax.f32 %v696, 0.0
      %v729 = vmax.f32 %v697, 0.0
      %v730 = vmax.f32 %v698, 0.0
      %v731 = vmax.f32 %v699, 0.0
      %v732 = vmax.f32 %v700, 0.0
      %v733 = vmax.f32 %v701, 0.0
      %v734 = vmax.f32 %v702, 0.0
      %v735 = vmax.f32 %v703, 0.0
      %v736 = vmax.f32 %v704, 0.0
      %v737 = vmax.f32 %v705, 0.0
      %v738 = vmax.f32 %v706, 0.0
      %v739 = vmax.f32 %v707, 0.0
      %v740 = vmax.f32 %v708, 0.0
      %v741 = vmax.f32 %v709, 0.0
      %v742 = vmax.f32 %v710, 0.0
      %v743 = vmax.f32 %v711, 0.0
      %744 = vst [vmem:[%s279] sm:$0xff] %v712
      %745 = vst [vmem:[%s279 + $0x8] sm:$0xff] %v713
      %746 = vst [vmem:[%s279 + $0x10] sm:$0xff] %v714
      %747 = vst [vmem:[%s279 + $0x18] sm:$0xff] %v715
      %748 = vst [vmem:[%s279 + $0x20] sm:$0xff] %v716
      %749 = vst [vmem:[%s279 + $0x28] sm:$0xff] %v717
      %750 = vst [vmem:[%s279 + $0x30] sm:$0xff] %v718
      %751 = vst [vmem:[%s279 + $0x38] sm:$0xff] %v719
      %752 = vst [vmem:[%s279 + $0x40] sm:$0xff] %v720
      %753 = vst [vmem:[%s279 + $0x48] sm:$0xff] %v721
      %754 = vst [vmem:[%s279 + $0x50] sm:$0xff] %v722
      %755 = vst [vmem:[%s279 + $0x58] sm:$0xff] %v723
      %756 = vst [vmem:[%s279 + $0x60] sm:$0xff] %v724
      %757 = vst [vmem:[%s279 + $0x68] sm:$0xff] %v725
      %758 = vst [vmem:[%s279 + $0x70] sm:$0xff] %v726
      %759 = vst [vmem:[%s279 + $0x78] sm:$0xff] %v727
      %760 = vst [vmem:[%s279 + $0x80] sm:$0xff] %v728
      %761 = vst [vmem:[%s279 + $0x88] sm:$0xff] %v729
      %762 = vst [vmem:[%s279 + $0x90] sm:$0xff] %v730
      %763 = vst [vmem:[%s279 + $0x98] sm:$0xff] %v731
      %764 = vst [vmem:[%s279 + $0xa0] sm:$0xff] %v732
      %765 = vst [vmem:[%s279 + $0xa8] sm:$0xff] %v733
      %766 = vst [vmem:[%s279 + $0xb0] sm:$0xff] %v734
      %767 = vst [vmem:[%s279 + $0xb8] sm:$0xff] %v735
      %768 = vst [vmem:[%s279 + $0xc0] sm:$0xff] %v736
      %769 = vst [vmem:[%s279 + $0xc8] sm:$0xff] %v737
      %770 = vst [vmem:[%s279 + $0xd0] sm:$0xff] %v738
      %771 = vst [vmem:[%s279 + $0xd8] sm:$0xff] %v739
      %772 = vst [vmem:[%s279 + $0xe0] sm:$0xff] %v740
      %773 = vst [vmem:[%s279 + $0xe8] sm:$0xff] %v741
      %774 = vst [vmem:[%s279 + $0xf0] sm:$0xff] %v742
      %775 = vst [vmem:[%s279 + $0xf8] sm:$0xff] %v743
      %s776 = smul.u32 16, %s20
      %p777 = scmp.lt.s32.totalorder %s19, 1
      %s778 = scalar_select %p777, %s19, 1
      %p779 = scmp.lt.s32.totalorder %s776, 15
      %s780 = scalar_select %p779, %s776, 15
      %s781 = smul.addr %s780, 2
      %s782 = smul.addr %s778, 32
      %s783 = sadd.s32 %s781, %s782
      %s784 = smul.addr %s783, 8
      %s785 = scalar_lea.vmem %s4, %s784
      // Predicated region
      $region37: #{basic_block_forward.5} parent=35 // pred_check
        %p786 = pneg %p145
      $region38: #{basic_block_forward.5} parent=35 // pred_check_branch
        %788 = sbr.rel (%p786) target = $region40
      $region39: #{basic_block_forward.5} parent=35 // pred_region
        %s789 = smul.u32 16, %s20
      $region40: #{basic_block_forward.5} parent=35 // pred_fallthru
        _
    $region36: #{basic_block_forward.5} parent=5 // pred_fallthru
      _
    %p790 = scmp.le.s32.totalorder 2, %s10
    // Predicated region
    $region41: #{basic_block_forward.5} parent=5 // pred_check
      %p791 = pneg %p790
    $region42: #{basic_block_forward.5} parent=5 // pred_check_branch
      %793 = sbr.rel (%p791) target = $region44
    $region43: #{basic_block_forward.5} parent=5 // pred_region
      %s794 = ssub.s32 %s10, 2
      // Predicated region
      $region45: #{basic_block_forward.5} parent=43 // pred_check
        %p795 = pneg %p151
      $region46: #{basic_block_forward.5} parent=43 // pred_check_branch
        %797 = sbr.rel (%p795) target = $region48
      $region47: #{basic_block_forward.5} parent=43 // pred_region
        %s798 = smul.u32 16, %s22
        %p799 = scmp.lt.s32.totalorder %s21, 1
        %s800 = scalar_select %p799, %s21, 1
        %p801 = scmp.lt.s32.totalorder %s798, 15
        %s802 = scalar_select %p801, %s798, 15
        %s803 = smul.addr %s802, 2
        %s804 = smul.addr %s800, 32
        %s805 = sadd.s32 %s803, %s804
        %s806 = smul.addr %s805, 8
        %s807 = scalar_lea.vmem %s4, %s806
      $region48: #{basic_block_forward.5} parent=43 // pred_fallthru
        _
    $region44: #{basic_block_forward.5} parent=5 // pred_fallthru
      _
  $region6: #{basic_block_forward.5} parent=0 // loop_footer
    %s14 = sadd.s32 1, %s10
  $region7: #{basic_block_forward.5} parent=0 // loop_footer_branch
    %9 = sbr.rel target = $region3
  $region8: #{basic_block_forward.5} parent=0 // loop_exit
    _

// kernel: basic_block_forward.3
$region0: #{basic_block_forward.3}
  #allocation0 [shape = 'u32[]', space=smem, size = 0x4, offset = 0x4, fixed_abs, tag = 'smem constant byte address 0x4 - core index']
  #allocation1 [shape = 'u32[144,128]{1,0:T(1,128)}', space=vmem, size = 0x12000, scoped, tag = 'internal scratch']
  %s0 = inlined_call_operand.vmem [shape: bf16[2,16,24,128], index: 0, kind: input, shape index: {}, may-alias: {0,1,2}]
  %s1 = inlined_call_operand.vmem [shape: bf16[2,16,24,128], index: 1, kind: input, shape index: {}, may-alias: {0,1,2}]
  %s2 = inlined_call_operand.vmem [shape: bf16[2,16,24,128], index: 2, kind: input, shape index: {}, may-alias: {0,1,2}]
  %s3 = inlined_call_operand.vmem [shape: bf16[3,3,128,128], index: 3, kind: input, shape index: {}]
  %s4 = inlined_call_operand.vmem [shape: bf16[2,16,24,128], index: 4, kind: output, shape index: {0}]
  %s5 = inlined_call_operand.vmem [shape: f32[2,1,2,128], index: 5, kind: output, shape index: {1}]
  %6 = xla_tuple %s4, %s5
  %s7 = sld [smem:[#allocation0]]
  $region57: #{basic_block_forward.3} parent=0
    _
  %s9 = ssub.s32 1, %s7
  %s10 = scalar_select 0, %s9, %s7
  loop: start=0, step=1, limit=4
  $region2: #{basic_block_forward.3} parent=0 // loop_pre_header
    _
  $region3: #{basic_block_forward.3} parent=0 // loop_header
    %s12 = sphi 0, %s16
    %p13 = scmp.ge.s32.totalorder %s12, 4
    %s19 = sphi 0, %s31
    %s20 = sphi 0, %s27
    %s21 = sphi 0, %s19
    %s22 = sphi 0, %s20
    %s23 = sphi 0, %s21
    %s24 = sphi 0, %s22
    %s36 = sphi 0, %s38
    %s39 = sphi 0, %s36
    %s40 = sphi 0, %s39
    %s56 = sphi 0, %s40
    %s72 = sphi 0, %s74
    %s75 = sphi 0, %s72
    %s76 = sphi 0, %s75
    %s92 = sphi 0, %s76
    %s108 = sphi 0, %s110
    %s111 = sphi 0, %s108
    %s112 = sphi 0, %s111
    %s128 = sphi 0, %s112
    %s132 = sphi 0, %s132
    %s134 = sphi 0, %s132
    %s135 = sphi 0, %s134
    %s149 = sphi 0, %s135
    %s157 = sphi 0, %s159
    %s160 = sphi 0, %s157
    %s161 = sphi 0, %s160
    %s177 = sphi 0, %s161
    %s185 = sphi 0, %s187
    %s188 = sphi 0, %s185
    %s189 = sphi 0, %s188
    %s205 = sphi 0, %s189
  $region4: #{basic_block_forward.3} parent=0 // loop_header_branch
    %15 = sbr.rel (%p13) target = $region8
  $region5: #{basic_block_forward.3} parent=0 // loop_body
    %s17 = ssub.s32 %s12, 1
    %s18 = ssub.s32 %s12, 2
    %s25 = sadd.s32 1, %s20
    %p26 = scmp.ge.s32.totalorder %s25, 1
    %s27 = scalar_select %p26, 0, %s25
    %s28 = sadd.s32 1, %s19
    %s29 = scalar_select %p26, %s28, %s19
    %p30 = scmp.ge.s32.totalorder %s29, 2
    %s31 = scalar_select %p30, 0, %s29
    %s32 = ssub.s32 %s19, %s31
    %s33 = ssub.s32 %s20, %s27
    %s34 = sor.u32 %s32, %s33
    %p35 = scmp.eq.s32.totalorder %s34, 0
    %s37 = sadd.s32 %s36, 1
    %s38 = scalar_select %p35, %s36, %s37
    %p41 = pneg %p35
    %p42 = scmp.eq.s32.totalorder %s12, 1
    %p43 = por %p41, %p42
    %p44 = scmp.ne.s32.totalorder %s36, %s39
    %p45 = scmp.eq.s32.totalorder %s12, 0
    %p46 = por %p44, %p45
    %p47 = scmp.ne.s32.totalorder %s36, %s39
    %p48 = scmp.eq.s32.totalorder %s17, 1
    %p49 = por %p47, %p48
    %p50 = scmp.ne.s32.totalorder %s39, %s40
    %p51 = scmp.eq.s32.totalorder %s17, 0
    %p52 = por %p50, %p51
    %p53 = scmp.ne.s32.totalorder %s39, %s40
    %p54 = scmp.eq.s32.totalorder %s18, 1
    %p55 = por %p53, %p54
    %p57 = scmp.ne.s32.totalorder %s40, %s56
    %p58 = scmp.eq.s32.totalorder %s18, 0
    %p59 = por %p57, %p58
    %s60 = smul.u32 %s20, 16
    %s61 = ssub.s32 %s60, 1
    %p62 = scmp.gt.s32.totalorder %s61, 0
    %s63 = scalar_select %p62, %s61, 0
    %s64 = smul.u32 %s27, 16
    %s65 = ssub.s32 %s64, 1
    %p66 = scmp.gt.s32.totalorder %s65, 0
    %s67 = scalar_select %p66, %s65, 0
    %s68 = ssub.s32 %s19, %s31
    %s69 = ssub.s32 %s63, %s67
    %s70 = sor.u32 %s68, %s69
    %p71 = scmp.eq.s32.totalorder %s70, 0
    %s73 = sadd.s32 %s72, 1
    %s74 = scalar_select %p71, %s72, %s73
    %p77 = pneg %p71
    %p78 = scmp.eq.s32.totalorder %s12, 1
    %p79 = por %p77, %p78
    %p80 = scmp.ne.s32.totalorder %s72, %s75
    %p81 = scmp.eq.s32.totalorder %s12, 0
    %p82 = por %p80, %p81
    %p83 = scmp.ne.s32.totalorder %s72, %s75
    %p84 = scmp.eq.s32.totalorder %s17, 1
    %p85 = por %p83, %p84
    %p86 = scmp.ne.s32.totalorder %s75, %s76
    %p87 = scmp.eq.s32.totalorder %s17, 0
    %p88 = por %p86, %p87
    %p89 = scmp.ne.s32.totalorder %s75, %s76
    %p90 = scmp.eq.s32.totalorder %s18, 1
    %p91 = por %p89, %p90
    %p93 = scmp.ne.s32.totalorder %s76, %s92
    %p94 = scmp.eq.s32.totalorder %s18, 0
    %p95 = por %p93, %p94
    %s96 = smul.u32 %s20, 16
    %s97 = sadd.s32 %s96, 16
    %p98 = scmp.lt.s32.totalorder %s97, 15
    %s99 = scalar_select %p98, %s97, 15
    %s100 = smul.u32 %s27, 16
    %s101 = sadd.s32 %s100, 16
    %p102 = scmp.lt.s32.totalorder %s101, 15
    %s103 = scalar_select %p102, %s101, 15
    %s104 = ssub.s32 %s19, %s31
    %s105 = ssub.s32 %s99, %s103
    %s106 = sor.u32 %s104, %s105
    %p107 = scmp.eq.s32.totalorder %s106, 0
    %s109 = sadd.s32 %s108, 1
    %s110 = scalar_select %p107, %s108, %s109
    %p113 = pneg %p107
    %p114 = scmp.eq.s32.totalorder %s12, 1
    %p115 = por %p113, %p114
    %p116 = scmp.ne.s32.totalorder %s108, %s111
    %p117 = scmp.eq.s32.totalorder %s12, 0
    %p118 = por %p116, %p117
    %p119 = scmp.ne.s32.totalorder %s108, %s111
    %p120 = scmp.eq.s32.totalorder %s17, 1
    %p121 = por %p119, %p120
    %p122 = scmp.ne.s32.totalorder %s111, %s112
    %p123 = scmp.eq.s32.totalorder %s17, 0
    %p124 = por %p122, %p123
    %p125 = scmp.ne.s32.totalorder %s111, %s112
    %p126 = scmp.eq.s32.totalorder %s18, 1
    %p127 = por %p125, %p126
    %p129 = scmp.ne.s32.totalorder %s112, %s128
    %p130 = scmp.eq.s32.totalorder %s18, 0
    %p131 = por %p129, %p130
    %s133 = sadd.s32 %s132, 1
    %p136 = scmp.eq.s32.totalorder %s12, 1
    %p137 = scmp.ne.s32.totalorder %s132, %s134
    %p138 = scmp.eq.s32.totalorder %s12, 0
    %p139 = por %p137, %p138
    %p140 = scmp.ne.s32.totalorder %s132, %s134
    %p141 = scmp.eq.s32.totalorder %s17, 1
    %p142 = por %p140, %p141
    %p143 = scmp.ne.s32.totalorder %s134, %s135
    %p144 = scmp.eq.s32.totalorder %s17, 0
    %p145 = por %p143, %p144
    %p146 = scmp.ne.s32.totalorder %s134, %s135
    %p147 = scmp.eq.s32.totalorder %s18, 1
    %p148 = por %p146, %p147
    %p150 = scmp.ne.s32.totalorder %s135, %s149
    %p151 = scmp.eq.s32.totalorder %s18, 0
    %p152 = por %p150, %p151
    %s153 = ssub.s32 %s19, %s31
    %s154 = ssub.s32 %s20, %s27
    %s155 = sor.u32 %s153, %s154
    %p156 = scmp.eq.s32.totalorder %s155, 0
    %s158 = sadd.s32 %s157, 1
    %s159 = scalar_select %p156, %s157, %s158
    %p162 = pneg %p156
    %p163 = scmp.eq.s32.totalorder %s12, 1
    %p164 = por %p162, %p163
    %p165 = scmp.ne.s32.totalorder %s157, %s160
    %p166 = scmp.eq.s32.totalorder %s12, 0
    %p167 = por %p165, %p166
    %p168 = scmp.ne.s32.totalorder %s157, %s160
    %p169 = scmp.eq.s32.totalorder %s17, 1
    %p170 = por %p168, %p169
    %p171 = scmp.ne.s32.totalorder %s160, %s161
    %p172 = scmp.eq.s32.totalorder %s17, 0
    %p173 = por %p171, %p172
    %p174 = scmp.ne.s32.totalorder %s160, %s161
    %p175 = scmp.eq.s32.totalorder %s18, 1
    %p176 = por %p174, %p175
    %p178 = scmp.ne.s32.totalorder %s161, %s177
    %p179 = scmp.eq.s32.totalorder %s18, 0
    %p180 = por %p178, %p179
    %s181 = ssub.s32 %s19, %s31
    %s182 = ssub.s32 %s20, %s27
    %s183 = sor.u32 %s181, %s182
    %p184 = scmp.eq.s32.totalorder %s183, 0
    %s186 = sadd.s32 %s185, 1
    %s187 = scalar_select %p184, %s185, %s186
    %p190 = pneg %p184
    %p191 = scmp.eq.s32.totalorder %s12, 1
    %p192 = por %p190, %p191
    %p193 = scmp.ne.s32.totalorder %s185, %s188
    %p194 = scmp.eq.s32.totalorder %s12, 0
    %p195 = por %p193, %p194
    %p196 = scmp.ne.s32.totalorder %s185, %s188
    %p197 = scmp.eq.s32.totalorder %s17, 1
    %p198 = por %p196, %p197
    %p199 = scmp.ne.s32.totalorder %s188, %s189
    %p200 = scmp.eq.s32.totalorder %s17, 0
    %p201 = por %p199, %p200
    %p202 = scmp.ne.s32.totalorder %s188, %s189
    %p203 = scmp.eq.s32.totalorder %s18, 1
    %p204 = por %p202, %p203
    %p206 = scmp.ne.s32.totalorder %s189, %s205
    %p207 = scmp.eq.s32.totalorder %s18, 0
    %p208 = por %p206, %p207
    %p209 = scmp.le.s32.totalorder 1, %s12
    %p210 = scmp.lt.s32.totalorder %s12, 3
    %p211 = pnand %p209, %p210
    %p212 = pneg %p211
    // Predicated region
    $region9: #{basic_block_forward.3} parent=5 // pred_check
      _
    $region10: #{basic_block_forward.3} parent=5 // pred_check_branch
      %214 = sbr.rel (%p211) target = $region12
    $region11: #{basic_block_forward.3} parent=5 // pred_region
      %s215 = ssub.s32 %s12, 1
      // Predicated region
      $region13: #{basic_block_forward.3} parent=11 // pred_check
        %p216 = pneg %p145
      $region14: #{basic_block_forward.3} parent=11 // pred_check_branch
        %218 = sbr.rel (%p216) target = $region16
      $region15: #{basic_block_forward.3} parent=11 // pred_region
        _
      $region16: #{basic_block_forward.3} parent=11 // pred_fallthru
        _
    $region12: #{basic_block_forward.3} parent=5 // pred_fallthru
      _
    %p219 = scmp.lt.s32.totalorder %s12, 2
    // Predicated region
    $region17: #{basic_block_forward.3} parent=5 // pred_check
      %p220 = pneg %p219
    $region18: #{basic_block_forward.3} parent=5 // pred_check_branch
      %222 = sbr.rel (%p220) target = $region20
    $region19: #{basic_block_forward.3} parent=5 // pred_region
      // Predicated region
      $region21: #{basic_block_forward.3} parent=19 // pred_check
        %p223 = pneg %p46
      $region22: #{basic_block_forward.3} parent=19 // pred_check_branch
        %225 = sbr.rel (%p223) target = $region24
      $region23: #{basic_block_forward.3} parent=19 // pred_region
        %s226 = smul.u32 16, %s20
        %p227 = scmp.lt.s32.totalorder %s19, 1
        %s228 = scalar_select %p227, %s19, 1
        %p229 = scmp.lt.s32.totalorder %s226, 15
        %s230 = scalar_select %p229, %s226, 15
        %s231 = smul.addr %s230, 3
        %s232 = smul.addr %s228, 48
        %s233 = sadd.s32 %s231, %s232
        %s234 = smul.addr %s233, 4
        %s235 = scalar_lea.vmem %s0, %s234
        %s236 = smul.u32 16, %s20
      $region24: #{basic_block_forward.3} parent=19 // pred_fallthru
        _
      // Predicated region
      $region25: #{basic_block_forward.3} parent=19 // pred_check
        %p237 = pneg %p82
      $region26: #{basic_block_forward.3} parent=19 // pred_check_branch
        %239 = sbr.rel (%p237) target = $region28
      $region27: #{basic_block_forward.3} parent=19 // pred_region
        %s240 = smul.u32 %s20, 16
        %s241 = ssub.s32 %s240, 1
        %p242 = scmp.gt.s32.totalorder %s241, 0
        %s243 = scalar_select %p242, %s241, 0
        %p244 = scmp.lt.s32.totalorder %s19, 1
        %s245 = scalar_select %p244, %s19, 1
        %p246 = scmp.lt.s32.totalorder %s243, 15
        %s247 = scalar_select %p246, %s243, 15
        %s248 = smul.addr %s247, 3
        %s249 = smul.addr %s245, 48
        %s250 = sadd.s32 %s248, %s249
        %s251 = smul.addr %s250, 4
        %s252 = scalar_lea.vmem %s1, %s251
        %s253 = smul.u32 %s20, 16
        %s254 = ssub.s32 %s253, 1
        %p255 = scmp.gt.s32.totalorder %s254, 0
        %s256 = scalar_select %p255, %s254, 0
      $region28: #{basic_block_forward.3} parent=19 // pred_fallthru
        _
      // Predicated region
      $region29: #{basic_block_forward.3} parent=19 // pred_check
        %p257 = pneg %p118
      $region30: #{basic_block_forward.3} parent=19 // pred_check_branch
        %259 = sbr.rel (%p257) target = $region32
      $region31: #{basic_block_forward.3} parent=19 // pred_region
        %s260 = smul.u32 %s20, 16
        %s261 = sadd.s32 %s260, 16
        %p262 = scmp.lt.s32.totalorder %s261, 15
        %s263 = scalar_select %p262, %s261, 15
        %p264 = scmp.lt.s32.totalorder %s19, 1
        %s265 = scalar_select %p264, %s19, 1
        %p266 = scmp.lt.s32.totalorder %s263, 15
        %s267 = scalar_select %p266, %s263, 15
        %s268 = smul.addr %s267, 3
        %s269 = smul.addr %s265, 48
        %s270 = sadd.s32 %s268, %s269
        %s271 = smul.addr %s270, 4
        %s272 = scalar_lea.vmem %s2, %s271
        %s273 = smul.u32 %s20, 16
        %s274 = sadd.s32 %s273, 16
        %p275 = scmp.lt.s32.totalorder %s274, 15
        %s276 = scalar_select %p275, %s274, 15
      $region32: #{basic_block_forward.3} parent=19 // pred_fallthru
        _
    $region20: #{basic_block_forward.3} parent=5 // pred_fallthru
      _
    %p277 = scmp.le.s32.totalorder 1, %s12
    %p278 = scmp.lt.s32.totalorder %s12, 3
    %p279 = pnand %p277, %p278
    %p280 = pneg %p279
    // Predicated region
    $region33: #{basic_block_forward.3} parent=5 // pred_check
      _
    $region34: #{basic_block_forward.3} parent=5 // pred_check_branch
      %282 = sbr.rel (%p279) target = $region36
    $region35: #{basic_block_forward.3} parent=5 // pred_region
      %s283 = ssub.s32 %s12, 1
      %s284 = smul.u32 16, %s22
      %p285 = scmp.lt.s32.totalorder %s21, 1
      %s286 = scalar_select %p285, %s21, 1
      %p287 = scmp.lt.s32.totalorder %s284, 15
      %s288 = scalar_select %p287, %s284, 15
      %s289 = smul.addr %s288, 3
      %s290 = smul.addr %s286, 48
      %s291 = sadd.s32 %s289, %s290
      %s292 = smul.addr %s291, 4
      %s293 = scalar_lea.vmem %s0, %s292
      %p294 = pneg %p52
      %p295 = pneg %p49
      %s296 = smul.u32 %s22, 16
      %s297 = ssub.s32 %s296, 1
      %p298 = scmp.gt.s32.totalorder %s297, 0
      %s299 = scalar_select %p298, %s297, 0
      %p300 = scmp.lt.s32.totalorder %s21, 1
      %s301 = scalar_select %p300, %s21, 1
      %p302 = scmp.lt.s32.totalorder %s299, 15
      %s303 = scalar_select %p302, %s299, 15
      %s304 = smul.addr %s303, 3
      %s305 = smul.addr %s301, 48
      %s306 = sadd.s32 %s304, %s305
      %s307 = smul.addr %s306, 4
      %s308 = scalar_lea.vmem %s1, %s307
      %p309 = pneg %p88
      %p310 = pneg %p85
      %s311 = smul.u32 %s22, 16
      %s312 = sadd.s32 %s311, 16
      %p313 = scmp.lt.s32.totalorder %s312, 15
      %s314 = scalar_select %p313, %s312, 15
      %p315 = scmp.lt.s32.totalorder %s21, 1
      %s316 = scalar_select %p315, %s21, 1
      %p317 = scmp.lt.s32.totalorder %s314, 15
      %s318 = scalar_select %p317, %s314, 15
      %s319 = smul.addr %s318, 3
      %s320 = smul.addr %s316, 48
      %s321 = sadd.s32 %s319, %s320
      %s322 = smul.addr %s321, 4
      %s323 = scalar_lea.vmem %s2, %s322
      %p324 = pneg %p124
      %p325 = pneg %p121
      %p326 = pneg %p145
      %p327 = pneg %p142
      %p328 = pneg %p173
      %p329 = pneg %p170
      %s330 = smul.u32 16, %s22
      %p331 = scmp.lt.s32.totalorder %s21, 1
      %s332 = scalar_select %p331, %s21, 1
      %p333 = scmp.lt.s32.totalorder %s330, 15
      %s334 = scalar_select %p333, %s330, 15
      %s335 = smul.addr %s334, 3
      %s336 = smul.addr %s332, 48
      %s337 = sadd.s32 %s335, %s336
      %s338 = smul.addr %s337, 4
      %s339 = scalar_lea.vmem %s4, %s338
      %p340 = pneg %p201
      %p341 = pneg %p198
      %p342 = scmp.lt.s32.totalorder %s21, 1
      %s343 = scalar_select %p342, %s21, 1
      %p344 = scmp.lt.s32.totalorder %s22, 0
      %s345 = scalar_select %p344, %s22, 0
      %s346 = sadd.s32 %s345, %s343
      %s347 = smul.addr %s346, 2
      %s348 = scalar_lea.vmem %s5, %s347
      %s349 = smul.u32 16, %s22
      %p350 = scmp.lt.s32.totalorder %s21, 1
      %s351 = scalar_select %p350, %s21, 1
      %p352 = scmp.lt.s32.totalorder %s349, 15
      %s353 = scalar_select %p352, %s349, 15
      %s354 = smul.addr %s353, 3
      %s355 = smul.addr %s351, 48
      %s356 = sadd.s32 %s354, %s355
      %s357 = smul.addr %s356, 4
      %s358 = scalar_lea.vmem %s0, %s357
      %s359 = smul.u32 16, %s22
      %s360 = smul.u32 %s22, 16
      %s361 = ssub.s32 %s360, 1
      %p362 = scmp.gt.s32.totalorder %s361, 0
      %s363 = scalar_select %p362, %s361, 0
      %p364 = scmp.lt.s32.totalorder %s21, 1
      %s365 = scalar_select %p364, %s21, 1
      %p366 = scmp.lt.s32.totalorder %s363, 15
      %s367 = scalar_select %p366, %s363, 15
      %s368 = smul.addr %s367, 3
      %s369 = smul.addr %s365, 48
      %s370 = sadd.s32 %s368, %s369
      %s371 = smul.addr %s370, 4
      %s372 = scalar_lea.vmem %s1, %s371
      %s373 = smul.u32 %s22, 16
      %s374 = ssub.s32 %s373, 1
      %p375 = scmp.gt.s32.totalorder %s374, 0
      %s376 = scalar_select %p375, %s374, 0
      %s377 = smul.u32 %s22, 16
      %s378 = sadd.s32 %s377, 16
      %p379 = scmp.lt.s32.totalorder %s378, 15
      %s380 = scalar_select %p379, %s378, 15
      %p381 = scmp.lt.s32.totalorder %s21, 1
      %s382 = scalar_select %p381, %s21, 1
      %p383 = scmp.lt.s32.totalorder %s380, 15
      %s384 = scalar_select %p383, %s380, 15
      %s385 = smul.addr %s384, 3
      %s386 = smul.addr %s382, 48
      %s387 = sadd.s32 %s385, %s386
      %s388 = smul.addr %s387, 4
      %s389 = scalar_lea.vmem %s2, %s388
      %s390 = smul.u32 %s22, 16
      %s391 = sadd.s32 %s390, 16
      %p392 = scmp.lt.s32.totalorder %s391, 15
      %s393 = scalar_select %p392, %s391, 15
      %s394 = smul.u32 16, %s22
      %p395 = scmp.lt.s32.totalorder %s21, 1
      %s396 = scalar_select %p395, %s21, 1
      %p397 = scmp.lt.s32.totalorder %s394, 15
      %s398 = scalar_select %p397, %s394, 15
      %s399 = smul.addr %s398, 3
      %s400 = smul.addr %s396, 48
      %s401 = sadd.s32 %s399, %s400
      %s402 = smul.addr %s401, 4
      %s403 = scalar_lea.vmem %s4, %s402
      %s404 = smul.u32 16, %s22
      %p405 = scmp.lt.s32.totalorder %s21, 1
      %s406 = scalar_select %p405, %s21, 1
      %p407 = scmp.lt.s32.totalorder %s22, 0
      %s408 = scalar_select %p407, %s22, 0
      %s409 = sadd.s32 %s408, %s406
      %s410 = smul.addr %s409, 2
      %s411 = scalar_lea.vmem %s5, %s410
      %v413 = vld [vmem:[%s358] sm:$0xf]
      %v414 = vld [vmem:[%s358 + $0x4] sm:$0xf]
      %v415 = vld [vmem:[%s358 + $0x8] sm:$0xf]
      %v416 = vld [vmem:[%s358 + $0xc] sm:$0xf]
      %v417 = vld [vmem:[%s358 + $0x10] sm:$0xf]
      %v418 = vld [vmem:[%s358 + $0x14] sm:$0xf]
      %v419 = vld [vmem:[%s358 + $0x18] sm:$0xf]
      %v420 = vld [vmem:[%s358 + $0x1c] sm:$0xf]
      %v421 = vld [vmem:[%s358 + $0x20] sm:$0xf]
      %v422 = vld [vmem:[%s358 + $0x24] sm:$0xf]
      %v423 = vld [vmem:[%s358 + $0x28] sm:$0xf]
      %v424 = vld [vmem:[%s358 + $0x2c] sm:$0xf]
      %v425 = vld [vmem:[%s358 + $0x30] sm:$0xf]
      %v426 = vld [vmem:[%s358 + $0x34] sm:$0xf]
      %v427 = vld [vmem:[%s358 + $0x38] sm:$0xf]
      %v428 = vld [vmem:[%s358 + $0x3c] sm:$0xf]
      %v429 = vld [vmem:[%s358 + $0x40] sm:$0xf]
      %v430 = vld [vmem:[%s358 + $0x44] sm:$0xf]
      %v431 = vld [vmem:[%s358 + $0x48] sm:$0xf]
      %v432 = vld [vmem:[%s358 + $0x4c] sm:$0xf]
      %v433 = vld [vmem:[%s358 + $0x50] sm:$0xf]
      %v434 = vld [vmem:[%s358 + $0x54] sm:$0xf]
      %v435 = vld [vmem:[%s358 + $0x58] sm:$0xf]
      %v436 = vld [vmem:[%s358 + $0x5c] sm:$0xf]
      %v437 = vld [vmem:[%s358 + $0x60] sm:$0xf]
      %v438 = vld [vmem:[%s358 + $0x64] sm:$0xf]
      %v439 = vld [vmem:[%s358 + $0x68] sm:$0xf]
      %v440 = vld [vmem:[%s358 + $0x6c] sm:$0xf]
      %v441 = vld [vmem:[%s358 + $0x70] sm:$0xf]
      %v442 = vld [vmem:[%s358 + $0x74] sm:$0xf]
      %v443 = vld [vmem:[%s358 + $0x78] sm:$0xf]
      %v444 = vld [vmem:[%s358 + $0x7c] sm:$0xf]
      %v445 = vld [vmem:[%s358 + $0x80] sm:$0xf]
      %v446 = vld [vmem:[%s358 + $0x84] sm:$0xf]
      %v447 = vld [vmem:[%s358 + $0x88] sm:$0xf]
      %v448 = vld [vmem:[%s358 + $0x8c] sm:$0xf]
      %v449 = vld [vmem:[%s358 + $0x90] sm:$0xf]
      %v450 = vld [vmem:[%s358 + $0x94] sm:$0xf]
      %v451 = vld [vmem:[%s358 + $0x98] sm:$0xf]
      %v452 = vld [vmem:[%s358 + $0x9c] sm:$0xf]
      %v453 = vld [vmem:[%s358 + $0xa0] sm:$0xf]
      %v454 = vld [vmem:[%s358 + $0xa4] sm:$0xf]
      %v455 = vld [vmem:[%s358 + $0xa8] sm:$0xf]
      %v456 = vld [vmem:[%s358 + $0xac] sm:$0xf]
      %v457 = vld [vmem:[%s358 + $0xb0] sm:$0xf]
      %v458 = vld [vmem:[%s358 + $0xb4] sm:$0xf]
      %v459 = vld [vmem:[%s358 + $0xb8] sm:$0xf]
      %v460 = vld [vmem:[%s358 + $0xbc] sm:$0xf]
      %v461 = vld [vmem:[%s372] sm:$0xf]
      %v462 = vld [vmem:[%s372 + $0x4] sm:$0xf]
      %v463 = vld [vmem:[%s372 + $0x8] sm:$0xf]
      %v464 = vld [vmem:[%s389] sm:$0xf]
      %v465 = vld [vmem:[%s389 + $0x4] sm:$0xf]
      %v466 = vld [vmem:[%s389 + $0x8] sm:$0xf]
      %v467 = vlaneseq
      %v468 = vshrl.u32 %v467, 7
      %v469 = vadd.s32 %v468, 8
      %v470 = vadd.s32 %v468, 16
      %vm471 = vcmp.ge.s32.totalorder %v468, 1
      %vm472 = vcmp.ge.s32.totalorder %v469, 1
      %vm473 = vcmp.ge.s32.totalorder %v470, 1
      %vm474 = vcmp.le.s32.totalorder %v468, 16
      %vm475 = vcmp.le.s32.totalorder %v469, 16
      %vm476 = vcmp.le.s32.totalorder %v470, 16
      %vm477 = vmand %vm471, %vm474
      %vm478 = vmand %vm472, %vm475
      %vm479 = vmand %vm473, %vm476
      %p480 = scmp.gt.s32.totalorder %s22, 0
      %s481 = scalar_select %p480, 1, 0
      %v482 = vstv %s481
      %vm483 = vcmp.eq.s32.totalorder %v482, 1
      %v484 = vsel %vm483, %v461, 0
      %v485 = vsel %vm483, %v462, 0
      %v486 = vsel %vm483, %v463, 0
      %p487 = scmp.lt.s32.totalorder %s22, 0
      %s488 = scalar_select %p487, 1, 0
      %v489 = vstv %s488
      %vm490 = vcmp.eq.s32.totalorder %v489, 1
      %v491 = vsel %vm490, %v464, 0
      %v492 = vsel %vm490, %v465, 0
      %v493 = vsel %vm490, %v466, 0
      %v548 = vunpack.c.l.b16 %v484
      %v549 = vunpack.c.l.b16 %v485
      %v550 = vunpack.c.l.b16 %v486
      %v551 = vunpack.c.l.b16 %v413
      %v552 = vunpack.c.l.b16 %v414
      %v553 = vunpack.c.l.b16 %v415
      %v554 = vunpack.c.l.b16 %v416
      %v555 = vunpack.c.l.b16 %v417
      %v556 = vunpack.c.l.b16 %v418
      %v557 = vunpack.c.l.b16 %v419
      %v558 = vunpack.c.l.b16 %v420
      %v559 = vunpack.c.l.b16 %v421
      %v560 = vunpack.c.l.b16 %v422
      %v561 = vunpack.c.l.b16 %v423
      %v562 = vunpack.c.l.b16 %v424
      %v563 = vunpack.c.l.b16 %v425
      %v564 = vunpack.c.l.b16 %v426
      %v565 = vunpack.c.l.b16 %v427
      %v566 = vunpack.c.l.b16 %v428
      %v567 = vunpack.c.l.b16 %v429
      %v568 = vunpack.c.l.b16 %v430
      %v569 = vunpack.c.l.b16 %v431
      %v570 = vunpack.c.l.b16 %v432
      %v571 = vunpack.c.l.b16 %v433
      %v572 = vunpack.c.l.b16 %v434
      %v573 = vunpack.c.l.b16 %v435
      %v574 = vunpack.c.l.b16 %v436
      %v575 = vunpack.c.l.b16 %v437
      %v576 = vunpack.c.l.b16 %v438
      %v577 = vunpack.c.l.b16 %v439
      %v578 = vunpack.c.l.b16 %v440
      %v579 = vunpack.c.l.b16 %v441
      %v580 = vunpack.c.l.b16 %v442
      %v581 = vunpack.c.l.b16 %v443
      %v582 = vunpack.c.l.b16 %v444
      %v583 = vunpack.c.l.b16 %v445
      %v584 = vunpack.c.l.b16 %v446
      %v585 = vunpack.c.l.b16 %v447
      %v586 = vunpack.c.l.b16 %v448
      %v587 = vunpack.c.l.b16 %v449
      %v588 = vunpack.c.l.b16 %v450
      %v589 = vunpack.c.l.b16 %v451
      %v590 = vunpack.c.l.b16 %v452
      %v591 = vunpack.c.l.b16 %v453
      %v592 = vunpack.c.l.b16 %v454
      %v593 = vunpack.c.l.b16 %v455
      %v594 = vunpack.c.l.b16 %v456
      %v595 = vunpack.c.l.b16 %v457
      %v596 = vunpack.c.l.b16 %v458
      %v597 = vunpack.c.l.b16 %v459
      %v598 = vunpack.c.l.b16 %v460
      %v599 = vunpack.c.l.b16 %v491
      %v600 = vunpack.c.l.b16 %v492
      %v601 = vunpack.c.l.b16 %v493
      %v602 = vpack.c.b16 %v549, %v548
      %v603 = vpack.c.b16 %v550, %v550
      %v604 = vpack.c.b16 %v552, %v551
      %v605 = vpack.c.b16 %v553, %v553
      %v606 = vpack.c.b16 %v555, %v554
      %v607 = vpack.c.b16 %v556, %v556
      %v608 = vpack.c.b16 %v558, %v557
      %v609 = vpack.c.b16 %v559, %v559
      %v610 = vpack.c.b16 %v561, %v560
      %v611 = vpack.c.b16 %v562, %v562
      %v612 = vpack.c.b16 %v564, %v563
      %v613 = vpack.c.b16 %v565, %v565
      %v614 = vpack.c.b16 %v567, %v566
      %v615 = vpack.c.b16 %v568, %v568
      %v616 = vpack.c.b16 %v570, %v569
      %v617 = vpack.c.b16 %v571, %v571
      %v618 = vpack.c.b16 %v573, %v572
      %v619 = vpack.c.b16 %v574, %v574
      %v620 = vpack.c.b16 %v576, %v575
      %v621 = vpack.c.b16 %v577, %v577
      %v622 = vpack.c.b16 %v579, %v578
      %v623 = vpack.c.b16 %v580, %v580
      %v624 = vpack.c.b16 %v582, %v581
      %v625 = vpack.c.b16 %v583, %v583
      %v626 = vpack.c.b16 %v585, %v584
      %v627 = vpack.c.b16 %v586, %v586
      %v628 = vpack.c.b16 %v588, %v587
      %v629 = vpack.c.b16 %v589, %v589
      %v630 = vpack.c.b16 %v591, %v590
      %v631 = vpack.c.b16 %v592, %v592
      %v632 = vpack.c.b16 %v594, %v593
      %v633 = vpack.c.b16 %v595, %v595
      %v634 = vpack.c.b16 %v597, %v596
      %v635 = vpack.c.b16 %v598, %v598
      %v636 = vpack.c.b16 %v600, %v599
      %v637 = vpack.c.b16 %v601, %v601
      %vm638 = vsmask.f32 256
      %v640 = vshrl.u32 %v602, 16
      %v642 = vrot.slane %v640, 7
      %v643 = vshll.u32 %v602, 16
      %v645 = vor.u32 %v642, %v643
      %v647 = vshrl.u32 %v603, 16
      %v649 = vrot.slane %v647, 7
      %v650 = vshll.u32 %v603, 16
      %v652 = vor.u32 %v649, %v650
      %v653 = vsel %vm638, %v642, %v652
      %v655 = vshrl.u32 %v604, 16
      %v657 = vrot.slane %v655, 7
      %v658 = vshll.u32 %v604, 16
      %v660 = vor.u32 %v657, %v658
      %v662 = vshrl.u32 %v605, 16
      %v664 = vrot.slane %v662, 7
      %v665 = vshll.u32 %v605, 16
      %v667 = vor.u32 %v664, %v665
      %v668 = vsel %vm638, %v657, %v667
      %v670 = vshrl.u32 %v606, 16
      %v672 = vrot.slane %v670, 7
      %v673 = vshll.u32 %v606, 16
      %v675 = vor.u32 %v672, %v673
      %v677 = vshrl.u32 %v607, 16
      %v679 = vrot.slane %v677, 7
      %v680 = vshll.u32 %v607, 16
      %v682 = vor.u32 %v679, %v680
      %v683 = vsel %vm638, %v672, %v682
      %v685 = vshrl.u32 %v608, 16
      %v687 = vrot.slane %v685, 7
      %v688 = vshll.u32 %v608, 16
      %v690 = vor.u32 %v687, %v688
      %v692 = vshrl.u32 %v609, 16
      %v694 = vrot.slane %v692, 7
      %v695 = vshll.u32 %v609, 16
      %v697 = vor.u32 %v694, %v695
      %v698 = vsel %vm638, %v687, %v697
      %v700 = vshrl.u32 %v610, 16
      %v702 = vrot.slane %v700, 7
      %v703 = vshll.u32 %v610, 16
      %v705 = vor.u32 %v702, %v703
      %v707 = vshrl.u32 %v611, 16
      %v709 = vrot.slane %v707, 7
      %v710 = vshll.u32 %v611, 16
      %v712 = vor.u32 %v709, %v710
      %v713 = vsel %vm638, %v702, %v712
      %v715 = vshrl.u32 %v612, 16
      %v717 = vrot.slane %v715, 7
      %v718 = vshll.u32 %v612, 16
      %v720 = vor.u32 %v717, %v718
      %v722 = vshrl.u32 %v613, 16
      %v724 = vrot.slane %v722, 7
      %v725 = vshll.u32 %v613, 16
      %v727 = vor.u32 %v724, %v725
      %v728 = vsel %vm638, %v717, %v727
      %v730 = vshrl.u32 %v614, 16
      %v732 = vrot.slane %v730, 7
      %v733 = vshll.u32 %v614, 16
      %v735 = vor.u32 %v732, %v733
      %v737 = vshrl.u32 %v615, 16
      %v739 = vrot.slane %v737, 7
      %v740 = vshll.u32 %v615, 16
      %v742 = vor.u32 %v739, %v740
      %v743 = vsel %vm638, %v732, %v742
      %v745 = vshrl.u32 %v616, 16
      %v747 = vrot.slane %v745, 7
      %v748 = vshll.u32 %v616, 16
      %v750 = vor.u32 %v747, %v748
      %v752 = vshrl.u32 %v617, 16
      %v754 = vrot.slane %v752, 7
      %v755 = vshll.u32 %v617, 16
      %v757 = vor.u32 %v754, %v755
      %v758 = vsel %vm638, %v747, %v757
      %v760 = vshrl.u32 %v618, 16
      %v762 = vrot.slane %v760, 7
      %v763 = vshll.u32 %v618, 16
      %v765 = vor.u32 %v762, %v763
      %v767 = vshrl.u32 %v619, 16
      %v769 = vrot.slane %v767, 7
      %v770 = vshll.u32 %v619, 16
      %v772 = vor.u32 %v769, %v770
      %v773 = vsel %vm638, %v762, %v772
      %v775 = vshrl.u32 %v620, 16
      %v777 = vrot.slane %v775, 7
      %v778 = vshll.u32 %v620, 16
      %v780 = vor.u32 %v777, %v778
      %v782 = vshrl.u32 %v621, 16
      %v784 = vrot.slane %v782, 7
      %v785 = vshll.u32 %v621, 16
      %v787 = vor.u32 %v784, %v785
      %v788 = vsel %vm638, %v777, %v787
      %v790 = vshrl.u32 %v622, 16
      %v792 = vrot.slane %v790, 7
      %v793 = vshll.u32 %v622, 16
      %v795 = vor.u32 %v792, %v793
      %v797 = vshrl.u32 %v623, 16
      %v799 = vrot.slane %v797, 7
      %v800 = vshll.u32 %v623, 16
      %v802 = vor.u32 %v799, %v800
      %v803 = vsel %vm638, %v792, %v802
      %v805 = vshrl.u32 %v624, 16
      %v807 = vrot.slane %v805, 7
      %v808 = vshll.u32 %v624, 16
      %v810 = vor.u32 %v807, %v808
      %v812 = vshrl.u32 %v625, 16
      %v814 = vrot.slane %v812, 7
      %v815 = vshll.u32 %v625, 16
      %v817 = vor.u32 %v814, %v815
      %v818 = vsel %vm638, %v807, %v817
      %v820 = vshrl.u32 %v626, 16
      %v822 = vrot.slane %v820, 7
      %v823 = vshll.u32 %v626, 16
      %v825 = vor.u32 %v822, %v823
      %v827 = vshrl.u32 %v627, 16
      %v829 = vrot.slane %v827, 7
      %v830 = vshll.u32 %v627, 16
      %v832 = vor.u32 %v829, %v830
      %v833 = vsel %vm638, %v822, %v832
      %v835 = vshrl.u32 %v628, 16
      %v837 = vrot.slane %v835, 7
      %v838 = vshll.u32 %v628, 16
      %v840 = vor.u32 %v837, %v838
      %v842 = vshrl.u32 %v629, 16
      %v844 = vrot.slane %v842, 7
      %v845 = vshll.u32 %v629, 16
      %v847 = vor.u32 %v844, %v845
      %v848 = vsel %vm638, %v837, %v847
      %v850 = vshrl.u32 %v630, 16
      %v852 = vrot.slane %v850, 7
      %v853 = vshll.u32 %v630, 16
      %v855 = vor.u32 %v852, %v853
      %v857 = vshrl.u32 %v631, 16
      %v859 = vrot.slane %v857, 7
      %v860 = vshll.u32 %v631, 16
      %v862 = vor.u32 %v859, %v860
      %v863 = vsel %vm638, %v852, %v862
      %v865 = vshrl.u32 %v632, 16
      %v867 = vrot.slane %v865, 7
      %v868 = vshll.u32 %v632, 16
      %v870 = vor.u32 %v867, %v868
      %v872 = vshrl.u32 %v633, 16
      %v874 = vrot.slane %v872, 7
      %v875 = vshll.u32 %v633, 16
      %v877 = vor.u32 %v874, %v875
      %v878 = vsel %vm638, %v867, %v877
      %v880 = vshrl.u32 %v634, 16
      %v882 = vrot.slane %v880, 7
      %v883 = vshll.u32 %v634, 16
      %v885 = vor.u32 %v882, %v883
      %v887 = vshrl.u32 %v635, 16
      %v889 = vrot.slane %v887, 7
      %v890 = vshll.u32 %v635, 16
      %v892 = vor.u32 %v889, %v890
      %v893 = vsel %vm638, %v882, %v892
      %v895 = vshrl.u32 %v636, 16
      %v897 = vrot.slane %v895, 7
      %v898 = vshll.u32 %v636, 16
      %v900 = vor.u32 %v897, %v898
      %v902 = vshrl.u32 %v637, 16
      %v904 = vrot.slane %v902, 7
      %v905 = vshll.u32 %v637, 16
      %v907 = vor.u32 %v904, %v905
      %v908 = vsel %vm638, %v897, %v907
      %vm927 = vcmask 1040384
      %vm928 = vmand %vm927, %vm638
      %v929 = vsel %vm928, 0, %v645
      %v930 = vsel %vm928, 0, %v660
      %v931 = vsel %vm928, 0, %v675
      %v932 = vsel %vm928, 0, %v690
      %v933 = vsel %vm928, 0, %v705
      %v934 = vsel %vm928, 0, %v720
      %v935 = vsel %vm928, 0, %v735
      %v936 = vsel %vm928, 0, %v750
      %v937 = vsel %vm928, 0, %v765
      %v938 = vsel %vm928, 0, %v780
      %v939 = vsel %vm928, 0, %v795
      %v940 = vsel %vm928, 0, %v810
      %v941 = vsel %vm928, 0, %v825
      %v942 = vsel %vm928, 0, %v840
      %v943 = vsel %vm928, 0, %v855
      %v944 = vsel %vm928, 0, %v870
      %v945 = vsel %vm928, 0, %v885
      %v946 = vsel %vm928, 0, %v900
      %vm947 = vsmask.f32 7424
      %v948 = vrot.slane %v643, 1
      %v949 = vor.u32 %v640, %v948
      %v950 = vrot.slane %v650, 1
      %v951 = vsel %vm947, %v949, %v950
      %v952 = vor.u32 %v647, %v950
      %v953 = vrot.slane %v658, 1
      %v954 = vor.u32 %v655, %v953
      %v955 = vrot.slane %v665, 1
      %v956 = vsel %vm947, %v954, %v955
      %v957 = vor.u32 %v662, %v955
      %v958 = vrot.slane %v673, 1
      %v959 = vor.u32 %v670, %v958
      %v960 = vrot.slane %v680, 1
      %v961 = vsel %vm947, %v959, %v960
      %v962 = vor.u32 %v677, %v960
      %v963 = vrot.slane %v688, 1
      %v964 = vor.u32 %v685, %v963
      %v965 = vrot.slane %v695, 1
      %v966 = vsel %vm947, %v964, %v965
      %v967 = vor.u32 %v692, %v965
      %v968 = vrot.slane %v703, 1
      %v969 = vor.u32 %v700, %v968
      %v970 = vrot.slane %v710, 1
      %v971 = vsel %vm947, %v969, %v970
      %v972 = vor.u32 %v707, %v970
      %v973 = vrot.slane %v718, 1
      %v974 = vor.u32 %v715, %v973
      %v975 = vrot.slane %v725, 1
      %v976 = vsel %vm947, %v974, %v975
      %v977 = vor.u32 %v722, %v975
      %v978 = vrot.slane %v733, 1
      %v979 = vor.u32 %v730, %v978
      %v980 = vrot.slane %v740, 1
      %v981 = vsel %vm947, %v979, %v980
      %v982 = vor.u32 %v737, %v980
      %v983 = vrot.slane %v748, 1
      %v984 = vor.u32 %v745, %v983
      %v985 = vrot.slane %v755, 1
      %v986 = vsel %vm947, %v984, %v985
      %v987 = vor.u32 %v752, %v985
      %v988 = vrot.slane %v763, 1
      %v989 = vor.u32 %v760, %v988
      %v990 = vrot.slane %v770, 1
      %v991 = vsel %vm947, %v989, %v990
      %v992 = vor.u32 %v767, %v990
      %v993 = vrot.slane %v778, 1
      %v994 = vor.u32 %v775, %v993
      %v995 = vrot.slane %v785, 1
      %v996 = vsel %vm947, %v994, %v995
      %v997 = vor.u32 %v782, %v995
      %v998 = vrot.slane %v793, 1
      %v999 = vor.u32 %v790, %v998
      %v1000 = vrot.slane %v800, 1
      %v1001 = vsel %vm947, %v999, %v1000
      %v1002 = vor.u32 %v797, %v1000
      %v1003 = vrot.slane %v808, 1
      %v1004 = vor.u32 %v805, %v1003
      %v1005 = vrot.slane %v815, 1
      %v1006 = vsel %vm947, %v1004, %v1005
      %v1007 = vor.u32 %v812, %v1005
      %v1008 = vrot.slane %v823, 1
      %v1009 = vor.u32 %v820, %v1008
      %v1010 = vrot.slane %v830, 1
      %v1011 = vsel %vm947, %v1009, %v1010
      %v1012 = vor.u32 %v827, %v1010
      %v1013 = vrot.slane %v838, 1
      %v1014 = vor.u32 %v835, %v1013
      %v1015 = vrot.slane %v845, 1
      %v1016 = vsel %vm947, %v1014, %v1015
      %v1017 = vor.u32 %v842, %v1015
      %v1018 = vrot.slane %v853, 1
      %v1019 = vor.u32 %v850, %v1018
      %v1020 = vrot.slane %v860, 1
      %v1021 = vsel %vm947, %v1019, %v1020
      %v1022 = vor.u32 %v857, %v1020
      %v1023 = vrot.slane %v868, 1
      %v1024 = vor.u32 %v865, %v1023
      %v1025 = vrot.slane %v875, 1
      %v1026 = vsel %vm947, %v1024, %v1025
      %v1027 = vor.u32 %v872, %v1025
      %v1028 = vrot.slane %v883, 1
      %v1029 = vor.u32 %v880, %v1028
      %v1030 = vrot.slane %v890, 1
      %v1031 = vsel %vm947, %v1029, %v1030
      %v1032 = vor.u32 %v887, %v1030
      %v1033 = vrot.slane %v898, 1
      %v1034 = vor.u32 %v895, %v1033
      %v1035 = vrot.slane %v905, 1
      %v1036 = vsel %vm947, %v1034, %v1035
      %v1037 = vor.u32 %v902, %v1035
      %vm1056 = vcmask 1043456
      %vm1057 = vsmask.f32 3328
      %vm1058 = vmand %vm1056, %vm1057
      %v1059 = vsel %vm1058, %v952, 0
      %v1060 = vsel %vm1058, %v957, 0
      %v1061 = vsel %vm1058, %v962, 0
      %v1062 = vsel %vm1058, %v967, 0
      %v1063 = vsel %vm1058, %v972, 0
      %v1064 = vsel %vm1058, %v977, 0
      %v1065 = vsel %vm1058, %v982, 0
      %v1066 = vsel %vm1058, %v987, 0
      %v1067 = vsel %vm1058, %v992, 0
      %v1068 = vsel %vm1058, %v997, 0
      %v1069 = vsel %vm1058, %v1002, 0
      %v1070 = vsel %vm1058, %v1007, 0
      %v1071 = vsel %vm1058, %v1012, 0
      %v1072 = vsel %vm1058, %v1017, 0
      %v1073 = vsel %vm1058, %v1022, 0
      %v1074 = vsel %vm1058, %v1027, 0
      %v1075 = vsel %vm1058, %v1032, 0
      %v1076 = vsel %vm1058, %v1037, 0
      %v1093 = vunpack.c.l.b16 %v929
      %v1094 = vunpack.c.h.b16 %v929
      %v1095 = vunpack.c.l.b16 %v653
      %v1096 = vunpack.c.l.b16 %v930
      %v1097 = vunpack.c.h.b16 %v930
      %v1098 = vunpack.c.l.b16 %v668
      %v1099 = vunpack.c.l.b16 %v931
      %v1100 = vunpack.c.h.b16 %v931
      %v1101 = vunpack.c.l.b16 %v683
      %v1102 = vunpack.c.l.b16 %v932
      %v1103 = vunpack.c.h.b16 %v932
      %v1104 = vunpack.c.l.b16 %v698
      %v1105 = vunpack.c.l.b16 %v933
      %v1106 = vunpack.c.h.b16 %v933
      %v1107 = vunpack.c.l.b16 %v713
      %v1108 = vunpack.c.l.b16 %v934
      %v1109 = vunpack.c.h.b16 %v934
      %v1110 = vunpack.c.l.b16 %v728
      %v1111 = vunpack.c.l.b16 %v935
      %v1112 = vunpack.c.h.b16 %v935
      %v1113 = vunpack.c.l.b16 %v743
      %v1114 = vunpack.c.l.b16 %v936
      %v1115 = vunpack.c.h.b16 %v936
      %v1116 = vunpack.c.l.b16 %v758
      %v1117 = vunpack.c.l.b16 %v937
      %v1118 = vunpack.c.h.b16 %v937
      %v1119 = vunpack.c.l.b16 %v773
      %v1120 = vunpack.c.l.b16 %v938
      %v1121 = vunpack.c.h.b16 %v938
      %v1122 = vunpack.c.l.b16 %v788
      %v1123 = vunpack.c.l.b16 %v939
      %v1124 = vunpack.c.h.b16 %v939
      %v1125 = vunpack.c.l.b16 %v803
      %v1126 = vunpack.c.l.b16 %v940
      %v1127 = vunpack.c.h.b16 %v940
      %v1128 = vunpack.c.l.b16 %v818
      %v1129 = vunpack.c.l.b16 %v941
      %v1130 = vunpack.c.h.b16 %v941
      %v1131 = vunpack.c.l.b16 %v833
      %v1132 = vunpack.c.l.b16 %v942
      %v1133 = vunpack.c.h.b16 %v942
      %v1134 = vunpack.c.l.b16 %v848
      %v1135 = vunpack.c.l.b16 %v943
      %v1136 = vunpack.c.h.b16 %v943
      %v1137 = vunpack.c.l.b16 %v863
      %v1138 = vunpack.c.l.b16 %v944
      %v1139 = vunpack.c.h.b16 %v944
      %v1140 = vunpack.c.l.b16 %v878
      %v1141 = vld [vmem:[%s3] sm:$0xf]
      %v1142 = vld [vmem:[%s3 + $0x4] sm:$0xf]
      %v1143 = vld [vmem:[%s3 + $0x8] sm:$0xf]
      %v1144 = vld [vmem:[%s3 + $0xc] sm:$0xf]
      %v1145 = vld [vmem:[%s3 + $0x10] sm:$0xf]
      %v1146 = vld [vmem:[%s3 + $0x14] sm:$0xf]
      %v1147 = vld [vmem:[%s3 + $0x18] sm:$0xf]
      %v1148 = vld [vmem:[%s3 + $0x1c] sm:$0xf]
      %v1149 = vld [vmem:[%s3 + $0x20] sm:$0xf]
      %v1150 = vld [vmem:[%s3 + $0x24] sm:$0xf]
      %v1151 = vld [vmem:[%s3 + $0x28] sm:$0xf]
      %v1152 = vld [vmem:[%s3 + $0x2c] sm:$0xf]
      %v1153 = vld [vmem:[%s3 + $0x30] sm:$0xf]
      %v1154 = vld [vmem:[%s3 + $0x34] sm:$0xf]
      %v1155 = vld [vmem:[%s3 + $0x38] sm:$0xf]
      %v1156 = vld [vmem:[%s3 + $0x3c] sm:$0xf]
      %s1157 = scalar_lea.vmem %s3, 64
      %v1158 = vld [vmem:[%s1157] sm:$0xf]
      %v1159 = vld [vmem:[%s1157 + $0x4] sm:$0xf]
      %v1160 = vld [vmem:[%s1157 + $0x8] sm:$0xf]
      %v1161 = vld [vmem:[%s1157 + $0xc] sm:$0xf]
      %v1162 = vld [vmem:[%s1157 + $0x10] sm:$0xf]
      %v1163 = vld [vmem:[%s1157 + $0x14] sm:$0xf]
      %v1164 = vld [vmem:[%s1157 + $0x18] sm:$0xf]
      %v1165 = vld [vmem:[%s1157 + $0x1c] sm:$0xf]
      %v1166 = vld [vmem:[%s1157 + $0x20] sm:$0xf]
      %v1167 = vld [vmem:[%s1157 + $0x24] sm:$0xf]
      %v1168 = vld [vmem:[%s1157 + $0x28] sm:$0xf]
      %v1169 = vld [vmem:[%s1157 + $0x2c] sm:$0xf]
      %v1170 = vld [vmem:[%s1157 + $0x30] sm:$0xf]
      %v1171 = vld [vmem:[%s1157 + $0x34] sm:$0xf]
      %v1172 = vld [vmem:[%s1157 + $0x38] sm:$0xf]
      %v1173 = vld [vmem:[%s1157 + $0x3c] sm:$0xf]
      %v1174 = vpack.c.b16 %v551, %v550
      %v1175 = vpack.c.b16 %v553, %v552
      %v1176 = vpack.c.b16 %v557, %v556
      %v1177 = vpack.c.b16 %v559, %v558
      %v1178 = vpack.c.b16 %v563, %v562
      %v1179 = vpack.c.b16 %v565, %v564
      %v1180 = vpack.c.b16 %v569, %v568
      %v1181 = vpack.c.b16 %v571, %v570
      %v1182 = vpack.c.b16 %v575, %v574
      %v1183 = vpack.c.b16 %v577, %v576
      %v1184 = vpack.c.b16 %v581, %v580
      %v1185 = vpack.c.b16 %v583, %v582
      %v1186 = vpack.c.b16 %v587, %v586
      %v1187 = vpack.c.b16 %v589, %v588
      %v1188 = vpack.c.b16 %v593, %v592
      %v1189 = vpack.c.b16 %v595, %v594
      %v1230 = vunpack.c.l.b16 %v1158
      %v1231 = vunpack.c.l.b16 %v1159
      %v1232 = vunpack.c.l.b16 %v1160
      %v1233 = vunpack.c.l.b16 %v1161
      %v1234 = vunpack.c.l.b16 %v1162
      %v1235 = vunpack.c.l.b16 %v1163
      %v1236 = vunpack.c.l.b16 %v1164
      %v1237 = vunpack.c.l.b16 %v1165
      %v1238 = vunpack.c.l.b16 %v1166
      %v1239 = vunpack.c.l.b16 %v1167
      %v1240 = vunpack.c.l.b16 %v1168
      %v1241 = vunpack.c.l.b16 %v1169
      %v1242 = vunpack.c.l.b16 %v1170
      %v1243 = vunpack.c.l.b16 %v1171
      %v1244 = vunpack.c.l.b16 %v1172
      %v1245 = vunpack.c.l.b16 %v1173
      %v1246 = vpack.c.b16 %v1231, %v1230
      %v1247 = vpack.c.b16 %v1233, %v1232
      %v1248 = vpack.c.b16 %v1235, %v1234
      %v1249 = vpack.c.b16 %v1237, %v1236
      %v1250 = vpack.c.b16 %v1239, %v1238
      %v1251 = vpack.c.b16 %v1241, %v1240
      %v1252 = vpack.c.b16 %v1243, %v1242
      %v1253 = vpack.c.b16 %v1245, %v1244
      %1262 = vmatprep.subr.bf16.mxu0 0
      %1263 = vmatpush1.bf16.msra.mxu0 %v1246
      %1264 = vmatprep.subr.bf16.mxu0 0
      %1265 = vmatpush1.bf16.msra.mxu0 %v1247
      %1266 = vmatprep.subr.bf16.mxu0 0
      %1267 = vmatpush1.bf16.msra.mxu0 %v1248
      %1268 = vmatprep.subr.bf16.mxu0 0
      %1269 = vmatpush1.bf16.msra.mxu0 %v1249
      %1270 = vmatprep.subr.bf16.mxu0 0
      %1271 = vmatpush1.bf16.msra.mxu0 %v1250
      %1272 = vmatprep.subr.bf16.mxu0 0
      %1273 = vmatpush1.bf16.msra.mxu0 %v1251
      %1274 = vmatprep.subr.bf16.mxu0 0
      %1275 = vmatpush1.bf16.msra.mxu0 %v1252
      %1276 = vmatprep.subr.bf16.mxu0 0
      %1277 = vmatpush1.bf16.msra.mxu0 %v1253
      %1278 = vmatprep.subr.bf16.mxu0 0
      %1279 = vmatpush1.bf16.msra.mxu0 0
      %1280 = vmatprep.subr.bf16.mxu0 0
      %1281 = vmatpush1.bf16.msra.mxu0 0
      %1282 = vmatprep.subr.bf16.mxu0 0
      %1283 = vmatpush1.bf16.msra.mxu0 0
      %1284 = vmatprep.subr.bf16.mxu0 0
      %1285 = vmatpush1.bf16.msra.mxu0 0
      %1286 = vmatprep.subr.bf16.mxu0 0
      %1287 = vmatpush1.bf16.msra.mxu0 0
      %1288 = vmatprep.subr.bf16.mxu0 0
      %1289 = vmatpush1.bf16.msra.mxu0 0
      %1290 = vmatprep.subr.bf16.mxu0 0
      %1291 = vmatpush1.bf16.msra.mxu0 0
      %1292 = vmatprep.subr.bf16.mxu0 0
      %1293 = vmatpush1.bf16.msra.mxu0 0
      %1294 = vmatprep.mubr.bf16.mxu0 0
      %1295 = vmatmul.mubr.bf16.gmra.mrb[0].mxu0 %v602
      %v1296 = vpop.f32.mrb[0].mxu0
      %v1297 = vadd.f32 0.0, %v1296
      %v1298 = vpop.f32.mrb[0].mxu0
      %v1299 = vpop.f32.mrb[0].mxu0
      %v1300 = vadd.f32 0.0, %v1299
      %v1301 = vpop.f32.mrb[0].mxu0
      %1302 = vmatprep.mubr.bf16.mxu0 0
      %1303 = vmatmul.mubr.bf16.gmra.mrb[0].mxu0 %v1174
      %v1304 = vpop.f32.mrb[0].mxu0
      %v1305 = vadd.f32 0.0, %v1304
      %v1306 = vpop.f32.mrb[0].mxu0
      %v1307 = vpop.f32.mrb[0].mxu0
      %v1308 = vadd.f32 0.0, %v1307
      %v1309 = vpop.f32.mrb[0].mxu0
      %1310 = vmatprep.mubr.bf16.mxu0 0
      %1311 = vmatmul.mubr.bf16.gmra.mrb[0].mxu0 %v1175
      %v1312 = vpop.f32.mrb[0].mxu0
      %v1313 = vadd.f32 0.0, %v1312
      %v1314 = vpop.f32.mrb[0].mxu0
      %v1315 = vpop.f32.mrb[0].mxu0
      %v1316 = vadd.f32 0.0, %v1315
      %v1317 = vpop.f32.mrb[0].mxu0
      %1318 = vmatprep.mubr.bf16.mxu0 0
      %1319 = vmatmul.mubr.bf16.gmra.mrb[0].mxu0 %v606
      %v1320 = vpop.f32.mrb[0].mxu0
      %v1321 = vadd.f32 0.0, %v1320
      %v1322 = vpop.f32.mrb[0].mxu0
      %v1323 = vpop.f32.mrb[0].mxu0
      %v1324 = vadd.f32 0.0, %v1323
      %v1325 = vpop.f32.mrb[0].mxu0
      %1326 = vmatprep.mubr.bf16.mxu0 0
      %1327 = vmatmul.mubr.bf16.gmra.mrb[0].mxu0 %v1176
      %v1328 = vpop.f32.mrb[0].mxu0
      %v1329 = vadd.f32 0.0, %v1328
      %v1330 = vpop.f32.mrb[0].mxu0
      %v1331 = vpop.f32.mrb[0].mxu0
      %v1332 = vadd.f32 0.0, %v1331
      %v1333 = vpop.f32.mrb[0].mxu0
      %1334 = vmatprep.mubr.bf16.mxu0 0
      %1335 = vmatmul.mubr.bf16.gmra.mrb[0].mxu0 %v1177
      %v1336 = vpop.f32.mrb[0].mxu0
      %v1337 = vadd.f32 0.0, %v1336
      %v1338 = vpop.f32.mrb[0].mxu0
      %v1339 = vpop.f32.mrb[0].mxu0
      %v1340 = vadd.f32 0.0, %v1339
      %v1341 = vpop.f32.mrb[0].mxu0
      %1342 = vmatprep.mubr.bf16.mxu0 0
      %1343 = vmatmul.mubr.bf16.gmra.mrb[0].mxu0 %v610
      %v1344 = vpop.f32.mrb[0].mxu0
      %v1345 = vadd.f32 0.0, %v1344
      %v1346 = vpop.f32.mrb[0].mxu0
      %v1347 = vpop.f32.mrb[0].mxu0
      %v1348 = vadd.f32 0.0, %v1347
      %v1349 = vpop.f32.mrb[0].mxu0
      %1350 = vmatprep.mubr.bf16.mxu0 0
      %1351 = vmatmul.mubr.bf16.gmra.mrb[0].mxu0 %v1178
      %v1352 = vpop.f32.mrb[0].mxu0
      %v1353 = vadd.f32 0.0, %v1352
      %v1354 = vpop.f32.mrb[0].mxu0
      %v1355 = vpop.f32.mrb[0].mxu0
      %v1356 = vadd.f32 0.0, %v1355
      %v1357 = vpop.f32.mrb[0].mxu0
      %1358 = vmatprep.mubr.bf16.mxu0 0
      %1359 = vmatmul.mubr.bf16.gmra.mrb[0].mxu0 %v1179
      %v1360 = vpop.f32.mrb[0].mxu0
      %v1361 = vadd.f32 0.0, %v1360
      %v1362 = vpop.f32.mrb[0].mxu0
      %v1363 = vpop.f32.mrb[0].mxu0
      %v1364 = vadd.f32 0.0, %v1363
      %v1365 = vpop.f32.mrb[0].mxu0
      %1366 = vmatprep.mubr.bf16.mxu0 0
      %1367 = vmatmul.mubr.bf16.gmra.mrb[0].mxu0 %v614
      %v1368 = vpop.f32.mrb[0].mxu0
      %v1369 = vadd.f32 0.0, %v1368
      %v1370 = vpop.f32.mrb[0].mxu0
      %v1371 = vpop.f32.mrb[0].mxu0
      %v1372 = vadd.f32 0.0, %v1371
      %v1373 = vpop.f32.mrb[0].mxu0
      %1374 = vmatprep.mubr.bf16.mxu0 0
      %1375 = vmatmul.mubr.bf16.gmra.mrb[0].mxu0 %v1180
      %v1376 = vpop.f32.mrb[0].mxu0
      %v1377 = vadd.f32 0.0, %v1376
      %v1378 = vpop.f32.mrb[0].mxu0
      %v1379 = vpop.f32.mrb[0].mxu0
      %v1380 = vadd.f32 0.0, %v1379
      %v1381 = vpop.f32.mrb[0].mxu0
      %1382 = vmatprep.mubr.bf16.mxu0 0
      %1383 = vmatmul.mubr.bf16.gmra.mrb[0].mxu0 %v1181
      %v1384 = vpop.f32.mrb[0].mxu0
      %v1385 = vadd.f32 0.0, %v1384
      %v1386 = vpop.f32.mrb[0].mxu0
      %v1387 = vpop.f32.mrb[0].mxu0
      %v1388 = vadd.f32 0.0, %v1387
      %v1389 = vpop.f32.mrb[0].mxu0
      %1390 = vmatprep.mubr.bf16.mxu0 0
      %1391 = vmatmul.mubr.bf16.gmra.mrb[0].mxu0 %v618
      %v1392 = vpop.f32.mrb[0].mxu0
      %v1393 = vadd.f32 0.0, %v1392
      %v1394 = vpop.f32.mrb[0].mxu0
      %v1395 = vpop.f32.mrb[0].mxu0
      %v1396 = vadd.f32 0.0, %v1395
      %v1397 = vpop.f32.mrb[0].mxu0
      %1398 = vmatprep.mubr.bf16.mxu0 0
      %1399 = vmatmul.mubr.bf16.gmra.mrb[0].mxu0 %v1182
      %v1400 = vpop.f32.mrb[0].mxu0
      %v1401 = vadd.f32 0.0, %v1400
      %v1402 = vpop.f32.mrb[0].mxu0
      %v1403 = vpop.f32.mrb[0].mxu0
      %v1404 = vadd.f32 0.0, %v1403
      %v1405 = vpop.f32.mrb[0].mxu0
      %1406 = vmatprep.mubr.bf16.mxu0 0
      %1407 = vmatmul.mubr.bf16.gmra.mrb[0].mxu0 %v1183
      %v1408 = vpop.f32.mrb[0].mxu0
      %v1409 = vadd.f32 0.0, %v1408
      %v1410 = vpop.f32.mrb[0].mxu0
      %v1411 = vpop.f32.mrb[0].mxu0
      %v1412 = vadd.f32 0.0, %v1411
      %v1413 = vpop.f32.mrb[0].mxu0
      %1414 = vmatprep.mubr.bf16.mxu0 0
      %1415 = vmatmul.mubr.bf16.gmra.mrb[0].mxu0 %v622
      %v1416 = vpop.f32.mrb[0].mxu0
      %v1417 = vadd.f32 0.0, %v1416
      %v1418 = vpop.f32.mrb[0].mxu0
      %v1419 = vpop.f32.mrb[0].mxu0
      %v1420 = vadd.f32 0.0, %v1419
      %v1421 = vpop.f32.mrb[0].mxu0
      %1422 = vmatprep.mubr.bf16.mxu0 0
      %1423 = vmatmul.mubr.bf16.gmra.mrb[0].mxu0 %v1184
      %v1424 = vpop.f32.mrb[0].mxu0
      %v1425 = vadd.f32 0.0, %v1424
      %v1426 = vpop.f32.mrb[0].mxu0
      %v1427 = vpop.f32.mrb[0].mxu0
      %v1428 = vadd.f32 0.0, %v1427
      %v1429 = vpop.f32.mrb[0].mxu0
      %1430 = vmatprep.mubr.bf16.mxu0 0
      %1431 = vmatmul.mubr.bf16.gmra.mrb[0].mxu0 %v1185
      %v1432 = vpop.f32.mrb[0].mxu0
      %v1433 = vadd.f32 0.0, %v1432
      %v1434 = vpop.f32.mrb[0].mxu0
      %v1435 = vpop.f32.mrb[0].mxu0
      %v1436 = vadd.f32 0.0, %v1435
      %v1437 = vpop.f32.mrb[0].mxu0
      %1438 = vmatprep.mubr.bf16.mxu0 0
      %1439 = vmatmul.mubr.bf16.gmra.mrb[0].mxu0 %v626
      %v1440 = vpop.f32.mrb[0].mxu0
      %v1441 = vadd.f32 0.0, %v1440
      %v1442 = vpop.f32.mrb[0].mxu0
      %v1443 = vpop.f32.mrb[0].mxu0
      %v1444 = vadd.f32 0.0, %v1443
      %v1445 = vpop.f32.mrb[0].mxu0
      %1446 = vmatprep.mubr.bf16.mxu0 0
      %1447 = vmatmul.mubr.bf16.gmra.mrb[0].mxu0 %v1186
      %v1448 = vpop.f32.mrb[0].mxu0
      %v1449 = vadd.f32 0.0, %v1448
      %v1450 = vpop.f32.mrb[0].mxu0
      %v1451 = vpop.f32.mrb[0].mxu0
      %v1452 = vadd.f32 0.0, %v1451
      %v1453 = vpop.f32.mrb[0].mxu0
      %1454 = vmatprep.mubr.bf16.mxu0 0
      %1455 = vmatmul.mubr.bf16.gmra.mrb[0].mxu0 %v1187
      %v1456 = vpop.f32.mrb[0].mxu0
      %v1457 = vadd.f32 0.0, %v1456
      %v1458 = vpop.f32.mrb[0].mxu0
      %v1459 = vpop.f32.mrb[0].mxu0
      %v1460 = vadd.f32 0.0, %v1459
      %v1461 = vpop.f32.mrb[0].mxu0
      %1462 = vmatprep.mubr.bf16.mxu0 0
      %1463 = vmatmul.mubr.bf16.gmra.mrb[0].mxu0 %v630
      %v1464 = vpop.f32.mrb[0].mxu0
      %v1465 = vadd.f32 0.0, %v1464
      %v1466 = vpop.f32.mrb[0].mxu0
      %v1467 = vpop.f32.mrb[0].mxu0
      %v1468 = vadd.f32 0.0, %v1467
      %v1469 = vpop.f32.mrb[0].mxu0
      %1470 = vmatprep.mubr.bf16.mxu0 0
      %1471 = vmatmul.mubr.bf16.gmra.mrb[0].mxu0 %v1188
      %v1472 = vpop.f32.mrb[0].mxu0
      %v1473 = vadd.f32 0.0, %v1472
      %v1474 = vpop.f32.mrb[0].mxu0
      %v1475 = vpop.f32.mrb[0].mxu0
      %v1476 = vadd.f32 0.0, %v1475
      %v1477 = vpop.f32.mrb[0].mxu0
      %1478 = vmatprep.mubr.bf16.mxu0 0
      %1479 = vmatmul.mubr.bf16.gmra.mrb[0].mxu0 %v1189
      %v1480 = vpop.f32.mrb[0].mxu0
      %v1481 = vadd.f32 0.0, %v1480
      %v1482 = vpop.f32.mrb[0].mxu0
      %v1483 = vpop.f32.mrb[0].mxu0
      %v1484 = vadd.f32 0.0, %v1483
      %v1485 = vpop.f32.mrb[0].mxu0
      %1486 = vdwg.mxu0
      %v1487 = vpack.c.b16 %v1094, %v1093
      %v1488 = vpack.c.b16 %v1096, %v1095
      %v1489 = vpack.c.b16 %v1098, %v1097
      %v1490 = vpack.c.b16 %v1100, %v1099
      %v1491 = vpack.c.b16 %v1102, %v1101
      %v1492 = vpack.c.b16 %v1104, %v1103
      %v1493 = vpack.c.b16 %v1106, %v1105
      %v1494 = vpack.c.b16 %v1108, %v1107
      %v1495 = vpack.c.b16 %v1110, %v1109
      %v1496 = vpack.c.b16 %v1112, %v1111
      %v1497 = vpack.c.b16 %v1114, %v1113
      %v1498 = vpack.c.b16 %v1116, %v1115
      %v1499 = vpack.c.b16 %v1118, %v1117
      %v1500 = vpack.c.b16 %v1120, %v1119
      %v1501 = vpack.c.b16 %v1122, %v1121
      %v1502 = vpack.c.b16 %v1124, %v1123
      %v1503 = vpack.c.b16 %v1126, %v1125
      %v1504 = vpack.c.b16 %v1128, %v1127
      %v1505 = vpack.c.b16 %v1130, %v1129
      %v1506 = vpack.c.b16 %v1132, %v1131
      %v1507 = vpack.c.b16 %v1134, %v1133
      %v1508 = vpack.c.b16 %v1136, %v1135
      %v1509 = vpack.c.b16 %v1138, %v1137
      %v1510 = vpack.c.b16 %v1140, %v1139
      %v1551 = vunpack.c.l.b16 %v1141
      %v1552 = vunpack.c.l.b16 %v1142
      %v1553 = vunpack.c.l.b16 %v1143
      %v1554 = vunpack.c.l.b16 %v1144
      %v1555 = vunpack.c.l.b16 %v1145
      %v1556 = vunpack.c.l.b16 %v1146
      %v1557 = vunpack.c.l.b16 %v1147
      %v1558 = vunpack.c.l.b16 %v1148
      %v1559 = vunpack.c.l.b16 %v1149
      %v1560 = vunpack.c.l.b16 %v1150
      %v1561 = vunpack.c.l.b16 %v1151
      %v1562 = vunpack.c.l.b16 %v1152
      %v1563 = vunpack.c.l.b16 %v1153
      %v1564 = vunpack.c.l.b16 %v1154
      %v1565 = vunpack.c.l.b16 %v1155
      %v1566 = vunpack.c.l.b16 %v1156
      %v1567 = vpack.c.b16 %v1552, %v1551
      %v1568 = vpack.c.b16 %v1554, %v1553
      %v1569 = vpack.c.b16 %v1556, %v1555
      %v1570 = vpack.c.b16 %v1558, %v1557
      %v1571 = vpack.c.b16 %v1560, %v1559
      %v1572 = vpack.c.b16 %v1562, %v1561
      %v1573 = vpack.c.b16 %v1564, %v1563
      %v1574 = vpack.c.b16 %v1566, %v1565
      %1583 = vmatprep.subr.bf16.mxu0 0
      %1584 = vmatpush1.bf16.msra.mxu0 %v1567
      %1585 = vmatprep.subr.bf16.mxu0 0
      %1586 = vmatpush1.bf16.msra.mxu0 %v1568
      %1587 = vmatprep.subr.bf16.mxu0 0
      %1588 = vmatpush1.bf16.msra.mxu0 %v1569
      %1589 = vmatprep.subr.bf16.mxu0 0
      %1590 = vmatpush1.bf16.msra.mxu0 %v1570
      %1591 = vmatprep.subr.bf16.mxu0 0
      %1592 = vmatpush1.bf16.msra.mxu0 %v1571
      %1593 = vmatprep.subr.bf16.mxu0 0
      %1594 = vmatpush1.bf16.msra.mxu0 %v1572
      %1595 = vmatprep.subr.bf16.mxu0 0
      %1596 = vmatpush1.bf16.msra.mxu0 %v1573
      %1597 = vmatprep.subr.bf16.mxu0 0
      %1598 = vmatpush1.bf16.msra.mxu0 %v1574
      %1599 = vmatprep.subr.bf16.mxu0 0
      %1600 = vmatpush1.bf16.msra.mxu0 0
      %1601 = vmatprep.subr.bf16.mxu0 0
      %1602 = vmatpush1.bf16.msra.mxu0 0
      %1603 = vmatprep.subr.bf16.mxu0 0
      %1604 = vmatpush1.bf16.msra.mxu0 0
      %1605 = vmatprep.subr.bf16.mxu0 0
      %1606 = vmatpush1.bf16.msra.mxu0 0
      %1607 = vmatprep.subr.bf16.mxu0 0
      %1608 = vmatpush1.bf16.msra.mxu0 0
      %1609 = vmatprep.subr.bf16.mxu0 0
      %1610 = vmatpush1.bf16.msra.mxu0 0
      %1611 = vmatprep.subr.bf16.mxu0 0
      %1612 = vmatpush1.bf16.msra.mxu0 0
      %1613 = vmatprep.subr.bf16.mxu0 0
      %1614 = vmatpush1.bf16.msra.mxu0 0
      %1615 = vmatprep.mubr.bf16.mxu0 0
      %1616 = vmatmul.mubr.bf16.gmra.mrb[0].mxu0 %v1487
      %v1617 = vpop.f32.mrb[0].mxu0
      %v1618 = vadd.f32 %v1297, %v1617
      %v1619 = vpop.f32.mrb[0].mxu0
      %v1620 = vpop.f32.mrb[0].mxu0
      %v1621 = vadd.f32 %v1300, %v1620
      %v1622 = vpop.f32.mrb[0].mxu0
      %1623 = vmatprep.mubr.bf16.mxu0 0
      %1624 = vmatmul.mubr.bf16.gmra.mrb[0].mxu0 %v1488
      %v1625 = vpop.f32.mrb[0].mxu0
      %v1626 = vadd.f32 %v1305, %v1625
      %v1627 = vpop.f32.mrb[0].mxu0
      %v1628 = vpop.f32.mrb[0].mxu0
      %v1629 = vadd.f32 %v1308, %v1628
      %v1630 = vpop.f32.mrb[0].mxu0
      %1631 = vmatprep.mubr.bf16.mxu0 0
      %1632 = vmatmul.mubr.bf16.gmra.mrb[0].mxu0 %v1489
      %v1633 = vpop.f32.mrb[0].mxu0
      %v1634 = vadd.f32 %v1313, %v1633
      %v1635 = vpop.f32.mrb[0].mxu0
      %v1636 = vpop.f32.mrb[0].mxu0
      %v1637 = vadd.f32 %v1316, %v1636
      %v1638 = vpop.f32.mrb[0].mxu0
      %1639 = vmatprep.mubr.bf16.mxu0 0
      %1640 = vmatmul.mubr.bf16.gmra.mrb[0].mxu0 %v1490
      %v1641 = vpop.f32.mrb[0].mxu0
      %v1642 = vadd.f32 %v1321, %v1641
      %v1643 = vpop.f32.mrb[0].mxu0
      %v1644 = vpop.f32.mrb[0].mxu0
      %v1645 = vadd.f32 %v1324, %v1644
      %v1646 = vpop.f32.mrb[0].mxu0
      %1647 = vmatprep.mubr.bf16.mxu0 0
      %1648 = vmatmul.mubr.bf16.gmra.mrb[0].mxu0 %v1491
      %v1649 = vpop.f32.mrb[0].mxu0
      %v1650 = vadd.f32 %v1329, %v1649
      %v1651 = vpop.f32.mrb[0].mxu0
      %v1652 = vpop.f32.mrb[0].mxu0
      %v1653 = vadd.f32 %v1332, %v1652
      %v1654 = vpop.f32.mrb[0].mxu0
      %1655 = vmatprep.mubr.bf16.mxu0 0
      %1656 = vmatmul.mubr.bf16.gmra.mrb[0].mxu0 %v1492
      %v1657 = vpop.f32.mrb[0].mxu0
      %v1658 = vadd.f32 %v1337, %v1657
      %v1659 = vpop.f32.mrb[0].mxu0
      %v1660 = vpop.f32.mrb[0].mxu0
      %v1661 = vadd.f32 %v1340, %v1660
      %v1662 = vpop.f32.mrb[0].mxu0
      %1663 = vmatprep.mubr.bf16.mxu0 0
      %1664 = vmatmul.mubr.bf16.gmra.mrb[0].mxu0 %v1493
      %v1665 = vpop.f32.mrb[0].mxu0
      %v1666 = vadd.f32 %v1345, %v1665
      %v1667 = vpop.f32.mrb[0].mxu0
      %v1668 = vpop.f32.mrb[0].mxu0
      %v1669 = vadd.f32 %v1348, %v1668
      %v1670 = vpop.f32.mrb[0].mxu0
      %1671 = vmatprep.mubr.bf16.mxu0 0
      %1672 = vmatmul.mubr.bf16.gmra.mrb[0].mxu0 %v1494
      %v1673 = vpop.f32.mrb[0].mxu0
      %v1674 = vadd.f32 %v1353, %v1673
      %v1675 = vpop.f32.mrb[0].mxu0
      %v1676 = vpop.f32.mrb[0].mxu0
      %v1677 = vadd.f32 %v1356, %v1676
      %v1678 = vpop.f32.mrb[0].mxu0
      %1679 = vmatprep.mubr.bf16.mxu0 0
      %1680 = vmatmul.mubr.bf16.gmra.mrb[0].mxu0 %v1495
      %v1681 = vpop.f32.mrb[0].mxu0
      %v1682 = vadd.f32 %v1361, %v1681
      %v1683 = vpop.f32.mrb[0].mxu0
      %v1684 = vpop.f32.mrb[0].mxu0
      %v1685 = vadd.f32 %v1364, %v1684
      %v1686 = vpop.f32.mrb[0].mxu0
      %1687 = vmatprep.mubr.bf16.mxu0 0
      %1688 = vmatmul.mubr.bf16.gmra.mrb[0].mxu0 %v1496
      %v1689 = vpop.f32.mrb[0].mxu0
      %v1690 = vadd.f32 %v1369, %v1689
      %v1691 = vpop.f32.mrb[0].mxu0
      %v1692 = vpop.f32.mrb[0].mxu0
      %v1693 = vadd.f32 %v1372, %v1692
      %v1694 = vpop.f32.mrb[0].mxu0
      %1695 = vmatprep.mubr.bf16.mxu0 0
      %1696 = vmatmul.mubr.bf16.gmra.mrb[0].mxu0 %v1497
      %v1697 = vpop.f32.mrb[0].mxu0
      %v1698 = vadd.f32 %v1377, %v1697
      %v1699 = vpop.f32.mrb[0].mxu0
      %v1700 = vpop.f32.mrb[0].mxu0
      %v1701 = vadd.f32 %v1380, %v1700
      %v1702 = vpop.f32.mrb[0].mxu0
      %1703 = vmatprep.mubr.bf16.mxu0 0
      %1704 = vmatmul.mubr.bf16.gmra.mrb[0].mxu0 %v1498
      %v1705 = vpop.f32.mrb[0].mxu0
      %v1706 = vadd.f32 %v1385, %v1705
      %v1707 = vpop.f32.mrb[0].mxu0
      %v1708 = vpop.f32.mrb[0].mxu0
      %v1709 = vadd.f32 %v1388, %v1708
      %v1710 = vpop.f32.mrb[0].mxu0
      %1711 = vmatprep.mubr.bf16.mxu0 0
      %1712 = vmatmul.mubr.bf16.gmra.mrb[0].mxu0 %v1499
      %v1713 = vpop.f32.mrb[0].mxu0
      %v1714 = vadd.f32 %v1393, %v1713
      %v1715 = vpop.f32.mrb[0].mxu0
      %v1716 = vpop.f32.mrb[0].mxu0
      %v1717 = vadd.f32 %v1396, %v1716
      %v1718 = vpop.f32.mrb[0].mxu0
      %1719 = vmatprep.mubr.bf16.mxu0 0
      %1720 = vmatmul.mubr.bf16.gmra.mrb[0].mxu0 %v1500
      %v1721 = vpop.f32.mrb[0].mxu0
      %v1722 = vadd.f32 %v1401, %v1721
      %v1723 = vpop.f32.mrb[0].mxu0
      %v1724 = vpop.f32.mrb[0].mxu0
      %v1725 = vadd.f32 %v1404, %v1724
      %v1726 = vpop.f32.mrb[0].mxu0
      %1727 = vmatprep.mubr.bf16.mxu0 0
      %1728 = vmatmul.mubr.bf16.gmra.mrb[0].mxu0 %v1501
      %v1729 = vpop.f32.mrb[0].mxu0
      %v1730 = vadd.f32 %v1409, %v1729
      %v1731 = vpop.f32.mrb[0].mxu0
      %v1732 = vpop.f32.mrb[0].mxu0
      %v1733 = vadd.f32 %v1412, %v1732
      %v1734 = vpop.f32.mrb[0].mxu0
      %1735 = vmatprep.mubr.bf16.mxu0 0
      %1736 = vmatmul.mubr.bf16.gmra.mrb[0].mxu0 %v1502
      %v1737 = vpop.f32.mrb[0].mxu0
      %v1738 = vadd.f32 %v1417, %v1737
      %v1739 = vpop.f32.mrb[0].mxu0
      %v1740 = vpop.f32.mrb[0].mxu0
      %v1741 = vadd.f32 %v1420, %v1740
      %v1742 = vpop.f32.mrb[0].mxu0
      %1743 = vmatprep.mubr.bf16.mxu0 0
      %1744 = vmatmul.mubr.bf16.gmra.mrb[0].mxu0 %v1503
      %v1745 = vpop.f32.mrb[0].mxu0
      %v1746 = vadd.f32 %v1425, %v1745
      %v1747 = vpop.f32.mrb[0].mxu0
      %v1748 = vpop.f32.mrb[0].mxu0
      %v1749 = vadd.f32 %v1428, %v1748
      %v1750 = vpop.f32.mrb[0].mxu0
      %1751 = vmatprep.mubr.bf16.mxu0 0
      %1752 = vmatmul.mubr.bf16.gmra.mrb[0].mxu0 %v1504
      %v1753 = vpop.f32.mrb[0].mxu0
      %v1754 = vadd.f32 %v1433, %v1753
      %v1755 = vpop.f32.mrb[0].mxu0
      %v1756 = vpop.f32.mrb[0].mxu0
      %v1757 = vadd.f32 %v1436, %v1756
      %v1758 = vpop.f32.mrb[0].mxu0
      %1759 = vmatprep.mubr.bf16.mxu0 0
      %1760 = vmatmul.mubr.bf16.gmra.mrb[0].mxu0 %v1505
      %v1761 = vpop.f32.mrb[0].mxu0
      %v1762 = vadd.f32 %v1441, %v1761
      %v1763 = vpop.f32.mrb[0].mxu0
      %v1764 = vpop.f32.mrb[0].mxu0
      %v1765 = vadd.f32 %v1444, %v1764
      %v1766 = vpop.f32.mrb[0].mxu0
      %1767 = vmatprep.mubr.bf16.mxu0 0
      %1768 = vmatmul.mubr.bf16.gmra.mrb[0].mxu0 %v1506
      %v1769 = vpop.f32.mrb[0].mxu0
      %v1770 = vadd.f32 %v1449, %v1769
      %v1771 = vpop.f32.mrb[0].mxu0
      %v1772 = vpop.f32.mrb[0].mxu0
      %v1773 = vadd.f32 %v1452, %v1772
      %v1774 = vpop.f32.mrb[0].mxu0
      %1775 = vmatprep.mubr.bf16.mxu0 0
      %1776 = vmatmul.mubr.bf16.gmra.mrb[0].mxu0 %v1507
      %v1777 = vpop.f32.mrb[0].mxu0
      %v1778 = vadd.f32 %v1457, %v1777
      %v1779 = vpop.f32.mrb[0].mxu0
      %v1780 = vpop.f32.mrb[0].mxu0
      %v1781 = vadd.f32 %v1460, %v1780
      %v1782 = vpop.f32.mrb[0].mxu0
      %1783 = vmatprep.mubr.bf16.mxu0 0
      %1784 = vmatmul.mubr.bf16.gmra.mrb[0].mxu0 %v1508
      %v1785 = vpop.f32.mrb[0].mxu0
      %v1786 = vadd.f32 %v1465, %v1785
      %v1787 = vpop.f32.mrb[0].mxu0
      %v1788 = vpop.f32.mrb[0].mxu0
      %v1789 = vadd.f32 %v1468, %v1788
      %v1790 = vpop.f32.mrb[0].mxu0
      %1791 = vmatprep.mubr.bf16.mxu0 0
      %1792 = vmatmul.mubr.bf16.gmra.mrb[0].mxu0 %v1509
      %v1793 = vpop.f32.mrb[0].mxu0
      %v1794 = vadd.f32 %v1473, %v1793
      %v1795 = vpop.f32.mrb[0].mxu0
      %v1796 = vpop.f32.mrb[0].mxu0
      %v1797 = vadd.f32 %v1476, %v1796
      %v1798 = vpop.f32.mrb[0].mxu0
      %1799 = vmatprep.mubr.bf16.mxu0 0
      %1800 = vmatmul.mubr.bf16.gmra.mrb[0].mxu0 %v1510
      %v1801 = vpop.f32.mrb[0].mxu0
      %v1802 = vadd.f32 %v1481, %v1801
      %v1803 = vpop.f32.mrb[0].mxu0
      %v1804 = vpop.f32.mrb[0].mxu0
      %v1805 = vadd.f32 %v1484, %v1804
      %v1806 = vpop.f32.mrb[0].mxu0
      %1807 = vdwg.mxu0
      %v1824 = vunpack.c.l.b16 %v951
      %v1825 = vunpack.c.h.b16 %v951
      %v1826 = vunpack.c.l.b16 %v1059
      %v1827 = vunpack.c.l.b16 %v956
      %v1828 = vunpack.c.h.b16 %v956
      %v1829 = vunpack.c.l.b16 %v1060
      %v1830 = vunpack.c.l.b16 %v961
      %v1831 = vunpack.c.h.b16 %v961
      %v1832 = vunpack.c.l.b16 %v1061
      %v1833 = vunpack.c.l.b16 %v966
      %v1834 = vunpack.c.h.b16 %v966
      %v1835 = vunpack.c.l.b16 %v1062
      %v1836 = vunpack.c.l.b16 %v971
      %v1837 = vunpack.c.h.b16 %v971
      %v1838 = vunpack.c.l.b16 %v1063
      %v1839 = vunpack.c.l.b16 %v976
      %v1840 = vunpack.c.h.b16 %v976
      %v1841 = vunpack.c.l.b16 %v1064
      %v1842 = vunpack.c.l.b16 %v981
      %v1843 = vunpack.c.h.b16 %v981
      %v1844 = vunpack.c.l.b16 %v1065
      %v1845 = vunpack.c.l.b16 %v986
      %v1846 = vunpack.c.h.b16 %v986
      %v1847 = vunpack.c.l.b16 %v1066
      %v1848 = vunpack.c.l.b16 %v991
      %v1849 = vunpack.c.h.b16 %v991
      %v1850 = vunpack.c.l.b16 %v1067
      %v1851 = vunpack.c.l.b16 %v996
      %v1852 = vunpack.c.h.b16 %v996
      %v1853 = vunpack.c.l.b16 %v1068
      %v1854 = vunpack.c.l.b16 %v1001
      %v1855 = vunpack.c.h.b16 %v1001
      %v1856 = vunpack.c.l.b16 %v1069
      %v1857 = vunpack.c.l.b16 %v1006
      %v1858 = vunpack.c.h.b16 %v1006
      %v1859 = vunpack.c.l.b16 %v1070
      %v1860 = vunpack.c.l.b16 %v1011
      %v1861 = vunpack.c.h.b16 %v1011
      %v1862 = vunpack.c.l.b16 %v1071
      %v1863 = vunpack.c.l.b16 %v1016
      %v1864 = vunpack.c.h.b16 %v1016
      %v1865 = vunpack.c.l.b16 %v1072
      %v1866 = vunpack.c.l.b16 %v1021
      %v1867 = vunpack.c.h.b16 %v1021
      %v1868 = vunpack.c.l.b16 %v1073
      %v1869 = vunpack.c.l.b16 %v1026
      %v1870 = vunpack.c.h.b16 %v1026
      %v1871 = vunpack.c.l.b16 %v1074
      %s1872 = scalar_lea.vmem %s3, 128
      %v1873 = vld [vmem:[%s1872] sm:$0xf]
      %v1874 = vld [vmem:[%s1872 + $0x4] sm:$0xf]
      %v1875 = vld [vmem:[%s1872 + $0x8] sm:$0xf]
      %v1876 = vld [vmem:[%s1872 + $0xc] sm:$0xf]
      %v1877 = vld [vmem:[%s1872 + $0x10] sm:$0xf]
      %v1878 = vld [vmem:[%s1872 + $0x14] sm:$0xf]
      %v1879 = vld [vmem:[%s1872 + $0x18] sm:$0xf]
      %v1880 = vld [vmem:[%s1872 + $0x1c] sm:$0xf]
      %v1881 = vld [vmem:[%s1872 + $0x20] sm:$0xf]
      %v1882 = vld [vmem:[%s1872 + $0x24] sm:$0xf]
      %v1883 = vld [vmem:[%s1872 + $0x28] sm:$0xf]
      %v1884 = vld [vmem:[%s1872 + $0x2c] sm:$0xf]
      %v1885 = vld [vmem:[%s1872 + $0x30] sm:$0xf]
      %v1886 = vld [vmem:[%s1872 + $0x34] sm:$0xf]
      %v1887 = vld [vmem:[%s1872 + $0x38] sm:$0xf]
      %v1888 = vld [vmem:[%s1872 + $0x3c] sm:$0xf]
      %v1889 = vpack.c.b16 %v1825, %v1824
      %v1890 = vpack.c.b16 %v1827, %v1826
      %v1891 = vpack.c.b16 %v1829, %v1828
      %v1892 = vpack.c.b16 %v1831, %v1830
      %v1893 = vpack.c.b16 %v1833, %v1832
      %v1894 = vpack.c.b16 %v1835, %v1834
      %v1895 = vpack.c.b16 %v1837, %v1836
      %v1896 = vpack.c.b16 %v1839, %v1838
      %v1897 = vpack.c.b16 %v1841, %v1840
      %v1898 = vpack.c.b16 %v1843, %v1842
      %v1899 = vpack.c.b16 %v1845, %v1844
      %v1900 = vpack.c.b16 %v1847, %v1846
      %v1901 = vpack.c.b16 %v1849, %v1848
      %v1902 = vpack.c.b16 %v1851, %v1850
      %v1903 = vpack.c.b16 %v1853, %v1852
      %v1904 = vpack.c.b16 %v1855, %v1854
      %v1905 = vpack.c.b16 %v1857, %v1856
      %v1906 = vpack.c.b16 %v1859, %v1858
      %v1907 = vpack.c.b16 %v1861, %v1860
      %v1908 = vpack.c.b16 %v1863, %v1862
      %v1909 = vpack.c.b16 %v1865, %v1864
      %v1910 = vpack.c.b16 %v1867, %v1866
      %v1911 = vpack.c.b16 %v1869, %v1868
      %v1912 = vpack.c.b16 %v1871, %v1870
      %v1953 = vunpack.c.l.b16 %v1873
      %v1954 = vunpack.c.l.b16 %v1874
      %v1955 = vunpack.c.l.b16 %v1875
      %v1956 = vunpack.c.l.b16 %v1876
      %v1957 = vunpack.c.l.b16 %v1877
      %v1958 = vunpack.c.l.b16 %v1878
      %v1959 = vunpack.c.l.b16 %v1879
      %v1960 = vunpack.c.l.b16 %v1880
      %v1961 = vunpack.c.l.b16 %v1881
      %v1962 = vunpack.c.l.b16 %v1882
      %v1963 = vunpack.c.l.b16 %v1883
      %v1964 = vunpack.c.l.b16 %v1884
      %v1965 = vunpack.c.l.b16 %v1885
      %v1966 = vunpack.c.l.b16 %v1886
      %v1967 = vunpack.c.l.b16 %v1887
      %v1968 = vunpack.c.l.b16 %v1888
      %v1969 = vpack.c.b16 %v1954, %v1953
      %v1970 = vpack.c.b16 %v1956, %v1955
      %v1971 = vpack.c.b16 %v1958, %v1957
      %v1972 = vpack.c.b16 %v1960, %v1959
      %v1973 = vpack.c.b16 %v1962, %v1961
      %v1974 = vpack.c.b16 %v1964, %v1963
      %v1975 = vpack.c.b16 %v1966, %v1965
      %v1976 = vpack.c.b16 %v1968, %v1967
      %1985 = vmatprep.subr.bf16.mxu0 0
      %1986 = vmatpush1.bf16.msra.mxu0 %v1969
      %1987 = vmatprep.subr.bf16.mxu0 0
      %1988 = vmatpush1.bf16.msra.mxu0 %v1970
      %1989 = vmatprep.subr.bf16.mxu0 0
      %1990 = vmatpush1.bf16.msra.mxu0 %v1971
      %1991 = vmatprep.subr.bf16.mxu0 0
      %1992 = vmatpush1.bf16.msra.mxu0 %v1972
      %1993 = vmatprep.subr.bf16.mxu0 0
      %1994 = vmatpush1.bf16.msra.mxu0 %v1973
      %1995 = vmatprep.subr.bf16.mxu0 0
      %1996 = vmatpush1.bf16.msra.mxu0 %v1974
      %1997 = vmatprep.subr.bf16.mxu0 0
      %1998 = vmatpush1.bf16.msra.mxu0 %v1975
      %1999 = vmatprep.subr.bf16.mxu0 0
      %2000 = vmatpush1.bf16.msra.mxu0 %v1976
      %2001 = vmatprep.subr.bf16.mxu0 0
      %2002 = vmatpush1.bf16.msra.mxu0 0
      %2003 = vmatprep.subr.bf16.mxu0 0
      %2004 = vmatpush1.bf16.msra.mxu0 0
      %2005 = vmatprep.subr.bf16.mxu0 0
      %2006 = vmatpush1.bf16.msra.mxu0 0
      %2007 = vmatprep.subr.bf16.mxu0 0
      %2008 = vmatpush1.bf16.msra.mxu0 0
      %2009 = vmatprep.subr.bf16.mxu0 0
      %2010 = vmatpush1.bf16.msra.mxu0 0
      %2011 = vmatprep.subr.bf16.mxu0 0
      %2012 = vmatpush1.bf16.msra.mxu0 0
      %2013 = vmatprep.subr.bf16.mxu0 0
      %2014 = vmatpush1.bf16.msra.mxu0 0
      %2015 = vmatprep.subr.bf16.mxu0 0
      %2016 = vmatpush1.bf16.msra.mxu0 0
      %2017 = vmatprep.mubr.bf16.mxu0 0
      %2018 = vmatmul.mubr.bf16.gmra.mrb[0].mxu0 %v1889
      %v2019 = vpop.f32.mrb[0].mxu0
      %v2020 = vadd.f32 0.0, %v2019
      %v2021 = vpop.f32.mrb[0].mxu0
      %v2022 = vpop.f32.mrb[0].mxu0
      %v2023 = vadd.f32 0.0, %v2022
      %v2024 = vpop.f32.mrb[0].mxu0
      %2025 = vmatprep.mubr.bf16.mxu0 0
      %2026 = vmatmul.mubr.bf16.gmra.mrb[0].mxu0 %v1890
      %v2027 = vpop.f32.mrb[0].mxu0
      %v2028 = vadd.f32 0.0, %v2027
      %v2029 = vpop.f32.mrb[0].mxu0
      %v2030 = vpop.f32.mrb[0].mxu0
      %v2031 = vadd.f32 0.0, %v2030
      %v2032 = vpop.f32.mrb[0].mxu0
      %2033 = vmatprep.mubr.bf16.mxu0 0
      %2034 = vmatmul.mubr.bf16.gmra.mrb[0].mxu0 %v1891
      %v2035 = vpop.f32.mrb[0].mxu0
      %v2036 = vadd.f32 0.0, %v2035
      %v2037 = vpop.f32.mrb[0].mxu0
      %v2038 = vpop.f32.mrb[0].mxu0
      %v2039 = vadd.f32 0.0, %v2038
      %v2040 = vpop.f32.mrb[0].mxu0
      %2041 = vmatprep.mubr.bf16.mxu0 0
      %2042 = vmatmul.mubr.bf16.gmra.mrb[0].mxu0 %v1892
      %v2043 = vpop.f32.mrb[0].mxu0
      %v2044 = vadd.f32 0.0, %v2043
      %v2045 = vpop.f32.mrb[0].mxu0
      %v2046 = vpop.f32.mrb[0].mxu0
      %v2047 = vadd.f32 0.0, %v2046
      %v2048 = vpop.f32.mrb[0].mxu0
      %2049 = vmatprep.mubr.bf16.mxu0 0
      %2050 = vmatmul.mubr.bf16.gmra.mrb[0].mxu0 %v1893
      %v2051 = vpop.f32.mrb[0].mxu0
      %v2052 = vadd.f32 0.0, %v2051
      %v2053 = vpop.f32.mrb[0].mxu0
      %v2054 = vpop.f32.mrb[0].mxu0
      %v2055 = vadd.f32 0.0, %v2054
      %v2056 = vpop.f32.mrb[0].mxu0
      %2057 = vmatprep.mubr.bf16.mxu0 0
      %2058 = vmatmul.mubr.bf16.gmra.mrb[0].mxu0 %v1894
      %v2059 = vpop.f32.mrb[0].mxu0
      %v2060 = vadd.f32 0.0, %v2059
      %v2061 = vpop.f32.mrb[0].mxu0
      %v2062 = vpop.f32.mrb[0].mxu0
      %v2063 = vadd.f32 0.0, %v2062
      %v2064 = vpop.f32.mrb[0].mxu0
      %2065 = vmatprep.mubr.bf16.mxu0 0
      %2066 = vmatmul.mubr.bf16.gmra.mrb[0].mxu0 %v1895
      %v2067 = vpop.f32.mrb[0].mxu0
      %v2068 = vadd.f32 0.0, %v2067
      %v2069 = vpop.f32.mrb[0].mxu0
      %v2070 = vpop.f32.mrb[0].mxu0
      %v2071 = vadd.f32 0.0, %v2070
      %v2072 = vpop.f32.mrb[0].mxu0
      %2073 = vmatprep.mubr.bf16.mxu0 0
      %2074 = vmatmul.mubr.bf16.gmra.mrb[0].mxu0 %v1896
      %v2075 = vpop.f32.mrb[0].mxu0
      %v2076 = vadd.f32 0.0, %v2075
      %v2077 = vpop.f32.mrb[0].mxu0
      %v2078 = vpop.f32.mrb[0].mxu0
      %v2079 = vadd.f32 0.0, %v2078
      %v2080 = vpop.f32.mrb[0].mxu0
      %2081 = vmatprep.mubr.bf16.mxu0 0
      %2082 = vmatmul.mubr.bf16.gmra.mrb[0].mxu0 %v1897
      %v2083 = vpop.f32.mrb[0].mxu0
      %v2084 = vadd.f32 0.0, %v2083
      %v2085 = vpop.f32.mrb[0].mxu0
      %v2086 = vpop.f32.mrb[0].mxu0
      %v2087 = vadd.f32 0.0, %v2086
      %v2088 = vpop.f32.mrb[0].mxu0
      %2089 = vmatprep.mubr.bf16.mxu0 0
      %2090 = vmatmul.mubr.bf16.gmra.mrb[0].mxu0 %v1898
      %v2091 = vpop.f32.mrb[0].mxu0
      %v2092 = vadd.f32 0.0, %v2091
      %v2093 = vpop.f32.mrb[0].mxu0
      %v2094 = vpop.f32.mrb[0].mxu0
      %v2095 = vadd.f32 0.0, %v2094
      %v2096 = vpop.f32.mrb[0].mxu0
      %2097 = vmatprep.mubr.bf16.mxu0 0
      %2098 = vmatmul.mubr.bf16.gmra.mrb[0].mxu0 %v1899
      %v2099 = vpop.f32.mrb[0].mxu0
      %v2100 = vadd.f32 0.0, %v2099
      %v2101 = vpop.f32.mrb[0].mxu0
      %v2102 = vpop.f32.mrb[0].mxu0
      %v2103 = vadd.f32 0.0, %v2102
      %v2104 = vpop.f32.mrb[0].mxu0
      %2105 = vmatprep.mubr.bf16.mxu0 0
      %2106 = vmatmul.mubr.bf16.gmra.mrb[0].mxu0 %v1900
      %v2107 = vpop.f32.mrb[0].mxu0
      %v2108 = vadd.f32 0.0, %v2107
      %v2109 = vpop.f32.mrb[0].mxu0
      %v2110 = vpop.f32.mrb[0].mxu0
      %v2111 = vadd.f32 0.0, %v2110
      %v2112 = vpop.f32.mrb[0].mxu0
      %2113 = vmatprep.mubr.bf16.mxu0 0
      %2114 = vmatmul.mubr.bf16.gmra.mrb[0].mxu0 %v1901
      %v2115 = vpop.f32.mrb[0].mxu0
      %v2116 = vadd.f32 0.0, %v2115
      %v2117 = vpop.f32.mrb[0].mxu0
      %v2118 = vpop.f32.mrb[0].mxu0
      %v2119 = vadd.f32 0.0, %v2118
      %v2120 = vpop.f32.mrb[0].mxu0
      %2121 = vmatprep.mubr.bf16.mxu0 0
      %2122 = vmatmul.mubr.bf16.gmra.mrb[0].mxu0 %v1902
      %v2123 = vpop.f32.mrb[0].mxu0
      %v2124 = vadd.f32 0.0, %v2123
      %v2125 = vpop.f32.mrb[0].mxu0
      %v2126 = vpop.f32.mrb[0].mxu0
      %v2127 = vadd.f32 0.0, %v2126
      %v2128 = vpop.f32.mrb[0].mxu0
      %2129 = vmatprep.mubr.bf16.mxu0 0
      %2130 = vmatmul.mubr.bf16.gmra.mrb[0].mxu0 %v1903
      %v2131 = vpop.f32.mrb[0].mxu0
      %v2132 = vadd.f32 0.0, %v2131
      %v2133 = vpop.f32.mrb[0].mxu0
      %v2134 = vpop.f32.mrb[0].mxu0
      %v2135 = vadd.f32 0.0, %v2134
      %v2136 = vpop.f32.mrb[0].mxu0
      %2137 = vmatprep.mubr.bf16.mxu0 0
      %2138 = vmatmul.mubr.bf16.gmra.mrb[0].mxu0 %v1904
      %v2139 = vpop.f32.mrb[0].mxu0
      %v2140 = vadd.f32 0.0, %v2139
      %v2141 = vpop.f32.mrb[0].mxu0
      %v2142 = vpop.f32.mrb[0].mxu0
      %v2143 = vadd.f32 0.0, %v2142
      %v2144 = vpop.f32.mrb[0].mxu0
      %2145 = vmatprep.mubr.bf16.mxu0 0
      %2146 = vmatmul.mubr.bf16.gmra.mrb[0].mxu0 %v1905
      %v2147 = vpop.f32.mrb[0].mxu0
      %v2148 = vadd.f32 0.0, %v2147
      %v2149 = vpop.f32.mrb[0].mxu0
      %v2150 = vpop.f32.mrb[0].mxu0
      %v2151 = vadd.f32 0.0, %v2150
      %v2152 = vpop.f32.mrb[0].mxu0
      %2153 = vmatprep.mubr.bf16.mxu0 0
      %2154 = vmatmul.mubr.bf16.gmra.mrb[0].mxu0 %v1906
      %v2155 = vpop.f32.mrb[0].mxu0
      %v2156 = vadd.f32 0.0, %v2155
      %v2157 = vpop.f32.mrb[0].mxu0
      %v2158 = vpop.f32.mrb[0].mxu0
      %v2159 = vadd.f32 0.0, %v2158
      %v2160 = vpop.f32.mrb[0].mxu0
      %2161 = vmatprep.mubr.bf16.mxu0 0
      %2162 = vmatmul.mubr.bf16.gmra.mrb[0].mxu0 %v1907
      %v2163 = vpop.f32.mrb[0].mxu0
      %v2164 = vadd.f32 0.0, %v2163
      %v2165 = vpop.f32.mrb[0].mxu0
      %v2166 = vpop.f32.mrb[0].mxu0
      %v2167 = vadd.f32 0.0, %v2166
      %v2168 = vpop.f32.mrb[0].mxu0
      %2169 = vmatprep.mubr.bf16.mxu0 0
      %2170 = vmatmul.mubr.bf16.gmra.mrb[0].mxu0 %v1908
      %v2171 = vpop.f32.mrb[0].mxu0
      %v2172 = vadd.f32 0.0, %v2171
      %v2173 = vpop.f32.mrb[0].mxu0
      %v2174 = vpop.f32.mrb[0].mxu0
      %v2175 = vadd.f32 0.0, %v2174
      %v2176 = vpop.f32.mrb[0].mxu0
      %2177 = vmatprep.mubr.bf16.mxu0 0
      %2178 = vmatmul.mubr.bf16.gmra.mrb[0].mxu0 %v1909
      %v2179 = vpop.f32.mrb[0].mxu0
      %v2180 = vadd.f32 0.0, %v2179
      %v2181 = vpop.f32.mrb[0].mxu0
      %v2182 = vpop.f32.mrb[0].mxu0
      %v2183 = vadd.f32 0.0, %v2182
      %v2184 = vpop.f32.mrb[0].mxu0
      %2185 = vmatprep.mubr.bf16.mxu0 0
      %2186 = vmatmul.mubr.bf16.gmra.mrb[0].mxu0 %v1910
      %v2187 = vpop.f32.mrb[0].mxu0
      %v2188 = vadd.f32 0.0, %v2187
      %v2189 = vpop.f32.mrb[0].mxu0
      %v2190 = vpop.f32.mrb[0].mxu0
      %v2191 = vadd.f32 0.0, %v2190
      %v2192 = vpop.f32.mrb[0].mxu0
      %2193 = vmatprep.mubr.bf16.mxu0 0
      %2194 = vmatmul.mubr.bf16.gmra.mrb[0].mxu0 %v1911
      %v2195 = vpop.f32.mrb[0].mxu0
      %v2196 = vadd.f32 0.0, %v2195
      %v2197 = vpop.f32.mrb[0].mxu0
      %v2198 = vpop.f32.mrb[0].mxu0
      %v2199 = vadd.f32 0.0, %v2198
      %v2200 = vpop.f32.mrb[0].mxu0
      %2201 = vmatprep.mubr.bf16.mxu0 0
      %2202 = vmatmul.mubr.bf16.gmra.mrb[0].mxu0 %v1912
      %v2203 = vpop.f32.mrb[0].mxu0
      %v2204 = vadd.f32 0.0, %v2203
      %v2205 = vpop.f32.mrb[0].mxu0
      %v2206 = vpop.f32.mrb[0].mxu0
      %v2207 = vadd.f32 0.0, %v2206
      %v2208 = vpop.f32.mrb[0].mxu0
      %2209 = vdwg.mxu0
      %v2210 = vadd.f32 %v1618, %v2020
      %v2211 = vadd.f32 %v1621, %v2023
      %v2212 = vadd.f32 %v1626, %v2028
      %v2213 = vadd.f32 %v1629, %v2031
      %v2214 = vadd.f32 %v1634, %v2036
      %v2215 = vadd.f32 %v1637, %v2039
      %v2216 = vadd.f32 %v1642, %v2044
      %v2217 = vadd.f32 %v1645, %v2047
      %v2218 = vadd.f32 %v1650, %v2052
      %v2219 = vadd.f32 %v1653, %v2055
      %v2220 = vadd.f32 %v1658, %v2060
      %v2221 = vadd.f32 %v1661, %v2063
      %v2222 = vadd.f32 %v1666, %v2068
      %v2223 = vadd.f32 %v1669, %v2071
      %v2224 = vadd.f32 %v1674, %v2076
      %v2225 = vadd.f32 %v1677, %v2079
      %v2226 = vadd.f32 %v1682, %v2084
      %v2227 = vadd.f32 %v1685, %v2087
      %v2228 = vadd.f32 %v1690, %v2092
      %v2229 = vadd.f32 %v1693, %v2095
      %v2230 = vadd.f32 %v1698, %v2100
      %v2231 = vadd.f32 %v1701, %v2103
      %v2232 = vadd.f32 %v1706, %v2108
      %v2233 = vadd.f32 %v1709, %v2111
      %v2234 = vadd.f32 %v1714, %v2116
      %v2235 = vadd.f32 %v1717, %v2119
      %v2236 = vadd.f32 %v1722, %v2124
      %v2237 = vadd.f32 %v1725, %v2127
      %v2238 = vadd.f32 %v1730, %v2132
      %v2239 = vadd.f32 %v1733, %v2135
      %v2240 = vadd.f32 %v1738, %v2140
      %v2241 = vadd.f32 %v1741, %v2143
      %v2242 = vadd.f32 %v1746, %v2148
      %v2243 = vadd.f32 %v1749, %v2151
      %v2244 = vadd.f32 %v1754, %v2156
      %v2245 = vadd.f32 %v1757, %v2159
      %v2246 = vadd.f32 %v1762, %v2164
      %v2247 = vadd.f32 %v1765, %v2167
      %v2248 = vadd.f32 %v1770, %v2172
      %v2249 = vadd.f32 %v1773, %v2175
      %v2250 = vadd.f32 %v1778, %v2180
      %v2251 = vadd.f32 %v1781, %v2183
      %v2252 = vadd.f32 %v1786, %v2188
      %v2253 = vadd.f32 %v1789, %v2191
      %v2254 = vadd.f32 %v1794, %v2196
      %v2255 = vadd.f32 %v1797, %v2199
      %v2256 = vadd.f32 %v1802, %v2204
      %v2257 = vadd.f32 %v1805, %v2207
      %v2259 = vunpack.c.l.b16 %v945
      %v2260 = vunpack.c.h.b16 %v945
      %v2261 = vunpack.c.l.b16 %v893
      %s2262 = scalar_lea.vmem %s3, 192
      %v2263 = vld [vmem:[%s2262] sm:$0xf]
      %v2264 = vld [vmem:[%s2262 + $0x4] sm:$0xf]
      %v2265 = vld [vmem:[%s2262 + $0x8] sm:$0xf]
      %v2266 = vld [vmem:[%s2262 + $0xc] sm:$0xf]
      %v2267 = vld [vmem:[%s2262 + $0x10] sm:$0xf]
      %v2268 = vld [vmem:[%s2262 + $0x14] sm:$0xf]
      %v2269 = vld [vmem:[%s2262 + $0x18] sm:$0xf]
      %v2270 = vld [vmem:[%s2262 + $0x1c] sm:$0xf]
      %v2271 = vld [vmem:[%s2262 + $0x20] sm:$0xf]
      %v2272 = vld [vmem:[%s2262 + $0x24] sm:$0xf]
      %v2273 = vld [vmem:[%s2262 + $0x28] sm:$0xf]
      %v2274 = vld [vmem:[%s2262 + $0x2c] sm:$0xf]
      %v2275 = vld [vmem:[%s2262 + $0x30] sm:$0xf]
      %v2276 = vld [vmem:[%s2262 + $0x34] sm:$0xf]
      %v2277 = vld [vmem:[%s2262 + $0x38] sm:$0xf]
      %v2278 = vld [vmem:[%s2262 + $0x3c] sm:$0xf]
      %v2279 = vpack.c.b16 %v1097, %v1096
      %v2280 = vpack.c.b16 %v1099, %v1098
      %v2281 = vpack.c.b16 %v1101, %v1100
      %v2282 = vpack.c.b16 %v1103, %v1102
      %v2283 = vpack.c.b16 %v1105, %v1104
      %v2284 = vpack.c.b16 %v1107, %v1106
      %v2285 = vpack.c.b16 %v1109, %v1108
      %v2286 = vpack.c.b16 %v1111, %v1110
      %v2287 = vpack.c.b16 %v1113, %v1112
      %v2288 = vpack.c.b16 %v1115, %v1114
      %v2289 = vpack.c.b16 %v1117, %v1116
      %v2290 = vpack.c.b16 %v1119, %v1118
      %v2291 = vpack.c.b16 %v1121, %v1120
      %v2292 = vpack.c.b16 %v1123, %v1122
      %v2293 = vpack.c.b16 %v1125, %v1124
      %v2294 = vpack.c.b16 %v1127, %v1126
      %v2295 = vpack.c.b16 %v1129, %v1128
      %v2296 = vpack.c.b16 %v1131, %v1130
      %v2297 = vpack.c.b16 %v1133, %v1132
      %v2298 = vpack.c.b16 %v1135, %v1134
      %v2299 = vpack.c.b16 %v1137, %v1136
      %v2300 = vpack.c.b16 %v1139, %v1138
      %v2301 = vpack.c.b16 %v2259, %v1140
      %v2302 = vpack.c.b16 %v2261, %v2260
      %v2343 = vunpack.c.l.b16 %v2263
      %v2344 = vunpack.c.l.b16 %v2264
      %v2345 = vunpack.c.l.b16 %v2265
      %v2346 = vunpack.c.l.b16 %v2266
      %v2347 = vunpack.c.l.b16 %v2267
      %v2348 = vunpack.c.l.b16 %v2268
      %v2349 = vunpack.c.l.b16 %v2269
      %v2350 = vunpack.c.l.b16 %v2270
      %v2351 = vunpack.c.l.b16 %v2271
      %v2352 = vunpack.c.l.b16 %v2272
      %v2353 = vunpack.c.l.b16 %v2273
      %v2354 = vunpack.c.l.b16 %v2274
      %v2355 = vunpack.c.l.b16 %v2275
      %v2356 = vunpack.c.l.b16 %v2276
      %v2357 = vunpack.c.l.b16 %v2277
      %v2358 = vunpack.c.l.b16 %v2278
      %v2359 = vpack.c.b16 %v2344, %v2343
      %v2360 = vpack.c.b16 %v2346, %v2345
      %v2361 = vpack.c.b16 %v2348, %v2347
      %v2362 = vpack.c.b16 %v2350, %v2349
      %v2363 = vpack.c.b16 %v2352, %v2351
      %v2364 = vpack.c.b16 %v2354, %v2353
      %v2365 = vpack.c.b16 %v2356, %v2355
      %v2366 = vpack.c.b16 %v2358, %v2357
      %2375 = vmatprep.subr.bf16.mxu0 0
      %2376 = vmatpush1.bf16.msra.mxu0 %v2359
      %2377 = vmatprep.subr.bf16.mxu0 0
      %2378 = vmatpush1.bf16.msra.mxu0 %v2360
      %2379 = vmatprep.subr.bf16.mxu0 0
      %2380 = vmatpush1.bf16.msra.mxu0 %v2361
      %2381 = vmatprep.subr.bf16.mxu0 0
      %2382 = vmatpush1.bf16.msra.mxu0 %v2362
      %2383 = vmatprep.subr.bf16.mxu0 0
      %2384 = vmatpush1.bf16.msra.mxu0 %v2363
      %2385 = vmatprep.subr.bf16.mxu0 0
      %2386 = vmatpush1.bf16.msra.mxu0 %v2364
      %2387 = vmatprep.subr.bf16.mxu0 0
      %2388 = vmatpush1.bf16.msra.mxu0 %v2365
      %2389 = vmatprep.subr.bf16.mxu0 0
      %2390 = vmatpush1.bf16.msra.mxu0 %v2366
      %2391 = vmatprep.subr.bf16.mxu0 0
      %2392 = vmatpush1.bf16.msra.mxu0 0
      %2393 = vmatprep.subr.bf16.mxu0 0
      %2394 = vmatpush1.bf16.msra.mxu0 0
      %2395 = vmatprep.subr.bf16.mxu0 0
      %2396 = vmatpush1.bf16.msra.mxu0 0
      %2397 = vmatprep.subr.bf16.mxu0 0
      %2398 = vmatpush1.bf16.msra.mxu0 0
      %2399 = vmatprep.subr.bf16.mxu0 0
      %2400 = vmatpush1.bf16.msra.mxu0 0
      %2401 = vmatprep.subr.bf16.mxu0 0
      %2402 = vmatpush1.bf16.msra.mxu0 0
      %2403 = vmatprep.subr.bf16.mxu0 0
      %2404 = vmatpush1.bf16.msra.mxu0 0
      %2405 = vmatprep.subr.bf16.mxu0 0
      %2406 = vmatpush1.bf16.msra.mxu0 0
      %2407 = vmatprep.mubr.bf16.mxu0 0
      %2408 = vmatmul.mubr.bf16.gmra.mrb[0].mxu0 %v2279
      %v2409 = vpop.f32.mrb[0].mxu0
      %v2410 = vadd.f32 0.0, %v2409
      %v2411 = vpop.f32.mrb[0].mxu0
      %v2412 = vpop.f32.mrb[0].mxu0
      %v2413 = vadd.f32 0.0, %v2412
      %v2414 = vpop.f32.mrb[0].mxu0
      %2415 = vmatprep.mubr.bf16.mxu0 0
      %2416 = vmatmul.mubr.bf16.gmra.mrb[0].mxu0 %v2280
      %v2417 = vpop.f32.mrb[0].mxu0
      %v2418 = vadd.f32 0.0, %v2417
      %v2419 = vpop.f32.mrb[0].mxu0
      %v2420 = vpop.f32.mrb[0].mxu0
      %v2421 = vadd.f32 0.0, %v2420
      %v2422 = vpop.f32.mrb[0].mxu0
      %2423 = vmatprep.mubr.bf16.mxu0 0
      %2424 = vmatmul.mubr.bf16.gmra.mrb[0].mxu0 %v2281
      %v2425 = vpop.f32.mrb[0].mxu0
      %v2426 = vadd.f32 0.0, %v2425
      %v2427 = vpop.f32.mrb[0].mxu0
      %v2428 = vpop.f32.mrb[0].mxu0
      %v2429 = vadd.f32 0.0, %v2428
      %v2430 = vpop.f32.mrb[0].mxu0
      %2431 = vmatprep.mubr.bf16.mxu0 0
      %2432 = vmatmul.mubr.bf16.gmra.mrb[0].mxu0 %v2282
      %v2433 = vpop.f32.mrb[0].mxu0
      %v2434 = vadd.f32 0.0, %v2433
      %v2435 = vpop.f32.mrb[0].mxu0
      %v2436 = vpop.f32.mrb[0].mxu0
      %v2437 = vadd.f32 0.0, %v2436
      %v2438 = vpop.f32.mrb[0].mxu0
      %2439 = vmatprep.mubr.bf16.mxu0 0
      %2440 = vmatmul.mubr.bf16.gmra.mrb[0].mxu0 %v2283
      %v2441 = vpop.f32.mrb[0].mxu0
      %v2442 = vadd.f32 0.0, %v2441
      %v2443 = vpop.f32.mrb[0].mxu0
      %v2444 = vpop.f32.mrb[0].mxu0
      %v2445 = vadd.f32 0.0, %v2444
      %v2446 = vpop.f32.mrb[0].mxu0
      %2447 = vmatprep.mubr.bf16.mxu0 0
      %2448 = vmatmul.mubr.bf16.gmra.mrb[0].mxu0 %v2284
      %v2449 = vpop.f32.mrb[0].mxu0
      %v2450 = vadd.f32 0.0, %v2449
      %v2451 = vpop.f32.mrb[0].mxu0
      %v2452 = vpop.f32.mrb[0].mxu0
      %v2453 = vadd.f32 0.0, %v2452
      %v2454 = vpop.f32.mrb[0].mxu0
      %2455 = vmatprep.mubr.bf16.mxu0 0
      %2456 = vmatmul.mubr.bf16.gmra.mrb[0].mxu0 %v2285
      %v2457 = vpop.f32.mrb[0].mxu0
      %v2458 = vadd.f32 0.0, %v2457
      %v2459 = vpop.f32.mrb[0].mxu0
      %v2460 = vpop.f32.mrb[0].mxu0
      %v2461 = vadd.f32 0.0, %v2460
      %v2462 = vpop.f32.mrb[0].mxu0
      %2463 = vmatprep.mubr.bf16.mxu0 0
      %2464 = vmatmul.mubr.bf16.gmra.mrb[0].mxu0 %v2286
      %v2465 = vpop.f32.mrb[0].mxu0
      %v2466 = vadd.f32 0.0, %v2465
      %v2467 = vpop.f32.mrb[0].mxu0
      %v2468 = vpop.f32.mrb[0].mxu0
      %v2469 = vadd.f32 0.0, %v2468
      %v2470 = vpop.f32.mrb[0].mxu0
      %2471 = vmatprep.mubr.bf16.mxu0 0
      %2472 = vmatmul.mubr.bf16.gmra.mrb[0].mxu0 %v2287
      %v2473 = vpop.f32.mrb[0].mxu0
      %v2474 = vadd.f32 0.0, %v2473
      %v2475 = vpop.f32.mrb[0].mxu0
      %v2476 = vpop.f32.mrb[0].mxu0
      %v2477 = vadd.f32 0.0, %v2476
      %v2478 = vpop.f32.mrb[0].mxu0
      %2479 = vmatprep.mubr.bf16.mxu0 0
      %2480 = vmatmul.mubr.bf16.gmra.mrb[0].mxu0 %v2288
      %v2481 = vpop.f32.mrb[0].mxu0
      %v2482 = vadd.f32 0.0, %v2481
      %v2483 = vpop.f32.mrb[0].mxu0
      %v2484 = vpop.f32.mrb[0].mxu0
      %v2485 = vadd.f32 0.0, %v2484
      %v2486 = vpop.f32.mrb[0].mxu0
      %2487 = vmatprep.mubr.bf16.mxu0 0
      %2488 = vmatmul.mubr.bf16.gmra.mrb[0].mxu0 %v2289
      %v2489 = vpop.f32.mrb[0].mxu0
      %v2490 = vadd.f32 0.0, %v2489
      %v2491 = vpop.f32.mrb[0].mxu0
      %v2492 = vpop.f32.mrb[0].mxu0
      %v2493 = vadd.f32 0.0, %v2492
      %v2494 = vpop.f32.mrb[0].mxu0
      %2495 = vmatprep.mubr.bf16.mxu0 0
      %2496 = vmatmul.mubr.bf16.gmra.mrb[0].mxu0 %v2290
      %v2497 = vpop.f32.mrb[0].mxu0
      %v2498 = vadd.f32 0.0, %v2497
      %v2499 = vpop.f32.mrb[0].mxu0
      %v2500 = vpop.f32.mrb[0].mxu0
      %v2501 = vadd.f32 0.0, %v2500
      %v2502 = vpop.f32.mrb[0].mxu0
      %2503 = vmatprep.mubr.bf16.mxu0 0
      %2504 = vmatmul.mubr.bf16.gmra.mrb[0].mxu0 %v2291
      %v2505 = vpop.f32.mrb[0].mxu0
      %v2506 = vadd.f32 0.0, %v2505
      %v2507 = vpop.f32.mrb[0].mxu0
      %v2508 = vpop.f32.mrb[0].mxu0
      %v2509 = vadd.f32 0.0, %v2508
      %v2510 = vpop.f32.mrb[0].mxu0
      %2511 = vmatprep.mubr.bf16.mxu0 0
      %2512 = vmatmul.mubr.bf16.gmra.mrb[0].mxu0 %v2292
      %v2513 = vpop.f32.mrb[0].mxu0
      %v2514 = vadd.f32 0.0, %v2513
      %v2515 = vpop.f32.mrb[0].mxu0
      %v2516 = vpop.f32.mrb[0].mxu0
      %v2517 = vadd.f32 0.0, %v2516
      %v2518 = vpop.f32.mrb[0].mxu0
      %2519 = vmatprep.mubr.bf16.mxu0 0
      %2520 = vmatmul.mubr.bf16.gmra.mrb[0].mxu0 %v2293
      %v2521 = vpop.f32.mrb[0].mxu0
      %v2522 = vadd.f32 0.0, %v2521
      %v2523 = vpop.f32.mrb[0].mxu0
      %v2524 = vpop.f32.mrb[0].mxu0
      %v2525 = vadd.f32 0.0, %v2524
      %v2526 = vpop.f32.mrb[0].mxu0
      %2527 = vmatprep.mubr.bf16.mxu0 0
      %2528 = vmatmul.mubr.bf16.gmra.mrb[0].mxu0 %v2294
      %v2529 = vpop.f32.mrb[0].mxu0
      %v2530 = vadd.f32 0.0, %v2529
      %v2531 = vpop.f32.mrb[0].mxu0
      %v2532 = vpop.f32.mrb[0].mxu0
      %v2533 = vadd.f32 0.0, %v2532
      %v2534 = vpop.f32.mrb[0].mxu0
      %2535 = vmatprep.mubr.bf16.mxu0 0
      %2536 = vmatmul.mubr.bf16.gmra.mrb[0].mxu0 %v2295
      %v2537 = vpop.f32.mrb[0].mxu0
      %v2538 = vadd.f32 0.0, %v2537
      %v2539 = vpop.f32.mrb[0].mxu0
      %v2540 = vpop.f32.mrb[0].mxu0
      %v2541 = vadd.f32 0.0, %v2540
      %v2542 = vpop.f32.mrb[0].mxu0
      %2543 = vmatprep.mubr.bf16.mxu0 0
      %2544 = vmatmul.mubr.bf16.gmra.mrb[0].mxu0 %v2296
      %v2545 = vpop.f32.mrb[0].mxu0
      %v2546 = vadd.f32 0.0, %v2545
      %v2547 = vpop.f32.mrb[0].mxu0
      %v2548 = vpop.f32.mrb[0].mxu0
      %v2549 = vadd.f32 0.0, %v2548
      %v2550 = vpop.f32.mrb[0].mxu0
      %2551 = vmatprep.mubr.bf16.mxu0 0
      %2552 = vmatmul.mubr.bf16.gmra.mrb[0].mxu0 %v2297
      %v2553 = vpop.f32.mrb[0].mxu0
      %v2554 = vadd.f32 0.0, %v2553
      %v2555 = vpop.f32.mrb[0].mxu0
      %v2556 = vpop.f32.mrb[0].mxu0
      %v2557 = vadd.f32 0.0, %v2556
      %v2558 = vpop.f32.mrb[0].mxu0
      %2559 = vmatprep.mubr.bf16.mxu0 0
      %2560 = vmatmul.mubr.bf16.gmra.mrb[0].mxu0 %v2298
      %v2561 = vpop.f32.mrb[0].mxu0
      %v2562 = vadd.f32 0.0, %v2561
      %v2563 = vpop.f32.mrb[0].mxu0
      %v2564 = vpop.f32.mrb[0].mxu0
      %v2565 = vadd.f32 0.0, %v2564
      %v2566 = vpop.f32.mrb[0].mxu0
      %2567 = vmatprep.mubr.bf16.mxu0 0
      %2568 = vmatmul.mubr.bf16.gmra.mrb[0].mxu0 %v2299
      %v2569 = vpop.f32.mrb[0].mxu0
      %v2570 = vadd.f32 0.0, %v2569
      %v2571 = vpop.f32.mrb[0].mxu0
      %v2572 = vpop.f32.mrb[0].mxu0
      %v2573 = vadd.f32 0.0, %v2572
      %v2574 = vpop.f32.mrb[0].mxu0
      %2575 = vmatprep.mubr.bf16.mxu0 0
      %2576 = vmatmul.mubr.bf16.gmra.mrb[0].mxu0 %v2300
      %v2577 = vpop.f32.mrb[0].mxu0
      %v2578 = vadd.f32 0.0, %v2577
      %v2579 = vpop.f32.mrb[0].mxu0
      %v2580 = vpop.f32.mrb[0].mxu0
      %v2581 = vadd.f32 0.0, %v2580
      %v2582 = vpop.f32.mrb[0].mxu0
      %2583 = vmatprep.mubr.bf16.mxu0 0
      %2584 = vmatmul.mubr.bf16.gmra.mrb[0].mxu0 %v2301
      %v2585 = vpop.f32.mrb[0].mxu0
      %v2586 = vadd.f32 0.0, %v2585
      %v2587 = vpop.f32.mrb[0].mxu0
      %v2588 = vpop.f32.mrb[0].mxu0
      %v2589 = vadd.f32 0.0, %v2588
      %v2590 = vpop.f32.mrb[0].mxu0
      %2591 = vmatprep.mubr.bf16.mxu0 0
      %2592 = vmatmul.mubr.bf16.gmra.mrb[0].mxu0 %v2302
      %v2593 = vpop.f32.mrb[0].mxu0
      %v2594 = vadd.f32 0.0, %v2593
      %v2595 = vpop.f32.mrb[0].mxu0
      %v2596 = vpop.f32.mrb[0].mxu0
      %v2597 = vadd.f32 0.0, %v2596
      %v2598 = vpop.f32.mrb[0].mxu0
      %2599 = vdwg.mxu0
      %v2600 = vadd.f32 %v2210, %v2410
      %v2601 = vadd.f32 %v2211, %v2413
      %v2602 = vadd.f32 %v2212, %v2418
      %v2603 = vadd.f32 %v2213, %v2421
      %v2604 = vadd.f32 %v2214, %v2426
      %v2605 = vadd.f32 %v2215, %v2429
      %v2606 = vadd.f32 %v2216, %v2434
      %v2607 = vadd.f32 %v2217, %v2437
      %v2608 = vadd.f32 %v2218, %v2442
      %v2609 = vadd.f32 %v2219, %v2445
      %v2610 = vadd.f32 %v2220, %v2450
      %v2611 = vadd.f32 %v2221, %v2453
      %v2612 = vadd.f32 %v2222, %v2458
      %v2613 = vadd.f32 %v2223, %v2461
      %v2614 = vadd.f32 %v2224, %v2466
      %v2615 = vadd.f32 %v2225, %v2469
      %v2616 = vadd.f32 %v2226, %v2474
      %v2617 = vadd.f32 %v2227, %v2477
      %v2618 = vadd.f32 %v2228, %v2482
      %v2619 = vadd.f32 %v2229, %v2485
      %v2620 = vadd.f32 %v2230, %v2490
      %v2621 = vadd.f32 %v2231, %v2493
      %v2622 = vadd.f32 %v2232, %v2498
      %v2623 = vadd.f32 %v2233, %v2501
      %v2624 = vadd.f32 %v2234, %v2506
      %v2625 = vadd.f32 %v2235, %v2509
      %v2626 = vadd.f32 %v2236, %v2514
      %v2627 = vadd.f32 %v2237, %v2517
      %v2628 = vadd.f32 %v2238, %v2522
      %v2629 = vadd.f32 %v2239, %v2525
      %v2630 = vadd.f32 %v2240, %v2530
      %v2631 = vadd.f32 %v2241, %v2533
      %v2632 = vadd.f32 %v2242, %v2538
      %v2633 = vadd.f32 %v2243, %v2541
      %v2634 = vadd.f32 %v2244, %v2546
      %v2635 = vadd.f32 %v2245, %v2549
      %v2636 = vadd.f32 %v2246, %v2554
      %v2637 = vadd.f32 %v2247, %v2557
      %v2638 = vadd.f32 %v2248, %v2562
      %v2639 = vadd.f32 %v2249, %v2565
      %v2640 = vadd.f32 %v2250, %v2570
      %v2641 = vadd.f32 %v2251, %v2573
      %v2642 = vadd.f32 %v2252, %v2578
      %v2643 = vadd.f32 %v2253, %v2581
      %v2644 = vadd.f32 %v2254, %v2586
      %v2645 = vadd.f32 %v2255, %v2589
      %v2646 = vadd.f32 %v2256, %v2594
      %v2647 = vadd.f32 %v2257, %v2597
      %s2648 = scalar_lea.vmem %s3, 256
      %v2649 = vld [vmem:[%s2648] sm:$0xf]
      %v2650 = vld [vmem:[%s2648 + $0x4] sm:$0xf]
      %v2651 = vld [vmem:[%s2648 + $0x8] sm:$0xf]
      %v2652 = vld [vmem:[%s2648 + $0xc] sm:$0xf]
      %v2653 = vld [vmem:[%s2648 + $0x10] sm:$0xf]
      %v2654 = vld [vmem:[%s2648 + $0x14] sm:$0xf]
      %v2655 = vld [vmem:[%s2648 + $0x18] sm:$0xf]
      %v2656 = vld [vmem:[%s2648 + $0x1c] sm:$0xf]
      %v2657 = vld [vmem:[%s2648 + $0x20] sm:$0xf]
      %v2658 = vld [vmem:[%s2648 + $0x24] sm:$0xf]
      %v2659 = vld [vmem:[%s2648 + $0x28] sm:$0xf]
      %v2660 = vld [vmem:[%s2648 + $0x2c] sm:$0xf]
      %v2661 = vld [vmem:[%s2648 + $0x30] sm:$0xf]
      %v2662 = vld [vmem:[%s2648 + $0x34] sm:$0xf]
      %v2663 = vld [vmem:[%s2648 + $0x38] sm:$0xf]
      %v2664 = vld [vmem:[%s2648 + $0x3c] sm:$0xf]
      %v2665 = vpack.c.b16 %v554, %v553
      %v2666 = vpack.c.b16 %v556, %v555
      %v2667 = vpack.c.b16 %v560, %v559
      %v2668 = vpack.c.b16 %v562, %v561
      %v2669 = vpack.c.b16 %v566, %v565
      %v2670 = vpack.c.b16 %v568, %v567
      %v2671 = vpack.c.b16 %v572, %v571
      %v2672 = vpack.c.b16 %v574, %v573
      %v2673 = vpack.c.b16 %v578, %v577
      %v2674 = vpack.c.b16 %v580, %v579
      %v2675 = vpack.c.b16 %v584, %v583
      %v2676 = vpack.c.b16 %v586, %v585
      %v2677 = vpack.c.b16 %v590, %v589
      %v2678 = vpack.c.b16 %v592, %v591
      %v2679 = vpack.c.b16 %v596, %v595
      %v2680 = vpack.c.b16 %v598, %v597
      %v2721 = vunpack.c.l.b16 %v2649
      %v2722 = vunpack.c.l.b16 %v2650
      %v2723 = vunpack.c.l.b16 %v2651
      %v2724 = vunpack.c.l.b16 %v2652
      %v2725 = vunpack.c.l.b16 %v2653
      %v2726 = vunpack.c.l.b16 %v2654
      %v2727 = vunpack.c.l.b16 %v2655
      %v2728 = vunpack.c.l.b16 %v2656
      %v2729 = vunpack.c.l.b16 %v2657
      %v2730 = vunpack.c.l.b16 %v2658
      %v2731 = vunpack.c.l.b16 %v2659
      %v2732 = vunpack.c.l.b16 %v2660
      %v2733 = vunpack.c.l.b16 %v2661
      %v2734 = vunpack.c.l.b16 %v2662
      %v2735 = vunpack.c.l.b16 %v2663
      %v2736 = vunpack.c.l.b16 %v2664
      %v2737 = vpack.c.b16 %v2722, %v2721
      %v2738 = vpack.c.b16 %v2724, %v2723
      %v2739 = vpack.c.b16 %v2726, %v2725
      %v2740 = vpack.c.b16 %v2728, %v2727
      %v2741 = vpack.c.b16 %v2730, %v2729
      %v2742 = vpack.c.b16 %v2732, %v2731
      %v2743 = vpack.c.b16 %v2734, %v2733
      %v2744 = vpack.c.b16 %v2736, %v2735
      %2753 = vmatprep.subr.bf16.mxu0 0
      %2754 = vmatpush1.bf16.msra.mxu0 %v2737
      %2755 = vmatprep.subr.bf16.mxu0 0
      %2756 = vmatpush1.bf16.msra.mxu0 %v2738
      %2757 = vmatprep.subr.bf16.mxu0 0
      %2758 = vmatpush1.bf16.msra.mxu0 %v2739
      %2759 = vmatprep.subr.bf16.mxu0 0
      %2760 = vmatpush1.bf16.msra.mxu0 %v2740
      %2761 = vmatprep.subr.bf16.mxu0 0
      %2762 = vmatpush1.bf16.msra.mxu0 %v2741
      %2763 = vmatprep.subr.bf16.mxu0 0
      %2764 = vmatpush1.bf16.msra.mxu0 %v2742
      %2765 = vmatprep.subr.bf16.mxu0 0
      %2766 = vmatpush1.bf16.msra.mxu0 %v2743
      %2767 = vmatprep.subr.bf16.mxu0 0
      %2768 = vmatpush1.bf16.msra.mxu0 %v2744
      %2769 = vmatprep.subr.bf16.mxu0 0
      %2770 = vmatpush1.bf16.msra.mxu0 0
      %2771 = vmatprep.subr.bf16.mxu0 0
      %2772 = vmatpush1.bf16.msra.mxu0 0
      %2773 = vmatprep.subr.bf16.mxu0 0
      %2774 = vmatpush1.bf16.msra.mxu0 0
      %2775 = vmatprep.subr.bf16.mxu0 0
      %2776 = vmatpush1.bf16.msra.mxu0 0
      %2777 = vmatprep.subr.bf16.mxu0 0
      %2778 = vmatpush1.bf16.msra.mxu0 0
      %2779 = vmatprep.subr.bf16.mxu0 0
      %2780 = vmatpush1.bf16.msra.mxu0 0
      %2781 = vmatprep.subr.bf16.mxu0 0
      %2782 = vmatpush1.bf16.msra.mxu0 0
      %2783 = vmatprep.subr.bf16.mxu0 0
      %2784 = vmatpush1.bf16.msra.mxu0 0
      %2785 = vmatprep.mubr.bf16.mxu0 0
      %2786 = vmatmul.mubr.bf16.gmra.mrb[0].mxu0 %v604
      %v2787 = vpop.f32.mrb[0].mxu0
      %v2788 = vadd.f32 0.0, %v2787
      %v2789 = vpop.f32.mrb[0].mxu0
      %v2790 = vpop.f32.mrb[0].mxu0
      %v2791 = vadd.f32 0.0, %v2790
      %v2792 = vpop.f32.mrb[0].mxu0
      %2793 = vmatprep.mubr.bf16.mxu0 0
      %2794 = vmatmul.mubr.bf16.gmra.mrb[0].mxu0 %v2665
      %v2795 = vpop.f32.mrb[0].mxu0
      %v2796 = vadd.f32 0.0, %v2795
      %v2797 = vpop.f32.mrb[0].mxu0
      %v2798 = vpop.f32.mrb[0].mxu0
      %v2799 = vadd.f32 0.0, %v2798
      %v2800 = vpop.f32.mrb[0].mxu0
      %2801 = vmatprep.mubr.bf16.mxu0 0
      %2802 = vmatmul.mubr.bf16.gmra.mrb[0].mxu0 %v2666
      %v2803 = vpop.f32.mrb[0].mxu0
      %v2804 = vadd.f32 0.0, %v2803
      %v2805 = vpop.f32.mrb[0].mxu0
      %v2806 = vpop.f32.mrb[0].mxu0
      %v2807 = vadd.f32 0.0, %v2806
      %v2808 = vpop.f32.mrb[0].mxu0
      %2809 = vmatprep.mubr.bf16.mxu0 0
      %2810 = vmatmul.mubr.bf16.gmra.mrb[0].mxu0 %v608
      %v2811 = vpop.f32.mrb[0].mxu0
      %v2812 = vadd.f32 0.0, %v2811
      %v2813 = vpop.f32.mrb[0].mxu0
      %v2814 = vpop.f32.mrb[0].mxu0
      %v2815 = vadd.f32 0.0, %v2814
      %v2816 = vpop.f32.mrb[0].mxu0
      %2817 = vmatprep.mubr.bf16.mxu0 0
      %2818 = vmatmul.mubr.bf16.gmra.mrb[0].mxu0 %v2667
      %v2819 = vpop.f32.mrb[0].mxu0
      %v2820 = vadd.f32 0.0, %v2819
      %v2821 = vpop.f32.mrb[0].mxu0
      %v2822 = vpop.f32.mrb[0].mxu0
      %v2823 = vadd.f32 0.0, %v2822
      %v2824 = vpop.f32.mrb[0].mxu0
      %2825 = vmatprep.mubr.bf16.mxu0 0
      %2826 = vmatmul.mubr.bf16.gmra.mrb[0].mxu0 %v2668
      %v2827 = vpop.f32.mrb[0].mxu0
      %v2828 = vadd.f32 0.0, %v2827
      %v2829 = vpop.f32.mrb[0].mxu0
      %v2830 = vpop.f32.mrb[0].mxu0
      %v2831 = vadd.f32 0.0, %v2830
      %v2832 = vpop.f32.mrb[0].mxu0
      %2833 = vmatprep.mubr.bf16.mxu0 0
      %2834 = vmatmul.mubr.bf16.gmra.mrb[0].mxu0 %v612
      %v2835 = vpop.f32.mrb[0].mxu0
      %v2836 = vadd.f32 0.0, %v2835
      %v2837 = vpop.f32.mrb[0].mxu0
      %v2838 = vpop.f32.mrb[0].mxu0
      %v2839 = vadd.f32 0.0, %v2838
      %v2840 = vpop.f32.mrb[0].mxu0
      %2841 = vmatprep.mubr.bf16.mxu0 0
      %2842 = vmatmul.mubr.bf16.gmra.mrb[0].mxu0 %v2669
      %v2843 = vpop.f32.mrb[0].mxu0
      %v2844 = vadd.f32 0.0, %v2843
      %v2845 = vpop.f32.mrb[0].mxu0
      %v2846 = vpop.f32.mrb[0].mxu0
      %v2847 = vadd.f32 0.0, %v2846
      %v2848 = vpop.f32.mrb[0].mxu0
      %2849 = vmatprep.mubr.bf16.mxu0 0
      %2850 = vmatmul.mubr.bf16.gmra.mrb[0].mxu0 %v2670
      %v2851 = vpop.f32.mrb[0].mxu0
      %v2852 = vadd.f32 0.0, %v2851
      %v2853 = vpop.f32.mrb[0].mxu0
      %v2854 = vpop.f32.mrb[0].mxu0
      %v2855 = vadd.f32 0.0, %v2854
      %v2856 = vpop.f32.mrb[0].mxu0
      %2857 = vmatprep.mubr.bf16.mxu0 0
      %2858 = vmatmul.mubr.bf16.gmra.mrb[0].mxu0 %v616
      %v2859 = vpop.f32.mrb[0].mxu0
      %v2860 = vadd.f32 0.0, %v2859
      %v2861 = vpop.f32.mrb[0].mxu0
      %v2862 = vpop.f32.mrb[0].mxu0
      %v2863 = vadd.f32 0.0, %v2862
      %v2864 = vpop.f32.mrb[0].mxu0
      %2865 = vmatprep.mubr.bf16.mxu0 0
      %2866 = vmatmul.mubr.bf16.gmra.mrb[0].mxu0 %v2671
      %v2867 = vpop.f32.mrb[0].mxu0
      %v2868 = vadd.f32 0.0, %v2867
      %v2869 = vpop.f32.mrb[0].mxu0
      %v2870 = vpop.f32.mrb[0].mxu0
      %v2871 = vadd.f32 0.0, %v2870
      %v2872 = vpop.f32.mrb[0].mxu0
      %2873 = vmatprep.mubr.bf16.mxu0 0
      %2874 = vmatmul.mubr.bf16.gmra.mrb[0].mxu0 %v2672
      %v2875 = vpop.f32.mrb[0].mxu0
      %v2876 = vadd.f32 0.0, %v2875
      %v2877 = vpop.f32.mrb[0].mxu0
      %v2878 = vpop.f32.mrb[0].mxu0
      %v2879 = vadd.f32 0.0, %v2878
      %v2880 = vpop.f32.mrb[0].mxu0
      %2881 = vmatprep.mubr.bf16.mxu0 0
      %2882 = vmatmul.mubr.bf16.gmra.mrb[0].mxu0 %v620
      %v2883 = vpop.f32.mrb[0].mxu0
      %v2884 = vadd.f32 0.0, %v2883
      %v2885 = vpop.f32.mrb[0].mxu0
      %v2886 = vpop.f32.mrb[0].mxu0
      %v2887 = vadd.f32 0.0, %v2886
      %v2888 = vpop.f32.mrb[0].mxu0
      %2889 = vmatprep.mubr.bf16.mxu0 0
      %2890 = vmatmul.mubr.bf16.gmra.mrb[0].mxu0 %v2673
      %v2891 = vpop.f32.mrb[0].mxu0
      %v2892 = vadd.f32 0.0, %v2891
      %v2893 = vpop.f32.mrb[0].mxu0
      %v2894 = vpop.f32.mrb[0].mxu0
      %v2895 = vadd.f32 0.0, %v2894
      %v2896 = vpop.f32.mrb[0].mxu0
      %2897 = vmatprep.mubr.bf16.mxu0 0
      %2898 = vmatmul.mubr.bf16.gmra.mrb[0].mxu0 %v2674
      %v2899 = vpop.f32.mrb[0].mxu0
      %v2900 = vadd.f32 0.0, %v2899
      %v2901 = vpop.f32.mrb[0].mxu0
      %v2902 = vpop.f32.mrb[0].mxu0
      %v2903 = vadd.f32 0.0, %v2902
      %v2904 = vpop.f32.mrb[0].mxu0
      %2905 = vmatprep.mubr.bf16.mxu0 0
      %2906 = vmatmul.mubr.bf16.gmra.mrb[0].mxu0 %v624
      %v2907 = vpop.f32.mrb[0].mxu0
      %v2908 = vadd.f32 0.0, %v2907
      %v2909 = vpop.f32.mrb[0].mxu0
      %v2910 = vpop.f32.mrb[0].mxu0
      %v2911 = vadd.f32 0.0, %v2910
      %v2912 = vpop.f32.mrb[0].mxu0
      %2913 = vmatprep.mubr.bf16.mxu0 0
      %2914 = vmatmul.mubr.bf16.gmra.mrb[0].mxu0 %v2675
      %v2915 = vpop.f32.mrb[0].mxu0
      %v2916 = vadd.f32 0.0, %v2915
      %v2917 = vpop.f32.mrb[0].mxu0
      %v2918 = vpop.f32.mrb[0].mxu0
      %v2919 = vadd.f32 0.0, %v2918
      %v2920 = vpop.f32.mrb[0].mxu0
      %2921 = vmatprep.mubr.bf16.mxu0 0
      %2922 = vmatmul.mubr.bf16.gmra.mrb[0].mxu0 %v2676
      %v2923 = vpop.f32.mrb[0].mxu0
      %v2924 = vadd.f32 0.0, %v2923
      %v2925 = vpop.f32.mrb[0].mxu0
      %v2926 = vpop.f32.mrb[0].mxu0
      %v2927 = vadd.f32 0.0, %v2926
      %v2928 = vpop.f32.mrb[0].mxu0
      %2929 = vmatprep.mubr.bf16.mxu0 0
      %2930 = vmatmul.mubr.bf16.gmra.mrb[0].mxu0 %v628
      %v2931 = vpop.f32.mrb[0].mxu0
      %v2932 = vadd.f32 0.0, %v2931
      %v2933 = vpop.f32.mrb[0].mxu0
      %v2934 = vpop.f32.mrb[0].mxu0
      %v2935 = vadd.f32 0.0, %v2934
      %v2936 = vpop.f32.mrb[0].mxu0
      %2937 = vmatprep.mubr.bf16.mxu0 0
      %2938 = vmatmul.mubr.bf16.gmra.mrb[0].mxu0 %v2677
      %v2939 = vpop.f32.mrb[0].mxu0
      %v2940 = vadd.f32 0.0, %v2939
      %v2941 = vpop.f32.mrb[0].mxu0
      %v2942 = vpop.f32.mrb[0].mxu0
      %v2943 = vadd.f32 0.0, %v2942
      %v2944 = vpop.f32.mrb[0].mxu0
      %2945 = vmatprep.mubr.bf16.mxu0 0
      %2946 = vmatmul.mubr.bf16.gmra.mrb[0].mxu0 %v2678
      %v2947 = vpop.f32.mrb[0].mxu0
      %v2948 = vadd.f32 0.0, %v2947
      %v2949 = vpop.f32.mrb[0].mxu0
      %v2950 = vpop.f32.mrb[0].mxu0
      %v2951 = vadd.f32 0.0, %v2950
      %v2952 = vpop.f32.mrb[0].mxu0
      %2953 = vmatprep.mubr.bf16.mxu0 0
      %2954 = vmatmul.mubr.bf16.gmra.mrb[0].mxu0 %v632
      %v2955 = vpop.f32.mrb[0].mxu0
      %v2956 = vadd.f32 0.0, %v2955
      %v2957 = vpop.f32.mrb[0].mxu0
      %v2958 = vpop.f32.mrb[0].mxu0
      %v2959 = vadd.f32 0.0, %v2958
      %v2960 = vpop.f32.mrb[0].mxu0
      %2961 = vmatprep.mubr.bf16.mxu0 0
      %2962 = vmatmul.mubr.bf16.gmra.mrb[0].mxu0 %v2679
      %v2963 = vpop.f32.mrb[0].mxu0
      %v2964 = vadd.f32 0.0, %v2963
      %v2965 = vpop.f32.mrb[0].mxu0
      %v2966 = vpop.f32.mrb[0].mxu0
      %v2967 = vadd.f32 0.0, %v2966
      %v2968 = vpop.f32.mrb[0].mxu0
      %2969 = vmatprep.mubr.bf16.mxu0 0
      %2970 = vmatmul.mubr.bf16.gmra.mrb[0].mxu0 %v2680
      %v2971 = vpop.f32.mrb[0].mxu0
      %v2972 = vadd.f32 0.0, %v2971
      %v2973 = vpop.f32.mrb[0].mxu0
      %v2974 = vpop.f32.mrb[0].mxu0
      %v2975 = vadd.f32 0.0, %v2974
      %v2976 = vpop.f32.mrb[0].mxu0
      %2977 = vdwg.mxu0
      %v2978 = vadd.f32 %v2600, %v2788
      %v2979 = vadd.f32 %v2601, %v2791
      %v2980 = vadd.f32 %v2602, %v2796
      %v2981 = vadd.f32 %v2603, %v2799
      %v2982 = vadd.f32 %v2604, %v2804
      %v2983 = vadd.f32 %v2605, %v2807
      %v2984 = vadd.f32 %v2606, %v2812
      %v2985 = vadd.f32 %v2607, %v2815
      %v2986 = vadd.f32 %v2608, %v2820
      %v2987 = vadd.f32 %v2609, %v2823
      %v2988 = vadd.f32 %v2610, %v2828
      %v2989 = vadd.f32 %v2611, %v2831
      %v2990 = vadd.f32 %v2612, %v2836
      %v2991 = vadd.f32 %v2613, %v2839
      %v2992 = vadd.f32 %v2614, %v2844
      %v2993 = vadd.f32 %v2615, %v2847
      %v2994 = vadd.f32 %v2616, %v2852
      %v2995 = vadd.f32 %v2617, %v2855
      %v2996 = vadd.f32 %v2618, %v2860
      %v2997 = vadd.f32 %v2619, %v2863
      %v2998 = vadd.f32 %v2620, %v2868
      %v2999 = vadd.f32 %v2621, %v2871
      %v3000 = vadd.f32 %v2622, %v2876
      %v3001 = vadd.f32 %v2623, %v2879
      %v3002 = vadd.f32 %v2624, %v2884
      %v3003 = vadd.f32 %v2625, %v2887
      %v3004 = vadd.f32 %v2626, %v2892
      %v3005 = vadd.f32 %v2627, %v2895
      %v3006 = vadd.f32 %v2628, %v2900
      %v3007 = vadd.f32 %v2629, %v2903
      %v3008 = vadd.f32 %v2630, %v2908
      %v3009 = vadd.f32 %v2631, %v2911
      %v3010 = vadd.f32 %v2632, %v2916
      %v3011 = vadd.f32 %v2633, %v2919
      %v3012 = vadd.f32 %v2634, %v2924
      %v3013 = vadd.f32 %v2635, %v2927
      %v3014 = vadd.f32 %v2636, %v2932
      %v3015 = vadd.f32 %v2637, %v2935
      %v3016 = vadd.f32 %v2638, %v2940
      %v3017 = vadd.f32 %v2639, %v2943
      %v3018 = vadd.f32 %v2640, %v2948
      %v3019 = vadd.f32 %v2641, %v2951
      %v3020 = vadd.f32 %v2642, %v2956
      %v3021 = vadd.f32 %v2643, %v2959
      %v3022 = vadd.f32 %v2644, %v2964
      %v3023 = vadd.f32 %v2645, %v2967
      %v3024 = vadd.f32 %v2646, %v2972
      %v3025 = vadd.f32 %v2647, %v2975
      %v3027 = vunpack.c.l.b16 %v1031
      %v3028 = vunpack.c.h.b16 %v1031
      %v3029 = vunpack.c.l.b16 %v1075
      %s3030 = scalar_lea.vmem %s3, 320
      %v3031 = vld [vmem:[%s3030] sm:$0xf]
      %v3032 = vld [vmem:[%s3030 + $0x4] sm:$0xf]
      %v3033 = vld [vmem:[%s3030 + $0x8] sm:$0xf]
      %v3034 = vld [vmem:[%s3030 + $0xc] sm:$0xf]
      %v3035 = vld [vmem:[%s3030 + $0x10] sm:$0xf]
      %v3036 = vld [vmem:[%s3030 + $0x14] sm:$0xf]
      %v3037 = vld [vmem:[%s3030 + $0x18] sm:$0xf]
      %v3038 = vld [vmem:[%s3030 + $0x1c] sm:$0xf]
      %v3039 = vld [vmem:[%s3030 + $0x20] sm:$0xf]
      %v3040 = vld [vmem:[%s3030 + $0x24] sm:$0xf]
      %v3041 = vld [vmem:[%s3030 + $0x28] sm:$0xf]
      %v3042 = vld [vmem:[%s3030 + $0x2c] sm:$0xf]
      %v3043 = vld [vmem:[%s3030 + $0x30] sm:$0xf]
      %v3044 = vld [vmem:[%s3030 + $0x34] sm:$0xf]
      %v3045 = vld [vmem:[%s3030 + $0x38] sm:$0xf]
      %v3046 = vld [vmem:[%s3030 + $0x3c] sm:$0xf]
      %v3047 = vpack.c.b16 %v1828, %v1827
      %v3048 = vpack.c.b16 %v1830, %v1829
      %v3049 = vpack.c.b16 %v1832, %v1831
      %v3050 = vpack.c.b16 %v1834, %v1833
      %v3051 = vpack.c.b16 %v1836, %v1835
      %v3052 = vpack.c.b16 %v1838, %v1837
      %v3053 = vpack.c.b16 %v1840, %v1839
      %v3054 = vpack.c.b16 %v1842, %v1841
      %v3055 = vpack.c.b16 %v1844, %v1843
      %v3056 = vpack.c.b16 %v1846, %v1845
      %v3057 = vpack.c.b16 %v1848, %v1847
      %v3058 = vpack.c.b16 %v1850, %v1849
      %v3059 = vpack.c.b16 %v1852, %v1851
      %v3060 = vpack.c.b16 %v1854, %v1853
      %v3061 = vpack.c.b16 %v1856, %v1855
      %v3062 = vpack.c.b16 %v1858, %v1857
      %v3063 = vpack.c.b16 %v1860, %v1859
      %v3064 = vpack.c.b16 %v1862, %v1861
      %v3065 = vpack.c.b16 %v1864, %v1863
      %v3066 = vpack.c.b16 %v1866, %v1865
      %v3067 = vpack.c.b16 %v1868, %v1867
      %v3068 = vpack.c.b16 %v1870, %v1869
      %v3069 = vpack.c.b16 %v3027, %v1871
      %v3070 = vpack.c.b16 %v3029, %v3028
      %v3111 = vunpack.c.l.b16 %v3031
      %v3112 = vunpack.c.l.b16 %v3032
      %v3113 = vunpack.c.l.b16 %v3033
      %v3114 = vunpack.c.l.b16 %v3034
      %v3115 = vunpack.c.l.b16 %v3035
      %v3116 = vunpack.c.l.b16 %v3036
      %v3117 = vunpack.c.l.b16 %v3037
      %v3118 = vunpack.c.l.b16 %v3038
      %v3119 = vunpack.c.l.b16 %v3039
      %v3120 = vunpack.c.l.b16 %v3040
      %v3121 = vunpack.c.l.b16 %v3041
      %v3122 = vunpack.c.l.b16 %v3042
      %v3123 = vunpack.c.l.b16 %v3043
      %v3124 = vunpack.c.l.b16 %v3044
      %v3125 = vunpack.c.l.b16 %v3045
      %v3126 = vunpack.c.l.b16 %v3046
      %v3127 = vpack.c.b16 %v3112, %v3111
      %v3128 = vpack.c.b16 %v3114, %v3113
      %v3129 = vpack.c.b16 %v3116, %v3115
      %v3130 = vpack.c.b16 %v3118, %v3117
      %v3131 = vpack.c.b16 %v3120, %v3119
      %v3132 = vpack.c.b16 %v3122, %v3121
      %v3133 = vpack.c.b16 %v3124, %v3123
      %v3134 = vpack.c.b16 %v3126, %v3125
      %3143 = vmatprep.subr.bf16.mxu0 0
      %3144 = vmatpush1.bf16.msra.mxu0 %v3127
      %3145 = vmatprep.subr.bf16.mxu0 0
      %3146 = vmatpush1.bf16.msra.mxu0 %v3128
      %3147 = vmatprep.subr.bf16.mxu0 0
      %3148 = vmatpush1.bf16.msra.mxu0 %v3129
      %3149 = vmatprep.subr.bf16.mxu0 0
      %3150 = vmatpush1.bf16.msra.mxu0 %v3130
      %3151 = vmatprep.subr.bf16.mxu0 0
      %3152 = vmatpush1.bf16.msra.mxu0 %v3131
      %3153 = vmatprep.subr.bf16.mxu0 0
      %3154 = vmatpush1.bf16.msra.mxu0 %v3132
      %3155 = vmatprep.subr.bf16.mxu0 0
      %3156 = vmatpush1.bf16.msra.mxu0 %v3133
      %3157 = vmatprep.subr.bf16.mxu0 0
      %3158 = vmatpush1.bf16.msra.mxu0 %v3134
      %3159 = vmatprep.subr.bf16.mxu0 0
      %3160 = vmatpush1.bf16.msra.mxu0 0
      %3161 = vmatprep.subr.bf16.mxu0 0
      %3162 = vmatpush1.bf16.msra.mxu0 0
      %3163 = vmatprep.subr.bf16.mxu0 0
      %3164 = vmatpush1.bf16.msra.mxu0 0
      %3165 = vmatprep.subr.bf16.mxu0 0
      %3166 = vmatpush1.bf16.msra.mxu0 0
      %3167 = vmatprep.subr.bf16.mxu0 0
      %3168 = vmatpush1.bf16.msra.mxu0 0
      %3169 = vmatprep.subr.bf16.mxu0 0
      %3170 = vmatpush1.bf16.msra.mxu0 0
      %3171 = vmatprep.subr.bf16.mxu0 0
      %3172 = vmatpush1.bf16.msra.mxu0 0
      %3173 = vmatprep.subr.bf16.mxu0 0
      %3174 = vmatpush1.bf16.msra.mxu0 0
      %3175 = vmatprep.mubr.bf16.mxu0 0
      %3176 = vmatmul.mubr.bf16.gmra.mrb[0].mxu0 %v3047
      %v3177 = vpop.f32.mrb[0].mxu0
      %v3178 = vadd.f32 0.0, %v3177
      %v3179 = vpop.f32.mrb[0].mxu0
      %v3180 = vpop.f32.mrb[0].mxu0
      %v3181 = vadd.f32 0.0, %v3180
      %v3182 = vpop.f32.mrb[0].mxu0
      %3183 = vmatprep.mubr.bf16.mxu0 0
      %3184 = vmatmul.mubr.bf16.gmra.mrb[0].mxu0 %v3048
      %v3185 = vpop.f32.mrb[0].mxu0
      %v3186 = vadd.f32 0.0, %v3185
      %v3187 = vpop.f32.mrb[0].mxu0
      %v3188 = vpop.f32.mrb[0].mxu0
      %v3189 = vadd.f32 0.0, %v3188
      %v3190 = vpop.f32.mrb[0].mxu0
      %3191 = vmatprep.mubr.bf16.mxu0 0
      %3192 = vmatmul.mubr.bf16.gmra.mrb[0].mxu0 %v3049
      %v3193 = vpop.f32.mrb[0].mxu0
      %v3194 = vadd.f32 0.0, %v3193
      %v3195 = vpop.f32.mrb[0].mxu0
      %v3196 = vpop.f32.mrb[0].mxu0
      %v3197 = vadd.f32 0.0, %v3196
      %v3198 = vpop.f32.mrb[0].mxu0
      %3199 = vmatprep.mubr.bf16.mxu0 0
      %3200 = vmatmul.mubr.bf16.gmra.mrb[0].mxu0 %v3050
      %v3201 = vpop.f32.mrb[0].mxu0
      %v3202 = vadd.f32 0.0, %v3201
      %v3203 = vpop.f32.mrb[0].mxu0
      %v3204 = vpop.f32.mrb[0].mxu0
      %v3205 = vadd.f32 0.0, %v3204
      %v3206 = vpop.f32.mrb[0].mxu0
      %3207 = vmatprep.mubr.bf16.mxu0 0
      %3208 = vmatmul.mubr.bf16.gmra.mrb[0].mxu0 %v3051
      %v3209 = vpop.f32.mrb[0].mxu0
      %v3210 = vadd.f32 0.0, %v3209
      %v3211 = vpop.f32.mrb[0].mxu0
      %v3212 = vpop.f32.mrb[0].mxu0
      %v3213 = vadd.f32 0.0, %v3212
      %v3214 = vpop.f32.mrb[0].mxu0
      %3215 = vmatprep.mubr.bf16.mxu0 0
      %3216 = vmatmul.mubr.bf16.gmra.mrb[0].mxu0 %v3052
      %v3217 = vpop.f32.mrb[0].mxu0
      %v3218 = vadd.f32 0.0, %v3217
      %v3219 = vpop.f32.mrb[0].mxu0
      %v3220 = vpop.f32.mrb[0].mxu0
      %v3221 = vadd.f32 0.0, %v3220
      %v3222 = vpop.f32.mrb[0].mxu0
      %3223 = vmatprep.mubr.bf16.mxu0 0
      %3224 = vmatmul.mubr.bf16.gmra.mrb[0].mxu0 %v3053
      %v3225 = vpop.f32.mrb[0].mxu0
      %v3226 = vadd.f32 0.0, %v3225
      %v3227 = vpop.f32.mrb[0].mxu0
      %v3228 = vpop.f32.mrb[0].mxu0
      %v3229 = vadd.f32 0.0, %v3228
      %v3230 = vpop.f32.mrb[0].mxu0
      %3231 = vmatprep.mubr.bf16.mxu0 0
      %3232 = vmatmul.mubr.bf16.gmra.mrb[0].mxu0 %v3054
      %v3233 = vpop.f32.mrb[0].mxu0
      %v3234 = vadd.f32 0.0, %v3233
      %v3235 = vpop.f32.mrb[0].mxu0
      %v3236 = vpop.f32.mrb[0].mxu0
      %v3237 = vadd.f32 0.0, %v3236
      %v3238 = vpop.f32.mrb[0].mxu0
      %3239 = vmatprep.mubr.bf16.mxu0 0
      %3240 = vmatmul.mubr.bf16.gmra.mrb[0].mxu0 %v3055
      %v3241 = vpop.f32.mrb[0].mxu0
      %v3242 = vadd.f32 0.0, %v3241
      %v3243 = vpop.f32.mrb[0].mxu0
      %v3244 = vpop.f32.mrb[0].mxu0
      %v3245 = vadd.f32 0.0, %v3244
      %v3246 = vpop.f32.mrb[0].mxu0
      %3247 = vmatprep.mubr.bf16.mxu0 0
      %3248 = vmatmul.mubr.bf16.gmra.mrb[0].mxu0 %v3056
      %v3249 = vpop.f32.mrb[0].mxu0
      %v3250 = vadd.f32 0.0, %v3249
      %v3251 = vpop.f32.mrb[0].mxu0
      %v3252 = vpop.f32.mrb[0].mxu0
      %v3253 = vadd.f32 0.0, %v3252
      %v3254 = vpop.f32.mrb[0].mxu0
      %3255 = vmatprep.mubr.bf16.mxu0 0
      %3256 = vmatmul.mubr.bf16.gmra.mrb[0].mxu0 %v3057
      %v3257 = vpop.f32.mrb[0].mxu0
      %v3258 = vadd.f32 0.0, %v3257
      %v3259 = vpop.f32.mrb[0].mxu0
      %v3260 = vpop.f32.mrb[0].mxu0
      %v3261 = vadd.f32 0.0, %v3260
      %v3262 = vpop.f32.mrb[0].mxu0
      %3263 = vmatprep.mubr.bf16.mxu0 0
      %3264 = vmatmul.mubr.bf16.gmra.mrb[0].mxu0 %v3058
      %v3265 = vpop.f32.mrb[0].mxu0
      %v3266 = vadd.f32 0.0, %v3265
      %v3267 = vpop.f32.mrb[0].mxu0
      %v3268 = vpop.f32.mrb[0].mxu0
      %v3269 = vadd.f32 0.0, %v3268
      %v3270 = vpop.f32.mrb[0].mxu0
      %3271 = vmatprep.mubr.bf16.mxu0 0
      %3272 = vmatmul.mubr.bf16.gmra.mrb[0].mxu0 %v3059
      %v3273 = vpop.f32.mrb[0].mxu0
      %v3274 = vadd.f32 0.0, %v3273
      %v3275 = vpop.f32.mrb[0].mxu0
      %v3276 = vpop.f32.mrb[0].mxu0
      %v3277 = vadd.f32 0.0, %v3276
      %v3278 = vpop.f32.mrb[0].mxu0
      %3279 = vmatprep.mubr.bf16.mxu0 0
      %3280 = vmatmul.mubr.bf16.gmra.mrb[0].mxu0 %v3060
      %v3281 = vpop.f32.mrb[0].mxu0
      %v3282 = vadd.f32 0.0, %v3281
      %v3283 = vpop.f32.mrb[0].mxu0
      %v3284 = vpop.f32.mrb[0].mxu0
      %v3285 = vadd.f32 0.0, %v3284
      %v3286 = vpop.f32.mrb[0].mxu0
      %3287 = vmatprep.mubr.bf16.mxu0 0
      %3288 = vmatmul.mubr.bf16.gmra.mrb[0].mxu0 %v3061
      %v3289 = vpop.f32.mrb[0].mxu0
      %v3290 = vadd.f32 0.0, %v3289
      %v3291 = vpop.f32.mrb[0].mxu0
      %v3292 = vpop.f32.mrb[0].mxu0
      %v3293 = vadd.f32 0.0, %v3292
      %v3294 = vpop.f32.mrb[0].mxu0
      %3295 = vmatprep.mubr.bf16.mxu0 0
      %3296 = vmatmul.mubr.bf16.gmra.mrb[0].mxu0 %v3062
      %v3297 = vpop.f32.mrb[0].mxu0
      %v3298 = vadd.f32 0.0, %v3297
      %v3299 = vpop.f32.mrb[0].mxu0
      %v3300 = vpop.f32.mrb[0].mxu0
      %v3301 = vadd.f32 0.0, %v3300
      %v3302 = vpop.f32.mrb[0].mxu0
      %3303 = vmatprep.mubr.bf16.mxu0 0
      %3304 = vmatmul.mubr.bf16.gmra.mrb[0].mxu0 %v3063
      %v3305 = vpop.f32.mrb[0].mxu0
      %v3306 = vadd.f32 0.0, %v3305
      %v3307 = vpop.f32.mrb[0].mxu0
      %v3308 = vpop.f32.mrb[0].mxu0
      %v3309 = vadd.f32 0.0, %v3308
      %v3310 = vpop.f32.mrb[0].mxu0
      %3311 = vmatprep.mubr.bf16.mxu0 0
      %3312 = vmatmul.mubr.bf16.gmra.mrb[0].mxu0 %v3064
      %v3313 = vpop.f32.mrb[0].mxu0
      %v3314 = vadd.f32 0.0, %v3313
      %v3315 = vpop.f32.mrb[0].mxu0
      %v3316 = vpop.f32.mrb[0].mxu0
      %v3317 = vadd.f32 0.0, %v3316
      %v3318 = vpop.f32.mrb[0].mxu0
      %3319 = vmatprep.mubr.bf16.mxu0 0
      %3320 = vmatmul.mubr.bf16.gmra.mrb[0].mxu0 %v3065
      %v3321 = vpop.f32.mrb[0].mxu0
      %v3322 = vadd.f32 0.0, %v3321
      %v3323 = vpop.f32.mrb[0].mxu0
      %v3324 = vpop.f32.mrb[0].mxu0
      %v3325 = vadd.f32 0.0, %v3324
      %v3326 = vpop.f32.mrb[0].mxu0
      %3327 = vmatprep.mubr.bf16.mxu0 0
      %3328 = vmatmul.mubr.bf16.gmra.mrb[0].mxu0 %v3066
      %v3329 = vpop.f32.mrb[0].mxu0
      %v3330 = vadd.f32 0.0, %v3329
      %v3331 = vpop.f32.mrb[0].mxu0
      %v3332 = vpop.f32.mrb[0].mxu0
      %v3333 = vadd.f32 0.0, %v3332
      %v3334 = vpop.f32.mrb[0].mxu0
      %3335 = vmatprep.mubr.bf16.mxu0 0
      %3336 = vmatmul.mubr.bf16.gmra.mrb[0].mxu0 %v3067
      %v3337 = vpop.f32.mrb[0].mxu0
      %v3338 = vadd.f32 0.0, %v3337
      %v3339 = vpop.f32.mrb[0].mxu0
      %v3340 = vpop.f32.mrb[0].mxu0
      %v3341 = vadd.f32 0.0, %v3340
      %v3342 = vpop.f32.mrb[0].mxu0
      %3343 = vmatprep.mubr.bf16.mxu0 0
      %3344 = vmatmul.mubr.bf16.gmra.mrb[0].mxu0 %v3068
      %v3345 = vpop.f32.mrb[0].mxu0
      %v3346 = vadd.f32 0.0, %v3345
      %v3347 = vpop.f32.mrb[0].mxu0
      %v3348 = vpop.f32.mrb[0].mxu0
      %v3349 = vadd.f32 0.0, %v3348
      %v3350 = vpop.f32.mrb[0].mxu0
      %3351 = vmatprep.mubr.bf16.mxu0 0
      %3352 = vmatmul.mubr.bf16.gmra.mrb[0].mxu0 %v3069
      %v3353 = vpop.f32.mrb[0].mxu0
      %v3354 = vadd.f32 0.0, %v3353
      %v3355 = vpop.f32.mrb[0].mxu0
      %v3356 = vpop.f32.mrb[0].mxu0
      %v3357 = vadd.f32 0.0, %v3356
      %v3358 = vpop.f32.mrb[0].mxu0
      %3359 = vmatprep.mubr.bf16.mxu0 0
      %3360 = vmatmul.mubr.bf16.gmra.mrb[0].mxu0 %v3070
      %v3361 = vpop.f32.mrb[0].mxu0
      %v3362 = vadd.f32 0.0, %v3361
      %v3363 = vpop.f32.mrb[0].mxu0
      %v3364 = vpop.f32.mrb[0].mxu0
      %v3365 = vadd.f32 0.0, %v3364
      %v3366 = vpop.f32.mrb[0].mxu0
      %3367 = vdwg.mxu0
      %v3368 = vadd.f32 %v2978, %v3178
      %v3369 = vadd.f32 %v2979, %v3181
      %v3370 = vadd.f32 %v2980, %v3186
      %v3371 = vadd.f32 %v2981, %v3189
      %v3372 = vadd.f32 %v2982, %v3194
      %v3373 = vadd.f32 %v2983, %v3197
      %v3374 = vadd.f32 %v2984, %v3202
      %v3375 = vadd.f32 %v2985, %v3205
      %v3376 = vadd.f32 %v2986, %v3210
      %v3377 = vadd.f32 %v2987, %v3213
      %v3378 = vadd.f32 %v2988, %v3218
      %v3379 = vadd.f32 %v2989, %v3221
      %v3380 = vadd.f32 %v2990, %v3226
      %v3381 = vadd.f32 %v2991, %v3229
      %v3382 = vadd.f32 %v2992, %v3234
      %v3383 = vadd.f32 %v2993, %v3237
      %v3384 = vadd.f32 %v2994, %v3242
      %v3385 = vadd.f32 %v2995, %v3245
      %v3386 = vadd.f32 %v2996, %v3250
      %v3387 = vadd.f32 %v2997, %v3253
      %v3388 = vadd.f32 %v2998, %v3258
      %v3389 = vadd.f32 %v2999, %v3261
      %v3390 = vadd.f32 %v3000, %v3266
      %v3391 = vadd.f32 %v3001, %v3269
      %v3392 = vadd.f32 %v3002, %v3274
      %v3393 = vadd.f32 %v3003, %v3277
      %v3394 = vadd.f32 %v3004, %v3282
      %v3395 = vadd.f32 %v3005, %v3285
      %v3396 = vadd.f32 %v3006, %v3290
      %v3397 = vadd.f32 %v3007, %v3293
      %v3398 = vadd.f32 %v3008, %v3298
      %v3399 = vadd.f32 %v3009, %v3301
      %v3400 = vadd.f32 %v3010, %v3306
      %v3401 = vadd.f32 %v3011, %v3309
      %v3402 = vadd.f32 %v3012, %v3314
      %v3403 = vadd.f32 %v3013, %v3317
      %v3404 = vadd.f32 %v3014, %v3322
      %v3405 = vadd.f32 %v3015, %v3325
      %v3406 = vadd.f32 %v3016, %v3330
      %v3407 = vadd.f32 %v3017, %v3333
      %v3408 = vadd.f32 %v3018, %v3338
      %v3409 = vadd.f32 %v3019, %v3341
      %v3410 = vadd.f32 %v3020, %v3346
      %v3411 = vadd.f32 %v3021, %v3349
      %v3412 = vadd.f32 %v3022, %v3354
      %v3413 = vadd.f32 %v3023, %v3357
      %v3414 = vadd.f32 %v3024, %v3362
      %v3415 = vadd.f32 %v3025, %v3365
      %v3417 = vunpack.c.l.b16 %v946
      %v3418 = vunpack.c.h.b16 %v946
      %v3419 = vunpack.c.l.b16 %v908
      %s3420 = scalar_lea.vmem %s3, 384
      %v3421 = vld [vmem:[%s3420] sm:$0xf]
      %v3422 = vld [vmem:[%s3420 + $0x4] sm:$0xf]
      %v3423 = vld [vmem:[%s3420 + $0x8] sm:$0xf]
      %v3424 = vld [vmem:[%s3420 + $0xc] sm:$0xf]
      %v3425 = vld [vmem:[%s3420 + $0x10] sm:$0xf]
      %v3426 = vld [vmem:[%s3420 + $0x14] sm:$0xf]
      %v3427 = vld [vmem:[%s3420 + $0x18] sm:$0xf]
      %v3428 = vld [vmem:[%s3420 + $0x1c] sm:$0xf]
      %v3429 = vld [vmem:[%s3420 + $0x20] sm:$0xf]
      %v3430 = vld [vmem:[%s3420 + $0x24] sm:$0xf]
      %v3431 = vld [vmem:[%s3420 + $0x28] sm:$0xf]
      %v3432 = vld [vmem:[%s3420 + $0x2c] sm:$0xf]
      %v3433 = vld [vmem:[%s3420 + $0x30] sm:$0xf]
      %v3434 = vld [vmem:[%s3420 + $0x34] sm:$0xf]
      %v3435 = vld [vmem:[%s3420 + $0x38] sm:$0xf]
      %v3436 = vld [vmem:[%s3420 + $0x3c] sm:$0xf]
      %v3437 = vpack.c.b16 %v2260, %v2259
      %v3438 = vpack.c.b16 %v3417, %v2261
      %v3439 = vpack.c.b16 %v3419, %v3418
      %v3459 = vunpack.c.l.b16 %v3421
      %v3460 = vunpack.c.l.b16 %v3422
      %v3461 = vunpack.c.l.b16 %v3423
      %v3462 = vunpack.c.l.b16 %v3424
      %v3463 = vunpack.c.l.b16 %v3425
      %v3464 = vunpack.c.l.b16 %v3426
      %v3465 = vunpack.c.l.b16 %v3427
      %v3466 = vunpack.c.l.b16 %v3428
      %v3467 = vunpack.c.l.b16 %v3429
      %v3468 = vunpack.c.l.b16 %v3430
      %v3469 = vunpack.c.l.b16 %v3431
      %v3470 = vunpack.c.l.b16 %v3432
      %v3471 = vunpack.c.l.b16 %v3433
      %v3472 = vunpack.c.l.b16 %v3434
      %v3473 = vunpack.c.l.b16 %v3435
      %v3474 = vunpack.c.l.b16 %v3436
      %v3475 = vpack.c.b16 %v3460, %v3459
      %v3476 = vpack.c.b16 %v3462, %v3461
      %v3477 = vpack.c.b16 %v3464, %v3463
      %v3478 = vpack.c.b16 %v3466, %v3465
      %v3479 = vpack.c.b16 %v3468, %v3467
      %v3480 = vpack.c.b16 %v3470, %v3469
      %v3481 = vpack.c.b16 %v3472, %v3471
      %v3482 = vpack.c.b16 %v3474, %v3473
      %3491 = vmatprep.subr.bf16.mxu0 0
      %3492 = vmatpush1.bf16.msra.mxu0 %v3475
      %3493 = vmatprep.subr.bf16.mxu0 0
      %3494 = vmatpush1.bf16.msra.mxu0 %v3476
      %3495 = vmatprep.subr.bf16.mxu0 0
      %3496 = vmatpush1.bf16.msra.mxu0 %v3477
      %3497 = vmatprep.subr.bf16.mxu0 0
      %3498 = vmatpush1.bf16.msra.mxu0 %v3478
      %3499 = vmatprep.subr.bf16.mxu0 0
      %3500 = vmatpush1.bf16.msra.mxu0 %v3479
      %3501 = vmatprep.subr.bf16.mxu0 0
      %3502 = vmatpush1.bf16.msra.mxu0 %v3480
      %3503 = vmatprep.subr.bf16.mxu0 0
      %3504 = vmatpush1.bf16.msra.mxu0 %v3481
      %3505 = vmatprep.subr.bf16.mxu0 0
      %3506 = vmatpush1.bf16.msra.mxu0 %v3482
      %3507 = vmatprep.subr.bf16.mxu0 0
      %3508 = vmatpush1.bf16.msra.mxu0 0
      %3509 = vmatprep.subr.bf16.mxu0 0
      %3510 = vmatpush1.bf16.msra.mxu0 0
      %3511 = vmatprep.subr.bf16.mxu0 0
      %3512 = vmatpush1.bf16.msra.mxu0 0
      %3513 = vmatprep.subr.bf16.mxu0 0
      %3514 = vmatpush1.bf16.msra.mxu0 0
      %3515 = vmatprep.subr.bf16.mxu0 0
      %3516 = vmatpush1.bf16.msra.mxu0 0
      %3517 = vmatprep.subr.bf16.mxu0 0
      %3518 = vmatpush1.bf16.msra.mxu0 0
      %3519 = vmatprep.subr.bf16.mxu0 0
      %3520 = vmatpush1.bf16.msra.mxu0 0
      %3521 = vmatprep.subr.bf16.mxu0 0
      %3522 = vmatpush1.bf16.msra.mxu0 0
      %3523 = vmatprep.mubr.bf16.mxu0 0
      %3524 = vmatmul.mubr.bf16.gmra.mrb[0].mxu0 %v1490
      %v3525 = vpop.f32.mrb[0].mxu0
      %v3526 = vadd.f32 0.0, %v3525
      %v3527 = vpop.f32.mrb[0].mxu0
      %v3528 = vpop.f32.mrb[0].mxu0
      %v3529 = vadd.f32 0.0, %v3528
      %v3530 = vpop.f32.mrb[0].mxu0
      %3531 = vmatprep.mubr.bf16.mxu0 0
      %3532 = vmatmul.mubr.bf16.gmra.mrb[0].mxu0 %v1491
      %v3533 = vpop.f32.mrb[0].mxu0
      %v3534 = vadd.f32 0.0, %v3533
      %v3535 = vpop.f32.mrb[0].mxu0
      %v3536 = vpop.f32.mrb[0].mxu0
      %v3537 = vadd.f32 0.0, %v3536
      %v3538 = vpop.f32.mrb[0].mxu0
      %3539 = vmatprep.mubr.bf16.mxu0 0
      %3540 = vmatmul.mubr.bf16.gmra.mrb[0].mxu0 %v1492
      %v3541 = vpop.f32.mrb[0].mxu0
      %v3542 = vadd.f32 0.0, %v3541
      %v3543 = vpop.f32.mrb[0].mxu0
      %v3544 = vpop.f32.mrb[0].mxu0
      %v3545 = vadd.f32 0.0, %v3544
      %v3546 = vpop.f32.mrb[0].mxu0
      %3547 = vmatprep.mubr.bf16.mxu0 0
      %3548 = vmatmul.mubr.bf16.gmra.mrb[0].mxu0 %v1493
      %v3549 = vpop.f32.mrb[0].mxu0
      %v3550 = vadd.f32 0.0, %v3549
      %v3551 = vpop.f32.mrb[0].mxu0
      %v3552 = vpop.f32.mrb[0].mxu0
      %v3553 = vadd.f32 0.0, %v3552
      %v3554 = vpop.f32.mrb[0].mxu0
      %3555 = vmatprep.mubr.bf16.mxu0 0
      %3556 = vmatmul.mubr.bf16.gmra.mrb[0].mxu0 %v1494
      %v3557 = vpop.f32.mrb[0].mxu0
      %v3558 = vadd.f32 0.0, %v3557
      %v3559 = vpop.f32.mrb[0].mxu0
      %v3560 = vpop.f32.mrb[0].mxu0
      %v3561 = vadd.f32 0.0, %v3560
      %v3562 = vpop.f32.mrb[0].mxu0
      %3563 = vmatprep.mubr.bf16.mxu0 0
      %3564 = vmatmul.mubr.bf16.gmra.mrb[0].mxu0 %v1495
      %v3565 = vpop.f32.mrb[0].mxu0
      %v3566 = vadd.f32 0.0, %v3565
      %v3567 = vpop.f32.mrb[0].mxu0
      %v3568 = vpop.f32.mrb[0].mxu0
      %v3569 = vadd.f32 0.0, %v3568
      %v3570 = vpop.f32.mrb[0].mxu0
      %3571 = vmatprep.mubr.bf16.mxu0 0
      %3572 = vmatmul.mubr.bf16.gmra.mrb[0].mxu0 %v1496
      %v3573 = vpop.f32.mrb[0].mxu0
      %v3574 = vadd.f32 0.0, %v3573
      %v3575 = vpop.f32.mrb[0].mxu0
      %v3576 = vpop.f32.mrb[0].mxu0
      %v3577 = vadd.f32 0.0, %v3576
      %v3578 = vpop.f32.mrb[0].mxu0
      %3579 = vmatprep.mubr.bf16.mxu0 0
      %3580 = vmatmul.mubr.bf16.gmra.mrb[0].mxu0 %v1497
      %v3581 = vpop.f32.mrb[0].mxu0
      %v3582 = vadd.f32 0.0, %v3581
      %v3583 = vpop.f32.mrb[0].mxu0
      %v3584 = vpop.f32.mrb[0].mxu0
      %v3585 = vadd.f32 0.0, %v3584
      %v3586 = vpop.f32.mrb[0].mxu0
      %3587 = vmatprep.mubr.bf16.mxu0 0
      %3588 = vmatmul.mubr.bf16.gmra.mrb[0].mxu0 %v1498
      %v3589 = vpop.f32.mrb[0].mxu0
      %v3590 = vadd.f32 0.0, %v3589
      %v3591 = vpop.f32.mrb[0].mxu0
      %v3592 = vpop.f32.mrb[0].mxu0
      %v3593 = vadd.f32 0.0, %v3592
      %v3594 = vpop.f32.mrb[0].mxu0
      %3595 = vmatprep.mubr.bf16.mxu0 0
      %3596 = vmatmul.mubr.bf16.gmra.mrb[0].mxu0 %v1499
      %v3597 = vpop.f32.mrb[0].mxu0
      %v3598 = vadd.f32 0.0, %v3597
      %v3599 = vpop.f32.mrb[0].mxu0
      %v3600 = vpop.f32.mrb[0].mxu0
      %v3601 = vadd.f32 0.0, %v3600
      %v3602 = vpop.f32.mrb[0].mxu0
      %3603 = vmatprep.mubr.bf16.mxu0 0
      %3604 = vmatmul.mubr.bf16.gmra.mrb[0].mxu0 %v1500
      %v3605 = vpop.f32.mrb[0].mxu0
      %v3606 = vadd.f32 0.0, %v3605
      %v3607 = vpop.f32.mrb[0].mxu0
      %v3608 = vpop.f32.mrb[0].mxu0
      %v3609 = vadd.f32 0.0, %v3608
      %v3610 = vpop.f32.mrb[0].mxu0
      %3611 = vmatprep.mubr.bf16.mxu0 0
      %3612 = vmatmul.mubr.bf16.gmra.mrb[0].mxu0 %v1501
      %v3613 = vpop.f32.mrb[0].mxu0
      %v3614 = vadd.f32 0.0, %v3613
      %v3615 = vpop.f32.mrb[0].mxu0
      %v3616 = vpop.f32.mrb[0].mxu0
      %v3617 = vadd.f32 0.0, %v3616
      %v3618 = vpop.f32.mrb[0].mxu0
      %3619 = vmatprep.mubr.bf16.mxu0 0
      %3620 = vmatmul.mubr.bf16.gmra.mrb[0].mxu0 %v1502
      %v3621 = vpop.f32.mrb[0].mxu0
      %v3622 = vadd.f32 0.0, %v3621
      %v3623 = vpop.f32.mrb[0].mxu0
      %v3624 = vpop.f32.mrb[0].mxu0
      %v3625 = vadd.f32 0.0, %v3624
      %v3626 = vpop.f32.mrb[0].mxu0
      %3627 = vmatprep.mubr.bf16.mxu0 0
      %3628 = vmatmul.mubr.bf16.gmra.mrb[0].mxu0 %v1503
      %v3629 = vpop.f32.mrb[0].mxu0
      %v3630 = vadd.f32 0.0, %v3629
      %v3631 = vpop.f32.mrb[0].mxu0
      %v3632 = vpop.f32.mrb[0].mxu0
      %v3633 = vadd.f32 0.0, %v3632
      %v3634 = vpop.f32.mrb[0].mxu0
      %3635 = vmatprep.mubr.bf16.mxu0 0
      %3636 = vmatmul.mubr.bf16.gmra.mrb[0].mxu0 %v1504
      %v3637 = vpop.f32.mrb[0].mxu0
      %v3638 = vadd.f32 0.0, %v3637
      %v3639 = vpop.f32.mrb[0].mxu0
      %v3640 = vpop.f32.mrb[0].mxu0
      %v3641 = vadd.f32 0.0, %v3640
      %v3642 = vpop.f32.mrb[0].mxu0
      %3643 = vmatprep.mubr.bf16.mxu0 0
      %3644 = vmatmul.mubr.bf16.gmra.mrb[0].mxu0 %v1505
      %v3645 = vpop.f32.mrb[0].mxu0
      %v3646 = vadd.f32 0.0, %v3645
      %v3647 = vpop.f32.mrb[0].mxu0
      %v3648 = vpop.f32.mrb[0].mxu0
      %v3649 = vadd.f32 0.0, %v3648
      %v3650 = vpop.f32.mrb[0].mxu0
      %3651 = vmatprep.mubr.bf16.mxu0 0
      %3652 = vmatmul.mubr.bf16.gmra.mrb[0].mxu0 %v1506
      %v3653 = vpop.f32.mrb[0].mxu0
      %v3654 = vadd.f32 0.0, %v3653
      %v3655 = vpop.f32.mrb[0].mxu0
      %v3656 = vpop.f32.mrb[0].mxu0
      %v3657 = vadd.f32 0.0, %v3656
      %v3658 = vpop.f32.mrb[0].mxu0
      %3659 = vmatprep.mubr.bf16.mxu0 0
      %3660 = vmatmul.mubr.bf16.gmra.mrb[0].mxu0 %v1507
      %v3661 = vpop.f32.mrb[0].mxu0
      %v3662 = vadd.f32 0.0, %v3661
      %v3663 = vpop.f32.mrb[0].mxu0
      %v3664 = vpop.f32.mrb[0].mxu0
      %v3665 = vadd.f32 0.0, %v3664
      %v3666 = vpop.f32.mrb[0].mxu0
      %3667 = vmatprep.mubr.bf16.mxu0 0
      %3668 = vmatmul.mubr.bf16.gmra.mrb[0].mxu0 %v1508
      %v3669 = vpop.f32.mrb[0].mxu0
      %v3670 = vadd.f32 0.0, %v3669
      %v3671 = vpop.f32.mrb[0].mxu0
      %v3672 = vpop.f32.mrb[0].mxu0
      %v3673 = vadd.f32 0.0, %v3672
      %v3674 = vpop.f32.mrb[0].mxu0
      %3675 = vmatprep.mubr.bf16.mxu0 0
      %3676 = vmatmul.mubr.bf16.gmra.mrb[0].mxu0 %v1509
      %v3677 = vpop.f32.mrb[0].mxu0
      %v3678 = vadd.f32 0.0, %v3677
      %v3679 = vpop.f32.mrb[0].mxu0
      %v3680 = vpop.f32.mrb[0].mxu0
      %v3681 = vadd.f32 0.0, %v3680
      %v3682 = vpop.f32.mrb[0].mxu0
      %3683 = vmatprep.mubr.bf16.mxu0 0
      %3684 = vmatmul.mubr.bf16.gmra.mrb[0].mxu0 %v1510
      %v3685 = vpop.f32.mrb[0].mxu0
      %v3686 = vadd.f32 0.0, %v3685
      %v3687 = vpop.f32.mrb[0].mxu0
      %v3688 = vpop.f32.mrb[0].mxu0
      %v3689 = vadd.f32 0.0, %v3688
      %v3690 = vpop.f32.mrb[0].mxu0
      %3691 = vmatprep.mubr.bf16.mxu0 0
      %3692 = vmatmul.mubr.bf16.gmra.mrb[0].mxu0 %v3437
      %v3693 = vpop.f32.mrb[0].mxu0
      %v3694 = vadd.f32 0.0, %v3693
      %v3695 = vpop.f32.mrb[0].mxu0
      %v3696 = vpop.f32.mrb[0].mxu0
      %v3697 = vadd.f32 0.0, %v3696
      %v3698 = vpop.f32.mrb[0].mxu0
      %3699 = vmatprep.mubr.bf16.mxu0 0
      %3700 = vmatmul.mubr.bf16.gmra.mrb[0].mxu0 %v3438
      %v3701 = vpop.f32.mrb[0].mxu0
      %v3702 = vadd.f32 0.0, %v3701
      %v3703 = vpop.f32.mrb[0].mxu0
      %v3704 = vpop.f32.mrb[0].mxu0
      %v3705 = vadd.f32 0.0, %v3704
      %v3706 = vpop.f32.mrb[0].mxu0
      %3707 = vmatprep.mubr.bf16.mxu0 0
      %3708 = vmatmul.mubr.bf16.gmra.mrb[0].mxu0 %v3439
      %v3709 = vpop.f32.mrb[0].mxu0
      %v3710 = vadd.f32 0.0, %v3709
      %v3711 = vpop.f32.mrb[0].mxu0
      %v3712 = vpop.f32.mrb[0].mxu0
      %v3713 = vadd.f32 0.0, %v3712
      %v3714 = vpop.f32.mrb[0].mxu0
      %3715 = vdwg.mxu0
      %v3716 = vadd.f32 %v3368, %v3526
      %v3717 = vadd.f32 %v3369, %v3529
      %v3718 = vadd.f32 %v3370, %v3534
      %v3719 = vadd.f32 %v3371, %v3537
      %v3720 = vadd.f32 %v3372, %v3542
      %v3721 = vadd.f32 %v3373, %v3545
      %v3722 = vadd.f32 %v3374, %v3550
      %v3723 = vadd.f32 %v3375, %v3553
      %v3724 = vadd.f32 %v3376, %v3558
      %v3725 = vadd.f32 %v3377, %v3561
      %v3726 = vadd.f32 %v3378, %v3566
      %v3727 = vadd.f32 %v3379, %v3569
      %v3728 = vadd.f32 %v3380, %v3574
      %v3729 = vadd.f32 %v3381, %v3577
      %v3730 = vadd.f32 %v3382, %v3582
      %v3731 = vadd.f32 %v3383, %v3585
      %v3732 = vadd.f32 %v3384, %v3590
      %v3733 = vadd.f32 %v3385, %v3593
      %v3734 = vadd.f32 %v3386, %v3598
      %v3735 = vadd.f32 %v3387, %v3601
      %v3736 = vadd.f32 %v3388, %v3606
      %v3737 = vadd.f32 %v3389, %v3609
      %v3738 = vadd.f32 %v3390, %v3614
      %v3739 = vadd.f32 %v3391, %v3617
      %v3740 = vadd.f32 %v3392, %v3622
      %v3741 = vadd.f32 %v3393, %v3625
      %v3742 = vadd.f32 %v3394, %v3630
      %v3743 = vadd.f32 %v3395, %v3633
      %v3744 = vadd.f32 %v3396, %v3638
      %v3745 = vadd.f32 %v3397, %v3641
      %v3746 = vadd.f32 %v3398, %v3646
      %v3747 = vadd.f32 %v3399, %v3649
      %v3748 = vadd.f32 %v3400, %v3654
      %v3749 = vadd.f32 %v3401, %v3657
      %v3750 = vadd.f32 %v3402, %v3662
      %v3751 = vadd.f32 %v3403, %v3665
      %v3752 = vadd.f32 %v3404, %v3670
      %v3753 = vadd.f32 %v3405, %v3673
      %v3754 = vadd.f32 %v3406, %v3678
      %v3755 = vadd.f32 %v3407, %v3681
      %v3756 = vadd.f32 %v3408, %v3686
      %v3757 = vadd.f32 %v3409, %v3689
      %v3758 = vadd.f32 %v3410, %v3694
      %v3759 = vadd.f32 %v3411, %v3697
      %v3760 = vadd.f32 %v3412, %v3702
      %v3761 = vadd.f32 %v3413, %v3705
      %v3762 = vadd.f32 %v3414, %v3710
      %v3763 = vadd.f32 %v3415, %v3713
      %s3764 = scalar_lea.vmem %s3, 448
      %v3765 = vld [vmem:[%s3764] sm:$0xf]
      %v3766 = vld [vmem:[%s3764 + $0x4] sm:$0xf]
      %v3767 = vld [vmem:[%s3764 + $0x8] sm:$0xf]
      %v3768 = vld [vmem:[%s3764 + $0xc] sm:$0xf]
      %v3769 = vld [vmem:[%s3764 + $0x10] sm:$0xf]
      %v3770 = vld [vmem:[%s3764 + $0x14] sm:$0xf]
      %v3771 = vld [vmem:[%s3764 + $0x18] sm:$0xf]
      %v3772 = vld [vmem:[%s3764 + $0x1c] sm:$0xf]
      %v3773 = vld [vmem:[%s3764 + $0x20] sm:$0xf]
      %v3774 = vld [vmem:[%s3764 + $0x24] sm:$0xf]
      %v3775 = vld [vmem:[%s3764 + $0x28] sm:$0xf]
      %v3776 = vld [vmem:[%s3764 + $0x2c] sm:$0xf]
      %v3777 = vld [vmem:[%s3764 + $0x30] sm:$0xf]
      %v3778 = vld [vmem:[%s3764 + $0x34] sm:$0xf]
      %v3779 = vld [vmem:[%s3764 + $0x38] sm:$0xf]
      %v3780 = vld [vmem:[%s3764 + $0x3c] sm:$0xf]
      %v3781 = vpack.c.b16 %v599, %v598
      %v3782 = vpack.c.b16 %v601, %v600
      %v3802 = vunpack.c.l.b16 %v3765
      %v3803 = vunpack.c.l.b16 %v3766
      %v3804 = vunpack.c.l.b16 %v3767
      %v3805 = vunpack.c.l.b16 %v3768
      %v3806 = vunpack.c.l.b16 %v3769
      %v3807 = vunpack.c.l.b16 %v3770
      %v3808 = vunpack.c.l.b16 %v3771
      %v3809 = vunpack.c.l.b16 %v3772
      %v3810 = vunpack.c.l.b16 %v3773
      %v3811 = vunpack.c.l.b16 %v3774
      %v3812 = vunpack.c.l.b16 %v3775
      %v3813 = vunpack.c.l.b16 %v3776
      %v3814 = vunpack.c.l.b16 %v3777
      %v3815 = vunpack.c.l.b16 %v3778
      %v3816 = vunpack.c.l.b16 %v3779
      %v3817 = vunpack.c.l.b16 %v3780
      %v3818 = vpack.c.b16 %v3803, %v3802
      %v3819 = vpack.c.b16 %v3805, %v3804
      %v3820 = vpack.c.b16 %v3807, %v3806
      %v3821 = vpack.c.b16 %v3809, %v3808
      %v3822 = vpack.c.b16 %v3811, %v3810
      %v3823 = vpack.c.b16 %v3813, %v3812
      %v3824 = vpack.c.b16 %v3815, %v3814
      %v3825 = vpack.c.b16 %v3817, %v3816
      %3834 = vmatprep.subr.bf16.mxu0 0
      %3835 = vmatpush1.bf16.msra.mxu0 %v3818
      %3836 = vmatprep.subr.bf16.mxu0 0
      %3837 = vmatpush1.bf16.msra.mxu0 %v3819
      %3838 = vmatprep.subr.bf16.mxu0 0
      %3839 = vmatpush1.bf16.msra.mxu0 %v3820
      %3840 = vmatprep.subr.bf16.mxu0 0
      %3841 = vmatpush1.bf16.msra.mxu0 %v3821
      %3842 = vmatprep.subr.bf16.mxu0 0
      %3843 = vmatpush1.bf16.msra.mxu0 %v3822
      %3844 = vmatprep.subr.bf16.mxu0 0
      %3845 = vmatpush1.bf16.msra.mxu0 %v3823
      %3846 = vmatprep.subr.bf16.mxu0 0
      %3847 = vmatpush1.bf16.msra.mxu0 %v3824
      %3848 = vmatprep.subr.bf16.mxu0 0
      %3849 = vmatpush1.bf16.msra.mxu0 %v3825
      %3850 = vmatprep.subr.bf16.mxu0 0
      %3851 = vmatpush1.bf16.msra.mxu0 0
      %3852 = vmatprep.subr.bf16.mxu0 0
      %3853 = vmatpush1.bf16.msra.mxu0 0
      %3854 = vmatprep.subr.bf16.mxu0 0
      %3855 = vmatpush1.bf16.msra.mxu0 0
      %3856 = vmatprep.subr.bf16.mxu0 0
      %3857 = vmatpush1.bf16.msra.mxu0 0
      %3858 = vmatprep.subr.bf16.mxu0 0
      %3859 = vmatpush1.bf16.msra.mxu0 0
      %3860 = vmatprep.subr.bf16.mxu0 0
      %3861 = vmatpush1.bf16.msra.mxu0 0
      %3862 = vmatprep.subr.bf16.mxu0 0
      %3863 = vmatpush1.bf16.msra.mxu0 0
      %3864 = vmatprep.subr.bf16.mxu0 0
      %3865 = vmatpush1.bf16.msra.mxu0 0
      %3866 = vmatprep.mubr.bf16.mxu0 0
      %3867 = vmatmul.mubr.bf16.gmra.mrb[0].mxu0 %v606
      %v3868 = vpop.f32.mrb[0].mxu0
      %v3869 = vadd.f32 0.0, %v3868
      %v3870 = vpop.f32.mrb[0].mxu0
      %v3871 = vpop.f32.mrb[0].mxu0
      %v3872 = vadd.f32 0.0, %v3871
      %v3873 = vpop.f32.mrb[0].mxu0
      %3874 = vmatprep.mubr.bf16.mxu0 0
      %3875 = vmatmul.mubr.bf16.gmra.mrb[0].mxu0 %v1176
      %v3876 = vpop.f32.mrb[0].mxu0
      %v3877 = vadd.f32 0.0, %v3876
      %v3878 = vpop.f32.mrb[0].mxu0
      %v3879 = vpop.f32.mrb[0].mxu0
      %v3880 = vadd.f32 0.0, %v3879
      %v3881 = vpop.f32.mrb[0].mxu0
      %3882 = vmatprep.mubr.bf16.mxu0 0
      %3883 = vmatmul.mubr.bf16.gmra.mrb[0].mxu0 %v1177
      %v3884 = vpop.f32.mrb[0].mxu0
      %v3885 = vadd.f32 0.0, %v3884
      %v3886 = vpop.f32.mrb[0].mxu0
      %v3887 = vpop.f32.mrb[0].mxu0
      %v3888 = vadd.f32 0.0, %v3887
      %v3889 = vpop.f32.mrb[0].mxu0
      %3890 = vmatprep.mubr.bf16.mxu0 0
      %3891 = vmatmul.mubr.bf16.gmra.mrb[0].mxu0 %v610
      %v3892 = vpop.f32.mrb[0].mxu0
      %v3893 = vadd.f32 0.0, %v3892
      %v3894 = vpop.f32.mrb[0].mxu0
      %v3895 = vpop.f32.mrb[0].mxu0
      %v3896 = vadd.f32 0.0, %v3895
      %v3897 = vpop.f32.mrb[0].mxu0
      %3898 = vmatprep.mubr.bf16.mxu0 0
      %3899 = vmatmul.mubr.bf16.gmra.mrb[0].mxu0 %v1178
      %v3900 = vpop.f32.mrb[0].mxu0
      %v3901 = vadd.f32 0.0, %v3900
      %v3902 = vpop.f32.mrb[0].mxu0
      %v3903 = vpop.f32.mrb[0].mxu0
      %v3904 = vadd.f32 0.0, %v3903
      %v3905 = vpop.f32.mrb[0].mxu0
      %3906 = vmatprep.mubr.bf16.mxu0 0
      %3907 = vmatmul.mubr.bf16.gmra.mrb[0].mxu0 %v1179
      %v3908 = vpop.f32.mrb[0].mxu0
      %v3909 = vadd.f32 0.0, %v3908
      %v3910 = vpop.f32.mrb[0].mxu0
      %v3911 = vpop.f32.mrb[0].mxu0
      %v3912 = vadd.f32 0.0, %v3911
      %v3913 = vpop.f32.mrb[0].mxu0
      %3914 = vmatprep.mubr.bf16.mxu0 0
      %3915 = vmatmul.mubr.bf16.gmra.mrb[0].mxu0 %v614
      %v3916 = vpop.f32.mrb[0].mxu0
      %v3917 = vadd.f32 0.0, %v3916
      %v3918 = vpop.f32.mrb[0].mxu0
      %v3919 = vpop.f32.mrb[0].mxu0
      %v3920 = vadd.f32 0.0, %v3919
      %v3921 = vpop.f32.mrb[0].mxu0
      %3922 = vmatprep.mubr.bf16.mxu0 0
      %3923 = vmatmul.mubr.bf16.gmra.mrb[0].mxu0 %v1180
      %v3924 = vpop.f32.mrb[0].mxu0
      %v3925 = vadd.f32 0.0, %v3924
      %v3926 = vpop.f32.mrb[0].mxu0
      %v3927 = vpop.f32.mrb[0].mxu0
      %v3928 = vadd.f32 0.0, %v3927
      %v3929 = vpop.f32.mrb[0].mxu0
      %3930 = vmatprep.mubr.bf16.mxu0 0
      %3931 = vmatmul.mubr.bf16.gmra.mrb[0].mxu0 %v1181
      %v3932 = vpop.f32.mrb[0].mxu0
      %v3933 = vadd.f32 0.0, %v3932
      %v3934 = vpop.f32.mrb[0].mxu0
      %v3935 = vpop.f32.mrb[0].mxu0
      %v3936 = vadd.f32 0.0, %v3935
      %v3937 = vpop.f32.mrb[0].mxu0
      %3938 = vmatprep.mubr.bf16.mxu0 0
      %3939 = vmatmul.mubr.bf16.gmra.mrb[0].mxu0 %v618
      %v3940 = vpop.f32.mrb[0].mxu0
      %v3941 = vadd.f32 0.0, %v3940
      %v3942 = vpop.f32.mrb[0].mxu0
      %v3943 = vpop.f32.mrb[0].mxu0
      %v3944 = vadd.f32 0.0, %v3943
      %v3945 = vpop.f32.mrb[0].mxu0
      %3946 = vmatprep.mubr.bf16.mxu0 0
      %3947 = vmatmul.mubr.bf16.gmra.mrb[0].mxu0 %v1182
      %v3948 = vpop.f32.mrb[0].mxu0
      %v3949 = vadd.f32 0.0, %v3948
      %v3950 = vpop.f32.mrb[0].mxu0
      %v3951 = vpop.f32.mrb[0].mxu0
      %v3952 = vadd.f32 0.0, %v3951
      %v3953 = vpop.f32.mrb[0].mxu0
      %3954 = vmatprep.mubr.bf16.mxu0 0
      %3955 = vmatmul.mubr.bf16.gmra.mrb[0].mxu0 %v1183
      %v3956 = vpop.f32.mrb[0].mxu0
      %v3957 = vadd.f32 0.0, %v3956
      %v3958 = vpop.f32.mrb[0].mxu0
      %v3959 = vpop.f32.mrb[0].mxu0
      %v3960 = vadd.f32 0.0, %v3959
      %v3961 = vpop.f32.mrb[0].mxu0
      %3962 = vmatprep.mubr.bf16.mxu0 0
      %3963 = vmatmul.mubr.bf16.gmra.mrb[0].mxu0 %v622
      %v3964 = vpop.f32.mrb[0].mxu0
      %v3965 = vadd.f32 0.0, %v3964
      %v3966 = vpop.f32.mrb[0].mxu0
      %v3967 = vpop.f32.mrb[0].mxu0
      %v3968 = vadd.f32 0.0, %v3967
      %v3969 = vpop.f32.mrb[0].mxu0
      %3970 = vmatprep.mubr.bf16.mxu0 0
      %3971 = vmatmul.mubr.bf16.gmra.mrb[0].mxu0 %v1184
      %v3972 = vpop.f32.mrb[0].mxu0
      %v3973 = vadd.f32 0.0, %v3972
      %v3974 = vpop.f32.mrb[0].mxu0
      %v3975 = vpop.f32.mrb[0].mxu0
      %v3976 = vadd.f32 0.0, %v3975
      %v3977 = vpop.f32.mrb[0].mxu0
      %3978 = vmatprep.mubr.bf16.mxu0 0
      %3979 = vmatmul.mubr.bf16.gmra.mrb[0].mxu0 %v1185
      %v3980 = vpop.f32.mrb[0].mxu0
      %v3981 = vadd.f32 0.0, %v3980
      %v3982 = vpop.f32.mrb[0].mxu0
      %v3983 = vpop.f32.mrb[0].mxu0
      %v3984 = vadd.f32 0.0, %v3983
      %v3985 = vpop.f32.mrb[0].mxu0
      %3986 = vmatprep.mubr.bf16.mxu0 0
      %3987 = vmatmul.mubr.bf16.gmra.mrb[0].mxu0 %v626
      %v3988 = vpop.f32.mrb[0].mxu0
      %v3989 = vadd.f32 0.0, %v3988
      %v3990 = vpop.f32.mrb[0].mxu0
      %v3991 = vpop.f32.mrb[0].mxu0
      %v3992 = vadd.f32 0.0, %v3991
      %v3993 = vpop.f32.mrb[0].mxu0
      %3994 = vmatprep.mubr.bf16.mxu0 0
      %3995 = vmatmul.mubr.bf16.gmra.mrb[0].mxu0 %v1186
      %v3996 = vpop.f32.mrb[0].mxu0
      %v3997 = vadd.f32 0.0, %v3996
      %v3998 = vpop.f32.mrb[0].mxu0
      %v3999 = vpop.f32.mrb[0].mxu0
      %v4000 = vadd.f32 0.0, %v3999
      %v4001 = vpop.f32.mrb[0].mxu0
      %4002 = vmatprep.mubr.bf16.mxu0 0
      %4003 = vmatmul.mubr.bf16.gmra.mrb[0].mxu0 %v1187
      %v4004 = vpop.f32.mrb[0].mxu0
      %v4005 = vadd.f32 0.0, %v4004
      %v4006 = vpop.f32.mrb[0].mxu0
      %v4007 = vpop.f32.mrb[0].mxu0
      %v4008 = vadd.f32 0.0, %v4007
      %v4009 = vpop.f32.mrb[0].mxu0
      %4010 = vmatprep.mubr.bf16.mxu0 0
      %4011 = vmatmul.mubr.bf16.gmra.mrb[0].mxu0 %v630
      %v4012 = vpop.f32.mrb[0].mxu0
      %v4013 = vadd.f32 0.0, %v4012
      %v4014 = vpop.f32.mrb[0].mxu0
      %v4015 = vpop.f32.mrb[0].mxu0
      %v4016 = vadd.f32 0.0, %v4015
      %v4017 = vpop.f32.mrb[0].mxu0
      %4018 = vmatprep.mubr.bf16.mxu0 0
      %4019 = vmatmul.mubr.bf16.gmra.mrb[0].mxu0 %v1188
      %v4020 = vpop.f32.mrb[0].mxu0
      %v4021 = vadd.f32 0.0, %v4020
      %v4022 = vpop.f32.mrb[0].mxu0
      %v4023 = vpop.f32.mrb[0].mxu0
      %v4024 = vadd.f32 0.0, %v4023
      %v4025 = vpop.f32.mrb[0].mxu0
      %4026 = vmatprep.mubr.bf16.mxu0 0
      %4027 = vmatmul.mubr.bf16.gmra.mrb[0].mxu0 %v1189
      %v4028 = vpop.f32.mrb[0].mxu0
      %v4029 = vadd.f32 0.0, %v4028
      %v4030 = vpop.f32.mrb[0].mxu0
      %v4031 = vpop.f32.mrb[0].mxu0
      %v4032 = vadd.f32 0.0, %v4031
      %v4033 = vpop.f32.mrb[0].mxu0
      %4034 = vmatprep.mubr.bf16.mxu0 0
      %4035 = vmatmul.mubr.bf16.gmra.mrb[0].mxu0 %v634
      %v4036 = vpop.f32.mrb[0].mxu0
      %v4037 = vadd.f32 0.0, %v4036
      %v4038 = vpop.f32.mrb[0].mxu0
      %v4039 = vpop.f32.mrb[0].mxu0
      %v4040 = vadd.f32 0.0, %v4039
      %v4041 = vpop.f32.mrb[0].mxu0
      %4042 = vmatprep.mubr.bf16.mxu0 0
      %4043 = vmatmul.mubr.bf16.gmra.mrb[0].mxu0 %v3781
      %v4044 = vpop.f32.mrb[0].mxu0
      %v4045 = vadd.f32 0.0, %v4044
      %v4046 = vpop.f32.mrb[0].mxu0
      %v4047 = vpop.f32.mrb[0].mxu0
      %v4048 = vadd.f32 0.0, %v4047
      %v4049 = vpop.f32.mrb[0].mxu0
      %4050 = vmatprep.mubr.bf16.mxu0 0
      %4051 = vmatmul.mubr.bf16.gmra.mrb[0].mxu0 %v3782
      %v4052 = vpop.f32.mrb[0].mxu0
      %v4053 = vadd.f32 0.0, %v4052
      %v4054 = vpop.f32.mrb[0].mxu0
      %v4055 = vpop.f32.mrb[0].mxu0
      %v4056 = vadd.f32 0.0, %v4055
      %v4057 = vpop.f32.mrb[0].mxu0
      %4058 = vdwg.mxu0
      %v4059 = vadd.f32 %v3716, %v3869
      %v4060 = vadd.f32 %v3717, %v3872
      %v4061 = vadd.f32 %v3718, %v3877
      %v4062 = vadd.f32 %v3719, %v3880
      %v4063 = vadd.f32 %v3720, %v3885
      %v4064 = vadd.f32 %v3721, %v3888
      %v4065 = vadd.f32 %v3722, %v3893
      %v4066 = vadd.f32 %v3723, %v3896
      %v4067 = vadd.f32 %v3724, %v3901
      %v4068 = vadd.f32 %v3725, %v3904
      %v4069 = vadd.f32 %v3726, %v3909
      %v4070 = vadd.f32 %v3727, %v3912
      %v4071 = vadd.f32 %v3728, %v3917
      %v4072 = vadd.f32 %v3729, %v3920
      %v4073 = vadd.f32 %v3730, %v3925
      %v4074 = vadd.f32 %v3731, %v3928
      %v4075 = vadd.f32 %v3732, %v3933
      %v4076 = vadd.f32 %v3733, %v3936
      %v4077 = vadd.f32 %v3734, %v3941
      %v4078 = vadd.f32 %v3735, %v3944
      %v4079 = vadd.f32 %v3736, %v3949
      %v4080 = vadd.f32 %v3737, %v3952
      %v4081 = vadd.f32 %v3738, %v3957
      %v4082 = vadd.f32 %v3739, %v3960
      %v4083 = vadd.f32 %v3740, %v3965
      %v4084 = vadd.f32 %v3741, %v3968
      %v4085 = vadd.f32 %v3742, %v3973
      %v4086 = vadd.f32 %v3743, %v3976
      %v4087 = vadd.f32 %v3744, %v3981
      %v4088 = vadd.f32 %v3745, %v3984
      %v4089 = vadd.f32 %v3746, %v3989
      %v4090 = vadd.f32 %v3747, %v3992
      %v4091 = vadd.f32 %v3748, %v3997
      %v4092 = vadd.f32 %v3749, %v4000
      %v4093 = vadd.f32 %v3750, %v4005
      %v4094 = vadd.f32 %v3751, %v4008
      %v4095 = vadd.f32 %v3752, %v4013
      %v4096 = vadd.f32 %v3753, %v4016
      %v4097 = vadd.f32 %v3754, %v4021
      %v4098 = vadd.f32 %v3755, %v4024
      %v4099 = vadd.f32 %v3756, %v4029
      %v4100 = vadd.f32 %v3757, %v4032
      %v4101 = vadd.f32 %v3758, %v4037
      %v4102 = vadd.f32 %v3759, %v4040
      %v4103 = vadd.f32 %v3760, %v4045
      %v4104 = vadd.f32 %v3761, %v4048
      %v4105 = vadd.f32 %v3762, %v4053
      %v4106 = vadd.f32 %v3763, %v4056
      %v4108 = vunpack.c.l.b16 %v1036
      %v4109 = vunpack.c.h.b16 %v1036
      %v4110 = vunpack.c.l.b16 %v1076
      %s4111 = scalar_lea.vmem %s3, 512
      %v4112 = vld [vmem:[%s4111] sm:$0xf]
      %v4113 = vld [vmem:[%s4111 + $0x4] sm:$0xf]
      %v4114 = vld [vmem:[%s4111 + $0x8] sm:$0xf]
      %v4115 = vld [vmem:[%s4111 + $0xc] sm:$0xf]
      %v4116 = vld [vmem:[%s4111 + $0x10] sm:$0xf]
      %v4117 = vld [vmem:[%s4111 + $0x14] sm:$0xf]
      %v4118 = vld [vmem:[%s4111 + $0x18] sm:$0xf]
      %v4119 = vld [vmem:[%s4111 + $0x1c] sm:$0xf]
      %v4120 = vld [vmem:[%s4111 + $0x20] sm:$0xf]
      %v4121 = vld [vmem:[%s4111 + $0x24] sm:$0xf]
      %v4122 = vld [vmem:[%s4111 + $0x28] sm:$0xf]
      %v4123 = vld [vmem:[%s4111 + $0x2c] sm:$0xf]
      %v4124 = vld [vmem:[%s4111 + $0x30] sm:$0xf]
      %v4125 = vld [vmem:[%s4111 + $0x34] sm:$0xf]
      %v4126 = vld [vmem:[%s4111 + $0x38] sm:$0xf]
      %v4127 = vld [vmem:[%s4111 + $0x3c] sm:$0xf]
      %v4128 = vpack.c.b16 %v3028, %v3027
      %v4129 = vpack.c.b16 %v4108, %v3029
      %v4130 = vpack.c.b16 %v4110, %v4109
      %v4150 = vunpack.c.l.b16 %v4112
      %v4151 = vunpack.c.l.b16 %v4113
      %v4152 = vunpack.c.l.b16 %v4114
      %v4153 = vunpack.c.l.b16 %v4115
      %v4154 = vunpack.c.l.b16 %v4116
      %v4155 = vunpack.c.l.b16 %v4117
      %v4156 = vunpack.c.l.b16 %v4118
      %v4157 = vunpack.c.l.b16 %v4119
      %v4158 = vunpack.c.l.b16 %v4120
      %v4159 = vunpack.c.l.b16 %v4121
      %v4160 = vunpack.c.l.b16 %v4122
      %v4161 = vunpack.c.l.b16 %v4123
      %v4162 = vunpack.c.l.b16 %v4124
      %v4163 = vunpack.c.l.b16 %v4125
      %v4164 = vunpack.c.l.b16 %v4126
      %v4165 = vunpack.c.l.b16 %v4127
      %v4166 = vpack.c.b16 %v4151, %v4150
      %v4167 = vpack.c.b16 %v4153, %v4152
      %v4168 = vpack.c.b16 %v4155, %v4154
      %v4169 = vpack.c.b16 %v4157, %v4156
      %v4170 = vpack.c.b16 %v4159, %v4158
      %v4171 = vpack.c.b16 %v4161, %v4160
      %v4172 = vpack.c.b16 %v4163, %v4162
      %v4173 = vpack.c.b16 %v4165, %v4164
      %4182 = vmatprep.subr.bf16.mxu0 0
      %4183 = vmatpush1.bf16.msra.mxu0 %v4166
      %4184 = vmatprep.subr.bf16.mxu0 0
      %4185 = vmatpush1.bf16.msra.mxu0 %v4167
      %4186 = vmatprep.subr.bf16.mxu0 0
      %4187 = vmatpush1.bf16.msra.mxu0 %v4168
      %4188 = vmatprep.subr.bf16.mxu0 0
      %4189 = vmatpush1.bf16.msra.mxu0 %v4169
      %4190 = vmatprep.subr.bf16.mxu0 0
      %4191 = vmatpush1.bf16.msra.mxu0 %v4170
      %4192 = vmatprep.subr.bf16.mxu0 0
      %4193 = vmatpush1.bf16.msra.mxu0 %v4171
      %4194 = vmatprep.subr.bf16.mxu0 0
      %4195 = vmatpush1.bf16.msra.mxu0 %v4172
      %4196 = vmatprep.subr.bf16.mxu0 0
      %4197 = vmatpush1.bf16.msra.mxu0 %v4173
      %4198 = vmatprep.subr.bf16.mxu0 0
      %4199 = vmatpush1.bf16.msra.mxu0 0
      %4200 = vmatprep.subr.bf16.mxu0 0
      %4201 = vmatpush1.bf16.msra.mxu0 0
      %4202 = vmatprep.subr.bf16.mxu0 0
      %4203 = vmatpush1.bf16.msra.mxu0 0
      %4204 = vmatprep.subr.bf16.mxu0 0
      %4205 = vmatpush1.bf16.msra.mxu0 0
      %4206 = vmatprep.subr.bf16.mxu0 0
      %4207 = vmatpush1.bf16.msra.mxu0 0
      %4208 = vmatprep.subr.bf16.mxu0 0
      %4209 = vmatpush1.bf16.msra.mxu0 0
      %4210 = vmatprep.subr.bf16.mxu0 0
      %4211 = vmatpush1.bf16.msra.mxu0 0
      %4212 = vmatprep.subr.bf16.mxu0 0
      %4213 = vmatpush1.bf16.msra.mxu0 0
      %4214 = vmatprep.mubr.bf16.mxu0 0
      %4215 = vmatmul.mubr.bf16.gmra.mrb[0].mxu0 %v1892
      %v4216 = vpop.f32.mrb[0].mxu0
      %v4217 = vadd.f32 0.0, %v4216
      %v4218 = vpop.f32.mrb[0].mxu0
      %v4219 = vpop.f32.mrb[0].mxu0
      %v4220 = vadd.f32 0.0, %v4219
      %v4221 = vpop.f32.mrb[0].mxu0
      %4222 = vmatprep.mubr.bf16.mxu0 0
      %4223 = vmatmul.mubr.bf16.gmra.mrb[0].mxu0 %v1893
      %v4224 = vpop.f32.mrb[0].mxu0
      %v4225 = vadd.f32 0.0, %v4224
      %v4226 = vpop.f32.mrb[0].mxu0
      %v4227 = vpop.f32.mrb[0].mxu0
      %v4228 = vadd.f32 0.0, %v4227
      %v4229 = vpop.f32.mrb[0].mxu0
      %4230 = vmatprep.mubr.bf16.mxu0 0
      %4231 = vmatmul.mubr.bf16.gmra.mrb[0].mxu0 %v1894
      %v4232 = vpop.f32.mrb[0].mxu0
      %v4233 = vadd.f32 0.0, %v4232
      %v4234 = vpop.f32.mrb[0].mxu0
      %v4235 = vpop.f32.mrb[0].mxu0
      %v4236 = vadd.f32 0.0, %v4235
      %v4237 = vpop.f32.mrb[0].mxu0
      %4238 = vmatprep.mubr.bf16.mxu0 0
      %4239 = vmatmul.mubr.bf16.gmra.mrb[0].mxu0 %v1895
      %v4240 = vpop.f32.mrb[0].mxu0
      %v4241 = vadd.f32 0.0, %v4240
      %v4242 = vpop.f32.mrb[0].mxu0
      %v4243 = vpop.f32.mrb[0].mxu0
      %v4244 = vadd.f32 0.0, %v4243
      %v4245 = vpop.f32.mrb[0].mxu0
      %4246 = vmatprep.mubr.bf16.mxu0 0
      %4247 = vmatmul.mubr.bf16.gmra.mrb[0].mxu0 %v1896
      %v4248 = vpop.f32.mrb[0].mxu0
      %v4249 = vadd.f32 0.0, %v4248
      %v4250 = vpop.f32.mrb[0].mxu0
      %v4251 = vpop.f32.mrb[0].mxu0
      %v4252 = vadd.f32 0.0, %v4251
      %v4253 = vpop.f32.mrb[0].mxu0
      %4254 = vmatprep.mubr.bf16.mxu0 0
      %4255 = vmatmul.mubr.bf16.gmra.mrb[0].mxu0 %v1897
      %v4256 = vpop.f32.mrb[0].mxu0
      %v4257 = vadd.f32 0.0, %v4256
      %v4258 = vpop.f32.mrb[0].mxu0
      %v4259 = vpop.f32.mrb[0].mxu0
      %v4260 = vadd.f32 0.0, %v4259
      %v4261 = vpop.f32.mrb[0].mxu0
      %4262 = vmatprep.mubr.bf16.mxu0 0
      %4263 = vmatmul.mubr.bf16.gmra.mrb[0].mxu0 %v1898
      %v4264 = vpop.f32.mrb[0].mxu0
      %v4265 = vadd.f32 0.0, %v4264
      %v4266 = vpop.f32.mrb[0].mxu0
      %v4267 = vpop.f32.mrb[0].mxu0
      %v4268 = vadd.f32 0.0, %v4267
      %v4269 = vpop.f32.mrb[0].mxu0
      %4270 = vmatprep.mubr.bf16.mxu0 0
      %4271 = vmatmul.mubr.bf16.gmra.mrb[0].mxu0 %v1899
      %v4272 = vpop.f32.mrb[0].mxu0
      %v4273 = vadd.f32 0.0, %v4272
      %v4274 = vpop.f32.mrb[0].mxu0
      %v4275 = vpop.f32.mrb[0].mxu0
      %v4276 = vadd.f32 0.0, %v4275
      %v4277 = vpop.f32.mrb[0].mxu0
      %4278 = vmatprep.mubr.bf16.mxu0 0
      %4279 = vmatmul.mubr.bf16.gmra.mrb[0].mxu0 %v1900
      %v4280 = vpop.f32.mrb[0].mxu0
      %v4281 = vadd.f32 0.0, %v4280
      %v4282 = vpop.f32.mrb[0].mxu0
      %v4283 = vpop.f32.mrb[0].mxu0
      %v4284 = vadd.f32 0.0, %v4283
      %v4285 = vpop.f32.mrb[0].mxu0
      %4286 = vmatprep.mubr.bf16.mxu0 0
      %4287 = vmatmul.mubr.bf16.gmra.mrb[0].mxu0 %v1901
      %v4288 = vpop.f32.mrb[0].mxu0
      %v4289 = vadd.f32 0.0, %v4288
      %v4290 = vpop.f32.mrb[0].mxu0
      %v4291 = vpop.f32.mrb[0].mxu0
      %v4292 = vadd.f32 0.0, %v4291
      %v4293 = vpop.f32.mrb[0].mxu0
      %4294 = vmatprep.mubr.bf16.mxu0 0
      %4295 = vmatmul.mubr.bf16.gmra.mrb[0].mxu0 %v1902
      %v4296 = vpop.f32.mrb[0].mxu0
      %v4297 = vadd.f32 0.0, %v4296
      %v4298 = vpop.f32.mrb[0].mxu0
      %v4299 = vpop.f32.mrb[0].mxu0
      %v4300 = vadd.f32 0.0, %v4299
      %v4301 = vpop.f32.mrb[0].mxu0
      %4302 = vmatprep.mubr.bf16.mxu0 0
      %4303 = vmatmul.mubr.bf16.gmra.mrb[0].mxu0 %v1903
      %v4304 = vpop.f32.mrb[0].mxu0
      %v4305 = vadd.f32 0.0, %v4304
      %v4306 = vpop.f32.mrb[0].mxu0
      %v4307 = vpop.f32.mrb[0].mxu0
      %v4308 = vadd.f32 0.0, %v4307
      %v4309 = vpop.f32.mrb[0].mxu0
      %4310 = vmatprep.mubr.bf16.mxu0 0
      %4311 = vmatmul.mubr.bf16.gmra.mrb[0].mxu0 %v1904
      %v4312 = vpop.f32.mrb[0].mxu0
      %v4313 = vadd.f32 0.0, %v4312
      %v4314 = vpop.f32.mrb[0].mxu0
      %v4315 = vpop.f32.mrb[0].mxu0
      %v4316 = vadd.f32 0.0, %v4315
      %v4317 = vpop.f32.mrb[0].mxu0
      %4318 = vmatprep.mubr.bf16.mxu0 0
      %4319 = vmatmul.mubr.bf16.gmra.mrb[0].mxu0 %v1905
      %v4320 = vpop.f32.mrb[0].mxu0
      %v4321 = vadd.f32 0.0, %v4320
      %v4322 = vpop.f32.mrb[0].mxu0
      %v4323 = vpop.f32.mrb[0].mxu0
      %v4324 = vadd.f32 0.0, %v4323
      %v4325 = vpop.f32.mrb[0].mxu0
      %4326 = vmatprep.mubr.bf16.mxu0 0
      %4327 = vmatmul.mubr.bf16.gmra.mrb[0].mxu0 %v1906
      %v4328 = vpop.f32.mrb[0].mxu0
      %v4329 = vadd.f32 0.0, %v4328
      %v4330 = vpop.f32.mrb[0].mxu0
      %v4331 = vpop.f32.mrb[0].mxu0
      %v4332 = vadd.f32 0.0, %v4331
      %v4333 = vpop.f32.mrb[0].mxu0
      %4334 = vmatprep.mubr.bf16.mxu0 0
      %4335 = vmatmul.mubr.bf16.gmra.mrb[0].mxu0 %v1907
      %v4336 = vpop.f32.mrb[0].mxu0
      %v4337 = vadd.f32 0.0, %v4336
      %v4338 = vpop.f32.mrb[0].mxu0
      %v4339 = vpop.f32.mrb[0].mxu0
      %v4340 = vadd.f32 0.0, %v4339
      %v4341 = vpop.f32.mrb[0].mxu0
      %4342 = vmatprep.mubr.bf16.mxu0 0
      %4343 = vmatmul.mubr.bf16.gmra.mrb[0].mxu0 %v1908
      %v4344 = vpop.f32.mrb[0].mxu0
      %v4345 = vadd.f32 0.0, %v4344
      %v4346 = vpop.f32.mrb[0].mxu0
      %v4347 = vpop.f32.mrb[0].mxu0
      %v4348 = vadd.f32 0.0, %v4347
      %v4349 = vpop.f32.mrb[0].mxu0
      %4350 = vmatprep.mubr.bf16.mxu0 0
      %4351 = vmatmul.mubr.bf16.gmra.mrb[0].mxu0 %v1909
      %v4352 = vpop.f32.mrb[0].mxu0
      %v4353 = vadd.f32 0.0, %v4352
      %v4354 = vpop.f32.mrb[0].mxu0
      %v4355 = vpop.f32.mrb[0].mxu0
      %v4356 = vadd.f32 0.0, %v4355
      %v4357 = vpop.f32.mrb[0].mxu0
      %4358 = vmatprep.mubr.bf16.mxu0 0
      %4359 = vmatmul.mubr.bf16.gmra.mrb[0].mxu0 %v1910
      %v4360 = vpop.f32.mrb[0].mxu0
      %v4361 = vadd.f32 0.0, %v4360
      %v4362 = vpop.f32.mrb[0].mxu0
      %v4363 = vpop.f32.mrb[0].mxu0
      %v4364 = vadd.f32 0.0, %v4363
      %v4365 = vpop.f32.mrb[0].mxu0
      %4366 = vmatprep.mubr.bf16.mxu0 0
      %4367 = vmatmul.mubr.bf16.gmra.mrb[0].mxu0 %v1911
      %v4368 = vpop.f32.mrb[0].mxu0
      %v4369 = vadd.f32 0.0, %v4368
      %v4370 = vpop.f32.mrb[0].mxu0
      %v4371 = vpop.f32.mrb[0].mxu0
      %v4372 = vadd.f32 0.0, %v4371
      %v4373 = vpop.f32.mrb[0].mxu0
      %4374 = vmatprep.mubr.bf16.mxu0 0
      %4375 = vmatmul.mubr.bf16.gmra.mrb[0].mxu0 %v1912
      %v4376 = vpop.f32.mrb[0].mxu0
      %v4377 = vadd.f32 0.0, %v4376
      %v4378 = vpop.f32.mrb[0].mxu0
      %v4379 = vpop.f32.mrb[0].mxu0
      %v4380 = vadd.f32 0.0, %v4379
      %v4381 = vpop.f32.mrb[0].mxu0
      %4382 = vmatprep.mubr.bf16.mxu0 0
      %4383 = vmatmul.mubr.bf16.gmra.mrb[0].mxu0 %v4128
      %v4384 = vpop.f32.mrb[0].mxu0
      %v4385 = vadd.f32 0.0, %v4384
      %v4386 = vpop.f32.mrb[0].mxu0
      %v4387 = vpop.f32.mrb[0].mxu0
      %v4388 = vadd.f32 0.0, %v4387
      %v4389 = vpop.f32.mrb[0].mxu0
      %4390 = vmatprep.mubr.bf16.mxu0 0
      %4391 = vmatmul.mubr.bf16.gmra.mrb[0].mxu0 %v4129
      %v4392 = vpop.f32.mrb[0].mxu0
      %v4393 = vadd.f32 0.0, %v4392
      %v4394 = vpop.f32.mrb[0].mxu0
      %v4395 = vpop.f32.mrb[0].mxu0
      %v4396 = vadd.f32 0.0, %v4395
      %v4397 = vpop.f32.mrb[0].mxu0
      %4398 = vmatprep.mubr.bf16.mxu0 0
      %4399 = vmatmul.mubr.bf16.gmra.mrb[0].mxu0 %v4130
      %v4400 = vpop.f32.mrb[0].mxu0
      %v4401 = vadd.f32 0.0, %v4400
      %v4402 = vpop.f32.mrb[0].mxu0
      %v4403 = vpop.f32.mrb[0].mxu0
      %v4404 = vadd.f32 0.0, %v4403
      %v4405 = vpop.f32.mrb[0].mxu0
      %4406 = vdwg.mxu0
      %v4407 = vadd.f32 %v4059, %v4217
      %v4408 = vadd.f32 %v4060, %v4220
      %v4409 = vadd.f32 %v4061, %v4225
      %v4410 = vadd.f32 %v4062, %v4228
      %v4411 = vadd.f32 %v4063, %v4233
      %v4412 = vadd.f32 %v4064, %v4236
      %v4413 = vadd.f32 %v4065, %v4241
      %v4414 = vadd.f32 %v4066, %v4244
      %v4415 = vadd.f32 %v4067, %v4249
      %v4416 = vadd.f32 %v4068, %v4252
      %v4417 = vadd.f32 %v4069, %v4257
      %v4418 = vadd.f32 %v4070, %v4260
      %v4419 = vadd.f32 %v4071, %v4265
      %v4420 = vadd.f32 %v4072, %v4268
      %v4421 = vadd.f32 %v4073, %v4273
      %v4422 = vadd.f32 %v4074, %v4276
      %v4423 = vadd.f32 %v4075, %v4281
      %v4424 = vadd.f32 %v4076, %v4284
      %v4425 = vadd.f32 %v4077, %v4289
      %v4426 = vadd.f32 %v4078, %v4292
      %v4427 = vadd.f32 %v4079, %v4297
      %v4428 = vadd.f32 %v4080, %v4300
      %v4429 = vadd.f32 %v4081, %v4305
      %v4430 = vadd.f32 %v4082, %v4308
      %v4431 = vadd.f32 %v4083, %v4313
      %v4432 = vadd.f32 %v4084, %v4316
      %v4433 = vadd.f32 %v4085, %v4321
      %v4434 = vadd.f32 %v4086, %v4324
      %v4435 = vadd.f32 %v4087, %v4329
      %v4436 = vadd.f32 %v4088, %v4332
      %v4437 = vadd.f32 %v4089, %v4337
      %v4438 = vadd.f32 %v4090, %v4340
      %v4439 = vadd.f32 %v4091, %v4345
      %v4440 = vadd.f32 %v4092, %v4348
      %v4441 = vadd.f32 %v4093, %v4353
      %v4442 = vadd.f32 %v4094, %v4356
      %v4443 = vadd.f32 %v4095, %v4361
      %v4444 = vadd.f32 %v4096, %v4364
      %v4445 = vadd.f32 %v4097, %v4369
      %v4446 = vadd.f32 %v4098, %v4372
      %v4447 = vadd.f32 %v4099, %v4377
      %v4448 = vadd.f32 %v4100, %v4380
      %v4449 = vadd.f32 %v4101, %v4385
      %v4450 = vadd.f32 %v4102, %v4388
      %v4451 = vadd.f32 %v4103, %v4393
      %v4452 = vadd.f32 %v4104, %v4396
      %v4453 = vadd.f32 %v4105, %v4401
      %v4454 = vadd.f32 %v4106, %v4404
      %v4455 = vsel %vm477, 1, 0
      %v4456 = vsel %vm478, 1, 0
      %v4457 = vsel %vm479, 1, 0
      %vm4458 = vcmp.eq.s32.totalorder %v4455, 1
      %vm4459 = vcmp.eq.s32.totalorder %v4456, 1
      %vm4460 = vcmp.eq.s32.totalorder %v4457, 1
      %v4461 = vsel %vm4458, %v4407, 0.0
      %v4462 = vsel %vm4459, %v4408, 0.0
      %v4463 = vsel %vm4460, %v4409, 0.0
      %v4464 = vsel %vm4458, %v4410, 0.0
      %v4465 = vsel %vm4459, %v4411, 0.0
      %v4466 = vsel %vm4460, %v4412, 0.0
      %v4467 = vsel %vm4458, %v4413, 0.0
      %v4468 = vsel %vm4459, %v4414, 0.0
      %v4469 = vsel %vm4460, %v4415, 0.0
      %v4470 = vsel %vm4458, %v4416, 0.0
      %v4471 = vsel %vm4459, %v4417, 0.0
      %v4472 = vsel %vm4460, %v4418, 0.0
      %v4473 = vsel %vm4458, %v4419, 0.0
      %v4474 = vsel %vm4459, %v4420, 0.0
      %v4475 = vsel %vm4460, %v4421, 0.0
      %v4476 = vsel %vm4458, %v4422, 0.0
      %v4477 = vsel %vm4459, %v4423, 0.0
      %v4478 = vsel %vm4460, %v4424, 0.0
      %v4479 = vsel %vm4458, %v4425, 0.0
      %v4480 = vsel %vm4459, %v4426, 0.0
      %v4481 = vsel %vm4460, %v4427, 0.0
      %v4482 = vsel %vm4458, %v4428, 0.0
      %v4483 = vsel %vm4459, %v4429, 0.0
      %v4484 = vsel %vm4460, %v4430, 0.0
      %v4485 = vsel %vm4458, %v4431, 0.0
      %v4486 = vsel %vm4459, %v4432, 0.0
      %v4487 = vsel %vm4460, %v4433, 0.0
      %v4488 = vsel %vm4458, %v4434, 0.0
      %v4489 = vsel %vm4459, %v4435, 0.0
      %v4490 = vsel %vm4460, %v4436, 0.0
      %v4491 = vsel %vm4458, %v4437, 0.0
      %v4492 = vsel %vm4459, %v4438, 0.0
      %v4493 = vsel %vm4460, %v4439, 0.0
      %v4494 = vsel %vm4458, %v4440, 0.0
      %v4495 = vsel %vm4459, %v4441, 0.0
      %v4496 = vsel %vm4460, %v4442, 0.0
      %v4497 = vsel %vm4458, %v4443, 0.0
      %v4498 = vsel %vm4459, %v4444, 0.0
      %v4499 = vsel %vm4460, %v4445, 0.0
      %v4500 = vsel %vm4458, %v4446, 0.0
      %v4501 = vsel %vm4459, %v4447, 0.0
      %v4502 = vsel %vm4460, %v4448, 0.0
      %v4503 = vsel %vm4458, %v4449, 0.0
      %v4504 = vsel %vm4459, %v4450, 0.0
      %v4505 = vsel %vm4460, %v4451, 0.0
      %v4506 = vsel %vm4458, %v4452, 0.0
      %v4507 = vsel %vm4459, %v4453, 0.0
      %v4508 = vsel %vm4460, %v4454, 0.0
      %v4509 = vadd.f32 %v4461, %v4462
      %v4510 = vadd.f32 %v4509, %v4463
      %v4511 = vadd.f32 %v4510, %v4464
      %v4512 = vadd.f32 %v4511, %v4465
      %v4513 = vadd.f32 %v4512, %v4466
      %v4514 = vadd.f32 %v4513, %v4467
      %v4515 = vadd.f32 %v4514, %v4468
      %v4516 = vadd.f32 %v4515, %v4469
      %v4517 = vadd.f32 %v4516, %v4470
      %v4518 = vadd.f32 %v4517, %v4471
      %v4519 = vadd.f32 %v4518, %v4472
      %v4520 = vadd.f32 %v4519, %v4473
      %v4521 = vadd.f32 %v4520, %v4474
      %v4522 = vadd.f32 %v4521, %v4475
      %v4523 = vadd.f32 %v4522, %v4476
      %v4524 = vadd.f32 %v4523, %v4477
      %v4525 = vadd.f32 %v4524, %v4478
      %v4526 = vadd.f32 %v4525, %v4479
      %v4527 = vadd.f32 %v4526, %v4480
      %v4528 = vadd.f32 %v4527, %v4481
      %v4529 = vadd.f32 %v4528, %v4482
      %v4530 = vadd.f32 %v4529, %v4483
      %v4531 = vadd.f32 %v4530, %v4484
      %v4532 = vadd.f32 %v4531, %v4485
      %v4533 = vadd.f32 %v4532, %v4486
      %v4534 = vadd.f32 %v4533, %v4487
      %v4535 = vadd.f32 %v4534, %v4488
      %v4536 = vadd.f32 %v4535, %v4489
      %v4537 = vadd.f32 %v4536, %v4490
      %v4538 = vadd.f32 %v4537, %v4491
      %v4539 = vadd.f32 %v4538, %v4492
      %v4540 = vadd.f32 %v4539, %v4493
      %v4541 = vadd.f32 %v4540, %v4494
      %v4542 = vadd.f32 %v4541, %v4495
      %v4543 = vadd.f32 %v4542, %v4496
      %v4544 = vadd.f32 %v4543, %v4497
      %v4545 = vadd.f32 %v4544, %v4498
      %v4546 = vadd.f32 %v4545, %v4499
      %v4547 = vadd.f32 %v4546, %v4500
      %v4548 = vadd.f32 %v4547, %v4501
      %v4549 = vadd.f32 %v4548, %v4502
      %v4550 = vadd.f32 %v4549, %v4503
      %v4551 = vadd.f32 %v4550, %v4504
      %v4552 = vadd.f32 %v4551, %v4505
      %v4553 = vadd.f32 %v4552, %v4506
      %v4554 = vadd.f32 %v4553, %v4507
      %v4555 = vadd.f32 %v4554, %v4508
      %v4556 = vrot.slane %v4555, 4
      %v4557 = vadd.f32 %v4555, %v4556
      %v4558 = vrot.slane %v4557, 2
      %v4559 = vadd.f32 %v4557, %v4558
      %v4560 = vrot.slane %v4559, 1
      %v4561 = vadd.f32 %v4559, %v4560
      %v4562 = vmul.f32 %v4461, %v4461
      %v4563 = vmul.f32 %v4462, %v4462
      %v4564 = vmul.f32 %v4463, %v4463
      %v4565 = vmul.f32 %v4464, %v4464
      %v4566 = vmul.f32 %v4465, %v4465
      %v4567 = vmul.f32 %v4466, %v4466
      %v4568 = vmul.f32 %v4467, %v4467
      %v4569 = vmul.f32 %v4468, %v4468
      %v4570 = vmul.f32 %v4469, %v4469
      %v4571 = vmul.f32 %v4470, %v4470
      %v4572 = vmul.f32 %v4471, %v4471
      %v4573 = vmul.f32 %v4472, %v4472
      %v4574 = vmul.f32 %v4473, %v4473
      %v4575 = vmul.f32 %v4474, %v4474
      %v4576 = vmul.f32 %v4475, %v4475
      %v4577 = vmul.f32 %v4476, %v4476
      %v4578 = vmul.f32 %v4477, %v4477
      %v4579 = vmul.f32 %v4478, %v4478
      %v4580 = vmul.f32 %v4479, %v4479
      %v4581 = vmul.f32 %v4480, %v4480
      %v4582 = vmul.f32 %v4481, %v4481
      %v4583 = vmul.f32 %v4482, %v4482
      %v4584 = vmul.f32 %v4483, %v4483
      %v4585 = vmul.f32 %v4484, %v4484
      %v4586 = vmul.f32 %v4485, %v4485
      %v4587 = vmul.f32 %v4486, %v4486
      %v4588 = vmul.f32 %v4487, %v4487
      %v4589 = vmul.f32 %v4488, %v4488
      %v4590 = vmul.f32 %v4489, %v4489
      %v4591 = vmul.f32 %v4490, %v4490
      %v4592 = vmul.f32 %v4491, %v4491
      %v4593 = vmul.f32 %v4492, %v4492
      %v4594 = vmul.f32 %v4493, %v4493
      %v4595 = vmul.f32 %v4494, %v4494
      %v4596 = vmul.f32 %v4495, %v4495
      %v4597 = vmul.f32 %v4496, %v4496
      %v4598 = vmul.f32 %v4497, %v4497
      %v4599 = vmul.f32 %v4498, %v4498
      %v4600 = vmul.f32 %v4499, %v4499
      %v4601 = vmul.f32 %v4500, %v4500
      %v4602 = vmul.f32 %v4501, %v4501
      %v4603 = vmul.f32 %v4502, %v4502
      %v4604 = vmul.f32 %v4503, %v4503
      %v4605 = vmul.f32 %v4504, %v4504
      %v4606 = vmul.f32 %v4505, %v4505
      %v4607 = vmul.f32 %v4506, %v4506
      %v4608 = vmul.f32 %v4507, %v4507
      %v4609 = vmul.f32 %v4508, %v4508
      %v4610 = vadd.f32 %v4562, %v4563
      %v4611 = vadd.f32 %v4610, %v4564
      %v4612 = vadd.f32 %v4611, %v4565
      %v4613 = vadd.f32 %v4612, %v4566
      %v4614 = vadd.f32 %v4613, %v4567
      %v4615 = vadd.f32 %v4614, %v4568
      %v4616 = vadd.f32 %v4615, %v4569
      %v4617 = vadd.f32 %v4616, %v4570
      %v4618 = vadd.f32 %v4617, %v4571
      %v4619 = vadd.f32 %v4618, %v4572
      %v4620 = vadd.f32 %v4619, %v4573
      %v4621 = vadd.f32 %v4620, %v4574
      %v4622 = vadd.f32 %v4621, %v4575
      %v4623 = vadd.f32 %v4622, %v4576
      %v4624 = vadd.f32 %v4623, %v4577
      %v4625 = vadd.f32 %v4624, %v4578
      %v4626 = vadd.f32 %v4625, %v4579
      %v4627 = vadd.f32 %v4626, %v4580
      %v4628 = vadd.f32 %v4627, %v4581
      %v4629 = vadd.f32 %v4628, %v4582
      %v4630 = vadd.f32 %v4629, %v4583
      %v4631 = vadd.f32 %v4630, %v4584
      %v4632 = vadd.f32 %v4631, %v4585
      %v4633 = vadd.f32 %v4632, %v4586
      %v4634 = vadd.f32 %v4633, %v4587
      %v4635 = vadd.f32 %v4634, %v4588
      %v4636 = vadd.f32 %v4635, %v4589
      %v4637 = vadd.f32 %v4636, %v4590
      %v4638 = vadd.f32 %v4637, %v4591
      %v4639 = vadd.f32 %v4638, %v4592
      %v4640 = vadd.f32 %v4639, %v4593
      %v4641 = vadd.f32 %v4640, %v4594
      %v4642 = vadd.f32 %v4641, %v4595
      %v4643 = vadd.f32 %v4642, %v4596
      %v4644 = vadd.f32 %v4643, %v4597
      %v4645 = vadd.f32 %v4644, %v4598
      %v4646 = vadd.f32 %v4645, %v4599
      %v4647 = vadd.f32 %v4646, %v4600
      %v4648 = vadd.f32 %v4647, %v4601
      %v4649 = vadd.f32 %v4648, %v4602
      %v4650 = vadd.f32 %v4649, %v4603
      %v4651 = vadd.f32 %v4650, %v4604
      %v4652 = vadd.f32 %v4651, %v4605
      %v4653 = vadd.f32 %v4652, %v4606
      %v4654 = vadd.f32 %v4653, %v4607
      %v4655 = vadd.f32 %v4654, %v4608
      %v4656 = vadd.f32 %v4655, %v4609
      %v4657 = vrot.slane %v4656, 4
      %v4658 = vadd.f32 %v4656, %v4657
      %v4659 = vrot.slane %v4658, 2
      %v4660 = vadd.f32 %v4658, %v4659
      %v4661 = vrot.slane %v4660, 1
      %v4662 = vadd.f32 %v4660, %v4661
      %vm4663 = vcmask 1040384
      %v4664 = vsel %vm4663, %v4561, %v4662
      %4665 = vst [vmem:[%s411] sm:$0x3] %v4664
      %v4666 = vpack.c.bf16 %v4462, %v4461
      %v4667 = vpack.c.bf16 %v4463, %v4463
      %v4668 = vpack.c.bf16 %v4465, %v4464
      %v4669 = vpack.c.bf16 %v4466, %v4466
      %v4670 = vpack.c.bf16 %v4468, %v4467
      %v4671 = vpack.c.bf16 %v4469, %v4469
      %v4672 = vpack.c.bf16 %v4471, %v4470
      %v4673 = vpack.c.bf16 %v4472, %v4472
      %v4674 = vpack.c.bf16 %v4474, %v4473
      %v4675 = vpack.c.bf16 %v4475, %v4475
      %v4676 = vpack.c.bf16 %v4477, %v4476
      %v4677 = vpack.c.bf16 %v4478, %v4478
      %v4678 = vpack.c.bf16 %v4480, %v4479
      %v4679 = vpack.c.bf16 %v4481, %v4481
      %v4680 = vpack.c.bf16 %v4483, %v4482
      %v4681 = vpack.c.bf16 %v4484, %v4484
      %v4682 = vpack.c.bf16 %v4486, %v4485
      %v4683 = vpack.c.bf16 %v4487, %v4487
      %v4684 = vpack.c.bf16 %v4489, %v4488
      %v4685 = vpack.c.bf16 %v4490, %v4490
      %v4686 = vpack.c.bf16 %v4492, %v4491
      %v4687 = vpack.c.bf16 %v4493, %v4493
      %v4688 = vpack.c.bf16 %v4495, %v4494
      %v4689 = vpack.c.bf16 %v4496, %v4496
      %v4690 = vpack.c.bf16 %v4498, %v4497
      %v4691 = vpack.c.bf16 %v4499, %v4499
      %v4692 = vpack.c.bf16 %v4501, %v4500
      %v4693 = vpack.c.bf16 %v4502, %v4502
      %v4694 = vpack.c.bf16 %v4504, %v4503
      %v4695 = vpack.c.bf16 %v4505, %v4505
      %v4696 = vpack.c.bf16 %v4507, %v4506
      %v4697 = vpack.c.bf16 %v4508, %v4508
      %v4730 = vunpack.c.l.b16 %v4666
      %v4731 = vunpack.c.h.b16 %v4666
      %v4732 = vunpack.c.l.b16 %v4667
      %v4733 = vunpack.c.l.b16 %v4668
      %v4734 = vunpack.c.h.b16 %v4668
      %v4735 = vunpack.c.l.b16 %v4669
      %v4736 = vunpack.c.l.b16 %v4670
      %v4737 = vunpack.c.h.b16 %v4670
      %v4738 = vunpack.c.l.b16 %v4671
      %v4739 = vunpack.c.l.b16 %v4672
      %v4740 = vunpack.c.h.b16 %v4672
      %v4741 = vunpack.c.l.b16 %v4673
      %v4742 = vunpack.c.l.b16 %v4674
      %v4743 = vunpack.c.h.b16 %v4674
      %v4744 = vunpack.c.l.b16 %v4675
      %v4745 = vunpack.c.l.b16 %v4676
      %v4746 = vunpack.c.h.b16 %v4676
      %v4747 = vunpack.c.l.b16 %v4677
      %v4748 = vunpack.c.l.b16 %v4678
      %v4749 = vunpack.c.h.b16 %v4678
      %v4750 = vunpack.c.l.b16 %v4679
      %v4751 = vunpack.c.l.b16 %v4680
      %v4752 = vunpack.c.h.b16 %v4680
      %v4753 = vunpack.c.l.b16 %v4681
      %v4754 = vunpack.c.l.b16 %v4682
      %v4755 = vunpack.c.h.b16 %v4682
      %v4756 = vunpack.c.l.b16 %v4683
      %v4757 = vunpack.c.l.b16 %v4684
      %v4758 = vunpack.c.h.b16 %v4684
      %v4759 = vunpack.c.l.b16 %v4685
      %v4760 = vunpack.c.l.b16 %v4686
      %v4761 = vunpack.c.h.b16 %v4686
      %v4762 = vunpack.c.l.b16 %v4687
      %v4763 = vunpack.c.l.b16 %v4688
      %v4764 = vunpack.c.h.b16 %v4688
      %v4765 = vunpack.c.l.b16 %v4689
      %v4766 = vunpack.c.l.b16 %v4690
      %v4767 = vunpack.c.h.b16 %v4690
      %v4768 = vunpack.c.l.b16 %v4691
      %v4769 = vunpack.c.l.b16 %v4692
      %v4770 = vunpack.c.h.b16 %v4692
      %v4771 = vunpack.c.l.b16 %v4693
      %v4772 = vunpack.c.l.b16 %v4694
      %v4773 = vunpack.c.h.b16 %v4694
      %v4774 = vunpack.c.l.b16 %v4695
      %v4775 = vunpack.c.l.b16 %v4696
      %v4776 = vunpack.c.h.b16 %v4696
      %v4777 = vunpack.c.l.b16 %v4697
      %v4778 = vpack.c.b16 %v4730, %v4730
      %v4779 = vpack.c.b16 %v4731, %v4731
      %v4780 = vpack.c.b16 %v4732, %v4732
      %v4781 = vpack.c.b16 %v4733, %v4733
      %v4782 = vpack.c.b16 %v4734, %v4734
      %v4783 = vpack.c.b16 %v4735, %v4735
      %v4784 = vpack.c.b16 %v4736, %v4736
      %v4785 = vpack.c.b16 %v4737, %v4737
      %v4786 = vpack.c.b16 %v4738, %v4738
      %v4787 = vpack.c.b16 %v4739, %v4739
      %v4788 = vpack.c.b16 %v4740, %v4740
      %v4789 = vpack.c.b16 %v4741, %v4741
      %v4790 = vpack.c.b16 %v4742, %v4742
      %v4791 = vpack.c.b16 %v4743, %v4743
      %v4792 = vpack.c.b16 %v4744, %v4744
      %v4793 = vpack.c.b16 %v4745, %v4745
      %v4794 = vpack.c.b16 %v4746, %v4746
      %v4795 = vpack.c.b16 %v4747, %v4747
      %v4796 = vpack.c.b16 %v4748, %v4748
      %v4797 = vpack.c.b16 %v4749, %v4749
      %v4798 = vpack.c.b16 %v4750, %v4750
      %v4799 = vpack.c.b16 %v4751, %v4751
      %v4800 = vpack.c.b16 %v4752, %v4752
      %v4801 = vpack.c.b16 %v4753, %v4753
      %v4802 = vpack.c.b16 %v4754, %v4754
      %v4803 = vpack.c.b16 %v4755, %v4755
      %v4804 = vpack.c.b16 %v4756, %v4756
      %v4805 = vpack.c.b16 %v4757, %v4757
      %v4806 = vpack.c.b16 %v4758, %v4758
      %v4807 = vpack.c.b16 %v4759, %v4759
      %v4808 = vpack.c.b16 %v4760, %v4760
      %v4809 = vpack.c.b16 %v4761, %v4761
      %v4810 = vpack.c.b16 %v4762, %v4762
      %v4811 = vpack.c.b16 %v4763, %v4763
      %v4812 = vpack.c.b16 %v4764, %v4764
      %v4813 = vpack.c.b16 %v4765, %v4765
      %v4814 = vpack.c.b16 %v4766, %v4766
      %v4815 = vpack.c.b16 %v4767, %v4767
      %v4816 = vpack.c.b16 %v4768, %v4768
      %v4817 = vpack.c.b16 %v4769, %v4769
      %v4818 = vpack.c.b16 %v4770, %v4770
      %v4819 = vpack.c.b16 %v4771, %v4771
      %v4820 = vpack.c.b16 %v4772, %v4772
      %v4821 = vpack.c.b16 %v4773, %v4773
      %v4822 = vpack.c.b16 %v4774, %v4774
      %v4823 = vpack.c.b16 %v4775, %v4775
      %v4824 = vpack.c.b16 %v4776, %v4776
      %v4825 = vpack.c.b16 %v4777, %v4777
      %4874 = vst [vmem:[%s403] sm:$0xf] %v4778
      %4875 = vst [vmem:[%s403 + $0x4] sm:$0xf] %v4779
      %4876 = vst [vmem:[%s403 + $0x8] sm:$0xf] %v4780
      %4877 = vst [vmem:[%s403 + $0xc] sm:$0xf] %v4781
      %4878 = vst [vmem:[%s403 + $0x10] sm:$0xf] %v4782
      %4879 = vst [vmem:[%s403 + $0x14] sm:$0xf] %v4783
      %4880 = vst [vmem:[%s403 + $0x18] sm:$0xf] %v4784
      %4881 = vst [vmem:[%s403 + $0x1c] sm:$0xf] %v4785
      %4882 = vst [vmem:[%s403 + $0x20] sm:$0xf] %v4786
      %4883 = vst [vmem:[%s403 + $0x24] sm:$0xf] %v4787
      %4884 = vst [vmem:[%s403 + $0x28] sm:$0xf] %v4788
      %4885 = vst [vmem:[%s403 + $0x2c] sm:$0xf] %v4789
      %4886 = vst [vmem:[%s403 + $0x30] sm:$0xf] %v4790
      %4887 = vst [vmem:[%s403 + $0x34] sm:$0xf] %v4791
      %4888 = vst [vmem:[%s403 + $0x38] sm:$0xf] %v4792
      %4889 = vst [vmem:[%s403 + $0x3c] sm:$0xf] %v4793
      %4890 = vst [vmem:[%s403 + $0x40] sm:$0xf] %v4794
      %4891 = vst [vmem:[%s403 + $0x44] sm:$0xf] %v4795
      %4892 = vst [vmem:[%s403 + $0x48] sm:$0xf] %v4796
      %4893 = vst [vmem:[%s403 + $0x4c] sm:$0xf] %v4797
      %4894 = vst [vmem:[%s403 + $0x50] sm:$0xf] %v4798
      %4895 = vst [vmem:[%s403 + $0x54] sm:$0xf] %v4799
      %4896 = vst [vmem:[%s403 + $0x58] sm:$0xf] %v4800
      %4897 = vst [vmem:[%s403 + $0x5c] sm:$0xf] %v4801
      %4898 = vst [vmem:[%s403 + $0x60] sm:$0xf] %v4802
      %4899 = vst [vmem:[%s403 + $0x64] sm:$0xf] %v4803
      %4900 = vst [vmem:[%s403 + $0x68] sm:$0xf] %v4804
      %4901 = vst [vmem:[%s403 + $0x6c] sm:$0xf] %v4805
      %4902 = vst [vmem:[%s403 + $0x70] sm:$0xf] %v4806
      %4903 = vst [vmem:[%s403 + $0x74] sm:$0xf] %v4807
      %4904 = vst [vmem:[%s403 + $0x78] sm:$0xf] %v4808
      %4905 = vst [vmem:[%s403 + $0x7c] sm:$0xf] %v4809
      %4906 = vst [vmem:[%s403 + $0x80] sm:$0xf] %v4810
      %4907 = vst [vmem:[%s403 + $0x84] sm:$0xf] %v4811
      %4908 = vst [vmem:[%s403 + $0x88] sm:$0xf] %v4812
      %4909 = vst [vmem:[%s403 + $0x8c] sm:$0xf] %v4813
      %4910 = vst [vmem:[%s403 + $0x90] sm:$0xf] %v4814
      %4911 = vst [vmem:[%s403 + $0x94] sm:$0xf] %v4815
      %4912 = vst [vmem:[%s403 + $0x98] sm:$0xf] %v4816
      %4913 = vst [vmem:[%s403 + $0x9c] sm:$0xf] %v4817
      %4914 = vst [vmem:[%s403 + $0xa0] sm:$0xf] %v4818
      %4915 = vst [vmem:[%s403 + $0xa4] sm:$0xf] %v4819
      %4916 = vst [vmem:[%s403 + $0xa8] sm:$0xf] %v4820
      %4917 = vst [vmem:[%s403 + $0xac] sm:$0xf] %v4821
      %4918 = vst [vmem:[%s403 + $0xb0] sm:$0xf] %v4822
      %4919 = vst [vmem:[%s403 + $0xb4] sm:$0xf] %v4823
      %4920 = vst [vmem:[%s403 + $0xb8] sm:$0xf] %v4824
      %4921 = vst [vmem:[%s403 + $0xbc] sm:$0xf] %v4825
      %s4922 = smul.u32 16, %s22
      %p4923 = scmp.lt.s32.totalorder %s21, 1
      %s4924 = scalar_select %p4923, %s21, 1
      %p4925 = scmp.lt.s32.totalorder %s4922, 15
      %s4926 = scalar_select %p4925, %s4922, 15
      %s4927 = smul.addr %s4926, 3
      %s4928 = smul.addr %s4924, 48
      %s4929 = sadd.s32 %s4927, %s4928
      %s4930 = smul.addr %s4929, 4
      %s4931 = scalar_lea.vmem %s4, %s4930
      %p4932 = scmp.lt.s32.totalorder %s21, 1
      %s4933 = scalar_select %p4932, %s21, 1
      %p4934 = scmp.lt.s32.totalorder %s22, 0
      %s4935 = scalar_select %p4934, %s22, 0
      %s4936 = sadd.s32 %s4935, %s4933
      %s4937 = smul.addr %s4936, 2
      %s4938 = scalar_lea.vmem %s5, %s4937
      // Predicated region
      $region37: #{basic_block_forward.3} parent=35 // pred_check
        %p4939 = pneg %p170
      $region38: #{basic_block_forward.3} parent=35 // pred_check_branch
        %4941 = sbr.rel (%p4939) target = $region40
      $region39: #{basic_block_forward.3} parent=35 // pred_region
        %s4942 = smul.u32 16, %s22
      $region40: #{basic_block_forward.3} parent=35 // pred_fallthru
        _
      // Predicated region
      $region41: #{basic_block_forward.3} parent=35 // pred_check
        %p4943 = pneg %p198
      $region42: #{basic_block_forward.3} parent=35 // pred_check_branch
        %4945 = sbr.rel (%p4943) target = $region44
      $region43: #{basic_block_forward.3} parent=35 // pred_region
        _
      $region44: #{basic_block_forward.3} parent=35 // pred_fallthru
        _
    $region36: #{basic_block_forward.3} parent=5 // pred_fallthru
      _
    %p4946 = scmp.le.s32.totalorder 2, %s12
    // Predicated region
    $region45: #{basic_block_forward.3} parent=5 // pred_check
      %p4947 = pneg %p4946
    $region46: #{basic_block_forward.3} parent=5 // pred_check_branch
      %4949 = sbr.rel (%p4947) target = $region48
    $region47: #{basic_block_forward.3} parent=5 // pred_region
      %s4950 = ssub.s32 %s12, 2
      // Predicated region
      $region49: #{basic_block_forward.3} parent=47 // pred_check
        %p4951 = pneg %p176
      $region50: #{basic_block_forward.3} parent=47 // pred_check_branch
        %4953 = sbr.rel (%p4951) target = $region52
      $region51: #{basic_block_forward.3} parent=47 // pred_region
        %s4954 = smul.u32 16, %s24
        %p4955 = scmp.lt.s32.totalorder %s23, 1
        %s4956 = scalar_select %p4955, %s23, 1
        %p4957 = scmp.lt.s32.totalorder %s4954, 15
        %s4958 = scalar_select %p4957, %s4954, 15
        %s4959 = smul.addr %s4958, 3
        %s4960 = smul.addr %s4956, 48
        %s4961 = sadd.s32 %s4959, %s4960
        %s4962 = smul.addr %s4961, 4
        %s4963 = scalar_lea.vmem %s4, %s4962
      $region52: #{basic_block_forward.3} parent=47 // pred_fallthru
        _
      // Predicated region
      $region53: #{basic_block_forward.3} parent=47 // pred_check
        %p4964 = pneg %p204
      $region54: #{basic_block_forward.3} parent=47 // pred_check_branch
        %4966 = sbr.rel (%p4964) target = $region56
      $region55: #{basic_block_forward.3} parent=47 // pred_region
        %p4967 = scmp.lt.s32.totalorder %s23, 1
        %s4968 = scalar_select %p4967, %s23, 1
        %p4969 = scmp.lt.s32.totalorder %s24, 0
        %s4970 = scalar_select %p4969, %s24, 0
        %s4971 = sadd.s32 %s4970, %s4968
        %s4972 = smul.addr %s4971, 2
        %s4973 = scalar_lea.vmem %s5, %s4972
      $region56: #{basic_block_forward.3} parent=47 // pred_fallthru
        _
    $region48: #{basic_block_forward.3} parent=5 // pred_fallthru
      _
  $region6: #{basic_block_forward.3} parent=0 // loop_footer
    %s16 = sadd.s32 1, %s12
  $region7: #{basic_block_forward.3} parent=0 // loop_footer_branch
    %11 = sbr.rel target = $region3
  $region8: #{basic_block_forward.3} parent=0 // loop_exit
    _

// kernel: basic_block_forward.4
$region0: #{basic_block_forward.4}
  #allocation0 [shape = 'u32[]', space=smem, size = 0x4, offset = 0x4, fixed_abs, tag = 'smem constant byte address 0x4 - core index']
  #allocation1 [shape = 'u32[144,128]{1,0:T(1,128)}', space=vmem, size = 0x12000, scoped, tag = 'internal scratch']
  %s0 = inlined_call_operand.vmem [shape: bf16[2,16,24,128], index: 0, kind: input, shape index: {}, may-alias: {0,1,2}]
  %s1 = inlined_call_operand.vmem [shape: bf16[2,16,24,128], index: 1, kind: input, shape index: {}, may-alias: {0,1,2}]
  %s2 = inlined_call_operand.vmem [shape: bf16[2,16,24,128], index: 2, kind: input, shape index: {}, may-alias: {0,1,2}]
  %s3 = inlined_call_operand.vmem [shape: f32[1,1,1,128], index: 3, kind: input, shape index: {}]
  %s4 = inlined_call_operand.vmem [shape: f32[1,1,1,128], index: 4, kind: input, shape index: {}]
  %s5 = inlined_call_operand.vmem [shape: bf16[3,3,128,128], index: 5, kind: input, shape index: {}]
  %s6 = inlined_call_operand.vmem [shape: bf16[2,16,16,128], index: 6, kind: output, shape index: {0}]
  %s7 = inlined_call_operand.vmem [shape: f32[2,1,2,128], index: 7, kind: output, shape index: {1}]
  %8 = xla_tuple %s6, %s7
  %s9 = sld [smem:[#allocation0]]
  $region65: #{basic_block_forward.4} parent=0
    _
  %s11 = ssub.s32 1, %s9
  %s12 = scalar_select 0, %s11, %s9
  loop: start=0, step=1, limit=4
  $region2: #{basic_block_forward.4} parent=0 // loop_pre_header
    _
  $region3: #{basic_block_forward.4} parent=0 // loop_header
    %s14 = sphi 0, %s18
    %p15 = scmp.ge.s32.totalorder %s14, 4
    %s21 = sphi 0, %s33
    %s22 = sphi 0, %s29
    %s23 = sphi 0, %s21
    %s24 = sphi 0, %s22
    %s25 = sphi 0, %s23
    %s26 = sphi 0, %s24
    %s38 = sphi 0, %s40
    %s41 = sphi 0, %s38
    %s42 = sphi 0, %s41
    %s58 = sphi 0, %s42
    %s74 = sphi 0, %s76
    %s77 = sphi 0, %s74
    %s78 = sphi 0, %s77
    %s94 = sphi 0, %s78
    %s110 = sphi 0, %s112
    %s113 = sphi 0, %s110
    %s114 = sphi 0, %s113
    %s130 = sphi 0, %s114
    %s134 = sphi 0, %s134
    %s136 = sphi 0, %s134
    %s137 = sphi 0, %s136
    %s151 = sphi 0, %s137
    %s155 = sphi 0, %s155
    %s157 = sphi 0, %s155
    %s158 = sphi 0, %s157
    %s172 = sphi 0, %s158
    %s176 = sphi 0, %s176
    %s178 = sphi 0, %s176
    %s179 = sphi 0, %s178
    %s193 = sphi 0, %s179
    %s201 = sphi 0, %s203
    %s204 = sphi 0, %s201
    %s205 = sphi 0, %s204
    %s221 = sphi 0, %s205
    %s229 = sphi 0, %s231
    %s232 = sphi 0, %s229
    %s233 = sphi 0, %s232
    %s249 = sphi 0, %s233
  $region4: #{basic_block_forward.4} parent=0 // loop_header_branch
    %17 = sbr.rel (%p15) target = $region8
  $region5: #{basic_block_forward.4} parent=0 // loop_body
    %s19 = ssub.s32 %s14, 1
    %s20 = ssub.s32 %s14, 2
    %s27 = sadd.s32 1, %s22
    %p28 = scmp.ge.s32.totalorder %s27, 1
    %s29 = scalar_select %p28, 0, %s27
    %s30 = sadd.s32 1, %s21
    %s31 = scalar_select %p28, %s30, %s21
    %p32 = scmp.ge.s32.totalorder %s31, 2
    %s33 = scalar_select %p32, 0, %s31
    %s34 = ssub.s32 %s21, %s33
    %s35 = ssub.s32 %s22, %s29
    %s36 = sor.u32 %s34, %s35
    %p37 = scmp.eq.s32.totalorder %s36, 0
    %s39 = sadd.s32 %s38, 1
    %s40 = scalar_select %p37, %s38, %s39
    %p43 = pneg %p37
    %p44 = scmp.eq.s32.totalorder %s14, 1
    %p45 = por %p43, %p44
    %p46 = scmp.ne.s32.totalorder %s38, %s41
    %p47 = scmp.eq.s32.totalorder %s14, 0
    %p48 = por %p46, %p47
    %p49 = scmp.ne.s32.totalorder %s38, %s41
    %p50 = scmp.eq.s32.totalorder %s19, 1
    %p51 = por %p49, %p50
    %p52 = scmp.ne.s32.totalorder %s41, %s42
    %p53 = scmp.eq.s32.totalorder %s19, 0
    %p54 = por %p52, %p53
    %p55 = scmp.ne.s32.totalorder %s41, %s42
    %p56 = scmp.eq.s32.totalorder %s20, 1
    %p57 = por %p55, %p56
    %p59 = scmp.ne.s32.totalorder %s42, %s58
    %p60 = scmp.eq.s32.totalorder %s20, 0
    %p61 = por %p59, %p60
    %s62 = smul.u32 %s22, 16
    %s63 = ssub.s32 %s62, 1
    %p64 = scmp.gt.s32.totalorder %s63, 0
    %s65 = scalar_select %p64, %s63, 0
    %s66 = smul.u32 %s29, 16
    %s67 = ssub.s32 %s66, 1
    %p68 = scmp.gt.s32.totalorder %s67, 0
    %s69 = scalar_select %p68, %s67, 0
    %s70 = ssub.s32 %s21, %s33
    %s71 = ssub.s32 %s65, %s69
    %s72 = sor.u32 %s70, %s71
    %p73 = scmp.eq.s32.totalorder %s72, 0
    %s75 = sadd.s32 %s74, 1
    %s76 = scalar_select %p73, %s74, %s75
    %p79 = pneg %p73
    %p80 = scmp.eq.s32.totalorder %s14, 1
    %p81 = por %p79, %p80
    %p82 = scmp.ne.s32.totalorder %s74, %s77
    %p83 = scmp.eq.s32.totalorder %s14, 0
    %p84 = por %p82, %p83
    %p85 = scmp.ne.s32.totalorder %s74, %s77
    %p86 = scmp.eq.s32.totalorder %s19, 1
    %p87 = por %p85, %p86
    %p88 = scmp.ne.s32.totalorder %s77, %s78
    %p89 = scmp.eq.s32.totalorder %s19, 0
    %p90 = por %p88, %p89
    %p91 = scmp.ne.s32.totalorder %s77, %s78
    %p92 = scmp.eq.s32.totalorder %s20, 1
    %p93 = por %p91, %p92
    %p95 = scmp.ne.s32.totalorder %s78, %s94
    %p96 = scmp.eq.s32.totalorder %s20, 0
    %p97 = por %p95, %p96
    %s98 = smul.u32 %s22, 16
    %s99 = sadd.s32 %s98, 16
    %p100 = scmp.lt.s32.totalorder %s99, 15
    %s101 = scalar_select %p100, %s99, 15
    %s102 = smul.u32 %s29, 16
    %s103 = sadd.s32 %s102, 16
    %p104 = scmp.lt.s32.totalorder %s103, 15
    %s105 = scalar_select %p104, %s103, 15
    %s106 = ssub.s32 %s21, %s33
    %s107 = ssub.s32 %s101, %s105
    %s108 = sor.u32 %s106, %s107
    %p109 = scmp.eq.s32.totalorder %s108, 0
    %s111 = sadd.s32 %s110, 1
    %s112 = scalar_select %p109, %s110, %s111
    %p115 = pneg %p109
    %p116 = scmp.eq.s32.totalorder %s14, 1
    %p117 = por %p115, %p116
    %p118 = scmp.ne.s32.totalorder %s110, %s113
    %p119 = scmp.eq.s32.totalorder %s14, 0
    %p120 = por %p118, %p119
    %p121 = scmp.ne.s32.totalorder %s110, %s113
    %p122 = scmp.eq.s32.totalorder %s19, 1
    %p123 = por %p121, %p122
    %p124 = scmp.ne.s32.totalorder %s113, %s114
    %p125 = scmp.eq.s32.totalorder %s19, 0
    %p126 = por %p124, %p125
    %p127 = scmp.ne.s32.totalorder %s113, %s114
    %p128 = scmp.eq.s32.totalorder %s20, 1
    %p129 = por %p127, %p128
    %p131 = scmp.ne.s32.totalorder %s114, %s130
    %p132 = scmp.eq.s32.totalorder %s20, 0
    %p133 = por %p131, %p132
    %s135 = sadd.s32 %s134, 1
    %p138 = scmp.eq.s32.totalorder %s14, 1
    %p139 = scmp.ne.s32.totalorder %s134, %s136
    %p140 = scmp.eq.s32.totalorder %s14, 0
    %p141 = por %p139, %p140
    %p142 = scmp.ne.s32.totalorder %s134, %s136
    %p143 = scmp.eq.s32.totalorder %s19, 1
    %p144 = por %p142, %p143
    %p145 = scmp.ne.s32.totalorder %s136, %s137
    %p146 = scmp.eq.s32.totalorder %s19, 0
    %p147 = por %p145, %p146
    %p148 = scmp.ne.s32.totalorder %s136, %s137
    %p149 = scmp.eq.s32.totalorder %s20, 1
    %p150 = por %p148, %p149
    %p152 = scmp.ne.s32.totalorder %s137, %s151
    %p153 = scmp.eq.s32.totalorder %s20, 0
    %p154 = por %p152, %p153
    %s156 = sadd.s32 %s155, 1
    %p159 = scmp.eq.s32.totalorder %s14, 1
    %p160 = scmp.ne.s32.totalorder %s155, %s157
    %p161 = scmp.eq.s32.totalorder %s14, 0
    %p162 = por %p160, %p161
    %p163 = scmp.ne.s32.totalorder %s155, %s157
    %p164 = scmp.eq.s32.totalorder %s19, 1
    %p165 = por %p163, %p164
    %p166 = scmp.ne.s32.totalorder %s157, %s158
    %p167 = scmp.eq.s32.totalorder %s19, 0
    %p168 = por %p166, %p167
    %p169 = scmp.ne.s32.totalorder %s157, %s158
    %p170 = scmp.eq.s32.totalorder %s20, 1
    %p171 = por %p169, %p170
    %p173 = scmp.ne.s32.totalorder %s158, %s172
    %p174 = scmp.eq.s32.totalorder %s20, 0
    %p175 = por %p173, %p174
    %s177 = sadd.s32 %s176, 1
    %p180 = scmp.eq.s32.totalorder %s14, 1
    %p181 = scmp.ne.s32.totalorder %s176, %s178
    %p182 = scmp.eq.s32.totalorder %s14, 0
    %p183 = por %p181, %p182
    %p184 = scmp.ne.s32.totalorder %s176, %s178
    %p185 = scmp.eq.s32.totalorder %s19, 1
    %p186 = por %p184, %p185
    %p187 = scmp.ne.s32.totalorder %s178, %s179
    %p188 = scmp.eq.s32.totalorder %s19, 0
    %p189 = por %p187, %p188
    %p190 = scmp.ne.s32.totalorder %s178, %s179
    %p191 = scmp.eq.s32.totalorder %s20, 1
    %p192 = por %p190, %p191
    %p194 = scmp.ne.s32.totalorder %s179, %s193
    %p195 = scmp.eq.s32.totalorder %s20, 0
    %p196 = por %p194, %p195
    %s197 = ssub.s32 %s21, %s33
    %s198 = ssub.s32 %s22, %s29
    %s199 = sor.u32 %s197, %s198
    %p200 = scmp.eq.s32.totalorder %s199, 0
    %s202 = sadd.s32 %s201, 1
    %s203 = scalar_select %p200, %s201, %s202
    %p206 = pneg %p200
    %p207 = scmp.eq.s32.totalorder %s14, 1
    %p208 = por %p206, %p207
    %p209 = scmp.ne.s32.totalorder %s201, %s204
    %p210 = scmp.eq.s32.totalorder %s14, 0
    %p211 = por %p209, %p210
    %p212 = scmp.ne.s32.totalorder %s201, %s204
    %p213 = scmp.eq.s32.totalorder %s19, 1
    %p214 = por %p212, %p213
    %p215 = scmp.ne.s32.totalorder %s204, %s205
    %p216 = scmp.eq.s32.totalorder %s19, 0
    %p217 = por %p215, %p216
    %p218 = scmp.ne.s32.totalorder %s204, %s205
    %p219 = scmp.eq.s32.totalorder %s20, 1
    %p220 = por %p218, %p219
    %p222 = scmp.ne.s32.totalorder %s205, %s221
    %p223 = scmp.eq.s32.totalorder %s20, 0
    %p224 = por %p222, %p223
    %s225 = ssub.s32 %s21, %s33
    %s226 = ssub.s32 %s22, %s29
    %s227 = sor.u32 %s225, %s226
    %p228 = scmp.eq.s32.totalorder %s227, 0
    %s230 = sadd.s32 %s229, 1
    %s231 = scalar_select %p228, %s229, %s230
    %p234 = pneg %p228
    %p235 = scmp.eq.s32.totalorder %s14, 1
    %p236 = por %p234, %p235
    %p237 = scmp.ne.s32.totalorder %s229, %s232
    %p238 = scmp.eq.s32.totalorder %s14, 0
    %p239 = por %p237, %p238
    %p240 = scmp.ne.s32.totalorder %s229, %s232
    %p241 = scmp.eq.s32.totalorder %s19, 1
    %p242 = por %p240, %p241
    %p243 = scmp.ne.s32.totalorder %s232, %s233
    %p244 = scmp.eq.s32.totalorder %s19, 0
    %p245 = por %p243, %p244
    %p246 = scmp.ne.s32.totalorder %s232, %s233
    %p247 = scmp.eq.s32.totalorder %s20, 1
    %p248 = por %p246, %p247
    %p250 = scmp.ne.s32.totalorder %s233, %s249
    %p251 = scmp.eq.s32.totalorder %s20, 0
    %p252 = por %p250, %p251
    %p253 = scmp.le.s32.totalorder 1, %s14
    %p254 = scmp.lt.s32.totalorder %s14, 3
    %p255 = pnand %p253, %p254
    %p256 = pneg %p255
    // Predicated region
    $region9: #{basic_block_forward.4} parent=5 // pred_check
      _
    $region10: #{basic_block_forward.4} parent=5 // pred_check_branch
      %258 = sbr.rel (%p255) target = $region12
    $region11: #{basic_block_forward.4} parent=5 // pred_region
      %s259 = ssub.s32 %s14, 1
      // Predicated region
      $region13: #{basic_block_forward.4} parent=11 // pred_check
        %p260 = pneg %p147
      $region14: #{basic_block_forward.4} parent=11 // pred_check_branch
        %262 = sbr.rel (%p260) target = $region16
      $region15: #{basic_block_forward.4} parent=11 // pred_region
        _
      $region16: #{basic_block_forward.4} parent=11 // pred_fallthru
        _
      // Predicated region
      $region17: #{basic_block_forward.4} parent=11 // pred_check
        %p263 = pneg %p168
      $region18: #{basic_block_forward.4} parent=11 // pred_check_branch
        %265 = sbr.rel (%p263) target = $region20
      $region19: #{basic_block_forward.4} parent=11 // pred_region
        _
      $region20: #{basic_block_forward.4} parent=11 // pred_fallthru
        _
      // Predicated region
      $region21: #{basic_block_forward.4} parent=11 // pred_check
        %p266 = pneg %p189
      $region22: #{basic_block_forward.4} parent=11 // pred_check_branch
        %268 = sbr.rel (%p266) target = $region24
      $region23: #{basic_block_forward.4} parent=11 // pred_region
        _
      $region24: #{basic_block_forward.4} parent=11 // pred_fallthru
        _
    $region12: #{basic_block_forward.4} parent=5 // pred_fallthru
      _
    %p269 = scmp.lt.s32.totalorder %s14, 2
    // Predicated region
    $region25: #{basic_block_forward.4} parent=5 // pred_check
      %p270 = pneg %p269
    $region26: #{basic_block_forward.4} parent=5 // pred_check_branch
      %272 = sbr.rel (%p270) target = $region28
    $region27: #{basic_block_forward.4} parent=5 // pred_region
      // Predicated region
      $region29: #{basic_block_forward.4} parent=27 // pred_check
        %p273 = pneg %p48
      $region30: #{basic_block_forward.4} parent=27 // pred_check_branch
        %275 = sbr.rel (%p273) target = $region32
      $region31: #{basic_block_forward.4} parent=27 // pred_region
        %s276 = smul.u32 16, %s22
        %p277 = scmp.lt.s32.totalorder %s21, 1
        %s278 = scalar_select %p277, %s21, 1
        %p279 = scmp.lt.s32.totalorder %s276, 15
        %s280 = scalar_select %p279, %s276, 15
        %s281 = smul.addr %s280, 3
        %s282 = smul.addr %s278, 48
        %s283 = sadd.s32 %s281, %s282
        %s284 = smul.addr %s283, 4
        %s285 = scalar_lea.vmem %s0, %s284
        %s286 = smul.u32 16, %s22
      $region32: #{basic_block_forward.4} parent=27 // pred_fallthru
        _
      // Predicated region
      $region33: #{basic_block_forward.4} parent=27 // pred_check
        %p287 = pneg %p84
      $region34: #{basic_block_forward.4} parent=27 // pred_check_branch
        %289 = sbr.rel (%p287) target = $region36
      $region35: #{basic_block_forward.4} parent=27 // pred_region
        %s290 = smul.u32 %s22, 16
        %s291 = ssub.s32 %s290, 1
        %p292 = scmp.gt.s32.totalorder %s291, 0
        %s293 = scalar_select %p292, %s291, 0
        %p294 = scmp.lt.s32.totalorder %s21, 1
        %s295 = scalar_select %p294, %s21, 1
        %p296 = scmp.lt.s32.totalorder %s293, 15
        %s297 = scalar_select %p296, %s293, 15
        %s298 = smul.addr %s297, 3
        %s299 = smul.addr %s295, 48
        %s300 = sadd.s32 %s298, %s299
        %s301 = smul.addr %s300, 4
        %s302 = scalar_lea.vmem %s1, %s301
        %s303 = smul.u32 %s22, 16
        %s304 = ssub.s32 %s303, 1
        %p305 = scmp.gt.s32.totalorder %s304, 0
        %s306 = scalar_select %p305, %s304, 0
      $region36: #{basic_block_forward.4} parent=27 // pred_fallthru
        _
      // Predicated region
      $region37: #{basic_block_forward.4} parent=27 // pred_check
        %p307 = pneg %p120
      $region38: #{basic_block_forward.4} parent=27 // pred_check_branch
        %309 = sbr.rel (%p307) target = $region40
      $region39: #{basic_block_forward.4} parent=27 // pred_region
        %s310 = smul.u32 %s22, 16
        %s311 = sadd.s32 %s310, 16
        %p312 = scmp.lt.s32.totalorder %s311, 15
        %s313 = scalar_select %p312, %s311, 15
        %p314 = scmp.lt.s32.totalorder %s21, 1
        %s315 = scalar_select %p314, %s21, 1
        %p316 = scmp.lt.s32.totalorder %s313, 15
        %s317 = scalar_select %p316, %s313, 15
        %s318 = smul.addr %s317, 3
        %s319 = smul.addr %s315, 48
        %s320 = sadd.s32 %s318, %s319
        %s321 = smul.addr %s320, 4
        %s322 = scalar_lea.vmem %s2, %s321
        %s323 = smul.u32 %s22, 16
        %s324 = sadd.s32 %s323, 16
        %p325 = scmp.lt.s32.totalorder %s324, 15
        %s326 = scalar_select %p325, %s324, 15
      $region40: #{basic_block_forward.4} parent=27 // pred_fallthru
        _
    $region28: #{basic_block_forward.4} parent=5 // pred_fallthru
      _
    %p327 = scmp.le.s32.totalorder 1, %s14
    %p328 = scmp.lt.s32.totalorder %s14, 3
    %p329 = pnand %p327, %p328
    %p330 = pneg %p329
    // Predicated region
    $region41: #{basic_block_forward.4} parent=5 // pred_check
      _
    $region42: #{basic_block_forward.4} parent=5 // pred_check_branch
      %332 = sbr.rel (%p329) target = $region44
    $region43: #{basic_block_forward.4} parent=5 // pred_region
      %s333 = ssub.s32 %s14, 1
      %s334 = smul.u32 16, %s24
      %p335 = scmp.lt.s32.totalorder %s23, 1
      %s336 = scalar_select %p335, %s23, 1
      %p337 = scmp.lt.s32.totalorder %s334, 15
      %s338 = scalar_select %p337, %s334, 15
      %s339 = smul.addr %s338, 3
      %s340 = smul.addr %s336, 48
      %s341 = sadd.s32 %s339, %s340
      %s342 = smul.addr %s341, 4
      %s343 = scalar_lea.vmem %s0, %s342
      %p344 = pneg %p54
      %p345 = pneg %p51
      %s346 = smul.u32 %s24, 16
      %s347 = ssub.s32 %s346, 1
      %p348 = scmp.gt.s32.totalorder %s347, 0
      %s349 = scalar_select %p348, %s347, 0
      %p350 = scmp.lt.s32.totalorder %s23, 1
      %s351 = scalar_select %p350, %s23, 1
      %p352 = scmp.lt.s32.totalorder %s349, 15
      %s353 = scalar_select %p352, %s349, 15
      %s354 = smul.addr %s353, 3
      %s355 = smul.addr %s351, 48
      %s356 = sadd.s32 %s354, %s355
      %s357 = smul.addr %s356, 4
      %s358 = scalar_lea.vmem %s1, %s357
      %p359 = pneg %p90
      %p360 = pneg %p87
      %s361 = smul.u32 %s24, 16
      %s362 = sadd.s32 %s361, 16
      %p363 = scmp.lt.s32.totalorder %s362, 15
      %s364 = scalar_select %p363, %s362, 15
      %p365 = scmp.lt.s32.totalorder %s23, 1
      %s366 = scalar_select %p365, %s23, 1
      %p367 = scmp.lt.s32.totalorder %s364, 15
      %s368 = scalar_select %p367, %s364, 15
      %s369 = smul.addr %s368, 3
      %s370 = smul.addr %s366, 48
      %s371 = sadd.s32 %s369, %s370
      %s372 = smul.addr %s371, 4
      %s373 = scalar_lea.vmem %s2, %s372
      %p374 = pneg %p126
      %p375 = pneg %p123
      %p376 = pneg %p147
      %p377 = pneg %p144
      %p378 = pneg %p168
      %p379 = pneg %p165
      %p380 = pneg %p189
      %p381 = pneg %p186
      %p382 = pneg %p217
      %p383 = pneg %p214
      %s384 = smul.u32 16, %s24
      %p385 = scmp.lt.s32.totalorder %s23, 1
      %s386 = scalar_select %p385, %s23, 1
      %p387 = scmp.lt.s32.totalorder %s384, 15
      %s388 = scalar_select %p387, %s384, 15
      %s389 = smul.addr %s388, 2
      %s390 = smul.addr %s386, 32
      %s391 = sadd.s32 %s389, %s390
      %s392 = smul.addr %s391, 4
      %s393 = scalar_lea.vmem %s6, %s392
      %p394 = pneg %p245
      %p395 = pneg %p242
      %p396 = scmp.lt.s32.totalorder %s23, 1
      %s397 = scalar_select %p396, %s23, 1
      %p398 = scmp.lt.s32.totalorder %s24, 0
      %s399 = scalar_select %p398, %s24, 0
      %s400 = sadd.s32 %s399, %s397
      %s401 = smul.addr %s400, 2
      %s402 = scalar_lea.vmem %s7, %s401
      %s403 = smul.u32 16, %s24
      %p404 = scmp.lt.s32.totalorder %s23, 1
      %s405 = scalar_select %p404, %s23, 1
      %p406 = scmp.lt.s32.totalorder %s403, 15
      %s407 = scalar_select %p406, %s403, 15
      %s408 = smul.addr %s407, 3
      %s409 = smul.addr %s405, 48
      %s410 = sadd.s32 %s408, %s409
      %s411 = smul.addr %s410, 4
      %s412 = scalar_lea.vmem %s0, %s411
      %s413 = smul.u32 16, %s24
      %s414 = smul.u32 %s24, 16
      %s415 = ssub.s32 %s414, 1
      %p416 = scmp.gt.s32.totalorder %s415, 0
      %s417 = scalar_select %p416, %s415, 0
      %p418 = scmp.lt.s32.totalorder %s23, 1
      %s419 = scalar_select %p418, %s23, 1
      %p420 = scmp.lt.s32.totalorder %s417, 15
      %s421 = scalar_select %p420, %s417, 15
      %s422 = smul.addr %s421, 3
      %s423 = smul.addr %s419, 48
      %s424 = sadd.s32 %s422, %s423
      %s425 = smul.addr %s424, 4
      %s426 = scalar_lea.vmem %s1, %s425
      %s427 = smul.u32 %s24, 16
      %s428 = ssub.s32 %s427, 1
      %p429 = scmp.gt.s32.totalorder %s428, 0
      %s430 = scalar_select %p429, %s428, 0
      %s431 = smul.u32 %s24, 16
      %s432 = sadd.s32 %s431, 16
      %p433 = scmp.lt.s32.totalorder %s432, 15
      %s434 = scalar_select %p433, %s432, 15
      %p435 = scmp.lt.s32.totalorder %s23, 1
      %s436 = scalar_select %p435, %s23, 1
      %p437 = scmp.lt.s32.totalorder %s434, 15
      %s438 = scalar_select %p437, %s434, 15
      %s439 = smul.addr %s438, 3
      %s440 = smul.addr %s436, 48
      %s441 = sadd.s32 %s439, %s440
      %s442 = smul.addr %s441, 4
      %s443 = scalar_lea.vmem %s2, %s442
      %s444 = smul.u32 %s24, 16
      %s445 = sadd.s32 %s444, 16
      %p446 = scmp.lt.s32.totalorder %s445, 15
      %s447 = scalar_select %p446, %s445, 15
      %s448 = smul.u32 16, %s24
      %p449 = scmp.lt.s32.totalorder %s23, 1
      %s450 = scalar_select %p449, %s23, 1
      %p451 = scmp.lt.s32.totalorder %s448, 15
      %s452 = scalar_select %p451, %s448, 15
      %s453 = smul.addr %s452, 2
      %s454 = smul.addr %s450, 32
      %s455 = sadd.s32 %s453, %s454
      %s456 = smul.addr %s455, 4
      %s457 = scalar_lea.vmem %s6, %s456
      %s458 = smul.u32 16, %s24
      %p459 = scmp.lt.s32.totalorder %s23, 1
      %s460 = scalar_select %p459, %s23, 1
      %p461 = scmp.lt.s32.totalorder %s24, 0
      %s462 = scalar_select %p461, %s24, 0
      %s463 = sadd.s32 %s462, %s460
      %s464 = smul.addr %s463, 2
      %s465 = scalar_lea.vmem %s7, %s464
      %v467 = vld [vmem:[%s412] sm:$0xf]
      %v468 = vld [vmem:[%s412 + $0x4] sm:$0xf]
      %v469 = vld [vmem:[%s412 + $0x8] sm:$0xf]
      %v470 = vld [vmem:[%s412 + $0xc] sm:$0xf]
      %v471 = vld [vmem:[%s412 + $0x10] sm:$0xf]
      %v472 = vld [vmem:[%s412 + $0x14] sm:$0xf]
      %v473 = vld [vmem:[%s412 + $0x18] sm:$0xf]
      %v474 = vld [vmem:[%s412 + $0x1c] sm:$0xf]
      %v475 = vld [vmem:[%s412 + $0x20] sm:$0xf]
      %v476 = vld [vmem:[%s412 + $0x24] sm:$0xf]
      %v477 = vld [vmem:[%s412 + $0x28] sm:$0xf]
      %v478 = vld [vmem:[%s412 + $0x2c] sm:$0xf]
      %v479 = vld [vmem:[%s412 + $0x30] sm:$0xf]
      %v480 = vld [vmem:[%s412 + $0x34] sm:$0xf]
      %v481 = vld [vmem:[%s412 + $0x38] sm:$0xf]
      %v482 = vld [vmem:[%s412 + $0x3c] sm:$0xf]
      %v483 = vld [vmem:[%s412 + $0x40] sm:$0xf]
      %v484 = vld [vmem:[%s412 + $0x44] sm:$0xf]
      %v485 = vld [vmem:[%s412 + $0x48] sm:$0xf]
      %v486 = vld [vmem:[%s412 + $0x4c] sm:$0xf]
      %v487 = vld [vmem:[%s412 + $0x50] sm:$0xf]
      %v488 = vld [vmem:[%s412 + $0x54] sm:$0xf]
      %v489 = vld [vmem:[%s412 + $0x58] sm:$0xf]
      %v490 = vld [vmem:[%s412 + $0x5c] sm:$0xf]
      %v491 = vld [vmem:[%s412 + $0x60] sm:$0xf]
      %v492 = vld [vmem:[%s412 + $0x64] sm:$0xf]
      %v493 = vld [vmem:[%s412 + $0x68] sm:$0xf]
      %v494 = vld [vmem:[%s412 + $0x6c] sm:$0xf]
      %v495 = vld [vmem:[%s412 + $0x70] sm:$0xf]
      %v496 = vld [vmem:[%s412 + $0x74] sm:$0xf]
      %v497 = vld [vmem:[%s412 + $0x78] sm:$0xf]
      %v498 = vld [vmem:[%s412 + $0x7c] sm:$0xf]
      %v499 = vld [vmem:[%s412 + $0x80] sm:$0xf]
      %v500 = vld [vmem:[%s412 + $0x84] sm:$0xf]
      %v501 = vld [vmem:[%s412 + $0x88] sm:$0xf]
      %v502 = vld [vmem:[%s412 + $0x8c] sm:$0xf]
      %v503 = vld [vmem:[%s412 + $0x90] sm:$0xf]
      %v504 = vld [vmem:[%s412 + $0x94] sm:$0xf]
      %v505 = vld [vmem:[%s412 + $0x98] sm:$0xf]
      %v506 = vld [vmem:[%s412 + $0x9c] sm:$0xf]
      %v507 = vld [vmem:[%s412 + $0xa0] sm:$0xf]
      %v508 = vld [vmem:[%s412 + $0xa4] sm:$0xf]
      %v509 = vld [vmem:[%s412 + $0xa8] sm:$0xf]
      %v510 = vld [vmem:[%s412 + $0xac] sm:$0xf]
      %v511 = vld [vmem:[%s412 + $0xb0] sm:$0xf]
      %v512 = vld [vmem:[%s412 + $0xb4] sm:$0xf]
      %v513 = vld [vmem:[%s412 + $0xb8] sm:$0xf]
      %v514 = vld [vmem:[%s412 + $0xbc] sm:$0xf]
      %v515 = vld [vmem:[%s426] sm:$0xf]
      %v516 = vld [vmem:[%s426 + $0x4] sm:$0xf]
      %v517 = vld [vmem:[%s426 + $0x8] sm:$0xf]
      %v518 = vld [vmem:[%s443] sm:$0xf]
      %v519 = vld [vmem:[%s443 + $0x4] sm:$0xf]
      %v520 = vld [vmem:[%s443 + $0x8] sm:$0xf]
      %v521 = vlaneseq
      %v522 = vshrl.u32 %v521, 7
      %v523 = vadd.s32 %v522, 8
      %v524 = vadd.s32 %v522, 16
      %vm525 = vcmp.ge.s32.totalorder %v522, 1
      %vm526 = vcmp.ge.s32.totalorder %v523, 1
      %vm527 = vcmp.ge.s32.totalorder %v524, 1
      %vm528 = vcmp.le.s32.totalorder %v522, 16
      %vm529 = vcmp.le.s32.totalorder %v523, 16
      %vm530 = vcmp.le.s32.totalorder %v524, 16
      %vm531 = vmand %vm525, %vm528
      %vm532 = vmand %vm526, %vm529
      %vm533 = vmand %vm527, %vm530
      %v534 = vld [vmem:[%s3] sm:$0x1]
      %v535 = vld [vmem:[%s4] sm:$0x1]
      %v536 = vunpack.c.l.bf16 %v467
      %v537 = vunpack.c.l.bf16 %v468
      %v538 = vunpack.c.l.bf16 %v469
      %v539 = vunpack.c.l.bf16 %v470
      %v540 = vunpack.c.l.bf16 %v471
      %v541 = vunpack.c.l.bf16 %v472
      %v542 = vunpack.c.l.bf16 %v473
      %v543 = vunpack.c.l.bf16 %v474
      %v544 = vunpack.c.l.bf16 %v475
      %v545 = vunpack.c.l.bf16 %v476
      %v546 = vunpack.c.l.bf16 %v477
      %v547 = vunpack.c.l.bf16 %v478
      %v548 = vunpack.c.l.bf16 %v479
      %v549 = vunpack.c.l.bf16 %v480
      %v550 = vunpack.c.l.bf16 %v481
      %v551 = vunpack.c.l.bf16 %v482
      %v552 = vunpack.c.l.bf16 %v483
      %v553 = vunpack.c.l.bf16 %v484
      %v554 = vunpack.c.l.bf16 %v485
      %v555 = vunpack.c.l.bf16 %v486
      %v556 = vunpack.c.l.bf16 %v487
      %v557 = vunpack.c.l.bf16 %v488
      %v558 = vunpack.c.l.bf16 %v489
      %v559 = vunpack.c.l.bf16 %v490
      %v560 = vunpack.c.l.bf16 %v491
      %v561 = vunpack.c.l.bf16 %v492
      %v562 = vunpack.c.l.bf16 %v493
      %v563 = vunpack.c.l.bf16 %v494
      %v564 = vunpack.c.l.bf16 %v495
      %v565 = vunpack.c.l.bf16 %v496
      %v566 = vunpack.c.l.bf16 %v497
      %v567 = vunpack.c.l.bf16 %v498
      %v568 = vunpack.c.l.bf16 %v499
      %v569 = vunpack.c.l.bf16 %v500
      %v570 = vunpack.c.l.bf16 %v501
      %v571 = vunpack.c.l.bf16 %v502
      %v572 = vunpack.c.l.bf16 %v503
      %v573 = vunpack.c.l.bf16 %v504
      %v574 = vunpack.c.l.bf16 %v505
      %v575 = vunpack.c.l.bf16 %v506
      %v576 = vunpack.c.l.bf16 %v507
      %v577 = vunpack.c.l.bf16 %v508
      %v578 = vunpack.c.l.bf16 %v509
      %v579 = vunpack.c.l.bf16 %v510
      %v580 = vunpack.c.l.bf16 %v511
      %v581 = vunpack.c.l.bf16 %v512
      %v582 = vunpack.c.l.bf16 %v513
      %v583 = vunpack.c.l.bf16 %v514
      %v585 = vlaneseq
      %v586 = vshrl.u32 %v585, 7
      %v587 = vsub.s32 0, %v586
      %v588 = vrot.slane %v534, %v587
      %v590 = vmul.f32 %v536, %v588
      %v591 = vmul.f32 %v537, %v588
      %v592 = vmul.f32 %v538, %v588
      %v593 = vmul.f32 %v539, %v588
      %v594 = vmul.f32 %v540, %v588
      %v595 = vmul.f32 %v541, %v588
      %v596 = vmul.f32 %v542, %v588
      %v597 = vmul.f32 %v543, %v588
      %v598 = vmul.f32 %v544, %v588
      %v599 = vmul.f32 %v545, %v588
      %v600 = vmul.f32 %v546, %v588
      %v601 = vmul.f32 %v547, %v588
      %v602 = vmul.f32 %v548, %v588
      %v603 = vmul.f32 %v549, %v588
      %v604 = vmul.f32 %v550, %v588
      %v605 = vmul.f32 %v551, %v588
      %v606 = vmul.f32 %v552, %v588
      %v607 = vmul.f32 %v553, %v588
      %v608 = vmul.f32 %v554, %v588
      %v609 = vmul.f32 %v555, %v588
      %v610 = vmul.f32 %v556, %v588
      %v611 = vmul.f32 %v557, %v588
      %v612 = vmul.f32 %v558, %v588
      %v613 = vmul.f32 %v559, %v588
      %v614 = vmul.f32 %v560, %v588
      %v615 = vmul.f32 %v561, %v588
      %v616 = vmul.f32 %v562, %v588
      %v617 = vmul.f32 %v563, %v588
      %v618 = vmul.f32 %v564, %v588
      %v619 = vmul.f32 %v565, %v588
      %v620 = vmul.f32 %v566, %v588
      %v621 = vmul.f32 %v567, %v588
      %v622 = vmul.f32 %v568, %v588
      %v623 = vmul.f32 %v569, %v588
      %v624 = vmul.f32 %v570, %v588
      %v625 = vmul.f32 %v571, %v588
      %v626 = vmul.f32 %v572, %v588
      %v627 = vmul.f32 %v573, %v588
      %v628 = vmul.f32 %v574, %v588
      %v629 = vmul.f32 %v575, %v588
      %v630 = vmul.f32 %v576, %v588
      %v631 = vmul.f32 %v577, %v588
      %v632 = vmul.f32 %v578, %v588
      %v633 = vmul.f32 %v579, %v588
      %v634 = vmul.f32 %v580, %v588
      %v635 = vmul.f32 %v581, %v588
      %v636 = vmul.f32 %v582, %v588
      %v637 = vmul.f32 %v583, %v588
      %v639 = vlaneseq
      %v640 = vshrl.u32 %v639, 7
      %v641 = vsub.s32 0, %v640
      %v642 = vrot.slane %v535, %v641
      %v644 = vadd.f32 %v590, %v642
      %v645 = vadd.f32 %v591, %v642
      %v646 = vadd.f32 %v592, %v642
      %v647 = vadd.f32 %v593, %v642
      %v648 = vadd.f32 %v594, %v642
      %v649 = vadd.f32 %v595, %v642
      %v650 = vadd.f32 %v596, %v642
      %v651 = vadd.f32 %v597, %v642
      %v652 = vadd.f32 %v598, %v642
      %v653 = vadd.f32 %v599, %v642
      %v654 = vadd.f32 %v600, %v642
      %v655 = vadd.f32 %v601, %v642
      %v656 = vadd.f32 %v602, %v642
      %v657 = vadd.f32 %v603, %v642
      %v658 = vadd.f32 %v604, %v642
      %v659 = vadd.f32 %v605, %v642
      %v660 = vadd.f32 %v606, %v642
      %v661 = vadd.f32 %v607, %v642
      %v662 = vadd.f32 %v608, %v642
      %v663 = vadd.f32 %v609, %v642
      %v664 = vadd.f32 %v610, %v642
      %v665 = vadd.f32 %v611, %v642
      %v666 = vadd.f32 %v612, %v642
      %v667 = vadd.f32 %v613, %v642
      %v668 = vadd.f32 %v614, %v642
      %v669 = vadd.f32 %v615, %v642
      %v670 = vadd.f32 %v616, %v642
      %v671 = vadd.f32 %v617, %v642
      %v672 = vadd.f32 %v618, %v642
      %v673 = vadd.f32 %v619, %v642
      %v674 = vadd.f32 %v620, %v642
      %v675 = vadd.f32 %v621, %v642
      %v676 = vadd.f32 %v622, %v642
      %v677 = vadd.f32 %v623, %v642
      %v678 = vadd.f32 %v624, %v642
      %v679 = vadd.f32 %v625, %v642
      %v680 = vadd.f32 %v626, %v642
      %v681 = vadd.f32 %v627, %v642
      %v682 = vadd.f32 %v628, %v642
      %v683 = vadd.f32 %v629, %v642
      %v684 = vadd.f32 %v630, %v642
      %v685 = vadd.f32 %v631, %v642
      %v686 = vadd.f32 %v632, %v642
      %v687 = vadd.f32 %v633, %v642
      %v688 = vadd.f32 %v634, %v642
      %v689 = vadd.f32 %v635, %v642
      %v690 = vadd.f32 %v636, %v642
      %v691 = vadd.f32 %v637, %v642
      %v692 = vmax.f32 %v644, 0.0
      %v693 = vmax.f32 %v645, 0.0
      %v694 = vmax.f32 %v646, 0.0
      %v695 = vmax.f32 %v647, 0.0
      %v696 = vmax.f32 %v648, 0.0
      %v697 = vmax.f32 %v649, 0.0
      %v698 = vmax.f32 %v650, 0.0
      %v699 = vmax.f32 %v651, 0.0
      %v700 = vmax.f32 %v652, 0.0
      %v701 = vmax.f32 %v653, 0.0
      %v702 = vmax.f32 %v654, 0.0
      %v703 = vmax.f32 %v655, 0.0
      %v704 = vmax.f32 %v656, 0.0
      %v705 = vmax.f32 %v657, 0.0
      %v706 = vmax.f32 %v658, 0.0
      %v707 = vmax.f32 %v659, 0.0
      %v708 = vmax.f32 %v660, 0.0
      %v709 = vmax.f32 %v661, 0.0
      %v710 = vmax.f32 %v662, 0.0
      %v711 = vmax.f32 %v663, 0.0
      %v712 = vmax.f32 %v664, 0.0
      %v713 = vmax.f32 %v665, 0.0
      %v714 = vmax.f32 %v666, 0.0
      %v715 = vmax.f32 %v667, 0.0
      %v716 = vmax.f32 %v668, 0.0
      %v717 = vmax.f32 %v669, 0.0
      %v718 = vmax.f32 %v670, 0.0
      %v719 = vmax.f32 %v671, 0.0
      %v720 = vmax.f32 %v672, 0.0
      %v721 = vmax.f32 %v673, 0.0
      %v722 = vmax.f32 %v674, 0.0
      %v723 = vmax.f32 %v675, 0.0
      %v724 = vmax.f32 %v676, 0.0
      %v725 = vmax.f32 %v677, 0.0
      %v726 = vmax.f32 %v678, 0.0
      %v727 = vmax.f32 %v679, 0.0
      %v728 = vmax.f32 %v680, 0.0
      %v729 = vmax.f32 %v681, 0.0
      %v730 = vmax.f32 %v682, 0.0
      %v731 = vmax.f32 %v683, 0.0
      %v732 = vmax.f32 %v684, 0.0
      %v733 = vmax.f32 %v685, 0.0
      %v734 = vmax.f32 %v686, 0.0
      %v735 = vmax.f32 %v687, 0.0
      %v736 = vmax.f32 %v688, 0.0
      %v737 = vmax.f32 %v689, 0.0
      %v738 = vmax.f32 %v690, 0.0
      %v739 = vmax.f32 %v691, 0.0
      %v740 = vsel %vm531, 1, 0
      %v741 = vsel %vm532, 1, 0
      %v742 = vsel %vm533, 1, 0
      %vm743 = vcmp.eq.s32.totalorder %v740, 1
      %vm744 = vcmp.eq.s32.totalorder %v741, 1
      %vm745 = vcmp.eq.s32.totalorder %v742, 1
      %v746 = vsel %vm743, %v692, 0.0
      %v747 = vsel %vm744, %v693, 0.0
      %v748 = vsel %vm745, %v694, 0.0
      %v749 = vsel %vm743, %v695, 0.0
      %v750 = vsel %vm744, %v696, 0.0
      %v751 = vsel %vm745, %v697, 0.0
      %v752 = vsel %vm743, %v698, 0.0
      %v753 = vsel %vm744, %v699, 0.0
      %v754 = vsel %vm745, %v700, 0.0
      %v755 = vsel %vm743, %v701, 0.0
      %v756 = vsel %vm744, %v702, 0.0
      %v757 = vsel %vm745, %v703, 0.0
      %v758 = vsel %vm743, %v704, 0.0
      %v759 = vsel %vm744, %v705, 0.0
      %v760 = vsel %vm745, %v706, 0.0
      %v761 = vsel %vm743, %v707, 0.0
      %v762 = vsel %vm744, %v708, 0.0
      %v763 = vsel %vm745, %v709, 0.0
      %v764 = vsel %vm743, %v710, 0.0
      %v765 = vsel %vm744, %v711, 0.0
      %v766 = vsel %vm745, %v712, 0.0
      %v767 = vsel %vm743, %v713, 0.0
      %v768 = vsel %vm744, %v714, 0.0
      %v769 = vsel %vm745, %v715, 0.0
      %v770 = vsel %vm743, %v716, 0.0
      %v771 = vsel %vm744, %v717, 0.0
      %v772 = vsel %vm745, %v718, 0.0
      %v773 = vsel %vm743, %v719, 0.0
      %v774 = vsel %vm744, %v720, 0.0
      %v775 = vsel %vm745, %v721, 0.0
      %v776 = vsel %vm743, %v722, 0.0
      %v777 = vsel %vm744, %v723, 0.0
      %v778 = vsel %vm745, %v724, 0.0
      %v779 = vsel %vm743, %v725, 0.0
      %v780 = vsel %vm744, %v726, 0.0
      %v781 = vsel %vm745, %v727, 0.0
      %v782 = vsel %vm743, %v728, 0.0
      %v783 = vsel %vm744, %v729, 0.0
      %v784 = vsel %vm745, %v730, 0.0
      %v785 = vsel %vm743, %v731, 0.0
      %v786 = vsel %vm744, %v732, 0.0
      %v787 = vsel %vm745, %v733, 0.0
      %v788 = vsel %vm743, %v734, 0.0
      %v789 = vsel %vm744, %v735, 0.0
      %v790 = vsel %vm745, %v736, 0.0
      %v791 = vsel %vm743, %v737, 0.0
      %v792 = vsel %vm744, %v738, 0.0
      %v793 = vsel %vm745, %v739, 0.0
      %v794 = vpack.c.bf16 %v747, %v746
      %v795 = vpack.c.bf16 %v748, %v748
      %v796 = vpack.c.bf16 %v750, %v749
      %v797 = vpack.c.bf16 %v751, %v751
      %v798 = vpack.c.bf16 %v753, %v752
      %v799 = vpack.c.bf16 %v754, %v754
      %v800 = vpack.c.bf16 %v756, %v755
      %v801 = vpack.c.bf16 %v757, %v757
      %v802 = vpack.c.bf16 %v759, %v758
      %v803 = vpack.c.bf16 %v760, %v760
      %v804 = vpack.c.bf16 %v762, %v761
      %v805 = vpack.c.bf16 %v763, %v763
      %v806 = vpack.c.bf16 %v765, %v764
      %v807 = vpack.c.bf16 %v766, %v766
      %v808 = vpack.c.bf16 %v768, %v767
      %v809 = vpack.c.bf16 %v769, %v769
      %v810 = vpack.c.bf16 %v771, %v770
      %v811 = vpack.c.bf16 %v772, %v772
      %v812 = vpack.c.bf16 %v774, %v773
      %v813 = vpack.c.bf16 %v775, %v775
      %v814 = vpack.c.bf16 %v777, %v776
      %v815 = vpack.c.bf16 %v778, %v778
      %v816 = vpack.c.bf16 %v780, %v779
      %v817 = vpack.c.bf16 %v781, %v781
      %v818 = vpack.c.bf16 %v783, %v782
      %v819 = vpack.c.bf16 %v784, %v784
      %v820 = vpack.c.bf16 %v786, %v785
      %v821 = vpack.c.bf16 %v787, %v787
      %v822 = vpack.c.bf16 %v789, %v788
      %v823 = vpack.c.bf16 %v790, %v790
      %v824 = vpack.c.bf16 %v792, %v791
      %v825 = vpack.c.bf16 %v793, %v793
      %v826 = vunpack.c.l.bf16 %v515
      %v827 = vunpack.c.l.bf16 %v516
      %v828 = vunpack.c.l.bf16 %v517
      %v829 = vmul.f32 %v826, %v588
      %v830 = vmul.f32 %v827, %v588
      %v831 = vmul.f32 %v828, %v588
      %v832 = vadd.f32 %v829, %v642
      %v833 = vadd.f32 %v830, %v642
      %v834 = vadd.f32 %v831, %v642
      %v835 = vmax.f32 %v832, 0.0
      %v836 = vmax.f32 %v833, 0.0
      %v837 = vmax.f32 %v834, 0.0
      %v838 = vsel %vm743, %v835, 0.0
      %v839 = vsel %vm744, %v836, 0.0
      %v840 = vsel %vm745, %v837, 0.0
      %v841 = vpack.c.bf16 %v839, %v838
      %v842 = vpack.c.bf16 %v840, %v840
      %v843 = vunpack.c.l.bf16 %v518
      %v844 = vunpack.c.l.bf16 %v519
      %v845 = vunpack.c.l.bf16 %v520
      %v846 = vmul.f32 %v843, %v588
      %v847 = vmul.f32 %v844, %v588
      %v848 = vmul.f32 %v845, %v588
      %v849 = vadd.f32 %v846, %v642
      %v850 = vadd.f32 %v847, %v642
      %v851 = vadd.f32 %v848, %v642
      %v852 = vmax.f32 %v849, 0.0
      %v853 = vmax.f32 %v850, 0.0
      %v854 = vmax.f32 %v851, 0.0
      %v855 = vsel %vm743, %v852, 0.0
      %v856 = vsel %vm744, %v853, 0.0
      %v857 = vsel %vm745, %v854, 0.0
      %v858 = vpack.c.bf16 %v856, %v855
      %v859 = vpack.c.bf16 %v857, %v857
      %p860 = scmp.gt.s32.totalorder %s24, 0
      %s861 = scalar_select %p860, 1, 0
      %v862 = vstv %s861
      %vm863 = vcmp.eq.s32.totalorder %v862, 1
      %v864 = vsel %vm863, %v841, 0
      %v865 = vsel %vm863, %v842, 0
      %p866 = scmp.lt.s32.totalorder %s24, 0
      %s867 = scalar_select %p866, 1, 0
      %v868 = vstv %s867
      %vm869 = vcmp.eq.s32.totalorder %v868, 1
      %v870 = vsel %vm869, %v858, 0
      %v871 = vsel %vm869, %v859, 0
      %vm872 = vsmask.f32 256
      %v874 = vshrl.u32 %v864, 16
      %v876 = vrot.slane %v874, 7
      %v877 = vshll.u32 %v864, 16
      %v879 = vor.u32 %v876, %v877
      %v881 = vshrl.u32 %v865, 16
      %v883 = vrot.slane %v881, 7
      %v884 = vshll.u32 %v865, 16
      %v886 = vor.u32 %v883, %v884
      %v887 = vsel %vm872, %v876, %v886
      %v889 = vshrl.u32 %v794, 16
      %v891 = vrot.slane %v889, 7
      %v892 = vshll.u32 %v794, 16
      %v894 = vor.u32 %v891, %v892
      %v896 = vshrl.u32 %v795, 16
      %v898 = vrot.slane %v896, 7
      %v899 = vshll.u32 %v795, 16
      %v901 = vor.u32 %v898, %v899
      %v902 = vsel %vm872, %v891, %v901
      %v904 = vshrl.u32 %v796, 16
      %v906 = vrot.slane %v904, 7
      %v907 = vshll.u32 %v796, 16
      %v909 = vor.u32 %v906, %v907
      %v911 = vshrl.u32 %v797, 16
      %v913 = vrot.slane %v911, 7
      %v914 = vshll.u32 %v797, 16
      %v916 = vor.u32 %v913, %v914
      %v917 = vsel %vm872, %v906, %v916
      %v919 = vshrl.u32 %v798, 16
      %v921 = vrot.slane %v919, 7
      %v922 = vshll.u32 %v798, 16
      %v924 = vor.u32 %v921, %v922
      %v926 = vshrl.u32 %v799, 16
      %v928 = vrot.slane %v926, 7
      %v929 = vshll.u32 %v799, 16
      %v931 = vor.u32 %v928, %v929
      %v932 = vsel %vm872, %v921, %v931
      %v934 = vshrl.u32 %v800, 16
      %v936 = vrot.slane %v934, 7
      %v937 = vshll.u32 %v800, 16
      %v939 = vor.u32 %v936, %v937
      %v941 = vshrl.u32 %v801, 16
      %v943 = vrot.slane %v941, 7
      %v944 = vshll.u32 %v801, 16
      %v946 = vor.u32 %v943, %v944
      %v947 = vsel %vm872, %v936, %v946
      %v949 = vshrl.u32 %v802, 16
      %v951 = vrot.slane %v949, 7
      %v952 = vshll.u32 %v802, 16
      %v954 = vor.u32 %v951, %v952
      %v956 = vshrl.u32 %v803, 16
      %v958 = vrot.slane %v956, 7
      %v959 = vshll.u32 %v803, 16
      %v961 = vor.u32 %v958, %v959
      %v962 = vsel %vm872, %v951, %v961
      %v964 = vshrl.u32 %v804, 16
      %v966 = vrot.slane %v964, 7
      %v967 = vshll.u32 %v804, 16
      %v969 = vor.u32 %v966, %v967
      %v971 = vshrl.u32 %v805, 16
      %v973 = vrot.slane %v971, 7
      %v974 = vshll.u32 %v805, 16
      %v976 = vor.u32 %v973, %v974
      %v977 = vsel %vm872, %v966, %v976
      %v979 = vshrl.u32 %v806, 16
      %v981 = vrot.slane %v979, 7
      %v982 = vshll.u32 %v806, 16
      %v984 = vor.u32 %v981, %v982
      %v986 = vshrl.u32 %v807, 16
      %v988 = vrot.slane %v986, 7
      %v989 = vshll.u32 %v807, 16
      %v991 = vor.u32 %v988, %v989
      %v992 = vsel %vm872, %v981, %v991
      %v994 = vshrl.u32 %v808, 16
      %v996 = vrot.slane %v994, 7
      %v997 = vshll.u32 %v808, 16
      %v999 = vor.u32 %v996, %v997
      %v1001 = vshrl.u32 %v809, 16
      %v1003 = vrot.slane %v1001, 7
      %v1004 = vshll.u32 %v809, 16
      %v1006 = vor.u32 %v1003, %v1004
      %v1007 = vsel %vm872, %v996, %v1006
      %v1009 = vshrl.u32 %v810, 16
      %v1011 = vrot.slane %v1009, 7
      %v1012 = vshll.u32 %v810, 16
      %v1014 = vor.u32 %v1011, %v1012
      %v1016 = vshrl.u32 %v811, 16
      %v1018 = vrot.slane %v1016, 7
      %v1019 = vshll.u32 %v811, 16
      %v1021 = vor.u32 %v1018, %v1019
      %v1022 = vsel %vm872, %v1011, %v1021
      %v1024 = vshrl.u32 %v812, 16
      %v1026 = vrot.slane %v1024, 7
      %v1027 = vshll.u32 %v812, 16
      %v1029 = vor.u32 %v1026, %v1027
      %v1031 = vshrl.u32 %v813, 16
      %v1033 = vrot.slane %v1031, 7
      %v1034 = vshll.u32 %v813, 16
      %v1036 = vor.u32 %v1033, %v1034
      %v1037 = vsel %vm872, %v1026, %v1036
      %v1039 = vshrl.u32 %v814, 16
      %v1041 = vrot.slane %v1039, 7
      %v1042 = vshll.u32 %v814, 16
      %v1044 = vor.u32 %v1041, %v1042
      %v1046 = vshrl.u32 %v815, 16
      %v1048 = vrot.slane %v1046, 7
      %v1049 = vshll.u32 %v815, 16
      %v1051 = vor.u32 %v1048, %v1049
      %v1052 = vsel %vm872, %v1041, %v1051
      %v1054 = vshrl.u32 %v816, 16
      %v1056 = vrot.slane %v1054, 7
      %v1057 = vshll.u32 %v816, 16
      %v1059 = vor.u32 %v1056, %v1057
      %v1061 = vshrl.u32 %v817, 16
      %v1063 = vrot.slane %v1061, 7
      %v1064 = vshll.u32 %v817, 16
      %v1066 = vor.u32 %v1063, %v1064
      %v1067 = vsel %vm872, %v1056, %v1066
      %v1069 = vshrl.u32 %v818, 16
      %v1071 = vrot.slane %v1069, 7
      %v1072 = vshll.u32 %v818, 16
      %v1074 = vor.u32 %v1071, %v1072
      %v1076 = vshrl.u32 %v819, 16
      %v1078 = vrot.slane %v1076, 7
      %v1079 = vshll.u32 %v819, 16
      %v1081 = vor.u32 %v1078, %v1079
      %v1082 = vsel %vm872, %v1071, %v1081
      %v1084 = vshrl.u32 %v820, 16
      %v1086 = vrot.slane %v1084, 7
      %v1087 = vshll.u32 %v820, 16
      %v1089 = vor.u32 %v1086, %v1087
      %v1091 = vshrl.u32 %v821, 16
      %v1093 = vrot.slane %v1091, 7
      %v1094 = vshll.u32 %v821, 16
      %v1096 = vor.u32 %v1093, %v1094
      %v1097 = vsel %vm872, %v1086, %v1096
      %v1099 = vshrl.u32 %v822, 16
      %v1101 = vrot.slane %v1099, 7
      %v1102 = vshll.u32 %v822, 16
      %v1104 = vor.u32 %v1101, %v1102
      %v1106 = vshrl.u32 %v823, 16
      %v1108 = vrot.slane %v1106, 7
      %v1109 = vshll.u32 %v823, 16
      %v1111 = vor.u32 %v1108, %v1109
      %v1112 = vsel %vm872, %v1101, %v1111
      %v1114 = vshrl.u32 %v824, 16
      %v1116 = vrot.slane %v1114, 7
      %v1117 = vshll.u32 %v824, 16
      %v1119 = vor.u32 %v1116, %v1117
      %v1121 = vshrl.u32 %v825, 16
      %v1123 = vrot.slane %v1121, 7
      %v1124 = vshll.u32 %v825, 16
      %v1126 = vor.u32 %v1123, %v1124
      %v1127 = vsel %vm872, %v1116, %v1126
      %v1129 = vshrl.u32 %v870, 16
      %v1131 = vrot.slane %v1129, 7
      %v1132 = vshll.u32 %v870, 16
      %v1134 = vor.u32 %v1131, %v1132
      %v1136 = vshrl.u32 %v871, 16
      %v1138 = vrot.slane %v1136, 7
      %v1139 = vshll.u32 %v871, 16
      %v1141 = vor.u32 %v1138, %v1139
      %v1142 = vsel %vm872, %v1131, %v1141
      %vm1161 = vcmask 1040384
      %vm1162 = vmand %vm1161, %vm872
      %v1163 = vsel %vm1162, 0, %v879
      %v1164 = vsel %vm1162, 0, %v894
      %v1165 = vsel %vm1162, 0, %v909
      %v1166 = vsel %vm1162, 0, %v924
      %v1167 = vsel %vm1162, 0, %v939
      %v1168 = vsel %vm1162, 0, %v954
      %v1169 = vsel %vm1162, 0, %v969
      %v1170 = vsel %vm1162, 0, %v984
      %v1171 = vsel %vm1162, 0, %v999
      %v1172 = vsel %vm1162, 0, %v1014
      %v1173 = vsel %vm1162, 0, %v1029
      %v1174 = vsel %vm1162, 0, %v1044
      %v1175 = vsel %vm1162, 0, %v1059
      %v1176 = vsel %vm1162, 0, %v1074
      %v1177 = vsel %vm1162, 0, %v1089
      %v1178 = vsel %vm1162, 0, %v1104
      %v1179 = vsel %vm1162, 0, %v1119
      %v1180 = vsel %vm1162, 0, %v1134
      %vm1181 = vsmask.f32 7424
      %v1182 = vrot.slane %v877, 1
      %v1183 = vor.u32 %v874, %v1182
      %v1184 = vrot.slane %v884, 1
      %v1185 = vsel %vm1181, %v1183, %v1184
      %v1186 = vor.u32 %v881, %v1184
      %v1187 = vrot.slane %v892, 1
      %v1188 = vor.u32 %v889, %v1187
      %v1189 = vrot.slane %v899, 1
      %v1190 = vsel %vm1181, %v1188, %v1189
      %v1191 = vor.u32 %v896, %v1189
      %v1192 = vrot.slane %v907, 1
      %v1193 = vor.u32 %v904, %v1192
      %v1194 = vrot.slane %v914, 1
      %v1195 = vsel %vm1181, %v1193, %v1194
      %v1196 = vor.u32 %v911, %v1194
      %v1197 = vrot.slane %v922, 1
      %v1198 = vor.u32 %v919, %v1197
      %v1199 = vrot.slane %v929, 1
      %v1200 = vsel %vm1181, %v1198, %v1199
      %v1201 = vor.u32 %v926, %v1199
      %v1202 = vrot.slane %v937, 1
      %v1203 = vor.u32 %v934, %v1202
      %v1204 = vrot.slane %v944, 1
      %v1205 = vsel %vm1181, %v1203, %v1204
      %v1206 = vor.u32 %v941, %v1204
      %v1207 = vrot.slane %v952, 1
      %v1208 = vor.u32 %v949, %v1207
      %v1209 = vrot.slane %v959, 1
      %v1210 = vsel %vm1181, %v1208, %v1209
      %v1211 = vor.u32 %v956, %v1209
      %v1212 = vrot.slane %v967, 1
      %v1213 = vor.u32 %v964, %v1212
      %v1214 = vrot.slane %v974, 1
      %v1215 = vsel %vm1181, %v1213, %v1214
      %v1216 = vor.u32 %v971, %v1214
      %v1217 = vrot.slane %v982, 1
      %v1218 = vor.u32 %v979, %v1217
      %v1219 = vrot.slane %v989, 1
      %v1220 = vsel %vm1181, %v1218, %v1219
      %v1221 = vor.u32 %v986, %v1219
      %v1222 = vrot.slane %v997, 1
      %v1223 = vor.u32 %v994, %v1222
      %v1224 = vrot.slane %v1004, 1
      %v1225 = vsel %vm1181, %v1223, %v1224
      %v1226 = vor.u32 %v1001, %v1224
      %v1227 = vrot.slane %v1012, 1
      %v1228 = vor.u32 %v1009, %v1227
      %v1229 = vrot.slane %v1019, 1
      %v1230 = vsel %vm1181, %v1228, %v1229
      %v1231 = vor.u32 %v1016, %v1229
      %v1232 = vrot.slane %v1027, 1
      %v1233 = vor.u32 %v1024, %v1232
      %v1234 = vrot.slane %v1034, 1
      %v1235 = vsel %vm1181, %v1233, %v1234
      %v1236 = vor.u32 %v1031, %v1234
      %v1237 = vrot.slane %v1042, 1
      %v1238 = vor.u32 %v1039, %v1237
      %v1239 = vrot.slane %v1049, 1
      %v1240 = vsel %vm1181, %v1238, %v1239
      %v1241 = vor.u32 %v1046, %v1239
      %v1242 = vrot.slane %v1057, 1
      %v1243 = vor.u32 %v1054, %v1242
      %v1244 = vrot.slane %v1064, 1
      %v1245 = vsel %vm1181, %v1243, %v1244
      %v1246 = vor.u32 %v1061, %v1244
      %v1247 = vrot.slane %v1072, 1
      %v1248 = vor.u32 %v1069, %v1247
      %v1249 = vrot.slane %v1079, 1
      %v1250 = vsel %vm1181, %v1248, %v1249
      %v1251 = vor.u32 %v1076, %v1249
      %v1252 = vrot.slane %v1087, 1
      %v1253 = vor.u32 %v1084, %v1252
      %v1254 = vrot.slane %v1094, 1
      %v1255 = vsel %vm1181, %v1253, %v1254
      %v1256 = vor.u32 %v1091, %v1254
      %v1257 = vrot.slane %v1102, 1
      %v1258 = vor.u32 %v1099, %v1257
      %v1259 = vrot.slane %v1109, 1
      %v1260 = vsel %vm1181, %v1258, %v1259
      %v1261 = vor.u32 %v1106, %v1259
      %v1262 = vrot.slane %v1117, 1
      %v1263 = vor.u32 %v1114, %v1262
      %v1264 = vrot.slane %v1124, 1
      %v1265 = vsel %vm1181, %v1263, %v1264
      %v1266 = vor.u32 %v1121, %v1264
      %v1267 = vrot.slane %v1132, 1
      %v1268 = vor.u32 %v1129, %v1267
      %v1269 = vrot.slane %v1139, 1
      %v1270 = vsel %vm1181, %v1268, %v1269
      %v1271 = vor.u32 %v1136, %v1269
      %vm1290 = vcmask 1043456
      %vm1291 = vsmask.f32 3328
      %vm1292 = vmand %vm1290, %vm1291
      %v1293 = vsel %vm1292, %v1186, 0
      %v1294 = vsel %vm1292, %v1191, 0
      %v1295 = vsel %vm1292, %v1196, 0
      %v1296 = vsel %vm1292, %v1201, 0
      %v1297 = vsel %vm1292, %v1206, 0
      %v1298 = vsel %vm1292, %v1211, 0
      %v1299 = vsel %vm1292, %v1216, 0
      %v1300 = vsel %vm1292, %v1221, 0
      %v1301 = vsel %vm1292, %v1226, 0
      %v1302 = vsel %vm1292, %v1231, 0
      %v1303 = vsel %vm1292, %v1236, 0
      %v1304 = vsel %vm1292, %v1241, 0
      %v1305 = vsel %vm1292, %v1246, 0
      %v1306 = vsel %vm1292, %v1251, 0
      %v1307 = vsel %vm1292, %v1256, 0
      %v1308 = vsel %vm1292, %v1261, 0
      %v1309 = vsel %vm1292, %v1266, 0
      %v1310 = vsel %vm1292, %v1271, 0
      %v1327 = vunpack.c.l.b16 %v1163
      %v1328 = vunpack.c.h.b16 %v1163
      %v1329 = vunpack.c.l.b16 %v887
      %v1330 = vunpack.c.l.b16 %v1164
      %v1331 = vunpack.c.h.b16 %v1164
      %v1332 = vunpack.c.l.b16 %v902
      %v1333 = vunpack.c.l.b16 %v1165
      %v1334 = vunpack.c.h.b16 %v1165
      %v1335 = vunpack.c.l.b16 %v917
      %v1336 = vunpack.c.l.b16 %v1166
      %v1337 = vunpack.c.h.b16 %v1166
      %v1338 = vunpack.c.l.b16 %v932
      %v1339 = vunpack.c.l.b16 %v1167
      %v1340 = vunpack.c.h.b16 %v1167
      %v1341 = vunpack.c.l.b16 %v947
      %v1342 = vunpack.c.l.b16 %v1168
      %v1343 = vunpack.c.h.b16 %v1168
      %v1344 = vunpack.c.l.b16 %v962
      %v1345 = vunpack.c.l.b16 %v1169
      %v1346 = vunpack.c.h.b16 %v1169
      %v1347 = vunpack.c.l.b16 %v977
      %v1348 = vunpack.c.l.b16 %v1170
      %v1349 = vunpack.c.h.b16 %v1170
      %v1350 = vunpack.c.l.b16 %v992
      %v1351 = vunpack.c.l.b16 %v1171
      %v1352 = vunpack.c.h.b16 %v1171
      %v1353 = vunpack.c.l.b16 %v1007
      %v1354 = vunpack.c.l.b16 %v1172
      %v1355 = vunpack.c.h.b16 %v1172
      %v1356 = vunpack.c.l.b16 %v1022
      %v1357 = vunpack.c.l.b16 %v1173
      %v1358 = vunpack.c.h.b16 %v1173
      %v1359 = vunpack.c.l.b16 %v1037
      %v1360 = vunpack.c.l.b16 %v1174
      %v1361 = vunpack.c.h.b16 %v1174
      %v1362 = vunpack.c.l.b16 %v1052
      %v1363 = vunpack.c.l.b16 %v1175
      %v1364 = vunpack.c.h.b16 %v1175
      %v1365 = vunpack.c.l.b16 %v1067
      %v1366 = vunpack.c.l.b16 %v1176
      %v1367 = vunpack.c.h.b16 %v1176
      %v1368 = vunpack.c.l.b16 %v1082
      %v1369 = vunpack.c.l.b16 %v1177
      %v1370 = vunpack.c.h.b16 %v1177
      %v1371 = vunpack.c.l.b16 %v1097
      %v1372 = vunpack.c.l.b16 %v1178
      %v1373 = vunpack.c.h.b16 %v1178
      %v1374 = vunpack.c.l.b16 %v1112
      %v1375 = vld [vmem:[%s5] sm:$0xf]
      %v1376 = vld [vmem:[%s5 + $0x4] sm:$0xf]
      %v1377 = vld [vmem:[%s5 + $0x8] sm:$0xf]
      %v1378 = vld [vmem:[%s5 + $0xc] sm:$0xf]
      %v1379 = vld [vmem:[%s5 + $0x10] sm:$0xf]
      %v1380 = vld [vmem:[%s5 + $0x14] sm:$0xf]
      %v1381 = vld [vmem:[%s5 + $0x18] sm:$0xf]
      %v1382 = vld [vmem:[%s5 + $0x1c] sm:$0xf]
      %v1383 = vld [vmem:[%s5 + $0x20] sm:$0xf]
      %v1384 = vld [vmem:[%s5 + $0x24] sm:$0xf]
      %v1385 = vld [vmem:[%s5 + $0x28] sm:$0xf]
      %v1386 = vld [vmem:[%s5 + $0x2c] sm:$0xf]
      %v1387 = vld [vmem:[%s5 + $0x30] sm:$0xf]
      %v1388 = vld [vmem:[%s5 + $0x34] sm:$0xf]
      %v1389 = vld [vmem:[%s5 + $0x38] sm:$0xf]
      %v1390 = vld [vmem:[%s5 + $0x3c] sm:$0xf]
      %v1423 = vunpack.c.l.b16 %v864
      %v1424 = vunpack.c.h.b16 %v864
      %v1425 = vunpack.c.l.b16 %v865
      %v1426 = vunpack.c.l.b16 %v794
      %v1427 = vunpack.c.h.b16 %v794
      %v1428 = vunpack.c.l.b16 %v795
      %v1429 = vunpack.c.l.b16 %v796
      %v1430 = vunpack.c.h.b16 %v796
      %v1431 = vunpack.c.l.b16 %v797
      %v1432 = vunpack.c.l.b16 %v798
      %v1433 = vunpack.c.h.b16 %v798
      %v1434 = vunpack.c.l.b16 %v799
      %v1435 = vunpack.c.l.b16 %v800
      %v1436 = vunpack.c.h.b16 %v800
      %v1437 = vunpack.c.l.b16 %v801
      %v1438 = vunpack.c.l.b16 %v802
      %v1439 = vunpack.c.h.b16 %v802
      %v1440 = vunpack.c.l.b16 %v803
      %v1441 = vunpack.c.l.b16 %v804
      %v1442 = vunpack.c.h.b16 %v804
      %v1443 = vunpack.c.l.b16 %v805
      %v1444 = vunpack.c.l.b16 %v806
      %v1445 = vunpack.c.h.b16 %v806
      %v1446 = vunpack.c.l.b16 %v807
      %v1447 = vunpack.c.l.b16 %v808
      %v1448 = vunpack.c.h.b16 %v808
      %v1449 = vunpack.c.l.b16 %v809
      %v1450 = vunpack.c.l.b16 %v810
      %v1451 = vunpack.c.h.b16 %v810
      %v1452 = vunpack.c.l.b16 %v811
      %v1453 = vunpack.c.l.b16 %v812
      %v1454 = vunpack.c.h.b16 %v812
      %v1455 = vunpack.c.l.b16 %v813
      %v1456 = vunpack.c.l.b16 %v814
      %v1457 = vunpack.c.h.b16 %v814
      %v1458 = vunpack.c.l.b16 %v815
      %v1459 = vunpack.c.l.b16 %v816
      %v1460 = vunpack.c.h.b16 %v816
      %v1461 = vunpack.c.l.b16 %v817
      %v1462 = vunpack.c.l.b16 %v818
      %v1463 = vunpack.c.h.b16 %v818
      %v1464 = vunpack.c.l.b16 %v819
      %v1465 = vunpack.c.l.b16 %v820
      %v1466 = vunpack.c.h.b16 %v820
      %v1467 = vunpack.c.l.b16 %v821
      %v1468 = vunpack.c.l.b16 %v822
      %v1469 = vunpack.c.h.b16 %v822
      %v1470 = vunpack.c.l.b16 %v823
      %s1471 = scalar_lea.vmem %s5, 64
      %v1472 = vld [vmem:[%s1471] sm:$0xf]
      %v1473 = vld [vmem:[%s1471 + $0x4] sm:$0xf]
      %v1474 = vld [vmem:[%s1471 + $0x8] sm:$0xf]
      %v1475 = vld [vmem:[%s1471 + $0xc] sm:$0xf]
      %v1476 = vld [vmem:[%s1471 + $0x10] sm:$0xf]
      %v1477 = vld [vmem:[%s1471 + $0x14] sm:$0xf]
      %v1478 = vld [vmem:[%s1471 + $0x18] sm:$0xf]
      %v1479 = vld [vmem:[%s1471 + $0x1c] sm:$0xf]
      %v1480 = vld [vmem:[%s1471 + $0x20] sm:$0xf]
      %v1481 = vld [vmem:[%s1471 + $0x24] sm:$0xf]
      %v1482 = vld [vmem:[%s1471 + $0x28] sm:$0xf]
      %v1483 = vld [vmem:[%s1471 + $0x2c] sm:$0xf]
      %v1484 = vld [vmem:[%s1471 + $0x30] sm:$0xf]
      %v1485 = vld [vmem:[%s1471 + $0x34] sm:$0xf]
      %v1486 = vld [vmem:[%s1471 + $0x38] sm:$0xf]
      %v1487 = vld [vmem:[%s1471 + $0x3c] sm:$0xf]
      %v1488 = vpack.c.b16 %v1424, %v1423
      %v1489 = vpack.c.b16 %v1426, %v1425
      %v1490 = vpack.c.b16 %v1428, %v1427
      %v1491 = vpack.c.b16 %v1430, %v1429
      %v1492 = vpack.c.b16 %v1432, %v1431
      %v1493 = vpack.c.b16 %v1434, %v1433
      %v1494 = vpack.c.b16 %v1436, %v1435
      %v1495 = vpack.c.b16 %v1438, %v1437
      %v1496 = vpack.c.b16 %v1440, %v1439
      %v1497 = vpack.c.b16 %v1442, %v1441
      %v1498 = vpack.c.b16 %v1444, %v1443
      %v1499 = vpack.c.b16 %v1446, %v1445
      %v1500 = vpack.c.b16 %v1448, %v1447
      %v1501 = vpack.c.b16 %v1450, %v1449
      %v1502 = vpack.c.b16 %v1452, %v1451
      %v1503 = vpack.c.b16 %v1454, %v1453
      %v1504 = vpack.c.b16 %v1456, %v1455
      %v1505 = vpack.c.b16 %v1458, %v1457
      %v1506 = vpack.c.b16 %v1460, %v1459
      %v1507 = vpack.c.b16 %v1462, %v1461
      %v1508 = vpack.c.b16 %v1464, %v1463
      %v1509 = vpack.c.b16 %v1466, %v1465
      %v1510 = vpack.c.b16 %v1468, %v1467
      %v1511 = vpack.c.b16 %v1470, %v1469
      %v1552 = vunpack.c.l.b16 %v1472
      %v1553 = vunpack.c.l.b16 %v1473
      %v1554 = vunpack.c.l.b16 %v1474
      %v1555 = vunpack.c.l.b16 %v1475
      %v1556 = vunpack.c.l.b16 %v1476
      %v1557 = vunpack.c.l.b16 %v1477
      %v1558 = vunpack.c.l.b16 %v1478
      %v1559 = vunpack.c.l.b16 %v1479
      %v1560 = vunpack.c.l.b16 %v1480
      %v1561 = vunpack.c.l.b16 %v1481
      %v1562 = vunpack.c.l.b16 %v1482
      %v1563 = vunpack.c.l.b16 %v1483
      %v1564 = vunpack.c.l.b16 %v1484
      %v1565 = vunpack.c.l.b16 %v1485
      %v1566 = vunpack.c.l.b16 %v1486
      %v1567 = vunpack.c.l.b16 %v1487
      %v1568 = vpack.c.b16 %v1553, %v1552
      %v1569 = vpack.c.b16 %v1555, %v1554
      %v1570 = vpack.c.b16 %v1557, %v1556
      %v1571 = vpack.c.b16 %v1559, %v1558
      %v1572 = vpack.c.b16 %v1561, %v1560
      %v1573 = vpack.c.b16 %v1563, %v1562
      %v1574 = vpack.c.b16 %v1565, %v1564
      %v1575 = vpack.c.b16 %v1567, %v1566
      %1584 = vmatprep.subr.bf16.mxu0 0
      %1585 = vmatpush1.bf16.msra.mxu0 %v1568
      %1586 = vmatprep.subr.bf16.mxu0 0
      %1587 = vmatpush1.bf16.msra.mxu0 %v1569
      %1588 = vmatprep.subr.bf16.mxu0 0
      %1589 = vmatpush1.bf16.msra.mxu0 %v1570
      %1590 = vmatprep.subr.bf16.mxu0 0
      %1591 = vmatpush1.bf16.msra.mxu0 %v1571
      %1592 = vmatprep.subr.bf16.mxu0 0
      %1593 = vmatpush1.bf16.msra.mxu0 %v1572
      %1594 = vmatprep.subr.bf16.mxu0 0
      %1595 = vmatpush1.bf16.msra.mxu0 %v1573
      %1596 = vmatprep.subr.bf16.mxu0 0
      %1597 = vmatpush1.bf16.msra.mxu0 %v1574
      %1598 = vmatprep.subr.bf16.mxu0 0
      %1599 = vmatpush1.bf16.msra.mxu0 %v1575
      %1600 = vmatprep.subr.bf16.mxu0 0
      %1601 = vmatpush1.bf16.msra.mxu0 0
      %1602 = vmatprep.subr.bf16.mxu0 0
      %1603 = vmatpush1.bf16.msra.mxu0 0
      %1604 = vmatprep.subr.bf16.mxu0 0
      %1605 = vmatpush1.bf16.msra.mxu0 0
      %1606 = vmatprep.subr.bf16.mxu0 0
      %1607 = vmatpush1.bf16.msra.mxu0 0
      %1608 = vmatprep.subr.bf16.mxu0 0
      %1609 = vmatpush1.bf16.msra.mxu0 0
      %1610 = vmatprep.subr.bf16.mxu0 0
      %1611 = vmatpush1.bf16.msra.mxu0 0
      %1612 = vmatprep.subr.bf16.mxu0 0
      %1613 = vmatpush1.bf16.msra.mxu0 0
      %1614 = vmatprep.subr.bf16.mxu0 0
      %1615 = vmatpush1.bf16.msra.mxu0 0
      %1616 = vmatprep.mubr.bf16.mxu0 0
      %1617 = vmatmul.mubr.bf16.gmra.mrb[0].mxu0 %v1488
      %v1618 = vpop.f32.mrb[0].mxu0
      %v1619 = vadd.f32 0.0, %v1618
      %v1620 = vpop.f32.mrb[0].mxu0
      %v1621 = vpop.f32.mrb[0].mxu0
      %v1622 = vadd.f32 0.0, %v1621
      %v1623 = vpop.f32.mrb[0].mxu0
      %1624 = vmatprep.mubr.bf16.mxu0 0
      %1625 = vmatmul.mubr.bf16.gmra.mrb[0].mxu0 %v1489
      %v1626 = vpop.f32.mrb[0].mxu0
      %v1627 = vadd.f32 0.0, %v1626
      %v1628 = vpop.f32.mrb[0].mxu0
      %v1629 = vpop.f32.mrb[0].mxu0
      %v1630 = vadd.f32 0.0, %v1629
      %v1631 = vpop.f32.mrb[0].mxu0
      %1632 = vmatprep.mubr.bf16.mxu0 0
      %1633 = vmatmul.mubr.bf16.gmra.mrb[0].mxu0 %v1490
      %v1634 = vpop.f32.mrb[0].mxu0
      %v1635 = vadd.f32 0.0, %v1634
      %v1636 = vpop.f32.mrb[0].mxu0
      %v1637 = vpop.f32.mrb[0].mxu0
      %v1638 = vadd.f32 0.0, %v1637
      %v1639 = vpop.f32.mrb[0].mxu0
      %1640 = vmatprep.mubr.bf16.mxu0 0
      %1641 = vmatmul.mubr.bf16.gmra.mrb[0].mxu0 %v1491
      %v1642 = vpop.f32.mrb[0].mxu0
      %v1643 = vadd.f32 0.0, %v1642
      %v1644 = vpop.f32.mrb[0].mxu0
      %v1645 = vpop.f32.mrb[0].mxu0
      %v1646 = vadd.f32 0.0, %v1645
      %v1647 = vpop.f32.mrb[0].mxu0
      %1648 = vmatprep.mubr.bf16.mxu0 0
      %1649 = vmatmul.mubr.bf16.gmra.mrb[0].mxu0 %v1492
      %v1650 = vpop.f32.mrb[0].mxu0
      %v1651 = vadd.f32 0.0, %v1650
      %v1652 = vpop.f32.mrb[0].mxu0
      %v1653 = vpop.f32.mrb[0].mxu0
      %v1654 = vadd.f32 0.0, %v1653
      %v1655 = vpop.f32.mrb[0].mxu0
      %1656 = vmatprep.mubr.bf16.mxu0 0
      %1657 = vmatmul.mubr.bf16.gmra.mrb[0].mxu0 %v1493
      %v1658 = vpop.f32.mrb[0].mxu0
      %v1659 = vadd.f32 0.0, %v1658
      %v1660 = vpop.f32.mrb[0].mxu0
      %v1661 = vpop.f32.mrb[0].mxu0
      %v1662 = vadd.f32 0.0, %v1661
      %v1663 = vpop.f32.mrb[0].mxu0
      %1664 = vmatprep.mubr.bf16.mxu0 0
      %1665 = vmatmul.mubr.bf16.gmra.mrb[0].mxu0 %v1494
      %v1666 = vpop.f32.mrb[0].mxu0
      %v1667 = vadd.f32 0.0, %v1666
      %v1668 = vpop.f32.mrb[0].mxu0
      %v1669 = vpop.f32.mrb[0].mxu0
      %v1670 = vadd.f32 0.0, %v1669
      %v1671 = vpop.f32.mrb[0].mxu0
      %1672 = vmatprep.mubr.bf16.mxu0 0
      %1673 = vmatmul.mubr.bf16.gmra.mrb[0].mxu0 %v1495
      %v1674 = vpop.f32.mrb[0].mxu0
      %v1675 = vadd.f32 0.0, %v1674
      %v1676 = vpop.f32.mrb[0].mxu0
      %v1677 = vpop.f32.mrb[0].mxu0
      %v1678 = vadd.f32 0.0, %v1677
      %v1679 = vpop.f32.mrb[0].mxu0
      %1680 = vmatprep.mubr.bf16.mxu0 0
      %1681 = vmatmul.mubr.bf16.gmra.mrb[0].mxu0 %v1496
      %v1682 = vpop.f32.mrb[0].mxu0
      %v1683 = vadd.f32 0.0, %v1682
      %v1684 = vpop.f32.mrb[0].mxu0
      %v1685 = vpop.f32.mrb[0].mxu0
      %v1686 = vadd.f32 0.0, %v1685
      %v1687 = vpop.f32.mrb[0].mxu0
      %1688 = vmatprep.mubr.bf16.mxu0 0
      %1689 = vmatmul.mubr.bf16.gmra.mrb[0].mxu0 %v1497
      %v1690 = vpop.f32.mrb[0].mxu0
      %v1691 = vadd.f32 0.0, %v1690
      %v1692 = vpop.f32.mrb[0].mxu0
      %v1693 = vpop.f32.mrb[0].mxu0
      %v1694 = vadd.f32 0.0, %v1693
      %v1695 = vpop.f32.mrb[0].mxu0
      %1696 = vmatprep.mubr.bf16.mxu0 0
      %1697 = vmatmul.mubr.bf16.gmra.mrb[0].mxu0 %v1498
      %v1698 = vpop.f32.mrb[0].mxu0
      %v1699 = vadd.f32 0.0, %v1698
      %v1700 = vpop.f32.mrb[0].mxu0
      %v1701 = vpop.f32.mrb[0].mxu0
      %v1702 = vadd.f32 0.0, %v1701
      %v1703 = vpop.f32.mrb[0].mxu0
      %1704 = vmatprep.mubr.bf16.mxu0 0
      %1705 = vmatmul.mubr.bf16.gmra.mrb[0].mxu0 %v1499
      %v1706 = vpop.f32.mrb[0].mxu0
      %v1707 = vadd.f32 0.0, %v1706
      %v1708 = vpop.f32.mrb[0].mxu0
      %v1709 = vpop.f32.mrb[0].mxu0
      %v1710 = vadd.f32 0.0, %v1709
      %v1711 = vpop.f32.mrb[0].mxu0
      %1712 = vmatprep.mubr.bf16.mxu0 0
      %1713 = vmatmul.mubr.bf16.gmra.mrb[0].mxu0 %v1500
      %v1714 = vpop.f32.mrb[0].mxu0
      %v1715 = vadd.f32 0.0, %v1714
      %v1716 = vpop.f32.mrb[0].mxu0
      %v1717 = vpop.f32.mrb[0].mxu0
      %v1718 = vadd.f32 0.0, %v1717
      %v1719 = vpop.f32.mrb[0].mxu0
      %1720 = vmatprep.mubr.bf16.mxu0 0
      %1721 = vmatmul.mubr.bf16.gmra.mrb[0].mxu0 %v1501
      %v1722 = vpop.f32.mrb[0].mxu0
      %v1723 = vadd.f32 0.0, %v1722
      %v1724 = vpop.f32.mrb[0].mxu0
      %v1725 = vpop.f32.mrb[0].mxu0
      %v1726 = vadd.f32 0.0, %v1725
      %v1727 = vpop.f32.mrb[0].mxu0
      %1728 = vmatprep.mubr.bf16.mxu0 0
      %1729 = vmatmul.mubr.bf16.gmra.mrb[0].mxu0 %v1502
      %v1730 = vpop.f32.mrb[0].mxu0
      %v1731 = vadd.f32 0.0, %v1730
      %v1732 = vpop.f32.mrb[0].mxu0
      %v1733 = vpop.f32.mrb[0].mxu0
      %v1734 = vadd.f32 0.0, %v1733
      %v1735 = vpop.f32.mrb[0].mxu0
      %1736 = vmatprep.mubr.bf16.mxu0 0
      %1737 = vmatmul.mubr.bf16.gmra.mrb[0].mxu0 %v1503
      %v1738 = vpop.f32.mrb[0].mxu0
      %v1739 = vadd.f32 0.0, %v1738
      %v1740 = vpop.f32.mrb[0].mxu0
      %v1741 = vpop.f32.mrb[0].mxu0
      %v1742 = vadd.f32 0.0, %v1741
      %v1743 = vpop.f32.mrb[0].mxu0
      %1744 = vmatprep.mubr.bf16.mxu0 0
      %1745 = vmatmul.mubr.bf16.gmra.mrb[0].mxu0 %v1504
      %v1746 = vpop.f32.mrb[0].mxu0
      %v1747 = vadd.f32 0.0, %v1746
      %v1748 = vpop.f32.mrb[0].mxu0
      %v1749 = vpop.f32.mrb[0].mxu0
      %v1750 = vadd.f32 0.0, %v1749
      %v1751 = vpop.f32.mrb[0].mxu0
      %1752 = vmatprep.mubr.bf16.mxu0 0
      %1753 = vmatmul.mubr.bf16.gmra.mrb[0].mxu0 %v1505
      %v1754 = vpop.f32.mrb[0].mxu0
      %v1755 = vadd.f32 0.0, %v1754
      %v1756 = vpop.f32.mrb[0].mxu0
      %v1757 = vpop.f32.mrb[0].mxu0
      %v1758 = vadd.f32 0.0, %v1757
      %v1759 = vpop.f32.mrb[0].mxu0
      %1760 = vmatprep.mubr.bf16.mxu0 0
      %1761 = vmatmul.mubr.bf16.gmra.mrb[0].mxu0 %v1506
      %v1762 = vpop.f32.mrb[0].mxu0
      %v1763 = vadd.f32 0.0, %v1762
      %v1764 = vpop.f32.mrb[0].mxu0
      %v1765 = vpop.f32.mrb[0].mxu0
      %v1766 = vadd.f32 0.0, %v1765
      %v1767 = vpop.f32.mrb[0].mxu0
      %1768 = vmatprep.mubr.bf16.mxu0 0
      %1769 = vmatmul.mubr.bf16.gmra.mrb[0].mxu0 %v1507
      %v1770 = vpop.f32.mrb[0].mxu0
      %v1771 = vadd.f32 0.0, %v1770
      %v1772 = vpop.f32.mrb[0].mxu0
      %v1773 = vpop.f32.mrb[0].mxu0
      %v1774 = vadd.f32 0.0, %v1773
      %v1775 = vpop.f32.mrb[0].mxu0
      %1776 = vmatprep.mubr.bf16.mxu0 0
      %1777 = vmatmul.mubr.bf16.gmra.mrb[0].mxu0 %v1508
      %v1778 = vpop.f32.mrb[0].mxu0
      %v1779 = vadd.f32 0.0, %v1778
      %v1780 = vpop.f32.mrb[0].mxu0
      %v1781 = vpop.f32.mrb[0].mxu0
      %v1782 = vadd.f32 0.0, %v1781
      %v1783 = vpop.f32.mrb[0].mxu0
      %1784 = vmatprep.mubr.bf16.mxu0 0
      %1785 = vmatmul.mubr.bf16.gmra.mrb[0].mxu0 %v1509
      %v1786 = vpop.f32.mrb[0].mxu0
      %v1787 = vadd.f32 0.0, %v1786
      %v1788 = vpop.f32.mrb[0].mxu0
      %v1789 = vpop.f32.mrb[0].mxu0
      %v1790 = vadd.f32 0.0, %v1789
      %v1791 = vpop.f32.mrb[0].mxu0
      %1792 = vmatprep.mubr.bf16.mxu0 0
      %1793 = vmatmul.mubr.bf16.gmra.mrb[0].mxu0 %v1510
      %v1794 = vpop.f32.mrb[0].mxu0
      %v1795 = vadd.f32 0.0, %v1794
      %v1796 = vpop.f32.mrb[0].mxu0
      %v1797 = vpop.f32.mrb[0].mxu0
      %v1798 = vadd.f32 0.0, %v1797
      %v1799 = vpop.f32.mrb[0].mxu0
      %1800 = vmatprep.mubr.bf16.mxu0 0
      %1801 = vmatmul.mubr.bf16.gmra.mrb[0].mxu0 %v1511
      %v1802 = vpop.f32.mrb[0].mxu0
      %v1803 = vadd.f32 0.0, %v1802
      %v1804 = vpop.f32.mrb[0].mxu0
      %v1805 = vpop.f32.mrb[0].mxu0
      %v1806 = vadd.f32 0.0, %v1805
      %v1807 = vpop.f32.mrb[0].mxu0
      %1808 = vdwg.mxu0
      %v1809 = vpack.c.b16 %v1328, %v1327
      %v1810 = vpack.c.b16 %v1330, %v1329
      %v1811 = vpack.c.b16 %v1332, %v1331
      %v1812 = vpack.c.b16 %v1334, %v1333
      %v1813 = vpack.c.b16 %v1336, %v1335
      %v1814 = vpack.c.b16 %v1338, %v1337
      %v1815 = vpack.c.b16 %v1340, %v1339
      %v1816 = vpack.c.b16 %v1342, %v1341
      %v1817 = vpack.c.b16 %v1344, %v1343
      %v1818 = vpack.c.b16 %v1346, %v1345
      %v1819 = vpack.c.b16 %v1348, %v1347
      %v1820 = vpack.c.b16 %v1350, %v1349
      %v1821 = vpack.c.b16 %v1352, %v1351
      %v1822 = vpack.c.b16 %v1354, %v1353
      %v1823 = vpack.c.b16 %v1356, %v1355
      %v1824 = vpack.c.b16 %v1358, %v1357
      %v1825 = vpack.c.b16 %v1360, %v1359
      %v1826 = vpack.c.b16 %v1362, %v1361
      %v1827 = vpack.c.b16 %v1364, %v1363
      %v1828 = vpack.c.b16 %v1366, %v1365
      %v1829 = vpack.c.b16 %v1368, %v1367
      %v1830 = vpack.c.b16 %v1370, %v1369
      %v1831 = vpack.c.b16 %v1372, %v1371
      %v1832 = vpack.c.b16 %v1374, %v1373
      %v1873 = vunpack.c.l.b16 %v1375
      %v1874 = vunpack.c.l.b16 %v1376
      %v1875 = vunpack.c.l.b16 %v1377
      %v1876 = vunpack.c.l.b16 %v1378
      %v1877 = vunpack.c.l.b16 %v1379
      %v1878 = vunpack.c.l.b16 %v1380
      %v1879 = vunpack.c.l.b16 %v1381
      %v1880 = vunpack.c.l.b16 %v1382
      %v1881 = vunpack.c.l.b16 %v1383
      %v1882 = vunpack.c.l.b16 %v1384
      %v1883 = vunpack.c.l.b16 %v1385
      %v1884 = vunpack.c.l.b16 %v1386
      %v1885 = vunpack.c.l.b16 %v1387
      %v1886 = vunpack.c.l.b16 %v1388
      %v1887 = vunpack.c.l.b16 %v1389
      %v1888 = vunpack.c.l.b16 %v1390
      %v1889 = vpack.c.b16 %v1874, %v1873
      %v1890 = vpack.c.b16 %v1876, %v1875
      %v1891 = vpack.c.b16 %v1878, %v1877
      %v1892 = vpack.c.b16 %v1880, %v1879
      %v1893 = vpack.c.b16 %v1882, %v1881
      %v1894 = vpack.c.b16 %v1884, %v1883
      %v1895 = vpack.c.b16 %v1886, %v1885
      %v1896 = vpack.c.b16 %v1888, %v1887
      %1905 = vmatprep.subr.bf16.mxu0 0
      %1906 = vmatpush1.bf16.msra.mxu0 %v1889
      %1907 = vmatprep.subr.bf16.mxu0 0
      %1908 = vmatpush1.bf16.msra.mxu0 %v1890
      %1909 = vmatprep.subr.bf16.mxu0 0
      %1910 = vmatpush1.bf16.msra.mxu0 %v1891
      %1911 = vmatprep.subr.bf16.mxu0 0
      %1912 = vmatpush1.bf16.msra.mxu0 %v1892
      %1913 = vmatprep.subr.bf16.mxu0 0
      %1914 = vmatpush1.bf16.msra.mxu0 %v1893
      %1915 = vmatprep.subr.bf16.mxu0 0
      %1916 = vmatpush1.bf16.msra.mxu0 %v1894
      %1917 = vmatprep.subr.bf16.mxu0 0
      %1918 = vmatpush1.bf16.msra.mxu0 %v1895
      %1919 = vmatprep.subr.bf16.mxu0 0
      %1920 = vmatpush1.bf16.msra.mxu0 %v1896
      %1921 = vmatprep.subr.bf16.mxu0 0
      %1922 = vmatpush1.bf16.msra.mxu0 0
      %1923 = vmatprep.subr.bf16.mxu0 0
      %1924 = vmatpush1.bf16.msra.mxu0 0
      %1925 = vmatprep.subr.bf16.mxu0 0
      %1926 = vmatpush1.bf16.msra.mxu0 0
      %1927 = vmatprep.subr.bf16.mxu0 0
      %1928 = vmatpush1.bf16.msra.mxu0 0
      %1929 = vmatprep.subr.bf16.mxu0 0
      %1930 = vmatpush1.bf16.msra.mxu0 0
      %1931 = vmatprep.subr.bf16.mxu0 0
      %1932 = vmatpush1.bf16.msra.mxu0 0
      %1933 = vmatprep.subr.bf16.mxu0 0
      %1934 = vmatpush1.bf16.msra.mxu0 0
      %1935 = vmatprep.subr.bf16.mxu0 0
      %1936 = vmatpush1.bf16.msra.mxu0 0
      %1937 = vmatprep.mubr.bf16.mxu0 0
      %1938 = vmatmul.mubr.bf16.gmra.mrb[0].mxu0 %v1809
      %v1939 = vpop.f32.mrb[0].mxu0
      %v1940 = vadd.f32 %v1619, %v1939
      %v1941 = vpop.f32.mrb[0].mxu0
      %v1942 = vpop.f32.mrb[0].mxu0
      %v1943 = vadd.f32 %v1622, %v1942
      %v1944 = vpop.f32.mrb[0].mxu0
      %1945 = vmatprep.mubr.bf16.mxu0 0
      %1946 = vmatmul.mubr.bf16.gmra.mrb[0].mxu0 %v1810
      %v1947 = vpop.f32.mrb[0].mxu0
      %v1948 = vadd.f32 %v1627, %v1947
      %v1949 = vpop.f32.mrb[0].mxu0
      %v1950 = vpop.f32.mrb[0].mxu0
      %v1951 = vadd.f32 %v1630, %v1950
      %v1952 = vpop.f32.mrb[0].mxu0
      %1953 = vmatprep.mubr.bf16.mxu0 0
      %1954 = vmatmul.mubr.bf16.gmra.mrb[0].mxu0 %v1811
      %v1955 = vpop.f32.mrb[0].mxu0
      %v1956 = vadd.f32 %v1635, %v1955
      %v1957 = vpop.f32.mrb[0].mxu0
      %v1958 = vpop.f32.mrb[0].mxu0
      %v1959 = vadd.f32 %v1638, %v1958
      %v1960 = vpop.f32.mrb[0].mxu0
      %1961 = vmatprep.mubr.bf16.mxu0 0
      %1962 = vmatmul.mubr.bf16.gmra.mrb[0].mxu0 %v1812
      %v1963 = vpop.f32.mrb[0].mxu0
      %v1964 = vadd.f32 %v1643, %v1963
      %v1965 = vpop.f32.mrb[0].mxu0
      %v1966 = vpop.f32.mrb[0].mxu0
      %v1967 = vadd.f32 %v1646, %v1966
      %v1968 = vpop.f32.mrb[0].mxu0
      %1969 = vmatprep.mubr.bf16.mxu0 0
      %1970 = vmatmul.mubr.bf16.gmra.mrb[0].mxu0 %v1813
      %v1971 = vpop.f32.mrb[0].mxu0
      %v1972 = vadd.f32 %v1651, %v1971
      %v1973 = vpop.f32.mrb[0].mxu0
      %v1974 = vpop.f32.mrb[0].mxu0
      %v1975 = vadd.f32 %v1654, %v1974
      %v1976 = vpop.f32.mrb[0].mxu0
      %1977 = vmatprep.mubr.bf16.mxu0 0
      %1978 = vmatmul.mubr.bf16.gmra.mrb[0].mxu0 %v1814
      %v1979 = vpop.f32.mrb[0].mxu0
      %v1980 = vadd.f32 %v1659, %v1979
      %v1981 = vpop.f32.mrb[0].mxu0
      %v1982 = vpop.f32.mrb[0].mxu0
      %v1983 = vadd.f32 %v1662, %v1982
      %v1984 = vpop.f32.mrb[0].mxu0
      %1985 = vmatprep.mubr.bf16.mxu0 0
      %1986 = vmatmul.mubr.bf16.gmra.mrb[0].mxu0 %v1815
      %v1987 = vpop.f32.mrb[0].mxu0
      %v1988 = vadd.f32 %v1667, %v1987
      %v1989 = vpop.f32.mrb[0].mxu0
      %v1990 = vpop.f32.mrb[0].mxu0
      %v1991 = vadd.f32 %v1670, %v1990
      %v1992 = vpop.f32.mrb[0].mxu0
      %1993 = vmatprep.mubr.bf16.mxu0 0
      %1994 = vmatmul.mubr.bf16.gmra.mrb[0].mxu0 %v1816
      %v1995 = vpop.f32.mrb[0].mxu0
      %v1996 = vadd.f32 %v1675, %v1995
      %v1997 = vpop.f32.mrb[0].mxu0
      %v1998 = vpop.f32.mrb[0].mxu0
      %v1999 = vadd.f32 %v1678, %v1998
      %v2000 = vpop.f32.mrb[0].mxu0
      %2001 = vmatprep.mubr.bf16.mxu0 0
      %2002 = vmatmul.mubr.bf16.gmra.mrb[0].mxu0 %v1817
      %v2003 = vpop.f32.mrb[0].mxu0
      %v2004 = vadd.f32 %v1683, %v2003
      %v2005 = vpop.f32.mrb[0].mxu0
      %v2006 = vpop.f32.mrb[0].mxu0
      %v2007 = vadd.f32 %v1686, %v2006
      %v2008 = vpop.f32.mrb[0].mxu0
      %2009 = vmatprep.mubr.bf16.mxu0 0
      %2010 = vmatmul.mubr.bf16.gmra.mrb[0].mxu0 %v1818
      %v2011 = vpop.f32.mrb[0].mxu0
      %v2012 = vadd.f32 %v1691, %v2011
      %v2013 = vpop.f32.mrb[0].mxu0
      %v2014 = vpop.f32.mrb[0].mxu0
      %v2015 = vadd.f32 %v1694, %v2014
      %v2016 = vpop.f32.mrb[0].mxu0
      %2017 = vmatprep.mubr.bf16.mxu0 0
      %2018 = vmatmul.mubr.bf16.gmra.mrb[0].mxu0 %v1819
      %v2019 = vpop.f32.mrb[0].mxu0
      %v2020 = vadd.f32 %v1699, %v2019
      %v2021 = vpop.f32.mrb[0].mxu0
      %v2022 = vpop.f32.mrb[0].mxu0
      %v2023 = vadd.f32 %v1702, %v2022
      %v2024 = vpop.f32.mrb[0].mxu0
      %2025 = vmatprep.mubr.bf16.mxu0 0
      %2026 = vmatmul.mubr.bf16.gmra.mrb[0].mxu0 %v1820
      %v2027 = vpop.f32.mrb[0].mxu0
      %v2028 = vadd.f32 %v1707, %v2027
      %v2029 = vpop.f32.mrb[0].mxu0
      %v2030 = vpop.f32.mrb[0].mxu0
      %v2031 = vadd.f32 %v1710, %v2030
      %v2032 = vpop.f32.mrb[0].mxu0
      %2033 = vmatprep.mubr.bf16.mxu0 0
      %2034 = vmatmul.mubr.bf16.gmra.mrb[0].mxu0 %v1821
      %v2035 = vpop.f32.mrb[0].mxu0
      %v2036 = vadd.f32 %v1715, %v2035
      %v2037 = vpop.f32.mrb[0].mxu0
      %v2038 = vpop.f32.mrb[0].mxu0
      %v2039 = vadd.f32 %v1718, %v2038
      %v2040 = vpop.f32.mrb[0].mxu0
      %2041 = vmatprep.mubr.bf16.mxu0 0
      %2042 = vmatmul.mubr.bf16.gmra.mrb[0].mxu0 %v1822
      %v2043 = vpop.f32.mrb[0].mxu0
      %v2044 = vadd.f32 %v1723, %v2043
      %v2045 = vpop.f32.mrb[0].mxu0
      %v2046 = vpop.f32.mrb[0].mxu0
      %v2047 = vadd.f32 %v1726, %v2046
      %v2048 = vpop.f32.mrb[0].mxu0
      %2049 = vmatprep.mubr.bf16.mxu0 0
      %2050 = vmatmul.mubr.bf16.gmra.mrb[0].mxu0 %v1823
      %v2051 = vpop.f32.mrb[0].mxu0
      %v2052 = vadd.f32 %v1731, %v2051
      %v2053 = vpop.f32.mrb[0].mxu0
      %v2054 = vpop.f32.mrb[0].mxu0
      %v2055 = vadd.f32 %v1734, %v2054
      %v2056 = vpop.f32.mrb[0].mxu0
      %2057 = vmatprep.mubr.bf16.mxu0 0
      %2058 = vmatmul.mubr.bf16.gmra.mrb[0].mxu0 %v1824
      %v2059 = vpop.f32.mrb[0].mxu0
      %v2060 = vadd.f32 %v1739, %v2059
      %v2061 = vpop.f32.mrb[0].mxu0
      %v2062 = vpop.f32.mrb[0].mxu0
      %v2063 = vadd.f32 %v1742, %v2062
      %v2064 = vpop.f32.mrb[0].mxu0
      %2065 = vmatprep.mubr.bf16.mxu0 0
      %2066 = vmatmul.mubr.bf16.gmra.mrb[0].mxu0 %v1825
      %v2067 = vpop.f32.mrb[0].mxu0
      %v2068 = vadd.f32 %v1747, %v2067
      %v2069 = vpop.f32.mrb[0].mxu0
      %v2070 = vpop.f32.mrb[0].mxu0
      %v2071 = vadd.f32 %v1750, %v2070
      %v2072 = vpop.f32.mrb[0].mxu0
      %2073 = vmatprep.mubr.bf16.mxu0 0
      %2074 = vmatmul.mubr.bf16.gmra.mrb[0].mxu0 %v1826
      %v2075 = vpop.f32.mrb[0].mxu0
      %v2076 = vadd.f32 %v1755, %v2075
      %v2077 = vpop.f32.mrb[0].mxu0
      %v2078 = vpop.f32.mrb[0].mxu0
      %v2079 = vadd.f32 %v1758, %v2078
      %v2080 = vpop.f32.mrb[0].mxu0
      %2081 = vmatprep.mubr.bf16.mxu0 0
      %2082 = vmatmul.mubr.bf16.gmra.mrb[0].mxu0 %v1827
      %v2083 = vpop.f32.mrb[0].mxu0
      %v2084 = vadd.f32 %v1763, %v2083
      %v2085 = vpop.f32.mrb[0].mxu0
      %v2086 = vpop.f32.mrb[0].mxu0
      %v2087 = vadd.f32 %v1766, %v2086
      %v2088 = vpop.f32.mrb[0].mxu0
      %2089 = vmatprep.mubr.bf16.mxu0 0
      %2090 = vmatmul.mubr.bf16.gmra.mrb[0].mxu0 %v1828
      %v2091 = vpop.f32.mrb[0].mxu0
      %v2092 = vadd.f32 %v1771, %v2091
      %v2093 = vpop.f32.mrb[0].mxu0
      %v2094 = vpop.f32.mrb[0].mxu0
      %v2095 = vadd.f32 %v1774, %v2094
      %v2096 = vpop.f32.mrb[0].mxu0
      %2097 = vmatprep.mubr.bf16.mxu0 0
      %2098 = vmatmul.mubr.bf16.gmra.mrb[0].mxu0 %v1829
      %v2099 = vpop.f32.mrb[0].mxu0
      %v2100 = vadd.f32 %v1779, %v2099
      %v2101 = vpop.f32.mrb[0].mxu0
      %v2102 = vpop.f32.mrb[0].mxu0
      %v2103 = vadd.f32 %v1782, %v2102
      %v2104 = vpop.f32.mrb[0].mxu0
      %2105 = vmatprep.mubr.bf16.mxu0 0
      %2106 = vmatmul.mubr.bf16.gmra.mrb[0].mxu0 %v1830
      %v2107 = vpop.f32.mrb[0].mxu0
      %v2108 = vadd.f32 %v1787, %v2107
      %v2109 = vpop.f32.mrb[0].mxu0
      %v2110 = vpop.f32.mrb[0].mxu0
      %v2111 = vadd.f32 %v1790, %v2110
      %v2112 = vpop.f32.mrb[0].mxu0
      %2113 = vmatprep.mubr.bf16.mxu0 0
      %2114 = vmatmul.mubr.bf16.gmra.mrb[0].mxu0 %v1831
      %v2115 = vpop.f32.mrb[0].mxu0
      %v2116 = vadd.f32 %v1795, %v2115
      %v2117 = vpop.f32.mrb[0].mxu0
      %v2118 = vpop.f32.mrb[0].mxu0
      %v2119 = vadd.f32 %v1798, %v2118
      %v2120 = vpop.f32.mrb[0].mxu0
      %2121 = vmatprep.mubr.bf16.mxu0 0
      %2122 = vmatmul.mubr.bf16.gmra.mrb[0].mxu0 %v1832
      %v2123 = vpop.f32.mrb[0].mxu0
      %v2124 = vadd.f32 %v1803, %v2123
      %v2125 = vpop.f32.mrb[0].mxu0
      %v2126 = vpop.f32.mrb[0].mxu0
      %v2127 = vadd.f32 %v1806, %v2126
      %v2128 = vpop.f32.mrb[0].mxu0
      %2129 = vdwg.mxu0
      %v2146 = vunpack.c.l.b16 %v1185
      %v2147 = vunpack.c.h.b16 %v1185
      %v2148 = vunpack.c.l.b16 %v1293
      %v2149 = vunpack.c.l.b16 %v1190
      %v2150 = vunpack.c.h.b16 %v1190
      %v2151 = vunpack.c.l.b16 %v1294
      %v2152 = vunpack.c.l.b16 %v1195
      %v2153 = vunpack.c.h.b16 %v1195
      %v2154 = vunpack.c.l.b16 %v1295
      %v2155 = vunpack.c.l.b16 %v1200
      %v2156 = vunpack.c.h.b16 %v1200
      %v2157 = vunpack.c.l.b16 %v1296
      %v2158 = vunpack.c.l.b16 %v1205
      %v2159 = vunpack.c.h.b16 %v1205
      %v2160 = vunpack.c.l.b16 %v1297
      %v2161 = vunpack.c.l.b16 %v1210
      %v2162 = vunpack.c.h.b16 %v1210
      %v2163 = vunpack.c.l.b16 %v1298
      %v2164 = vunpack.c.l.b16 %v1215
      %v2165 = vunpack.c.h.b16 %v1215
      %v2166 = vunpack.c.l.b16 %v1299
      %v2167 = vunpack.c.l.b16 %v1220
      %v2168 = vunpack.c.h.b16 %v1220
      %v2169 = vunpack.c.l.b16 %v1300
      %v2170 = vunpack.c.l.b16 %v1225
      %v2171 = vunpack.c.h.b16 %v1225
      %v2172 = vunpack.c.l.b16 %v1301
      %v2173 = vunpack.c.l.b16 %v1230
      %v2174 = vunpack.c.h.b16 %v1230
      %v2175 = vunpack.c.l.b16 %v1302
      %v2176 = vunpack.c.l.b16 %v1235
      %v2177 = vunpack.c.h.b16 %v1235
      %v2178 = vunpack.c.l.b16 %v1303
      %v2179 = vunpack.c.l.b16 %v1240
      %v2180 = vunpack.c.h.b16 %v1240
      %v2181 = vunpack.c.l.b16 %v1304
      %v2182 = vunpack.c.l.b16 %v1245
      %v2183 = vunpack.c.h.b16 %v1245
      %v2184 = vunpack.c.l.b16 %v1305
      %v2185 = vunpack.c.l.b16 %v1250
      %v2186 = vunpack.c.h.b16 %v1250
      %v2187 = vunpack.c.l.b16 %v1306
      %v2188 = vunpack.c.l.b16 %v1255
      %v2189 = vunpack.c.h.b16 %v1255
      %v2190 = vunpack.c.l.b16 %v1307
      %v2191 = vunpack.c.l.b16 %v1260
      %v2192 = vunpack.c.h.b16 %v1260
      %v2193 = vunpack.c.l.b16 %v1308
      %s2194 = scalar_lea.vmem %s5, 128
      %v2195 = vld [vmem:[%s2194] sm:$0xf]
      %v2196 = vld [vmem:[%s2194 + $0x4] sm:$0xf]
      %v2197 = vld [vmem:[%s2194 + $0x8] sm:$0xf]
      %v2198 = vld [vmem:[%s2194 + $0xc] sm:$0xf]
      %v2199 = vld [vmem:[%s2194 + $0x10] sm:$0xf]
      %v2200 = vld [vmem:[%s2194 + $0x14] sm:$0xf]
      %v2201 = vld [vmem:[%s2194 + $0x18] sm:$0xf]
      %v2202 = vld [vmem:[%s2194 + $0x1c] sm:$0xf]
      %v2203 = vld [vmem:[%s2194 + $0x20] sm:$0xf]
      %v2204 = vld [vmem:[%s2194 + $0x24] sm:$0xf]
      %v2205 = vld [vmem:[%s2194 + $0x28] sm:$0xf]
      %v2206 = vld [vmem:[%s2194 + $0x2c] sm:$0xf]
      %v2207 = vld [vmem:[%s2194 + $0x30] sm:$0xf]
      %v2208 = vld [vmem:[%s2194 + $0x34] sm:$0xf]
      %v2209 = vld [vmem:[%s2194 + $0x38] sm:$0xf]
      %v2210 = vld [vmem:[%s2194 + $0x3c] sm:$0xf]
      %v2211 = vpack.c.b16 %v2147, %v2146
      %v2212 = vpack.c.b16 %v2149, %v2148
      %v2213 = vpack.c.b16 %v2151, %v2150
      %v2214 = vpack.c.b16 %v2153, %v2152
      %v2215 = vpack.c.b16 %v2155, %v2154
      %v2216 = vpack.c.b16 %v2157, %v2156
      %v2217 = vpack.c.b16 %v2159, %v2158
      %v2218 = vpack.c.b16 %v2161, %v2160
      %v2219 = vpack.c.b16 %v2163, %v2162
      %v2220 = vpack.c.b16 %v2165, %v2164
      %v2221 = vpack.c.b16 %v2167, %v2166
      %v2222 = vpack.c.b16 %v2169, %v2168
      %v2223 = vpack.c.b16 %v2171, %v2170
      %v2224 = vpack.c.b16 %v2173, %v2172
      %v2225 = vpack.c.b16 %v2175, %v2174
      %v2226 = vpack.c.b16 %v2177, %v2176
      %v2227 = vpack.c.b16 %v2179, %v2178
      %v2228 = vpack.c.b16 %v2181, %v2180
      %v2229 = vpack.c.b16 %v2183, %v2182
      %v2230 = vpack.c.b16 %v2185, %v2184
      %v2231 = vpack.c.b16 %v2187, %v2186
      %v2232 = vpack.c.b16 %v2189, %v2188
      %v2233 = vpack.c.b16 %v2191, %v2190
      %v2234 = vpack.c.b16 %v2193, %v2192
      %v2275 = vunpack.c.l.b16 %v2195
      %v2276 = vunpack.c.l.b16 %v2196
      %v2277 = vunpack.c.l.b16 %v2197
      %v2278 = vunpack.c.l.b16 %v2198
      %v2279 = vunpack.c.l.b16 %v2199
      %v2280 = vunpack.c.l.b16 %v2200
      %v2281 = vunpack.c.l.b16 %v2201
      %v2282 = vunpack.c.l.b16 %v2202
      %v2283 = vunpack.c.l.b16 %v2203
      %v2284 = vunpack.c.l.b16 %v2204
      %v2285 = vunpack.c.l.b16 %v2205
      %v2286 = vunpack.c.l.b16 %v2206
      %v2287 = vunpack.c.l.b16 %v2207
      %v2288 = vunpack.c.l.b16 %v2208
      %v2289 = vunpack.c.l.b16 %v2209
      %v2290 = vunpack.c.l.b16 %v2210
      %v2291 = vpack.c.b16 %v2276, %v2275
      %v2292 = vpack.c.b16 %v2278, %v2277
      %v2293 = vpack.c.b16 %v2280, %v2279
      %v2294 = vpack.c.b16 %v2282, %v2281
      %v2295 = vpack.c.b16 %v2284, %v2283
      %v2296 = vpack.c.b16 %v2286, %v2285
      %v2297 = vpack.c.b16 %v2288, %v2287
      %v2298 = vpack.c.b16 %v2290, %v2289
      %2307 = vmatprep.subr.bf16.mxu0 0
      %2308 = vmatpush1.bf16.msra.mxu0 %v2291
      %2309 = vmatprep.subr.bf16.mxu0 0
      %2310 = vmatpush1.bf16.msra.mxu0 %v2292
      %2311 = vmatprep.subr.bf16.mxu0 0
      %2312 = vmatpush1.bf16.msra.mxu0 %v2293
      %2313 = vmatprep.subr.bf16.mxu0 0
      %2314 = vmatpush1.bf16.msra.mxu0 %v2294
      %2315 = vmatprep.subr.bf16.mxu0 0
      %2316 = vmatpush1.bf16.msra.mxu0 %v2295
      %2317 = vmatprep.subr.bf16.mxu0 0
      %2318 = vmatpush1.bf16.msra.mxu0 %v2296
      %2319 = vmatprep.subr.bf16.mxu0 0
      %2320 = vmatpush1.bf16.msra.mxu0 %v2297
      %2321 = vmatprep.subr.bf16.mxu0 0
      %2322 = vmatpush1.bf16.msra.mxu0 %v2298
      %2323 = vmatprep.subr.bf16.mxu0 0
      %2324 = vmatpush1.bf16.msra.mxu0 0
      %2325 = vmatprep.subr.bf16.mxu0 0
      %2326 = vmatpush1.bf16.msra.mxu0 0
      %2327 = vmatprep.subr.bf16.mxu0 0
      %2328 = vmatpush1.bf16.msra.mxu0 0
      %2329 = vmatprep.subr.bf16.mxu0 0
      %2330 = vmatpush1.bf16.msra.mxu0 0
      %2331 = vmatprep.subr.bf16.mxu0 0
      %2332 = vmatpush1.bf16.msra.mxu0 0
      %2333 = vmatprep.subr.bf16.mxu0 0
      %2334 = vmatpush1.bf16.msra.mxu0 0
      %2335 = vmatprep.subr.bf16.mxu0 0
      %2336 = vmatpush1.bf16.msra.mxu0 0
      %2337 = vmatprep.subr.bf16.mxu0 0
      %2338 = vmatpush1.bf16.msra.mxu0 0
      %2339 = vmatprep.mubr.bf16.mxu0 0
      %2340 = vmatmul.mubr.bf16.gmra.mrb[0].mxu0 %v2211
      %v2341 = vpop.f32.mrb[0].mxu0
      %v2342 = vadd.f32 0.0, %v2341
      %v2343 = vpop.f32.mrb[0].mxu0
      %v2344 = vpop.f32.mrb[0].mxu0
      %v2345 = vadd.f32 0.0, %v2344
      %v2346 = vpop.f32.mrb[0].mxu0
      %2347 = vmatprep.mubr.bf16.mxu0 0
      %2348 = vmatmul.mubr.bf16.gmra.mrb[0].mxu0 %v2212
      %v2349 = vpop.f32.mrb[0].mxu0
      %v2350 = vadd.f32 0.0, %v2349
      %v2351 = vpop.f32.mrb[0].mxu0
      %v2352 = vpop.f32.mrb[0].mxu0
      %v2353 = vadd.f32 0.0, %v2352
      %v2354 = vpop.f32.mrb[0].mxu0
      %2355 = vmatprep.mubr.bf16.mxu0 0
      %2356 = vmatmul.mubr.bf16.gmra.mrb[0].mxu0 %v2213
      %v2357 = vpop.f32.mrb[0].mxu0
      %v2358 = vadd.f32 0.0, %v2357
      %v2359 = vpop.f32.mrb[0].mxu0
      %v2360 = vpop.f32.mrb[0].mxu0
      %v2361 = vadd.f32 0.0, %v2360
      %v2362 = vpop.f32.mrb[0].mxu0
      %2363 = vmatprep.mubr.bf16.mxu0 0
      %2364 = vmatmul.mubr.bf16.gmra.mrb[0].mxu0 %v2214
      %v2365 = vpop.f32.mrb[0].mxu0
      %v2366 = vadd.f32 0.0, %v2365
      %v2367 = vpop.f32.mrb[0].mxu0
      %v2368 = vpop.f32.mrb[0].mxu0
      %v2369 = vadd.f32 0.0, %v2368
      %v2370 = vpop.f32.mrb[0].mxu0
      %2371 = vmatprep.mubr.bf16.mxu0 0
      %2372 = vmatmul.mubr.bf16.gmra.mrb[0].mxu0 %v2215
      %v2373 = vpop.f32.mrb[0].mxu0
      %v2374 = vadd.f32 0.0, %v2373
      %v2375 = vpop.f32.mrb[0].mxu0
      %v2376 = vpop.f32.mrb[0].mxu0
      %v2377 = vadd.f32 0.0, %v2376
      %v2378 = vpop.f32.mrb[0].mxu0
      %2379 = vmatprep.mubr.bf16.mxu0 0
      %2380 = vmatmul.mubr.bf16.gmra.mrb[0].mxu0 %v2216
      %v2381 = vpop.f32.mrb[0].mxu0
      %v2382 = vadd.f32 0.0, %v2381
      %v2383 = vpop.f32.mrb[0].mxu0
      %v2384 = vpop.f32.mrb[0].mxu0
      %v2385 = vadd.f32 0.0, %v2384
      %v2386 = vpop.f32.mrb[0].mxu0
      %2387 = vmatprep.mubr.bf16.mxu0 0
      %2388 = vmatmul.mubr.bf16.gmra.mrb[0].mxu0 %v2217
      %v2389 = vpop.f32.mrb[0].mxu0
      %v2390 = vadd.f32 0.0, %v2389
      %v2391 = vpop.f32.mrb[0].mxu0
      %v2392 = vpop.f32.mrb[0].mxu0
      %v2393 = vadd.f32 0.0, %v2392
      %v2394 = vpop.f32.mrb[0].mxu0
      %2395 = vmatprep.mubr.bf16.mxu0 0
      %2396 = vmatmul.mubr.bf16.gmra.mrb[0].mxu0 %v2218
      %v2397 = vpop.f32.mrb[0].mxu0
      %v2398 = vadd.f32 0.0, %v2397
      %v2399 = vpop.f32.mrb[0].mxu0
      %v2400 = vpop.f32.mrb[0].mxu0
      %v2401 = vadd.f32 0.0, %v2400
      %v2402 = vpop.f32.mrb[0].mxu0
      %2403 = vmatprep.mubr.bf16.mxu0 0
      %2404 = vmatmul.mubr.bf16.gmra.mrb[0].mxu0 %v2219
      %v2405 = vpop.f32.mrb[0].mxu0
      %v2406 = vadd.f32 0.0, %v2405
      %v2407 = vpop.f32.mrb[0].mxu0
      %v2408 = vpop.f32.mrb[0].mxu0
      %v2409 = vadd.f32 0.0, %v2408
      %v2410 = vpop.f32.mrb[0].mxu0
      %2411 = vmatprep.mubr.bf16.mxu0 0
      %2412 = vmatmul.mubr.bf16.gmra.mrb[0].mxu0 %v2220
      %v2413 = vpop.f32.mrb[0].mxu0
      %v2414 = vadd.f32 0.0, %v2413
      %v2415 = vpop.f32.mrb[0].mxu0
      %v2416 = vpop.f32.mrb[0].mxu0
      %v2417 = vadd.f32 0.0, %v2416
      %v2418 = vpop.f32.mrb[0].mxu0
      %2419 = vmatprep.mubr.bf16.mxu0 0
      %2420 = vmatmul.mubr.bf16.gmra.mrb[0].mxu0 %v2221
      %v2421 = vpop.f32.mrb[0].mxu0
      %v2422 = vadd.f32 0.0, %v2421
      %v2423 = vpop.f32.mrb[0].mxu0
      %v2424 = vpop.f32.mrb[0].mxu0
      %v2425 = vadd.f32 0.0, %v2424
      %v2426 = vpop.f32.mrb[0].mxu0
      %2427 = vmatprep.mubr.bf16.mxu0 0
      %2428 = vmatmul.mubr.bf16.gmra.mrb[0].mxu0 %v2222
      %v2429 = vpop.f32.mrb[0].mxu0
      %v2430 = vadd.f32 0.0, %v2429
      %v2431 = vpop.f32.mrb[0].mxu0
      %v2432 = vpop.f32.mrb[0].mxu0
      %v2433 = vadd.f32 0.0, %v2432
      %v2434 = vpop.f32.mrb[0].mxu0
      %2435 = vmatprep.mubr.bf16.mxu0 0
      %2436 = vmatmul.mubr.bf16.gmra.mrb[0].mxu0 %v2223
      %v2437 = vpop.f32.mrb[0].mxu0
      %v2438 = vadd.f32 0.0, %v2437
      %v2439 = vpop.f32.mrb[0].mxu0
      %v2440 = vpop.f32.mrb[0].mxu0
      %v2441 = vadd.f32 0.0, %v2440
      %v2442 = vpop.f32.mrb[0].mxu0
      %2443 = vmatprep.mubr.bf16.mxu0 0
      %2444 = vmatmul.mubr.bf16.gmra.mrb[0].mxu0 %v2224
      %v2445 = vpop.f32.mrb[0].mxu0
      %v2446 = vadd.f32 0.0, %v2445
      %v2447 = vpop.f32.mrb[0].mxu0
      %v2448 = vpop.f32.mrb[0].mxu0
      %v2449 = vadd.f32 0.0, %v2448
      %v2450 = vpop.f32.mrb[0].mxu0
      %2451 = vmatprep.mubr.bf16.mxu0 0
      %2452 = vmatmul.mubr.bf16.gmra.mrb[0].mxu0 %v2225
      %v2453 = vpop.f32.mrb[0].mxu0
      %v2454 = vadd.f32 0.0, %v2453
      %v2455 = vpop.f32.mrb[0].mxu0
      %v2456 = vpop.f32.mrb[0].mxu0
      %v2457 = vadd.f32 0.0, %v2456
      %v2458 = vpop.f32.mrb[0].mxu0
      %2459 = vmatprep.mubr.bf16.mxu0 0
      %2460 = vmatmul.mubr.bf16.gmra.mrb[0].mxu0 %v2226
      %v2461 = vpop.f32.mrb[0].mxu0
      %v2462 = vadd.f32 0.0, %v2461
      %v2463 = vpop.f32.mrb[0].mxu0
      %v2464 = vpop.f32.mrb[0].mxu0
      %v2465 = vadd.f32 0.0, %v2464
      %v2466 = vpop.f32.mrb[0].mxu0
      %2467 = vmatprep.mubr.bf16.mxu0 0
      %2468 = vmatmul.mubr.bf16.gmra.mrb[0].mxu0 %v2227
      %v2469 = vpop.f32.mrb[0].mxu0
      %v2470 = vadd.f32 0.0, %v2469
      %v2471 = vpop.f32.mrb[0].mxu0
      %v2472 = vpop.f32.mrb[0].mxu0
      %v2473 = vadd.f32 0.0, %v2472
      %v2474 = vpop.f32.mrb[0].mxu0
      %2475 = vmatprep.mubr.bf16.mxu0 0
      %2476 = vmatmul.mubr.bf16.gmra.mrb[0].mxu0 %v2228
      %v2477 = vpop.f32.mrb[0].mxu0
      %v2478 = vadd.f32 0.0, %v2477
      %v2479 = vpop.f32.mrb[0].mxu0
      %v2480 = vpop.f32.mrb[0].mxu0
      %v2481 = vadd.f32 0.0, %v2480
      %v2482 = vpop.f32.mrb[0].mxu0
      %2483 = vmatprep.mubr.bf16.mxu0 0
      %2484 = vmatmul.mubr.bf16.gmra.mrb[0].mxu0 %v2229
      %v2485 = vpop.f32.mrb[0].mxu0
      %v2486 = vadd.f32 0.0, %v2485
      %v2487 = vpop.f32.mrb[0].mxu0
      %v2488 = vpop.f32.mrb[0].mxu0
      %v2489 = vadd.f32 0.0, %v2488
      %v2490 = vpop.f32.mrb[0].mxu0
      %2491 = vmatprep.mubr.bf16.mxu0 0
      %2492 = vmatmul.mubr.bf16.gmra.mrb[0].mxu0 %v2230
      %v2493 = vpop.f32.mrb[0].mxu0
      %v2494 = vadd.f32 0.0, %v2493
      %v2495 = vpop.f32.mrb[0].mxu0
      %v2496 = vpop.f32.mrb[0].mxu0
      %v2497 = vadd.f32 0.0, %v2496
      %v2498 = vpop.f32.mrb[0].mxu0
      %2499 = vmatprep.mubr.bf16.mxu0 0
      %2500 = vmatmul.mubr.bf16.gmra.mrb[0].mxu0 %v2231
      %v2501 = vpop.f32.mrb[0].mxu0
      %v2502 = vadd.f32 0.0, %v2501
      %v2503 = vpop.f32.mrb[0].mxu0
      %v2504 = vpop.f32.mrb[0].mxu0
      %v2505 = vadd.f32 0.0, %v2504
      %v2506 = vpop.f32.mrb[0].mxu0
      %2507 = vmatprep.mubr.bf16.mxu0 0
      %2508 = vmatmul.mubr.bf16.gmra.mrb[0].mxu0 %v2232
      %v2509 = vpop.f32.mrb[0].mxu0
      %v2510 = vadd.f32 0.0, %v2509
      %v2511 = vpop.f32.mrb[0].mxu0
      %v2512 = vpop.f32.mrb[0].mxu0
      %v2513 = vadd.f32 0.0, %v2512
      %v2514 = vpop.f32.mrb[0].mxu0
      %2515 = vmatprep.mubr.bf16.mxu0 0
      %2516 = vmatmul.mubr.bf16.gmra.mrb[0].mxu0 %v2233
      %v2517 = vpop.f32.mrb[0].mxu0
      %v2518 = vadd.f32 0.0, %v2517
      %v2519 = vpop.f32.mrb[0].mxu0
      %v2520 = vpop.f32.mrb[0].mxu0
      %v2521 = vadd.f32 0.0, %v2520
      %v2522 = vpop.f32.mrb[0].mxu0
      %2523 = vmatprep.mubr.bf16.mxu0 0
      %2524 = vmatmul.mubr.bf16.gmra.mrb[0].mxu0 %v2234
      %v2525 = vpop.f32.mrb[0].mxu0
      %v2526 = vadd.f32 0.0, %v2525
      %v2527 = vpop.f32.mrb[0].mxu0
      %v2528 = vpop.f32.mrb[0].mxu0
      %v2529 = vadd.f32 0.0, %v2528
      %v2530 = vpop.f32.mrb[0].mxu0
      %2531 = vdwg.mxu0
      %v2532 = vadd.f32 %v1940, %v2342
      %v2533 = vadd.f32 %v1943, %v2345
      %v2534 = vadd.f32 %v1948, %v2350
      %v2535 = vadd.f32 %v1951, %v2353
      %v2536 = vadd.f32 %v1956, %v2358
      %v2537 = vadd.f32 %v1959, %v2361
      %v2538 = vadd.f32 %v1964, %v2366
      %v2539 = vadd.f32 %v1967, %v2369
      %v2540 = vadd.f32 %v1972, %v2374
      %v2541 = vadd.f32 %v1975, %v2377
      %v2542 = vadd.f32 %v1980, %v2382
      %v2543 = vadd.f32 %v1983, %v2385
      %v2544 = vadd.f32 %v1988, %v2390
      %v2545 = vadd.f32 %v1991, %v2393
      %v2546 = vadd.f32 %v1996, %v2398
      %v2547 = vadd.f32 %v1999, %v2401
      %v2548 = vadd.f32 %v2004, %v2406
      %v2549 = vadd.f32 %v2007, %v2409
      %v2550 = vadd.f32 %v2012, %v2414
      %v2551 = vadd.f32 %v2015, %v2417
      %v2552 = vadd.f32 %v2020, %v2422
      %v2553 = vadd.f32 %v2023, %v2425
      %v2554 = vadd.f32 %v2028, %v2430
      %v2555 = vadd.f32 %v2031, %v2433
      %v2556 = vadd.f32 %v2036, %v2438
      %v2557 = vadd.f32 %v2039, %v2441
      %v2558 = vadd.f32 %v2044, %v2446
      %v2559 = vadd.f32 %v2047, %v2449
      %v2560 = vadd.f32 %v2052, %v2454
      %v2561 = vadd.f32 %v2055, %v2457
      %v2562 = vadd.f32 %v2060, %v2462
      %v2563 = vadd.f32 %v2063, %v2465
      %v2564 = vadd.f32 %v2068, %v2470
      %v2565 = vadd.f32 %v2071, %v2473
      %v2566 = vadd.f32 %v2076, %v2478
      %v2567 = vadd.f32 %v2079, %v2481
      %v2568 = vadd.f32 %v2084, %v2486
      %v2569 = vadd.f32 %v2087, %v2489
      %v2570 = vadd.f32 %v2092, %v2494
      %v2571 = vadd.f32 %v2095, %v2497
      %v2572 = vadd.f32 %v2100, %v2502
      %v2573 = vadd.f32 %v2103, %v2505
      %v2574 = vadd.f32 %v2108, %v2510
      %v2575 = vadd.f32 %v2111, %v2513
      %v2576 = vadd.f32 %v2116, %v2518
      %v2577 = vadd.f32 %v2119, %v2521
      %v2578 = vadd.f32 %v2124, %v2526
      %v2579 = vadd.f32 %v2127, %v2529
      %v2581 = vunpack.c.l.b16 %v1179
      %v2582 = vunpack.c.h.b16 %v1179
      %v2583 = vunpack.c.l.b16 %v1127
      %s2584 = scalar_lea.vmem %s5, 192
      %v2585 = vld [vmem:[%s2584] sm:$0xf]
      %v2586 = vld [vmem:[%s2584 + $0x4] sm:$0xf]
      %v2587 = vld [vmem:[%s2584 + $0x8] sm:$0xf]
      %v2588 = vld [vmem:[%s2584 + $0xc] sm:$0xf]
      %v2589 = vld [vmem:[%s2584 + $0x10] sm:$0xf]
      %v2590 = vld [vmem:[%s2584 + $0x14] sm:$0xf]
      %v2591 = vld [vmem:[%s2584 + $0x18] sm:$0xf]
      %v2592 = vld [vmem:[%s2584 + $0x1c] sm:$0xf]
      %v2593 = vld [vmem:[%s2584 + $0x20] sm:$0xf]
      %v2594 = vld [vmem:[%s2584 + $0x24] sm:$0xf]
      %v2595 = vld [vmem:[%s2584 + $0x28] sm:$0xf]
      %v2596 = vld [vmem:[%s2584 + $0x2c] sm:$0xf]
      %v2597 = vld [vmem:[%s2584 + $0x30] sm:$0xf]
      %v2598 = vld [vmem:[%s2584 + $0x34] sm:$0xf]
      %v2599 = vld [vmem:[%s2584 + $0x38] sm:$0xf]
      %v2600 = vld [vmem:[%s2584 + $0x3c] sm:$0xf]
      %v2601 = vpack.c.b16 %v1331, %v1330
      %v2602 = vpack.c.b16 %v1333, %v1332
      %v2603 = vpack.c.b16 %v1335, %v1334
      %v2604 = vpack.c.b16 %v1337, %v1336
      %v2605 = vpack.c.b16 %v1339, %v1338
      %v2606 = vpack.c.b16 %v1341, %v1340
      %v2607 = vpack.c.b16 %v1343, %v1342
      %v2608 = vpack.c.b16 %v1345, %v1344
      %v2609 = vpack.c.b16 %v1347, %v1346
      %v2610 = vpack.c.b16 %v1349, %v1348
      %v2611 = vpack.c.b16 %v1351, %v1350
      %v2612 = vpack.c.b16 %v1353, %v1352
      %v2613 = vpack.c.b16 %v1355, %v1354
      %v2614 = vpack.c.b16 %v1357, %v1356
      %v2615 = vpack.c.b16 %v1359, %v1358
      %v2616 = vpack.c.b16 %v1361, %v1360
      %v2617 = vpack.c.b16 %v1363, %v1362
      %v2618 = vpack.c.b16 %v1365, %v1364
      %v2619 = vpack.c.b16 %v1367, %v1366
      %v2620 = vpack.c.b16 %v1369, %v1368
      %v2621 = vpack.c.b16 %v1371, %v1370
      %v2622 = vpack.c.b16 %v1373, %v1372
      %v2623 = vpack.c.b16 %v2581, %v1374
      %v2624 = vpack.c.b16 %v2583, %v2582
      %v2665 = vunpack.c.l.b16 %v2585
      %v2666 = vunpack.c.l.b16 %v2586
      %v2667 = vunpack.c.l.b16 %v2587
      %v2668 = vunpack.c.l.b16 %v2588
      %v2669 = vunpack.c.l.b16 %v2589
      %v2670 = vunpack.c.l.b16 %v2590
      %v2671 = vunpack.c.l.b16 %v2591
      %v2672 = vunpack.c.l.b16 %v2592
      %v2673 = vunpack.c.l.b16 %v2593
      %v2674 = vunpack.c.l.b16 %v2594
      %v2675 = vunpack.c.l.b16 %v2595
      %v2676 = vunpack.c.l.b16 %v2596
      %v2677 = vunpack.c.l.b16 %v2597
      %v2678 = vunpack.c.l.b16 %v2598
      %v2679 = vunpack.c.l.b16 %v2599
      %v2680 = vunpack.c.l.b16 %v2600
      %v2681 = vpack.c.b16 %v2666, %v2665
      %v2682 = vpack.c.b16 %v2668, %v2667
      %v2683 = vpack.c.b16 %v2670, %v2669
      %v2684 = vpack.c.b16 %v2672, %v2671
      %v2685 = vpack.c.b16 %v2674, %v2673
      %v2686 = vpack.c.b16 %v2676, %v2675
      %v2687 = vpack.c.b16 %v2678, %v2677
      %v2688 = vpack.c.b16 %v2680, %v2679
      %2697 = vmatprep.subr.bf16.mxu0 0
      %2698 = vmatpush1.bf16.msra.mxu0 %v2681
      %2699 = vmatprep.subr.bf16.mxu0 0
      %2700 = vmatpush1.bf16.msra.mxu0 %v2682
      %2701 = vmatprep.subr.bf16.mxu0 0
      %2702 = vmatpush1.bf16.msra.mxu0 %v2683
      %2703 = vmatprep.subr.bf16.mxu0 0
      %2704 = vmatpush1.bf16.msra.mxu0 %v2684
      %2705 = vmatprep.subr.bf16.mxu0 0
      %2706 = vmatpush1.bf16.msra.mxu0 %v2685
      %2707 = vmatprep.subr.bf16.mxu0 0
      %2708 = vmatpush1.bf16.msra.mxu0 %v2686
      %2709 = vmatprep.subr.bf16.mxu0 0
      %2710 = vmatpush1.bf16.msra.mxu0 %v2687
      %2711 = vmatprep.subr.bf16.mxu0 0
      %2712 = vmatpush1.bf16.msra.mxu0 %v2688
      %2713 = vmatprep.subr.bf16.mxu0 0
      %2714 = vmatpush1.bf16.msra.mxu0 0
      %2715 = vmatprep.subr.bf16.mxu0 0
      %2716 = vmatpush1.bf16.msra.mxu0 0
      %2717 = vmatprep.subr.bf16.mxu0 0
      %2718 = vmatpush1.bf16.msra.mxu0 0
      %2719 = vmatprep.subr.bf16.mxu0 0
      %2720 = vmatpush1.bf16.msra.mxu0 0
      %2721 = vmatprep.subr.bf16.mxu0 0
      %2722 = vmatpush1.bf16.msra.mxu0 0
      %2723 = vmatprep.subr.bf16.mxu0 0
      %2724 = vmatpush1.bf16.msra.mxu0 0
      %2725 = vmatprep.subr.bf16.mxu0 0
      %2726 = vmatpush1.bf16.msra.mxu0 0
      %2727 = vmatprep.subr.bf16.mxu0 0
      %2728 = vmatpush1.bf16.msra.mxu0 0
      %2729 = vmatprep.mubr.bf16.mxu0 0
      %2730 = vmatmul.mubr.bf16.gmra.mrb[0].mxu0 %v2601
      %v2731 = vpop.f32.mrb[0].mxu0
      %v2732 = vadd.f32 0.0, %v2731
      %v2733 = vpop.f32.mrb[0].mxu0
      %v2734 = vpop.f32.mrb[0].mxu0
      %v2735 = vadd.f32 0.0, %v2734
      %v2736 = vpop.f32.mrb[0].mxu0
      %2737 = vmatprep.mubr.bf16.mxu0 0
      %2738 = vmatmul.mubr.bf16.gmra.mrb[0].mxu0 %v2602
      %v2739 = vpop.f32.mrb[0].mxu0
      %v2740 = vadd.f32 0.0, %v2739
      %v2741 = vpop.f32.mrb[0].mxu0
      %v2742 = vpop.f32.mrb[0].mxu0
      %v2743 = vadd.f32 0.0, %v2742
      %v2744 = vpop.f32.mrb[0].mxu0
      %2745 = vmatprep.mubr.bf16.mxu0 0
      %2746 = vmatmul.mubr.bf16.gmra.mrb[0].mxu0 %v2603
      %v2747 = vpop.f32.mrb[0].mxu0
      %v2748 = vadd.f32 0.0, %v2747
      %v2749 = vpop.f32.mrb[0].mxu0
      %v2750 = vpop.f32.mrb[0].mxu0
      %v2751 = vadd.f32 0.0, %v2750
      %v2752 = vpop.f32.mrb[0].mxu0
      %2753 = vmatprep.mubr.bf16.mxu0 0
      %2754 = vmatmul.mubr.bf16.gmra.mrb[0].mxu0 %v2604
      %v2755 = vpop.f32.mrb[0].mxu0
      %v2756 = vadd.f32 0.0, %v2755
      %v2757 = vpop.f32.mrb[0].mxu0
      %v2758 = vpop.f32.mrb[0].mxu0
      %v2759 = vadd.f32 0.0, %v2758
      %v2760 = vpop.f32.mrb[0].mxu0
      %2761 = vmatprep.mubr.bf16.mxu0 0
      %2762 = vmatmul.mubr.bf16.gmra.mrb[0].mxu0 %v2605
      %v2763 = vpop.f32.mrb[0].mxu0
      %v2764 = vadd.f32 0.0, %v2763
      %v2765 = vpop.f32.mrb[0].mxu0
      %v2766 = vpop.f32.mrb[0].mxu0
      %v2767 = vadd.f32 0.0, %v2766
      %v2768 = vpop.f32.mrb[0].mxu0
      %2769 = vmatprep.mubr.bf16.mxu0 0
      %2770 = vmatmul.mubr.bf16.gmra.mrb[0].mxu0 %v2606
      %v2771 = vpop.f32.mrb[0].mxu0
      %v2772 = vadd.f32 0.0, %v2771
      %v2773 = vpop.f32.mrb[0].mxu0
      %v2774 = vpop.f32.mrb[0].mxu0
      %v2775 = vadd.f32 0.0, %v2774
      %v2776 = vpop.f32.mrb[0].mxu0
      %2777 = vmatprep.mubr.bf16.mxu0 0
      %2778 = vmatmul.mubr.bf16.gmra.mrb[0].mxu0 %v2607
      %v2779 = vpop.f32.mrb[0].mxu0
      %v2780 = vadd.f32 0.0, %v2779
      %v2781 = vpop.f32.mrb[0].mxu0
      %v2782 = vpop.f32.mrb[0].mxu0
      %v2783 = vadd.f32 0.0, %v2782
      %v2784 = vpop.f32.mrb[0].mxu0
      %2785 = vmatprep.mubr.bf16.mxu0 0
      %2786 = vmatmul.mubr.bf16.gmra.mrb[0].mxu0 %v2608
      %v2787 = vpop.f32.mrb[0].mxu0
      %v2788 = vadd.f32 0.0, %v2787
      %v2789 = vpop.f32.mrb[0].mxu0
      %v2790 = vpop.f32.mrb[0].mxu0
      %v2791 = vadd.f32 0.0, %v2790
      %v2792 = vpop.f32.mrb[0].mxu0
      %2793 = vmatprep.mubr.bf16.mxu0 0
      %2794 = vmatmul.mubr.bf16.gmra.mrb[0].mxu0 %v2609
      %v2795 = vpop.f32.mrb[0].mxu0
      %v2796 = vadd.f32 0.0, %v2795
      %v2797 = vpop.f32.mrb[0].mxu0
      %v2798 = vpop.f32.mrb[0].mxu0
      %v2799 = vadd.f32 0.0, %v2798
      %v2800 = vpop.f32.mrb[0].mxu0
      %2801 = vmatprep.mubr.bf16.mxu0 0
      %2802 = vmatmul.mubr.bf16.gmra.mrb[0].mxu0 %v2610
      %v2803 = vpop.f32.mrb[0].mxu0
      %v2804 = vadd.f32 0.0, %v2803
      %v2805 = vpop.f32.mrb[0].mxu0
      %v2806 = vpop.f32.mrb[0].mxu0
      %v2807 = vadd.f32 0.0, %v2806
      %v2808 = vpop.f32.mrb[0].mxu0
      %2809 = vmatprep.mubr.bf16.mxu0 0
      %2810 = vmatmul.mubr.bf16.gmra.mrb[0].mxu0 %v2611
      %v2811 = vpop.f32.mrb[0].mxu0
      %v2812 = vadd.f32 0.0, %v2811
      %v2813 = vpop.f32.mrb[0].mxu0
      %v2814 = vpop.f32.mrb[0].mxu0
      %v2815 = vadd.f32 0.0, %v2814
      %v2816 = vpop.f32.mrb[0].mxu0
      %2817 = vmatprep.mubr.bf16.mxu0 0
      %2818 = vmatmul.mubr.bf16.gmra.mrb[0].mxu0 %v2612
      %v2819 = vpop.f32.mrb[0].mxu0
      %v2820 = vadd.f32 0.0, %v2819
      %v2821 = vpop.f32.mrb[0].mxu0
      %v2822 = vpop.f32.mrb[0].mxu0
      %v2823 = vadd.f32 0.0, %v2822
      %v2824 = vpop.f32.mrb[0].mxu0
      %2825 = vmatprep.mubr.bf16.mxu0 0
      %2826 = vmatmul.mubr.bf16.gmra.mrb[0].mxu0 %v2613
      %v2827 = vpop.f32.mrb[0].mxu0
      %v2828 = vadd.f32 0.0, %v2827
      %v2829 = vpop.f32.mrb[0].mxu0
      %v2830 = vpop.f32.mrb[0].mxu0
      %v2831 = vadd.f32 0.0, %v2830
      %v2832 = vpop.f32.mrb[0].mxu0
      %2833 = vmatprep.mubr.bf16.mxu0 0
      %2834 = vmatmul.mubr.bf16.gmra.mrb[0].mxu0 %v2614
      %v2835 = vpop.f32.mrb[0].mxu0
      %v2836 = vadd.f32 0.0, %v2835
      %v2837 = vpop.f32.mrb[0].mxu0
      %v2838 = vpop.f32.mrb[0].mxu0
      %v2839 = vadd.f32 0.0, %v2838
      %v2840 = vpop.f32.mrb[0].mxu0
      %2841 = vmatprep.mubr.bf16.mxu0 0
      %2842 = vmatmul.mubr.bf16.gmra.mrb[0].mxu0 %v2615
      %v2843 = vpop.f32.mrb[0].mxu0
      %v2844 = vadd.f32 0.0, %v2843
      %v2845 = vpop.f32.mrb[0].mxu0
      %v2846 = vpop.f32.mrb[0].mxu0
      %v2847 = vadd.f32 0.0, %v2846
      %v2848 = vpop.f32.mrb[0].mxu0
      %2849 = vmatprep.mubr.bf16.mxu0 0
      %2850 = vmatmul.mubr.bf16.gmra.mrb[0].mxu0 %v2616
      %v2851 = vpop.f32.mrb[0].mxu0
      %v2852 = vadd.f32 0.0, %v2851
      %v2853 = vpop.f32.mrb[0].mxu0
      %v2854 = vpop.f32.mrb[0].mxu0
      %v2855 = vadd.f32 0.0, %v2854
      %v2856 = vpop.f32.mrb[0].mxu0
      %2857 = vmatprep.mubr.bf16.mxu0 0
      %2858 = vmatmul.mubr.bf16.gmra.mrb[0].mxu0 %v2617
      %v2859 = vpop.f32.mrb[0].mxu0
      %v2860 = vadd.f32 0.0, %v2859
      %v2861 = vpop.f32.mrb[0].mxu0
      %v2862 = vpop.f32.mrb[0].mxu0
      %v2863 = vadd.f32 0.0, %v2862
      %v2864 = vpop.f32.mrb[0].mxu0
      %2865 = vmatprep.mubr.bf16.mxu0 0
      %2866 = vmatmul.mubr.bf16.gmra.mrb[0].mxu0 %v2618
      %v2867 = vpop.f32.mrb[0].mxu0
      %v2868 = vadd.f32 0.0, %v2867
      %v2869 = vpop.f32.mrb[0].mxu0
      %v2870 = vpop.f32.mrb[0].mxu0
      %v2871 = vadd.f32 0.0, %v2870
      %v2872 = vpop.f32.mrb[0].mxu0
      %2873 = vmatprep.mubr.bf16.mxu0 0
      %2874 = vmatmul.mubr.bf16.gmra.mrb[0].mxu0 %v2619
      %v2875 = vpop.f32.mrb[0].mxu0
      %v2876 = vadd.f32 0.0, %v2875
      %v2877 = vpop.f32.mrb[0].mxu0
      %v2878 = vpop.f32.mrb[0].mxu0
      %v2879 = vadd.f32 0.0, %v2878
      %v2880 = vpop.f32.mrb[0].mxu0
      %2881 = vmatprep.mubr.bf16.mxu0 0
      %2882 = vmatmul.mubr.bf16.gmra.mrb[0].mxu0 %v2620
      %v2883 = vpop.f32.mrb[0].mxu0
      %v2884 = vadd.f32 0.0, %v2883
      %v2885 = vpop.f32.mrb[0].mxu0
      %v2886 = vpop.f32.mrb[0].mxu0
      %v2887 = vadd.f32 0.0, %v2886
      %v2888 = vpop.f32.mrb[0].mxu0
      %2889 = vmatprep.mubr.bf16.mxu0 0
      %2890 = vmatmul.mubr.bf16.gmra.mrb[0].mxu0 %v2621
      %v2891 = vpop.f32.mrb[0].mxu0
      %v2892 = vadd.f32 0.0, %v2891
      %v2893 = vpop.f32.mrb[0].mxu0
      %v2894 = vpop.f32.mrb[0].mxu0
      %v2895 = vadd.f32 0.0, %v2894
      %v2896 = vpop.f32.mrb[0].mxu0
      %2897 = vmatprep.mubr.bf16.mxu0 0
      %2898 = vmatmul.mubr.bf16.gmra.mrb[0].mxu0 %v2622
      %v2899 = vpop.f32.mrb[0].mxu0
      %v2900 = vadd.f32 0.0, %v2899
      %v2901 = vpop.f32.mrb[0].mxu0
      %v2902 = vpop.f32.mrb[0].mxu0
      %v2903 = vadd.f32 0.0, %v2902
      %v2904 = vpop.f32.mrb[0].mxu0
      %2905 = vmatprep.mubr.bf16.mxu0 0
      %2906 = vmatmul.mubr.bf16.gmra.mrb[0].mxu0 %v2623
      %v2907 = vpop.f32.mrb[0].mxu0
      %v2908 = vadd.f32 0.0, %v2907
      %v2909 = vpop.f32.mrb[0].mxu0
      %v2910 = vpop.f32.mrb[0].mxu0
      %v2911 = vadd.f32 0.0, %v2910
      %v2912 = vpop.f32.mrb[0].mxu0
      %2913 = vmatprep.mubr.bf16.mxu0 0
      %2914 = vmatmul.mubr.bf16.gmra.mrb[0].mxu0 %v2624
      %v2915 = vpop.f32.mrb[0].mxu0
      %v2916 = vadd.f32 0.0, %v2915
      %v2917 = vpop.f32.mrb[0].mxu0
      %v2918 = vpop.f32.mrb[0].mxu0
      %v2919 = vadd.f32 0.0, %v2918
      %v2920 = vpop.f32.mrb[0].mxu0
      %2921 = vdwg.mxu0
      %v2922 = vadd.f32 %v2532, %v2732
      %v2923 = vadd.f32 %v2533, %v2735
      %v2924 = vadd.f32 %v2534, %v2740
      %v2925 = vadd.f32 %v2535, %v2743
      %v2926 = vadd.f32 %v2536, %v2748
      %v2927 = vadd.f32 %v2537, %v2751
      %v2928 = vadd.f32 %v2538, %v2756
      %v2929 = vadd.f32 %v2539, %v2759
      %v2930 = vadd.f32 %v2540, %v2764
      %v2931 = vadd.f32 %v2541, %v2767
      %v2932 = vadd.f32 %v2542, %v2772
      %v2933 = vadd.f32 %v2543, %v2775
      %v2934 = vadd.f32 %v2544, %v2780
      %v2935 = vadd.f32 %v2545, %v2783
      %v2936 = vadd.f32 %v2546, %v2788
      %v2937 = vadd.f32 %v2547, %v2791
      %v2938 = vadd.f32 %v2548, %v2796
      %v2939 = vadd.f32 %v2549, %v2799
      %v2940 = vadd.f32 %v2550, %v2804
      %v2941 = vadd.f32 %v2551, %v2807
      %v2942 = vadd.f32 %v2552, %v2812
      %v2943 = vadd.f32 %v2553, %v2815
      %v2944 = vadd.f32 %v2554, %v2820
      %v2945 = vadd.f32 %v2555, %v2823
      %v2946 = vadd.f32 %v2556, %v2828
      %v2947 = vadd.f32 %v2557, %v2831
      %v2948 = vadd.f32 %v2558, %v2836
      %v2949 = vadd.f32 %v2559, %v2839
      %v2950 = vadd.f32 %v2560, %v2844
      %v2951 = vadd.f32 %v2561, %v2847
      %v2952 = vadd.f32 %v2562, %v2852
      %v2953 = vadd.f32 %v2563, %v2855
      %v2954 = vadd.f32 %v2564, %v2860
      %v2955 = vadd.f32 %v2565, %v2863
      %v2956 = vadd.f32 %v2566, %v2868
      %v2957 = vadd.f32 %v2567, %v2871
      %v2958 = vadd.f32 %v2568, %v2876
      %v2959 = vadd.f32 %v2569, %v2879
      %v2960 = vadd.f32 %v2570, %v2884
      %v2961 = vadd.f32 %v2571, %v2887
      %v2962 = vadd.f32 %v2572, %v2892
      %v2963 = vadd.f32 %v2573, %v2895
      %v2964 = vadd.f32 %v2574, %v2900
      %v2965 = vadd.f32 %v2575, %v2903
      %v2966 = vadd.f32 %v2576, %v2908
      %v2967 = vadd.f32 %v2577, %v2911
      %v2968 = vadd.f32 %v2578, %v2916
      %v2969 = vadd.f32 %v2579, %v2919
      %v2972 = vunpack.c.l.b16 %v824
      %v2973 = vunpack.c.h.b16 %v824
      %v2974 = vunpack.c.l.b16 %v825
      %s2975 = scalar_lea.vmem %s5, 256
      %v2976 = vld [vmem:[%s2975] sm:$0xf]
      %v2977 = vld [vmem:[%s2975 + $0x4] sm:$0xf]
      %v2978 = vld [vmem:[%s2975 + $0x8] sm:$0xf]
      %v2979 = vld [vmem:[%s2975 + $0xc] sm:$0xf]
      %v2980 = vld [vmem:[%s2975 + $0x10] sm:$0xf]
      %v2981 = vld [vmem:[%s2975 + $0x14] sm:$0xf]
      %v2982 = vld [vmem:[%s2975 + $0x18] sm:$0xf]
      %v2983 = vld [vmem:[%s2975 + $0x1c] sm:$0xf]
      %v2984 = vld [vmem:[%s2975 + $0x20] sm:$0xf]
      %v2985 = vld [vmem:[%s2975 + $0x24] sm:$0xf]
      %v2986 = vld [vmem:[%s2975 + $0x28] sm:$0xf]
      %v2987 = vld [vmem:[%s2975 + $0x2c] sm:$0xf]
      %v2988 = vld [vmem:[%s2975 + $0x30] sm:$0xf]
      %v2989 = vld [vmem:[%s2975 + $0x34] sm:$0xf]
      %v2990 = vld [vmem:[%s2975 + $0x38] sm:$0xf]
      %v2991 = vld [vmem:[%s2975 + $0x3c] sm:$0xf]
      %v2992 = vpack.c.b16 %v1427, %v1426
      %v2993 = vpack.c.b16 %v1429, %v1428
      %v2994 = vpack.c.b16 %v1431, %v1430
      %v2995 = vpack.c.b16 %v1433, %v1432
      %v2996 = vpack.c.b16 %v1435, %v1434
      %v2997 = vpack.c.b16 %v1437, %v1436
      %v2998 = vpack.c.b16 %v1439, %v1438
      %v2999 = vpack.c.b16 %v1441, %v1440
      %v3000 = vpack.c.b16 %v1443, %v1442
      %v3001 = vpack.c.b16 %v1445, %v1444
      %v3002 = vpack.c.b16 %v1447, %v1446
      %v3003 = vpack.c.b16 %v1449, %v1448
      %v3004 = vpack.c.b16 %v1451, %v1450
      %v3005 = vpack.c.b16 %v1453, %v1452
      %v3006 = vpack.c.b16 %v1455, %v1454
      %v3007 = vpack.c.b16 %v1457, %v1456
      %v3008 = vpack.c.b16 %v1459, %v1458
      %v3009 = vpack.c.b16 %v1461, %v1460
      %v3010 = vpack.c.b16 %v1463, %v1462
      %v3011 = vpack.c.b16 %v1465, %v1464
      %v3012 = vpack.c.b16 %v1467, %v1466
      %v3013 = vpack.c.b16 %v1469, %v1468
      %v3014 = vpack.c.b16 %v2972, %v1470
      %v3015 = vpack.c.b16 %v2974, %v2973
      %v3056 = vunpack.c.l.b16 %v2976
      %v3057 = vunpack.c.l.b16 %v2977
      %v3058 = vunpack.c.l.b16 %v2978
      %v3059 = vunpack.c.l.b16 %v2979
      %v3060 = vunpack.c.l.b16 %v2980
      %v3061 = vunpack.c.l.b16 %v2981
      %v3062 = vunpack.c.l.b16 %v2982
      %v3063 = vunpack.c.l.b16 %v2983
      %v3064 = vunpack.c.l.b16 %v2984
      %v3065 = vunpack.c.l.b16 %v2985
      %v3066 = vunpack.c.l.b16 %v2986
      %v3067 = vunpack.c.l.b16 %v2987
      %v3068 = vunpack.c.l.b16 %v2988
      %v3069 = vunpack.c.l.b16 %v2989
      %v3070 = vunpack.c.l.b16 %v2990
      %v3071 = vunpack.c.l.b16 %v2991
      %v3072 = vpack.c.b16 %v3057, %v3056
      %v3073 = vpack.c.b16 %v3059, %v3058
      %v3074 = vpack.c.b16 %v3061, %v3060
      %v3075 = vpack.c.b16 %v3063, %v3062
      %v3076 = vpack.c.b16 %v3065, %v3064
      %v3077 = vpack.c.b16 %v3067, %v3066
      %v3078 = vpack.c.b16 %v3069, %v3068
      %v3079 = vpack.c.b16 %v3071, %v3070
      %3088 = vmatprep.subr.bf16.mxu0 0
      %3089 = vmatpush1.bf16.msra.mxu0 %v3072
      %3090 = vmatprep.subr.bf16.mxu0 0
      %3091 = vmatpush1.bf16.msra.mxu0 %v3073
      %3092 = vmatprep.subr.bf16.mxu0 0
      %3093 = vmatpush1.bf16.msra.mxu0 %v3074
      %3094 = vmatprep.subr.bf16.mxu0 0
      %3095 = vmatpush1.bf16.msra.mxu0 %v3075
      %3096 = vmatprep.subr.bf16.mxu0 0
      %3097 = vmatpush1.bf16.msra.mxu0 %v3076
      %3098 = vmatprep.subr.bf16.mxu0 0
      %3099 = vmatpush1.bf16.msra.mxu0 %v3077
      %3100 = vmatprep.subr.bf16.mxu0 0
      %3101 = vmatpush1.bf16.msra.mxu0 %v3078
      %3102 = vmatprep.subr.bf16.mxu0 0
      %3103 = vmatpush1.bf16.msra.mxu0 %v3079
      %3104 = vmatprep.subr.bf16.mxu0 0
      %3105 = vmatpush1.bf16.msra.mxu0 0
      %3106 = vmatprep.subr.bf16.mxu0 0
      %3107 = vmatpush1.bf16.msra.mxu0 0
      %3108 = vmatprep.subr.bf16.mxu0 0
      %3109 = vmatpush1.bf16.msra.mxu0 0
      %3110 = vmatprep.subr.bf16.mxu0 0
      %3111 = vmatpush1.bf16.msra.mxu0 0
      %3112 = vmatprep.subr.bf16.mxu0 0
      %3113 = vmatpush1.bf16.msra.mxu0 0
      %3114 = vmatprep.subr.bf16.mxu0 0
      %3115 = vmatpush1.bf16.msra.mxu0 0
      %3116 = vmatprep.subr.bf16.mxu0 0
      %3117 = vmatpush1.bf16.msra.mxu0 0
      %3118 = vmatprep.subr.bf16.mxu0 0
      %3119 = vmatpush1.bf16.msra.mxu0 0
      %3120 = vmatprep.mubr.bf16.mxu0 0
      %3121 = vmatmul.mubr.bf16.gmra.mrb[0].mxu0 %v2992
      %v3122 = vpop.f32.mrb[0].mxu0
      %v3123 = vadd.f32 0.0, %v3122
      %v3124 = vpop.f32.mrb[0].mxu0
      %v3125 = vpop.f32.mrb[0].mxu0
      %v3126 = vadd.f32 0.0, %v3125
      %v3127 = vpop.f32.mrb[0].mxu0
      %3128 = vmatprep.mubr.bf16.mxu0 0
      %3129 = vmatmul.mubr.bf16.gmra.mrb[0].mxu0 %v2993
      %v3130 = vpop.f32.mrb[0].mxu0
      %v3131 = vadd.f32 0.0, %v3130
      %v3132 = vpop.f32.mrb[0].mxu0
      %v3133 = vpop.f32.mrb[0].mxu0
      %v3134 = vadd.f32 0.0, %v3133
      %v3135 = vpop.f32.mrb[0].mxu0
      %3136 = vmatprep.mubr.bf16.mxu0 0
      %3137 = vmatmul.mubr.bf16.gmra.mrb[0].mxu0 %v2994
      %v3138 = vpop.f32.mrb[0].mxu0
      %v3139 = vadd.f32 0.0, %v3138
      %v3140 = vpop.f32.mrb[0].mxu0
      %v3141 = vpop.f32.mrb[0].mxu0
      %v3142 = vadd.f32 0.0, %v3141
      %v3143 = vpop.f32.mrb[0].mxu0
      %3144 = vmatprep.mubr.bf16.mxu0 0
      %3145 = vmatmul.mubr.bf16.gmra.mrb[0].mxu0 %v2995
      %v3146 = vpop.f32.mrb[0].mxu0
      %v3147 = vadd.f32 0.0, %v3146
      %v3148 = vpop.f32.mrb[0].mxu0
      %v3149 = vpop.f32.mrb[0].mxu0
      %v3150 = vadd.f32 0.0, %v3149
      %v3151 = vpop.f32.mrb[0].mxu0
      %3152 = vmatprep.mubr.bf16.mxu0 0
      %3153 = vmatmul.mubr.bf16.gmra.mrb[0].mxu0 %v2996
      %v3154 = vpop.f32.mrb[0].mxu0
      %v3155 = vadd.f32 0.0, %v3154
      %v3156 = vpop.f32.mrb[0].mxu0
      %v3157 = vpop.f32.mrb[0].mxu0
      %v3158 = vadd.f32 0.0, %v3157
      %v3159 = vpop.f32.mrb[0].mxu0
      %3160 = vmatprep.mubr.bf16.mxu0 0
      %3161 = vmatmul.mubr.bf16.gmra.mrb[0].mxu0 %v2997
      %v3162 = vpop.f32.mrb[0].mxu0
      %v3163 = vadd.f32 0.0, %v3162
      %v3164 = vpop.f32.mrb[0].mxu0
      %v3165 = vpop.f32.mrb[0].mxu0
      %v3166 = vadd.f32 0.0, %v3165
      %v3167 = vpop.f32.mrb[0].mxu0
      %3168 = vmatprep.mubr.bf16.mxu0 0
      %3169 = vmatmul.mubr.bf16.gmra.mrb[0].mxu0 %v2998
      %v3170 = vpop.f32.mrb[0].mxu0
      %v3171 = vadd.f32 0.0, %v3170
      %v3172 = vpop.f32.mrb[0].mxu0
      %v3173 = vpop.f32.mrb[0].mxu0
      %v3174 = vadd.f32 0.0, %v3173
      %v3175 = vpop.f32.mrb[0].mxu0
      %3176 = vmatprep.mubr.bf16.mxu0 0
      %3177 = vmatmul.mubr.bf16.gmra.mrb[0].mxu0 %v2999
      %v3178 = vpop.f32.mrb[0].mxu0
      %v3179 = vadd.f32 0.0, %v3178
      %v3180 = vpop.f32.mrb[0].mxu0
      %v3181 = vpop.f32.mrb[0].mxu0
      %v3182 = vadd.f32 0.0, %v3181
      %v3183 = vpop.f32.mrb[0].mxu0
      %3184 = vmatprep.mubr.bf16.mxu0 0
      %3185 = vmatmul.mubr.bf16.gmra.mrb[0].mxu0 %v3000
      %v3186 = vpop.f32.mrb[0].mxu0
      %v3187 = vadd.f32 0.0, %v3186
      %v3188 = vpop.f32.mrb[0].mxu0
      %v3189 = vpop.f32.mrb[0].mxu0
      %v3190 = vadd.f32 0.0, %v3189
      %v3191 = vpop.f32.mrb[0].mxu0
      %3192 = vmatprep.mubr.bf16.mxu0 0
      %3193 = vmatmul.mubr.bf16.gmra.mrb[0].mxu0 %v3001
      %v3194 = vpop.f32.mrb[0].mxu0
      %v3195 = vadd.f32 0.0, %v3194
      %v3196 = vpop.f32.mrb[0].mxu0
      %v3197 = vpop.f32.mrb[0].mxu0
      %v3198 = vadd.f32 0.0, %v3197
      %v3199 = vpop.f32.mrb[0].mxu0
      %3200 = vmatprep.mubr.bf16.mxu0 0
      %3201 = vmatmul.mubr.bf16.gmra.mrb[0].mxu0 %v3002
      %v3202 = vpop.f32.mrb[0].mxu0
      %v3203 = vadd.f32 0.0, %v3202
      %v3204 = vpop.f32.mrb[0].mxu0
      %v3205 = vpop.f32.mrb[0].mxu0
      %v3206 = vadd.f32 0.0, %v3205
      %v3207 = vpop.f32.mrb[0].mxu0
      %3208 = vmatprep.mubr.bf16.mxu0 0
      %3209 = vmatmul.mubr.bf16.gmra.mrb[0].mxu0 %v3003
      %v3210 = vpop.f32.mrb[0].mxu0
      %v3211 = vadd.f32 0.0, %v3210
      %v3212 = vpop.f32.mrb[0].mxu0
      %v3213 = vpop.f32.mrb[0].mxu0
      %v3214 = vadd.f32 0.0, %v3213
      %v3215 = vpop.f32.mrb[0].mxu0
      %3216 = vmatprep.mubr.bf16.mxu0 0
      %3217 = vmatmul.mubr.bf16.gmra.mrb[0].mxu0 %v3004
      %v3218 = vpop.f32.mrb[0].mxu0
      %v3219 = vadd.f32 0.0, %v3218
      %v3220 = vpop.f32.mrb[0].mxu0
      %v3221 = vpop.f32.mrb[0].mxu0
      %v3222 = vadd.f32 0.0, %v3221
      %v3223 = vpop.f32.mrb[0].mxu0
      %3224 = vmatprep.mubr.bf16.mxu0 0
      %3225 = vmatmul.mubr.bf16.gmra.mrb[0].mxu0 %v3005
      %v3226 = vpop.f32.mrb[0].mxu0
      %v3227 = vadd.f32 0.0, %v3226
      %v3228 = vpop.f32.mrb[0].mxu0
      %v3229 = vpop.f32.mrb[0].mxu0
      %v3230 = vadd.f32 0.0, %v3229
      %v3231 = vpop.f32.mrb[0].mxu0
      %3232 = vmatprep.mubr.bf16.mxu0 0
      %3233 = vmatmul.mubr.bf16.gmra.mrb[0].mxu0 %v3006
      %v3234 = vpop.f32.mrb[0].mxu0
      %v3235 = vadd.f32 0.0, %v3234
      %v3236 = vpop.f32.mrb[0].mxu0
      %v3237 = vpop.f32.mrb[0].mxu0
      %v3238 = vadd.f32 0.0, %v3237
      %v3239 = vpop.f32.mrb[0].mxu0
      %3240 = vmatprep.mubr.bf16.mxu0 0
      %3241 = vmatmul.mubr.bf16.gmra.mrb[0].mxu0 %v3007
      %v3242 = vpop.f32.mrb[0].mxu0
      %v3243 = vadd.f32 0.0, %v3242
      %v3244 = vpop.f32.mrb[0].mxu0
      %v3245 = vpop.f32.mrb[0].mxu0
      %v3246 = vadd.f32 0.0, %v3245
      %v3247 = vpop.f32.mrb[0].mxu0
      %3248 = vmatprep.mubr.bf16.mxu0 0
      %3249 = vmatmul.mubr.bf16.gmra.mrb[0].mxu0 %v3008
      %v3250 = vpop.f32.mrb[0].mxu0
      %v3251 = vadd.f32 0.0, %v3250
      %v3252 = vpop.f32.mrb[0].mxu0
      %v3253 = vpop.f32.mrb[0].mxu0
      %v3254 = vadd.f32 0.0, %v3253
      %v3255 = vpop.f32.mrb[0].mxu0
      %3256 = vmatprep.mubr.bf16.mxu0 0
      %3257 = vmatmul.mubr.bf16.gmra.mrb[0].mxu0 %v3009
      %v3258 = vpop.f32.mrb[0].mxu0
      %v3259 = vadd.f32 0.0, %v3258
      %v3260 = vpop.f32.mrb[0].mxu0
      %v3261 = vpop.f32.mrb[0].mxu0
      %v3262 = vadd.f32 0.0, %v3261
      %v3263 = vpop.f32.mrb[0].mxu0
      %3264 = vmatprep.mubr.bf16.mxu0 0
      %3265 = vmatmul.mubr.bf16.gmra.mrb[0].mxu0 %v3010
      %v3266 = vpop.f32.mrb[0].mxu0
      %v3267 = vadd.f32 0.0, %v3266
      %v3268 = vpop.f32.mrb[0].mxu0
      %v3269 = vpop.f32.mrb[0].mxu0
      %v3270 = vadd.f32 0.0, %v3269
      %v3271 = vpop.f32.mrb[0].mxu0
      %3272 = vmatprep.mubr.bf16.mxu0 0
      %3273 = vmatmul.mubr.bf16.gmra.mrb[0].mxu0 %v3011
      %v3274 = vpop.f32.mrb[0].mxu0
      %v3275 = vadd.f32 0.0, %v3274
      %v3276 = vpop.f32.mrb[0].mxu0
      %v3277 = vpop.f32.mrb[0].mxu0
      %v3278 = vadd.f32 0.0, %v3277
      %v3279 = vpop.f32.mrb[0].mxu0
      %3280 = vmatprep.mubr.bf16.mxu0 0
      %3281 = vmatmul.mubr.bf16.gmra.mrb[0].mxu0 %v3012
      %v3282 = vpop.f32.mrb[0].mxu0
      %v3283 = vadd.f32 0.0, %v3282
      %v3284 = vpop.f32.mrb[0].mxu0
      %v3285 = vpop.f32.mrb[0].mxu0
      %v3286 = vadd.f32 0.0, %v3285
      %v3287 = vpop.f32.mrb[0].mxu0
      %3288 = vmatprep.mubr.bf16.mxu0 0
      %3289 = vmatmul.mubr.bf16.gmra.mrb[0].mxu0 %v3013
      %v3290 = vpop.f32.mrb[0].mxu0
      %v3291 = vadd.f32 0.0, %v3290
      %v3292 = vpop.f32.mrb[0].mxu0
      %v3293 = vpop.f32.mrb[0].mxu0
      %v3294 = vadd.f32 0.0, %v3293
      %v3295 = vpop.f32.mrb[0].mxu0
      %3296 = vmatprep.mubr.bf16.mxu0 0
      %3297 = vmatmul.mubr.bf16.gmra.mrb[0].mxu0 %v3014
      %v3298 = vpop.f32.mrb[0].mxu0
      %v3299 = vadd.f32 0.0, %v3298
      %v3300 = vpop.f32.mrb[0].mxu0
      %v3301 = vpop.f32.mrb[0].mxu0
      %v3302 = vadd.f32 0.0, %v3301
      %v3303 = vpop.f32.mrb[0].mxu0
      %3304 = vmatprep.mubr.bf16.mxu0 0
      %3305 = vmatmul.mubr.bf16.gmra.mrb[0].mxu0 %v3015
      %v3306 = vpop.f32.mrb[0].mxu0
      %v3307 = vadd.f32 0.0, %v3306
      %v3308 = vpop.f32.mrb[0].mxu0
      %v3309 = vpop.f32.mrb[0].mxu0
      %v3310 = vadd.f32 0.0, %v3309
      %v3311 = vpop.f32.mrb[0].mxu0
      %3312 = vdwg.mxu0
      %v3313 = vadd.f32 %v2922, %v3123
      %v3314 = vadd.f32 %v2923, %v3126
      %v3315 = vadd.f32 %v2924, %v3131
      %v3316 = vadd.f32 %v2925, %v3134
      %v3317 = vadd.f32 %v2926, %v3139
      %v3318 = vadd.f32 %v2927, %v3142
      %v3319 = vadd.f32 %v2928, %v3147
      %v3320 = vadd.f32 %v2929, %v3150
      %v3321 = vadd.f32 %v2930, %v3155
      %v3322 = vadd.f32 %v2931, %v3158
      %v3323 = vadd.f32 %v2932, %v3163
      %v3324 = vadd.f32 %v2933, %v3166
      %v3325 = vadd.f32 %v2934, %v3171
      %v3326 = vadd.f32 %v2935, %v3174
      %v3327 = vadd.f32 %v2936, %v3179
      %v3328 = vadd.f32 %v2937, %v3182
      %v3329 = vadd.f32 %v2938, %v3187
      %v3330 = vadd.f32 %v2939, %v3190
      %v3331 = vadd.f32 %v2940, %v3195
      %v3332 = vadd.f32 %v2941, %v3198
      %v3333 = vadd.f32 %v2942, %v3203
      %v3334 = vadd.f32 %v2943, %v3206
      %v3335 = vadd.f32 %v2944, %v3211
      %v3336 = vadd.f32 %v2945, %v3214
      %v3337 = vadd.f32 %v2946, %v3219
      %v3338 = vadd.f32 %v2947, %v3222
      %v3339 = vadd.f32 %v2948, %v3227
      %v3340 = vadd.f32 %v2949, %v3230
      %v3341 = vadd.f32 %v2950, %v3235
      %v3342 = vadd.f32 %v2951, %v3238
      %v3343 = vadd.f32 %v2952, %v3243
      %v3344 = vadd.f32 %v2953, %v3246
      %v3345 = vadd.f32 %v2954, %v3251
      %v3346 = vadd.f32 %v2955, %v3254
      %v3347 = vadd.f32 %v2956, %v3259
      %v3348 = vadd.f32 %v2957, %v3262
      %v3349 = vadd.f32 %v2958, %v3267
      %v3350 = vadd.f32 %v2959, %v3270
      %v3351 = vadd.f32 %v2960, %v3275
      %v3352 = vadd.f32 %v2961, %v3278
      %v3353 = vadd.f32 %v2962, %v3283
      %v3354 = vadd.f32 %v2963, %v3286
      %v3355 = vadd.f32 %v2964, %v3291
      %v3356 = vadd.f32 %v2965, %v3294
      %v3357 = vadd.f32 %v2966, %v3299
      %v3358 = vadd.f32 %v2967, %v3302
      %v3359 = vadd.f32 %v2968, %v3307
      %v3360 = vadd.f32 %v2969, %v3310
      %v3362 = vunpack.c.l.b16 %v1265
      %v3363 = vunpack.c.h.b16 %v1265
      %v3364 = vunpack.c.l.b16 %v1309
      %s3365 = scalar_lea.vmem %s5, 320
      %v3366 = vld [vmem:[%s3365] sm:$0xf]
      %v3367 = vld [vmem:[%s3365 + $0x4] sm:$0xf]
      %v3368 = vld [vmem:[%s3365 + $0x8] sm:$0xf]
      %v3369 = vld [vmem:[%s3365 + $0xc] sm:$0xf]
      %v3370 = vld [vmem:[%s3365 + $0x10] sm:$0xf]
      %v3371 = vld [vmem:[%s3365 + $0x14] sm:$0xf]
      %v3372 = vld [vmem:[%s3365 + $0x18] sm:$0xf]
      %v3373 = vld [vmem:[%s3365 + $0x1c] sm:$0xf]
      %v3374 = vld [vmem:[%s3365 + $0x20] sm:$0xf]
      %v3375 = vld [vmem:[%s3365 + $0x24] sm:$0xf]
      %v3376 = vld [vmem:[%s3365 + $0x28] sm:$0xf]
      %v3377 = vld [vmem:[%s3365 + $0x2c] sm:$0xf]
      %v3378 = vld [vmem:[%s3365 + $0x30] sm:$0xf]
      %v3379 = vld [vmem:[%s3365 + $0x34] sm:$0xf]
      %v3380 = vld [vmem:[%s3365 + $0x38] sm:$0xf]
      %v3381 = vld [vmem:[%s3365 + $0x3c] sm:$0xf]
      %v3382 = vpack.c.b16 %v2150, %v2149
      %v3383 = vpack.c.b16 %v2152, %v2151
      %v3384 = vpack.c.b16 %v2154, %v2153
      %v3385 = vpack.c.b16 %v2156, %v2155
      %v3386 = vpack.c.b16 %v2158, %v2157
      %v3387 = vpack.c.b16 %v2160, %v2159
      %v3388 = vpack.c.b16 %v2162, %v2161
      %v3389 = vpack.c.b16 %v2164, %v2163
      %v3390 = vpack.c.b16 %v2166, %v2165
      %v3391 = vpack.c.b16 %v2168, %v2167
      %v3392 = vpack.c.b16 %v2170, %v2169
      %v3393 = vpack.c.b16 %v2172, %v2171
      %v3394 = vpack.c.b16 %v2174, %v2173
      %v3395 = vpack.c.b16 %v2176, %v2175
      %v3396 = vpack.c.b16 %v2178, %v2177
      %v3397 = vpack.c.b16 %v2180, %v2179
      %v3398 = vpack.c.b16 %v2182, %v2181
      %v3399 = vpack.c.b16 %v2184, %v2183
      %v3400 = vpack.c.b16 %v2186, %v2185
      %v3401 = vpack.c.b16 %v2188, %v2187
      %v3402 = vpack.c.b16 %v2190, %v2189
      %v3403 = vpack.c.b16 %v2192, %v2191
      %v3404 = vpack.c.b16 %v3362, %v2193
      %v3405 = vpack.c.b16 %v3364, %v3363
      %v3446 = vunpack.c.l.b16 %v3366
      %v3447 = vunpack.c.l.b16 %v3367
      %v3448 = vunpack.c.l.b16 %v3368
      %v3449 = vunpack.c.l.b16 %v3369
      %v3450 = vunpack.c.l.b16 %v3370
      %v3451 = vunpack.c.l.b16 %v3371
      %v3452 = vunpack.c.l.b16 %v3372
      %v3453 = vunpack.c.l.b16 %v3373
      %v3454 = vunpack.c.l.b16 %v3374
      %v3455 = vunpack.c.l.b16 %v3375
      %v3456 = vunpack.c.l.b16 %v3376
      %v3457 = vunpack.c.l.b16 %v3377
      %v3458 = vunpack.c.l.b16 %v3378
      %v3459 = vunpack.c.l.b16 %v3379
      %v3460 = vunpack.c.l.b16 %v3380
      %v3461 = vunpack.c.l.b16 %v3381
      %v3462 = vpack.c.b16 %v3447, %v3446
      %v3463 = vpack.c.b16 %v3449, %v3448
      %v3464 = vpack.c.b16 %v3451, %v3450
      %v3465 = vpack.c.b16 %v3453, %v3452
      %v3466 = vpack.c.b16 %v3455, %v3454
      %v3467 = vpack.c.b16 %v3457, %v3456
      %v3468 = vpack.c.b16 %v3459, %v3458
      %v3469 = vpack.c.b16 %v3461, %v3460
      %3478 = vmatprep.subr.bf16.mxu0 0
      %3479 = vmatpush1.bf16.msra.mxu0 %v3462
      %3480 = vmatprep.subr.bf16.mxu0 0
      %3481 = vmatpush1.bf16.msra.mxu0 %v3463
      %3482 = vmatprep.subr.bf16.mxu0 0
      %3483 = vmatpush1.bf16.msra.mxu0 %v3464
      %3484 = vmatprep.subr.bf16.mxu0 0
      %3485 = vmatpush1.bf16.msra.mxu0 %v3465
      %3486 = vmatprep.subr.bf16.mxu0 0
      %3487 = vmatpush1.bf16.msra.mxu0 %v3466
      %3488 = vmatprep.subr.bf16.mxu0 0
      %3489 = vmatpush1.bf16.msra.mxu0 %v3467
      %3490 = vmatprep.subr.bf16.mxu0 0
      %3491 = vmatpush1.bf16.msra.mxu0 %v3468
      %3492 = vmatprep.subr.bf16.mxu0 0
      %3493 = vmatpush1.bf16.msra.mxu0 %v3469
      %3494 = vmatprep.subr.bf16.mxu0 0
      %3495 = vmatpush1.bf16.msra.mxu0 0
      %3496 = vmatprep.subr.bf16.mxu0 0
      %3497 = vmatpush1.bf16.msra.mxu0 0
      %3498 = vmatprep.subr.bf16.mxu0 0
      %3499 = vmatpush1.bf16.msra.mxu0 0
      %3500 = vmatprep.subr.bf16.mxu0 0
      %3501 = vmatpush1.bf16.msra.mxu0 0
      %3502 = vmatprep.subr.bf16.mxu0 0
      %3503 = vmatpush1.bf16.msra.mxu0 0
      %3504 = vmatprep.subr.bf16.mxu0 0
      %3505 = vmatpush1.bf16.msra.mxu0 0
      %3506 = vmatprep.subr.bf16.mxu0 0
      %3507 = vmatpush1.bf16.msra.mxu0 0
      %3508 = vmatprep.subr.bf16.mxu0 0
      %3509 = vmatpush1.bf16.msra.mxu0 0
      %3510 = vmatprep.mubr.bf16.mxu0 0
      %3511 = vmatmul.mubr.bf16.gmra.mrb[0].mxu0 %v3382
      %v3512 = vpop.f32.mrb[0].mxu0
      %v3513 = vadd.f32 0.0, %v3512
      %v3514 = vpop.f32.mrb[0].mxu0
      %v3515 = vpop.f32.mrb[0].mxu0
      %v3516 = vadd.f32 0.0, %v3515
      %v3517 = vpop.f32.mrb[0].mxu0
      %3518 = vmatprep.mubr.bf16.mxu0 0
      %3519 = vmatmul.mubr.bf16.gmra.mrb[0].mxu0 %v3383
      %v3520 = vpop.f32.mrb[0].mxu0
      %v3521 = vadd.f32 0.0, %v3520
      %v3522 = vpop.f32.mrb[0].mxu0
      %v3523 = vpop.f32.mrb[0].mxu0
      %v3524 = vadd.f32 0.0, %v3523
      %v3525 = vpop.f32.mrb[0].mxu0
      %3526 = vmatprep.mubr.bf16.mxu0 0
      %3527 = vmatmul.mubr.bf16.gmra.mrb[0].mxu0 %v3384
      %v3528 = vpop.f32.mrb[0].mxu0
      %v3529 = vadd.f32 0.0, %v3528
      %v3530 = vpop.f32.mrb[0].mxu0
      %v3531 = vpop.f32.mrb[0].mxu0
      %v3532 = vadd.f32 0.0, %v3531
      %v3533 = vpop.f32.mrb[0].mxu0
      %3534 = vmatprep.mubr.bf16.mxu0 0
      %3535 = vmatmul.mubr.bf16.gmra.mrb[0].mxu0 %v3385
      %v3536 = vpop.f32.mrb[0].mxu0
      %v3537 = vadd.f32 0.0, %v3536
      %v3538 = vpop.f32.mrb[0].mxu0
      %v3539 = vpop.f32.mrb[0].mxu0
      %v3540 = vadd.f32 0.0, %v3539
      %v3541 = vpop.f32.mrb[0].mxu0
      %3542 = vmatprep.mubr.bf16.mxu0 0
      %3543 = vmatmul.mubr.bf16.gmra.mrb[0].mxu0 %v3386
      %v3544 = vpop.f32.mrb[0].mxu0
      %v3545 = vadd.f32 0.0, %v3544
      %v3546 = vpop.f32.mrb[0].mxu0
      %v3547 = vpop.f32.mrb[0].mxu0
      %v3548 = vadd.f32 0.0, %v3547
      %v3549 = vpop.f32.mrb[0].mxu0
      %3550 = vmatprep.mubr.bf16.mxu0 0
      %3551 = vmatmul.mubr.bf16.gmra.mrb[0].mxu0 %v3387
      %v3552 = vpop.f32.mrb[0].mxu0
      %v3553 = vadd.f32 0.0, %v3552
      %v3554 = vpop.f32.mrb[0].mxu0
      %v3555 = vpop.f32.mrb[0].mxu0
      %v3556 = vadd.f32 0.0, %v3555
      %v3557 = vpop.f32.mrb[0].mxu0
      %3558 = vmatprep.mubr.bf16.mxu0 0
      %3559 = vmatmul.mubr.bf16.gmra.mrb[0].mxu0 %v3388
      %v3560 = vpop.f32.mrb[0].mxu0
      %v3561 = vadd.f32 0.0, %v3560
      %v3562 = vpop.f32.mrb[0].mxu0
      %v3563 = vpop.f32.mrb[0].mxu0
      %v3564 = vadd.f32 0.0, %v3563
      %v3565 = vpop.f32.mrb[0].mxu0
      %3566 = vmatprep.mubr.bf16.mxu0 0
      %3567 = vmatmul.mubr.bf16.gmra.mrb[0].mxu0 %v3389
      %v3568 = vpop.f32.mrb[0].mxu0
      %v3569 = vadd.f32 0.0, %v3568
      %v3570 = vpop.f32.mrb[0].mxu0
      %v3571 = vpop.f32.mrb[0].mxu0
      %v3572 = vadd.f32 0.0, %v3571
      %v3573 = vpop.f32.mrb[0].mxu0
      %3574 = vmatprep.mubr.bf16.mxu0 0
      %3575 = vmatmul.mubr.bf16.gmra.mrb[0].mxu0 %v3390
      %v3576 = vpop.f32.mrb[0].mxu0
      %v3577 = vadd.f32 0.0, %v3576
      %v3578 = vpop.f32.mrb[0].mxu0
      %v3579 = vpop.f32.mrb[0].mxu0
      %v3580 = vadd.f32 0.0, %v3579
      %v3581 = vpop.f32.mrb[0].mxu0
      %3582 = vmatprep.mubr.bf16.mxu0 0
      %3583 = vmatmul.mubr.bf16.gmra.mrb[0].mxu0 %v3391
      %v3584 = vpop.f32.mrb[0].mxu0
      %v3585 = vadd.f32 0.0, %v3584
      %v3586 = vpop.f32.mrb[0].mxu0
      %v3587 = vpop.f32.mrb[0].mxu0
      %v3588 = vadd.f32 0.0, %v3587
      %v3589 = vpop.f32.mrb[0].mxu0
      %3590 = vmatprep.mubr.bf16.mxu0 0
      %3591 = vmatmul.mubr.bf16.gmra.mrb[0].mxu0 %v3392
      %v3592 = vpop.f32.mrb[0].mxu0
      %v3593 = vadd.f32 0.0, %v3592
      %v3594 = vpop.f32.mrb[0].mxu0
      %v3595 = vpop.f32.mrb[0].mxu0
      %v3596 = vadd.f32 0.0, %v3595
      %v3597 = vpop.f32.mrb[0].mxu0
      %3598 = vmatprep.mubr.bf16.mxu0 0
      %3599 = vmatmul.mubr.bf16.gmra.mrb[0].mxu0 %v3393
      %v3600 = vpop.f32.mrb[0].mxu0
      %v3601 = vadd.f32 0.0, %v3600
      %v3602 = vpop.f32.mrb[0].mxu0
      %v3603 = vpop.f32.mrb[0].mxu0
      %v3604 = vadd.f32 0.0, %v3603
      %v3605 = vpop.f32.mrb[0].mxu0
      %3606 = vmatprep.mubr.bf16.mxu0 0
      %3607 = vmatmul.mubr.bf16.gmra.mrb[0].mxu0 %v3394
      %v3608 = vpop.f32.mrb[0].mxu0
      %v3609 = vadd.f32 0.0, %v3608
      %v3610 = vpop.f32.mrb[0].mxu0
      %v3611 = vpop.f32.mrb[0].mxu0
      %v3612 = vadd.f32 0.0, %v3611
      %v3613 = vpop.f32.mrb[0].mxu0
      %3614 = vmatprep.mubr.bf16.mxu0 0
      %3615 = vmatmul.mubr.bf16.gmra.mrb[0].mxu0 %v3395
      %v3616 = vpop.f32.mrb[0].mxu0
      %v3617 = vadd.f32 0.0, %v3616
      %v3618 = vpop.f32.mrb[0].mxu0
      %v3619 = vpop.f32.mrb[0].mxu0
      %v3620 = vadd.f32 0.0, %v3619
      %v3621 = vpop.f32.mrb[0].mxu0
      %3622 = vmatprep.mubr.bf16.mxu0 0
      %3623 = vmatmul.mubr.bf16.gmra.mrb[0].mxu0 %v3396
      %v3624 = vpop.f32.mrb[0].mxu0
      %v3625 = vadd.f32 0.0, %v3624
      %v3626 = vpop.f32.mrb[0].mxu0
      %v3627 = vpop.f32.mrb[0].mxu0
      %v3628 = vadd.f32 0.0, %v3627
      %v3629 = vpop.f32.mrb[0].mxu0
      %3630 = vmatprep.mubr.bf16.mxu0 0
      %3631 = vmatmul.mubr.bf16.gmra.mrb[0].mxu0 %v3397
      %v3632 = vpop.f32.mrb[0].mxu0
      %v3633 = vadd.f32 0.0, %v3632
      %v3634 = vpop.f32.mrb[0].mxu0
      %v3635 = vpop.f32.mrb[0].mxu0
      %v3636 = vadd.f32 0.0, %v3635
      %v3637 = vpop.f32.mrb[0].mxu0
      %3638 = vmatprep.mubr.bf16.mxu0 0
      %3639 = vmatmul.mubr.bf16.gmra.mrb[0].mxu0 %v3398
      %v3640 = vpop.f32.mrb[0].mxu0
      %v3641 = vadd.f32 0.0, %v3640
      %v3642 = vpop.f32.mrb[0].mxu0
      %v3643 = vpop.f32.mrb[0].mxu0
      %v3644 = vadd.f32 0.0, %v3643
      %v3645 = vpop.f32.mrb[0].mxu0
      %3646 = vmatprep.mubr.bf16.mxu0 0
      %3647 = vmatmul.mubr.bf16.gmra.mrb[0].mxu0 %v3399
      %v3648 = vpop.f32.mrb[0].mxu0
      %v3649 = vadd.f32 0.0, %v3648
      %v3650 = vpop.f32.mrb[0].mxu0
      %v3651 = vpop.f32.mrb[0].mxu0
      %v3652 = vadd.f32 0.0, %v3651
      %v3653 = vpop.f32.mrb[0].mxu0
      %3654 = vmatprep.mubr.bf16.mxu0 0
      %3655 = vmatmul.mubr.bf16.gmra.mrb[0].mxu0 %v3400
      %v3656 = vpop.f32.mrb[0].mxu0
      %v3657 = vadd.f32 0.0, %v3656
      %v3658 = vpop.f32.mrb[0].mxu0
      %v3659 = vpop.f32.mrb[0].mxu0
      %v3660 = vadd.f32 0.0, %v3659
      %v3661 = vpop.f32.mrb[0].mxu0
      %3662 = vmatprep.mubr.bf16.mxu0 0
      %3663 = vmatmul.mubr.bf16.gmra.mrb[0].mxu0 %v3401
      %v3664 = vpop.f32.mrb[0].mxu0
      %v3665 = vadd.f32 0.0, %v3664
      %v3666 = vpop.f32.mrb[0].mxu0
      %v3667 = vpop.f32.mrb[0].mxu0
      %v3668 = vadd.f32 0.0, %v3667
      %v3669 = vpop.f32.mrb[0].mxu0
      %3670 = vmatprep.mubr.bf16.mxu0 0
      %3671 = vmatmul.mubr.bf16.gmra.mrb[0].mxu0 %v3402
      %v3672 = vpop.f32.mrb[0].mxu0
      %v3673 = vadd.f32 0.0, %v3672
      %v3674 = vpop.f32.mrb[0].mxu0
      %v3675 = vpop.f32.mrb[0].mxu0
      %v3676 = vadd.f32 0.0, %v3675
      %v3677 = vpop.f32.mrb[0].mxu0
      %3678 = vmatprep.mubr.bf16.mxu0 0
      %3679 = vmatmul.mubr.bf16.gmra.mrb[0].mxu0 %v3403
      %v3680 = vpop.f32.mrb[0].mxu0
      %v3681 = vadd.f32 0.0, %v3680
      %v3682 = vpop.f32.mrb[0].mxu0
      %v3683 = vpop.f32.mrb[0].mxu0
      %v3684 = vadd.f32 0.0, %v3683
      %v3685 = vpop.f32.mrb[0].mxu0
      %3686 = vmatprep.mubr.bf16.mxu0 0
      %3687 = vmatmul.mubr.bf16.gmra.mrb[0].mxu0 %v3404
      %v3688 = vpop.f32.mrb[0].mxu0
      %v3689 = vadd.f32 0.0, %v3688
      %v3690 = vpop.f32.mrb[0].mxu0
      %v3691 = vpop.f32.mrb[0].mxu0
      %v3692 = vadd.f32 0.0, %v3691
      %v3693 = vpop.f32.mrb[0].mxu0
      %3694 = vmatprep.mubr.bf16.mxu0 0
      %3695 = vmatmul.mubr.bf16.gmra.mrb[0].mxu0 %v3405
      %v3696 = vpop.f32.mrb[0].mxu0
      %v3697 = vadd.f32 0.0, %v3696
      %v3698 = vpop.f32.mrb[0].mxu0
      %v3699 = vpop.f32.mrb[0].mxu0
      %v3700 = vadd.f32 0.0, %v3699
      %v3701 = vpop.f32.mrb[0].mxu0
      %3702 = vdwg.mxu0
      %v3703 = vadd.f32 %v3313, %v3513
      %v3704 = vadd.f32 %v3314, %v3516
      %v3705 = vadd.f32 %v3315, %v3521
      %v3706 = vadd.f32 %v3316, %v3524
      %v3707 = vadd.f32 %v3317, %v3529
      %v3708 = vadd.f32 %v3318, %v3532
      %v3709 = vadd.f32 %v3319, %v3537
      %v3710 = vadd.f32 %v3320, %v3540
      %v3711 = vadd.f32 %v3321, %v3545
      %v3712 = vadd.f32 %v3322, %v3548
      %v3713 = vadd.f32 %v3323, %v3553
      %v3714 = vadd.f32 %v3324, %v3556
      %v3715 = vadd.f32 %v3325, %v3561
      %v3716 = vadd.f32 %v3326, %v3564
      %v3717 = vadd.f32 %v3327, %v3569
      %v3718 = vadd.f32 %v3328, %v3572
      %v3719 = vadd.f32 %v3329, %v3577
      %v3720 = vadd.f32 %v3330, %v3580
      %v3721 = vadd.f32 %v3331, %v3585
      %v3722 = vadd.f32 %v3332, %v3588
      %v3723 = vadd.f32 %v3333, %v3593
      %v3724 = vadd.f32 %v3334, %v3596
      %v3725 = vadd.f32 %v3335, %v3601
      %v3726 = vadd.f32 %v3336, %v3604
      %v3727 = vadd.f32 %v3337, %v3609
      %v3728 = vadd.f32 %v3338, %v3612
      %v3729 = vadd.f32 %v3339, %v3617
      %v3730 = vadd.f32 %v3340, %v3620
      %v3731 = vadd.f32 %v3341, %v3625
      %v3732 = vadd.f32 %v3342, %v3628
      %v3733 = vadd.f32 %v3343, %v3633
      %v3734 = vadd.f32 %v3344, %v3636
      %v3735 = vadd.f32 %v3345, %v3641
      %v3736 = vadd.f32 %v3346, %v3644
      %v3737 = vadd.f32 %v3347, %v3649
      %v3738 = vadd.f32 %v3348, %v3652
      %v3739 = vadd.f32 %v3349, %v3657
      %v3740 = vadd.f32 %v3350, %v3660
      %v3741 = vadd.f32 %v3351, %v3665
      %v3742 = vadd.f32 %v3352, %v3668
      %v3743 = vadd.f32 %v3353, %v3673
      %v3744 = vadd.f32 %v3354, %v3676
      %v3745 = vadd.f32 %v3355, %v3681
      %v3746 = vadd.f32 %v3356, %v3684
      %v3747 = vadd.f32 %v3357, %v3689
      %v3748 = vadd.f32 %v3358, %v3692
      %v3749 = vadd.f32 %v3359, %v3697
      %v3750 = vadd.f32 %v3360, %v3700
      %v3752 = vunpack.c.l.b16 %v1180
      %v3753 = vunpack.c.h.b16 %v1180
      %v3754 = vunpack.c.l.b16 %v1142
      %s3755 = scalar_lea.vmem %s5, 384
      %v3756 = vld [vmem:[%s3755] sm:$0xf]
      %v3757 = vld [vmem:[%s3755 + $0x4] sm:$0xf]
      %v3758 = vld [vmem:[%s3755 + $0x8] sm:$0xf]
      %v3759 = vld [vmem:[%s3755 + $0xc] sm:$0xf]
      %v3760 = vld [vmem:[%s3755 + $0x10] sm:$0xf]
      %v3761 = vld [vmem:[%s3755 + $0x14] sm:$0xf]
      %v3762 = vld [vmem:[%s3755 + $0x18] sm:$0xf]
      %v3763 = vld [vmem:[%s3755 + $0x1c] sm:$0xf]
      %v3764 = vld [vmem:[%s3755 + $0x20] sm:$0xf]
      %v3765 = vld [vmem:[%s3755 + $0x24] sm:$0xf]
      %v3766 = vld [vmem:[%s3755 + $0x28] sm:$0xf]
      %v3767 = vld [vmem:[%s3755 + $0x2c] sm:$0xf]
      %v3768 = vld [vmem:[%s3755 + $0x30] sm:$0xf]
      %v3769 = vld [vmem:[%s3755 + $0x34] sm:$0xf]
      %v3770 = vld [vmem:[%s3755 + $0x38] sm:$0xf]
      %v3771 = vld [vmem:[%s3755 + $0x3c] sm:$0xf]
      %v3772 = vpack.c.b16 %v2582, %v2581
      %v3773 = vpack.c.b16 %v3752, %v2583
      %v3774 = vpack.c.b16 %v3754, %v3753
      %v3794 = vunpack.c.l.b16 %v3756
      %v3795 = vunpack.c.l.b16 %v3757
      %v3796 = vunpack.c.l.b16 %v3758
      %v3797 = vunpack.c.l.b16 %v3759
      %v3798 = vunpack.c.l.b16 %v3760
      %v3799 = vunpack.c.l.b16 %v3761
      %v3800 = vunpack.c.l.b16 %v3762
      %v3801 = vunpack.c.l.b16 %v3763
      %v3802 = vunpack.c.l.b16 %v3764
      %v3803 = vunpack.c.l.b16 %v3765
      %v3804 = vunpack.c.l.b16 %v3766
      %v3805 = vunpack.c.l.b16 %v3767
      %v3806 = vunpack.c.l.b16 %v3768
      %v3807 = vunpack.c.l.b16 %v3769
      %v3808 = vunpack.c.l.b16 %v3770
      %v3809 = vunpack.c.l.b16 %v3771
      %v3810 = vpack.c.b16 %v3795, %v3794
      %v3811 = vpack.c.b16 %v3797, %v3796
      %v3812 = vpack.c.b16 %v3799, %v3798
      %v3813 = vpack.c.b16 %v3801, %v3800
      %v3814 = vpack.c.b16 %v3803, %v3802
      %v3815 = vpack.c.b16 %v3805, %v3804
      %v3816 = vpack.c.b16 %v3807, %v3806
      %v3817 = vpack.c.b16 %v3809, %v3808
      %3826 = vmatprep.subr.bf16.mxu0 0
      %3827 = vmatpush1.bf16.msra.mxu0 %v3810
      %3828 = vmatprep.subr.bf16.mxu0 0
      %3829 = vmatpush1.bf16.msra.mxu0 %v3811
      %3830 = vmatprep.subr.bf16.mxu0 0
      %3831 = vmatpush1.bf16.msra.mxu0 %v3812
      %3832 = vmatprep.subr.bf16.mxu0 0
      %3833 = vmatpush1.bf16.msra.mxu0 %v3813
      %3834 = vmatprep.subr.bf16.mxu0 0
      %3835 = vmatpush1.bf16.msra.mxu0 %v3814
      %3836 = vmatprep.subr.bf16.mxu0 0
      %3837 = vmatpush1.bf16.msra.mxu0 %v3815
      %3838 = vmatprep.subr.bf16.mxu0 0
      %3839 = vmatpush1.bf16.msra.mxu0 %v3816
      %3840 = vmatprep.subr.bf16.mxu0 0
      %3841 = vmatpush1.bf16.msra.mxu0 %v3817
      %3842 = vmatprep.subr.bf16.mxu0 0
      %3843 = vmatpush1.bf16.msra.mxu0 0
      %3844 = vmatprep.subr.bf16.mxu0 0
      %3845 = vmatpush1.bf16.msra.mxu0 0
      %3846 = vmatprep.subr.bf16.mxu0 0
      %3847 = vmatpush1.bf16.msra.mxu0 0
      %3848 = vmatprep.subr.bf16.mxu0 0
      %3849 = vmatpush1.bf16.msra.mxu0 0
      %3850 = vmatprep.subr.bf16.mxu0 0
      %3851 = vmatpush1.bf16.msra.mxu0 0
      %3852 = vmatprep.subr.bf16.mxu0 0
      %3853 = vmatpush1.bf16.msra.mxu0 0
      %3854 = vmatprep.subr.bf16.mxu0 0
      %3855 = vmatpush1.bf16.msra.mxu0 0
      %3856 = vmatprep.subr.bf16.mxu0 0
      %3857 = vmatpush1.bf16.msra.mxu0 0
      %3858 = vmatprep.mubr.bf16.mxu0 0
      %3859 = vmatmul.mubr.bf16.gmra.mrb[0].mxu0 %v1812
      %v3860 = vpop.f32.mrb[0].mxu0
      %v3861 = vadd.f32 0.0, %v3860
      %v3862 = vpop.f32.mrb[0].mxu0
      %v3863 = vpop.f32.mrb[0].mxu0
      %v3864 = vadd.f32 0.0, %v3863
      %v3865 = vpop.f32.mrb[0].mxu0
      %3866 = vmatprep.mubr.bf16.mxu0 0
      %3867 = vmatmul.mubr.bf16.gmra.mrb[0].mxu0 %v1813
      %v3868 = vpop.f32.mrb[0].mxu0
      %v3869 = vadd.f32 0.0, %v3868
      %v3870 = vpop.f32.mrb[0].mxu0
      %v3871 = vpop.f32.mrb[0].mxu0
      %v3872 = vadd.f32 0.0, %v3871
      %v3873 = vpop.f32.mrb[0].mxu0
      %3874 = vmatprep.mubr.bf16.mxu0 0
      %3875 = vmatmul.mubr.bf16.gmra.mrb[0].mxu0 %v1814
      %v3876 = vpop.f32.mrb[0].mxu0
      %v3877 = vadd.f32 0.0, %v3876
      %v3878 = vpop.f32.mrb[0].mxu0
      %v3879 = vpop.f32.mrb[0].mxu0
      %v3880 = vadd.f32 0.0, %v3879
      %v3881 = vpop.f32.mrb[0].mxu0
      %3882 = vmatprep.mubr.bf16.mxu0 0
      %3883 = vmatmul.mubr.bf16.gmra.mrb[0].mxu0 %v1815
      %v3884 = vpop.f32.mrb[0].mxu0
      %v3885 = vadd.f32 0.0, %v3884
      %v3886 = vpop.f32.mrb[0].mxu0
      %v3887 = vpop.f32.mrb[0].mxu0
      %v3888 = vadd.f32 0.0, %v3887
      %v3889 = vpop.f32.mrb[0].mxu0
      %3890 = vmatprep.mubr.bf16.mxu0 0
      %3891 = vmatmul.mubr.bf16.gmra.mrb[0].mxu0 %v1816
      %v3892 = vpop.f32.mrb[0].mxu0
      %v3893 = vadd.f32 0.0, %v3892
      %v3894 = vpop.f32.mrb[0].mxu0
      %v3895 = vpop.f32.mrb[0].mxu0
      %v3896 = vadd.f32 0.0, %v3895
      %v3897 = vpop.f32.mrb[0].mxu0
      %3898 = vmatprep.mubr.bf16.mxu0 0
      %3899 = vmatmul.mubr.bf16.gmra.mrb[0].mxu0 %v1817
      %v3900 = vpop.f32.mrb[0].mxu0
      %v3901 = vadd.f32 0.0, %v3900
      %v3902 = vpop.f32.mrb[0].mxu0
      %v3903 = vpop.f32.mrb[0].mxu0
      %v3904 = vadd.f32 0.0, %v3903
      %v3905 = vpop.f32.mrb[0].mxu0
      %3906 = vmatprep.mubr.bf16.mxu0 0
      %3907 = vmatmul.mubr.bf16.gmra.mrb[0].mxu0 %v1818
      %v3908 = vpop.f32.mrb[0].mxu0
      %v3909 = vadd.f32 0.0, %v3908
      %v3910 = vpop.f32.mrb[0].mxu0
      %v3911 = vpop.f32.mrb[0].mxu0
      %v3912 = vadd.f32 0.0, %v3911
      %v3913 = vpop.f32.mrb[0].mxu0
      %3914 = vmatprep.mubr.bf16.mxu0 0
      %3915 = vmatmul.mubr.bf16.gmra.mrb[0].mxu0 %v1819
      %v3916 = vpop.f32.mrb[0].mxu0
      %v3917 = vadd.f32 0.0, %v3916
      %v3918 = vpop.f32.mrb[0].mxu0
      %v3919 = vpop.f32.mrb[0].mxu0
      %v3920 = vadd.f32 0.0, %v3919
      %v3921 = vpop.f32.mrb[0].mxu0
      %3922 = vmatprep.mubr.bf16.mxu0 0
      %3923 = vmatmul.mubr.bf16.gmra.mrb[0].mxu0 %v1820
      %v3924 = vpop.f32.mrb[0].mxu0
      %v3925 = vadd.f32 0.0, %v3924
      %v3926 = vpop.f32.mrb[0].mxu0
      %v3927 = vpop.f32.mrb[0].mxu0
      %v3928 = vadd.f32 0.0, %v3927
      %v3929 = vpop.f32.mrb[0].mxu0
      %3930 = vmatprep.mubr.bf16.mxu0 0
      %3931 = vmatmul.mubr.bf16.gmra.mrb[0].mxu0 %v1821
      %v3932 = vpop.f32.mrb[0].mxu0
      %v3933 = vadd.f32 0.0, %v3932
      %v3934 = vpop.f32.mrb[0].mxu0
      %v3935 = vpop.f32.mrb[0].mxu0
      %v3936 = vadd.f32 0.0, %v3935
      %v3937 = vpop.f32.mrb[0].mxu0
      %3938 = vmatprep.mubr.bf16.mxu0 0
      %3939 = vmatmul.mubr.bf16.gmra.mrb[0].mxu0 %v1822
      %v3940 = vpop.f32.mrb[0].mxu0
      %v3941 = vadd.f32 0.0, %v3940
      %v3942 = vpop.f32.mrb[0].mxu0
      %v3943 = vpop.f32.mrb[0].mxu0
      %v3944 = vadd.f32 0.0, %v3943
      %v3945 = vpop.f32.mrb[0].mxu0
      %3946 = vmatprep.mubr.bf16.mxu0 0
      %3947 = vmatmul.mubr.bf16.gmra.mrb[0].mxu0 %v1823
      %v3948 = vpop.f32.mrb[0].mxu0
      %v3949 = vadd.f32 0.0, %v3948
      %v3950 = vpop.f32.mrb[0].mxu0
      %v3951 = vpop.f32.mrb[0].mxu0
      %v3952 = vadd.f32 0.0, %v3951
      %v3953 = vpop.f32.mrb[0].mxu0
      %3954 = vmatprep.mubr.bf16.mxu0 0
      %3955 = vmatmul.mubr.bf16.gmra.mrb[0].mxu0 %v1824
      %v3956 = vpop.f32.mrb[0].mxu0
      %v3957 = vadd.f32 0.0, %v3956
      %v3958 = vpop.f32.mrb[0].mxu0
      %v3959 = vpop.f32.mrb[0].mxu0
      %v3960 = vadd.f32 0.0, %v3959
      %v3961 = vpop.f32.mrb[0].mxu0
      %3962 = vmatprep.mubr.bf16.mxu0 0
      %3963 = vmatmul.mubr.bf16.gmra.mrb[0].mxu0 %v1825
      %v3964 = vpop.f32.mrb[0].mxu0
      %v3965 = vadd.f32 0.0, %v3964
      %v3966 = vpop.f32.mrb[0].mxu0
      %v3967 = vpop.f32.mrb[0].mxu0
      %v3968 = vadd.f32 0.0, %v3967
      %v3969 = vpop.f32.mrb[0].mxu0
      %3970 = vmatprep.mubr.bf16.mxu0 0
      %3971 = vmatmul.mubr.bf16.gmra.mrb[0].mxu0 %v1826
      %v3972 = vpop.f32.mrb[0].mxu0
      %v3973 = vadd.f32 0.0, %v3972
      %v3974 = vpop.f32.mrb[0].mxu0
      %v3975 = vpop.f32.mrb[0].mxu0
      %v3976 = vadd.f32 0.0, %v3975
      %v3977 = vpop.f32.mrb[0].mxu0
      %3978 = vmatprep.mubr.bf16.mxu0 0
      %3979 = vmatmul.mubr.bf16.gmra.mrb[0].mxu0 %v1827
      %v3980 = vpop.f32.mrb[0].mxu0
      %v3981 = vadd.f32 0.0, %v3980
      %v3982 = vpop.f32.mrb[0].mxu0
      %v3983 = vpop.f32.mrb[0].mxu0
      %v3984 = vadd.f32 0.0, %v3983
      %v3985 = vpop.f32.mrb[0].mxu0
      %3986 = vmatprep.mubr.bf16.mxu0 0
      %3987 = vmatmul.mubr.bf16.gmra.mrb[0].mxu0 %v1828
      %v3988 = vpop.f32.mrb[0].mxu0
      %v3989 = vadd.f32 0.0, %v3988
      %v3990 = vpop.f32.mrb[0].mxu0
      %v3991 = vpop.f32.mrb[0].mxu0
      %v3992 = vadd.f32 0.0, %v3991
      %v3993 = vpop.f32.mrb[0].mxu0
      %3994 = vmatprep.mubr.bf16.mxu0 0
      %3995 = vmatmul.mubr.bf16.gmra.mrb[0].mxu0 %v1829
      %v3996 = vpop.f32.mrb[0].mxu0
      %v3997 = vadd.f32 0.0, %v3996
      %v3998 = vpop.f32.mrb[0].mxu0
      %v3999 = vpop.f32.mrb[0].mxu0
      %v4000 = vadd.f32 0.0, %v3999
      %v4001 = vpop.f32.mrb[0].mxu0
      %4002 = vmatprep.mubr.bf16.mxu0 0
      %4003 = vmatmul.mubr.bf16.gmra.mrb[0].mxu0 %v1830
      %v4004 = vpop.f32.mrb[0].mxu0
      %v4005 = vadd.f32 0.0, %v4004
      %v4006 = vpop.f32.mrb[0].mxu0
      %v4007 = vpop.f32.mrb[0].mxu0
      %v4008 = vadd.f32 0.0, %v4007
      %v4009 = vpop.f32.mrb[0].mxu0
      %4010 = vmatprep.mubr.bf16.mxu0 0
      %4011 = vmatmul.mubr.bf16.gmra.mrb[0].mxu0 %v1831
      %v4012 = vpop.f32.mrb[0].mxu0
      %v4013 = vadd.f32 0.0, %v4012
      %v4014 = vpop.f32.mrb[0].mxu0
      %v4015 = vpop.f32.mrb[0].mxu0
      %v4016 = vadd.f32 0.0, %v4015
      %v4017 = vpop.f32.mrb[0].mxu0
      %4018 = vmatprep.mubr.bf16.mxu0 0
      %4019 = vmatmul.mubr.bf16.gmra.mrb[0].mxu0 %v1832
      %v4020 = vpop.f32.mrb[0].mxu0
      %v4021 = vadd.f32 0.0, %v4020
      %v4022 = vpop.f32.mrb[0].mxu0
      %v4023 = vpop.f32.mrb[0].mxu0
      %v4024 = vadd.f32 0.0, %v4023
      %v4025 = vpop.f32.mrb[0].mxu0
      %4026 = vmatprep.mubr.bf16.mxu0 0
      %4027 = vmatmul.mubr.bf16.gmra.mrb[0].mxu0 %v3772
      %v4028 = vpop.f32.mrb[0].mxu0
      %v4029 = vadd.f32 0.0, %v4028
      %v4030 = vpop.f32.mrb[0].mxu0
      %v4031 = vpop.f32.mrb[0].mxu0
      %v4032 = vadd.f32 0.0, %v4031
      %v4033 = vpop.f32.mrb[0].mxu0
      %4034 = vmatprep.mubr.bf16.mxu0 0
      %4035 = vmatmul.mubr.bf16.gmra.mrb[0].mxu0 %v3773
      %v4036 = vpop.f32.mrb[0].mxu0
      %v4037 = vadd.f32 0.0, %v4036
      %v4038 = vpop.f32.mrb[0].mxu0
      %v4039 = vpop.f32.mrb[0].mxu0
      %v4040 = vadd.f32 0.0, %v4039
      %v4041 = vpop.f32.mrb[0].mxu0
      %4042 = vmatprep.mubr.bf16.mxu0 0
      %4043 = vmatmul.mubr.bf16.gmra.mrb[0].mxu0 %v3774
      %v4044 = vpop.f32.mrb[0].mxu0
      %v4045 = vadd.f32 0.0, %v4044
      %v4046 = vpop.f32.mrb[0].mxu0
      %v4047 = vpop.f32.mrb[0].mxu0
      %v4048 = vadd.f32 0.0, %v4047
      %v4049 = vpop.f32.mrb[0].mxu0
      %4050 = vdwg.mxu0
      %v4051 = vadd.f32 %v3703, %v3861
      %v4052 = vadd.f32 %v3704, %v3864
      %v4053 = vadd.f32 %v3705, %v3869
      %v4054 = vadd.f32 %v3706, %v3872
      %v4055 = vadd.f32 %v3707, %v3877
      %v4056 = vadd.f32 %v3708, %v3880
      %v4057 = vadd.f32 %v3709, %v3885
      %v4058 = vadd.f32 %v3710, %v3888
      %v4059 = vadd.f32 %v3711, %v3893
      %v4060 = vadd.f32 %v3712, %v3896
      %v4061 = vadd.f32 %v3713, %v3901
      %v4062 = vadd.f32 %v3714, %v3904
      %v4063 = vadd.f32 %v3715, %v3909
      %v4064 = vadd.f32 %v3716, %v3912
      %v4065 = vadd.f32 %v3717, %v3917
      %v4066 = vadd.f32 %v3718, %v3920
      %v4067 = vadd.f32 %v3719, %v3925
      %v4068 = vadd.f32 %v3720, %v3928
      %v4069 = vadd.f32 %v3721, %v3933
      %v4070 = vadd.f32 %v3722, %v3936
      %v4071 = vadd.f32 %v3723, %v3941
      %v4072 = vadd.f32 %v3724, %v3944
      %v4073 = vadd.f32 %v3725, %v3949
      %v4074 = vadd.f32 %v3726, %v3952
      %v4075 = vadd.f32 %v3727, %v3957
      %v4076 = vadd.f32 %v3728, %v3960
      %v4077 = vadd.f32 %v3729, %v3965
      %v4078 = vadd.f32 %v3730, %v3968
      %v4079 = vadd.f32 %v3731, %v3973
      %v4080 = vadd.f32 %v3732, %v3976
      %v4081 = vadd.f32 %v3733, %v3981
      %v4082 = vadd.f32 %v3734, %v3984
      %v4083 = vadd.f32 %v3735, %v3989
      %v4084 = vadd.f32 %v3736, %v3992
      %v4085 = vadd.f32 %v3737, %v3997
      %v4086 = vadd.f32 %v3738, %v4000
      %v4087 = vadd.f32 %v3739, %v4005
      %v4088 = vadd.f32 %v3740, %v4008
      %v4089 = vadd.f32 %v3741, %v4013
      %v4090 = vadd.f32 %v3742, %v4016
      %v4091 = vadd.f32 %v3743, %v4021
      %v4092 = vadd.f32 %v3744, %v4024
      %v4093 = vadd.f32 %v3745, %v4029
      %v4094 = vadd.f32 %v3746, %v4032
      %v4095 = vadd.f32 %v3747, %v4037
      %v4096 = vadd.f32 %v3748, %v4040
      %v4097 = vadd.f32 %v3749, %v4045
      %v4098 = vadd.f32 %v3750, %v4048
      %v4101 = vunpack.c.l.b16 %v870
      %v4102 = vunpack.c.h.b16 %v870
      %v4103 = vunpack.c.l.b16 %v871
      %s4104 = scalar_lea.vmem %s5, 448
      %v4105 = vld [vmem:[%s4104] sm:$0xf]
      %v4106 = vld [vmem:[%s4104 + $0x4] sm:$0xf]
      %v4107 = vld [vmem:[%s4104 + $0x8] sm:$0xf]
      %v4108 = vld [vmem:[%s4104 + $0xc] sm:$0xf]
      %v4109 = vld [vmem:[%s4104 + $0x10] sm:$0xf]
      %v4110 = vld [vmem:[%s4104 + $0x14] sm:$0xf]
      %v4111 = vld [vmem:[%s4104 + $0x18] sm:$0xf]
      %v4112 = vld [vmem:[%s4104 + $0x1c] sm:$0xf]
      %v4113 = vld [vmem:[%s4104 + $0x20] sm:$0xf]
      %v4114 = vld [vmem:[%s4104 + $0x24] sm:$0xf]
      %v4115 = vld [vmem:[%s4104 + $0x28] sm:$0xf]
      %v4116 = vld [vmem:[%s4104 + $0x2c] sm:$0xf]
      %v4117 = vld [vmem:[%s4104 + $0x30] sm:$0xf]
      %v4118 = vld [vmem:[%s4104 + $0x34] sm:$0xf]
      %v4119 = vld [vmem:[%s4104 + $0x38] sm:$0xf]
      %v4120 = vld [vmem:[%s4104 + $0x3c] sm:$0xf]
      %v4121 = vpack.c.b16 %v2973, %v2972
      %v4122 = vpack.c.b16 %v4101, %v2974
      %v4123 = vpack.c.b16 %v4103, %v4102
      %v4143 = vunpack.c.l.b16 %v4105
      %v4144 = vunpack.c.l.b16 %v4106
      %v4145 = vunpack.c.l.b16 %v4107
      %v4146 = vunpack.c.l.b16 %v4108
      %v4147 = vunpack.c.l.b16 %v4109
      %v4148 = vunpack.c.l.b16 %v4110
      %v4149 = vunpack.c.l.b16 %v4111
      %v4150 = vunpack.c.l.b16 %v4112
      %v4151 = vunpack.c.l.b16 %v4113
      %v4152 = vunpack.c.l.b16 %v4114
      %v4153 = vunpack.c.l.b16 %v4115
      %v4154 = vunpack.c.l.b16 %v4116
      %v4155 = vunpack.c.l.b16 %v4117
      %v4156 = vunpack.c.l.b16 %v4118
      %v4157 = vunpack.c.l.b16 %v4119
      %v4158 = vunpack.c.l.b16 %v4120
      %v4159 = vpack.c.b16 %v4144, %v4143
      %v4160 = vpack.c.b16 %v4146, %v4145
      %v4161 = vpack.c.b16 %v4148, %v4147
      %v4162 = vpack.c.b16 %v4150, %v4149
      %v4163 = vpack.c.b16 %v4152, %v4151
      %v4164 = vpack.c.b16 %v4154, %v4153
      %v4165 = vpack.c.b16 %v4156, %v4155
      %v4166 = vpack.c.b16 %v4158, %v4157
      %4175 = vmatprep.subr.bf16.mxu0 0
      %4176 = vmatpush1.bf16.msra.mxu0 %v4159
      %4177 = vmatprep.subr.bf16.mxu0 0
      %4178 = vmatpush1.bf16.msra.mxu0 %v4160
      %4179 = vmatprep.subr.bf16.mxu0 0
      %4180 = vmatpush1.bf16.msra.mxu0 %v4161
      %4181 = vmatprep.subr.bf16.mxu0 0
      %4182 = vmatpush1.bf16.msra.mxu0 %v4162
      %4183 = vmatprep.subr.bf16.mxu0 0
      %4184 = vmatpush1.bf16.msra.mxu0 %v4163
      %4185 = vmatprep.subr.bf16.mxu0 0
      %4186 = vmatpush1.bf16.msra.mxu0 %v4164
      %4187 = vmatprep.subr.bf16.mxu0 0
      %4188 = vmatpush1.bf16.msra.mxu0 %v4165
      %4189 = vmatprep.subr.bf16.mxu0 0
      %4190 = vmatpush1.bf16.msra.mxu0 %v4166
      %4191 = vmatprep.subr.bf16.mxu0 0
      %4192 = vmatpush1.bf16.msra.mxu0 0
      %4193 = vmatprep.subr.bf16.mxu0 0
      %4194 = vmatpush1.bf16.msra.mxu0 0
      %4195 = vmatprep.subr.bf16.mxu0 0
      %4196 = vmatpush1.bf16.msra.mxu0 0
      %4197 = vmatprep.subr.bf16.mxu0 0
      %4198 = vmatpush1.bf16.msra.mxu0 0
      %4199 = vmatprep.subr.bf16.mxu0 0
      %4200 = vmatpush1.bf16.msra.mxu0 0
      %4201 = vmatprep.subr.bf16.mxu0 0
      %4202 = vmatpush1.bf16.msra.mxu0 0
      %4203 = vmatprep.subr.bf16.mxu0 0
      %4204 = vmatpush1.bf16.msra.mxu0 0
      %4205 = vmatprep.subr.bf16.mxu0 0
      %4206 = vmatpush1.bf16.msra.mxu0 0
      %4207 = vmatprep.mubr.bf16.mxu0 0
      %4208 = vmatmul.mubr.bf16.gmra.mrb[0].mxu0 %v1491
      %v4209 = vpop.f32.mrb[0].mxu0
      %v4210 = vadd.f32 0.0, %v4209
      %v4211 = vpop.f32.mrb[0].mxu0
      %v4212 = vpop.f32.mrb[0].mxu0
      %v4213 = vadd.f32 0.0, %v4212
      %v4214 = vpop.f32.mrb[0].mxu0
      %4215 = vmatprep.mubr.bf16.mxu0 0
      %4216 = vmatmul.mubr.bf16.gmra.mrb[0].mxu0 %v1492
      %v4217 = vpop.f32.mrb[0].mxu0
      %v4218 = vadd.f32 0.0, %v4217
      %v4219 = vpop.f32.mrb[0].mxu0
      %v4220 = vpop.f32.mrb[0].mxu0
      %v4221 = vadd.f32 0.0, %v4220
      %v4222 = vpop.f32.mrb[0].mxu0
      %4223 = vmatprep.mubr.bf16.mxu0 0
      %4224 = vmatmul.mubr.bf16.gmra.mrb[0].mxu0 %v1493
      %v4225 = vpop.f32.mrb[0].mxu0
      %v4226 = vadd.f32 0.0, %v4225
      %v4227 = vpop.f32.mrb[0].mxu0
      %v4228 = vpop.f32.mrb[0].mxu0
      %v4229 = vadd.f32 0.0, %v4228
      %v4230 = vpop.f32.mrb[0].mxu0
      %4231 = vmatprep.mubr.bf16.mxu0 0
      %4232 = vmatmul.mubr.bf16.gmra.mrb[0].mxu0 %v1494
      %v4233 = vpop.f32.mrb[0].mxu0
      %v4234 = vadd.f32 0.0, %v4233
      %v4235 = vpop.f32.mrb[0].mxu0
      %v4236 = vpop.f32.mrb[0].mxu0
      %v4237 = vadd.f32 0.0, %v4236
      %v4238 = vpop.f32.mrb[0].mxu0
      %4239 = vmatprep.mubr.bf16.mxu0 0
      %4240 = vmatmul.mubr.bf16.gmra.mrb[0].mxu0 %v1495
      %v4241 = vpop.f32.mrb[0].mxu0
      %v4242 = vadd.f32 0.0, %v4241
      %v4243 = vpop.f32.mrb[0].mxu0
      %v4244 = vpop.f32.mrb[0].mxu0
      %v4245 = vadd.f32 0.0, %v4244
      %v4246 = vpop.f32.mrb[0].mxu0
      %4247 = vmatprep.mubr.bf16.mxu0 0
      %4248 = vmatmul.mubr.bf16.gmra.mrb[0].mxu0 %v1496
      %v4249 = vpop.f32.mrb[0].mxu0
      %v4250 = vadd.f32 0.0, %v4249
      %v4251 = vpop.f32.mrb[0].mxu0
      %v4252 = vpop.f32.mrb[0].mxu0
      %v4253 = vadd.f32 0.0, %v4252
      %v4254 = vpop.f32.mrb[0].mxu0
      %4255 = vmatprep.mubr.bf16.mxu0 0
      %4256 = vmatmul.mubr.bf16.gmra.mrb[0].mxu0 %v1497
      %v4257 = vpop.f32.mrb[0].mxu0
      %v4258 = vadd.f32 0.0, %v4257
      %v4259 = vpop.f32.mrb[0].mxu0
      %v4260 = vpop.f32.mrb[0].mxu0
      %v4261 = vadd.f32 0.0, %v4260
      %v4262 = vpop.f32.mrb[0].mxu0
      %4263 = vmatprep.mubr.bf16.mxu0 0
      %4264 = vmatmul.mubr.bf16.gmra.mrb[0].mxu0 %v1498
      %v4265 = vpop.f32.mrb[0].mxu0
      %v4266 = vadd.f32 0.0, %v4265
      %v4267 = vpop.f32.mrb[0].mxu0
      %v4268 = vpop.f32.mrb[0].mxu0
      %v4269 = vadd.f32 0.0, %v4268
      %v4270 = vpop.f32.mrb[0].mxu0
      %4271 = vmatprep.mubr.bf16.mxu0 0
      %4272 = vmatmul.mubr.bf16.gmra.mrb[0].mxu0 %v1499
      %v4273 = vpop.f32.mrb[0].mxu0
      %v4274 = vadd.f32 0.0, %v4273
      %v4275 = vpop.f32.mrb[0].mxu0
      %v4276 = vpop.f32.mrb[0].mxu0
      %v4277 = vadd.f32 0.0, %v4276
      %v4278 = vpop.f32.mrb[0].mxu0
      %4279 = vmatprep.mubr.bf16.mxu0 0
      %4280 = vmatmul.mubr.bf16.gmra.mrb[0].mxu0 %v1500
      %v4281 = vpop.f32.mrb[0].mxu0
      %v4282 = vadd.f32 0.0, %v4281
      %v4283 = vpop.f32.mrb[0].mxu0
      %v4284 = vpop.f32.mrb[0].mxu0
      %v4285 = vadd.f32 0.0, %v4284
      %v4286 = vpop.f32.mrb[0].mxu0
      %4287 = vmatprep.mubr.bf16.mxu0 0
      %4288 = vmatmul.mubr.bf16.gmra.mrb[0].mxu0 %v1501
      %v4289 = vpop.f32.mrb[0].mxu0
      %v4290 = vadd.f32 0.0, %v4289
      %v4291 = vpop.f32.mrb[0].mxu0
      %v4292 = vpop.f32.mrb[0].mxu0
      %v4293 = vadd.f32 0.0, %v4292
      %v4294 = vpop.f32.mrb[0].mxu0
      %4295 = vmatprep.mubr.bf16.mxu0 0
      %4296 = vmatmul.mubr.bf16.gmra.mrb[0].mxu0 %v1502
      %v4297 = vpop.f32.mrb[0].mxu0
      %v4298 = vadd.f32 0.0, %v4297
      %v4299 = vpop.f32.mrb[0].mxu0
      %v4300 = vpop.f32.mrb[0].mxu0
      %v4301 = vadd.f32 0.0, %v4300
      %v4302 = vpop.f32.mrb[0].mxu0
      %4303 = vmatprep.mubr.bf16.mxu0 0
      %4304 = vmatmul.mubr.bf16.gmra.mrb[0].mxu0 %v1503
      %v4305 = vpop.f32.mrb[0].mxu0
      %v4306 = vadd.f32 0.0, %v4305
      %v4307 = vpop.f32.mrb[0].mxu0
      %v4308 = vpop.f32.mrb[0].mxu0
      %v4309 = vadd.f32 0.0, %v4308
      %v4310 = vpop.f32.mrb[0].mxu0
      %4311 = vmatprep.mubr.bf16.mxu0 0
      %4312 = vmatmul.mubr.bf16.gmra.mrb[0].mxu0 %v1504
      %v4313 = vpop.f32.mrb[0].mxu0
      %v4314 = vadd.f32 0.0, %v4313
      %v4315 = vpop.f32.mrb[0].mxu0
      %v4316 = vpop.f32.mrb[0].mxu0
      %v4317 = vadd.f32 0.0, %v4316
      %v4318 = vpop.f32.mrb[0].mxu0
      %4319 = vmatprep.mubr.bf16.mxu0 0
      %4320 = vmatmul.mubr.bf16.gmra.mrb[0].mxu0 %v1505
      %v4321 = vpop.f32.mrb[0].mxu0
      %v4322 = vadd.f32 0.0, %v4321
      %v4323 = vpop.f32.mrb[0].mxu0
      %v4324 = vpop.f32.mrb[0].mxu0
      %v4325 = vadd.f32 0.0, %v4324
      %v4326 = vpop.f32.mrb[0].mxu0
      %4327 = vmatprep.mubr.bf16.mxu0 0
      %4328 = vmatmul.mubr.bf16.gmra.mrb[0].mxu0 %v1506
      %v4329 = vpop.f32.mrb[0].mxu0
      %v4330 = vadd.f32 0.0, %v4329
      %v4331 = vpop.f32.mrb[0].mxu0
      %v4332 = vpop.f32.mrb[0].mxu0
      %v4333 = vadd.f32 0.0, %v4332
      %v4334 = vpop.f32.mrb[0].mxu0
      %4335 = vmatprep.mubr.bf16.mxu0 0
      %4336 = vmatmul.mubr.bf16.gmra.mrb[0].mxu0 %v1507
      %v4337 = vpop.f32.mrb[0].mxu0
      %v4338 = vadd.f32 0.0, %v4337
      %v4339 = vpop.f32.mrb[0].mxu0
      %v4340 = vpop.f32.mrb[0].mxu0
      %v4341 = vadd.f32 0.0, %v4340
      %v4342 = vpop.f32.mrb[0].mxu0
      %4343 = vmatprep.mubr.bf16.mxu0 0
      %4344 = vmatmul.mubr.bf16.gmra.mrb[0].mxu0 %v1508
      %v4345 = vpop.f32.mrb[0].mxu0
      %v4346 = vadd.f32 0.0, %v4345
      %v4347 = vpop.f32.mrb[0].mxu0
      %v4348 = vpop.f32.mrb[0].mxu0
      %v4349 = vadd.f32 0.0, %v4348
      %v4350 = vpop.f32.mrb[0].mxu0
      %4351 = vmatprep.mubr.bf16.mxu0 0
      %4352 = vmatmul.mubr.bf16.gmra.mrb[0].mxu0 %v1509
      %v4353 = vpop.f32.mrb[0].mxu0
      %v4354 = vadd.f32 0.0, %v4353
      %v4355 = vpop.f32.mrb[0].mxu0
      %v4356 = vpop.f32.mrb[0].mxu0
      %v4357 = vadd.f32 0.0, %v4356
      %v4358 = vpop.f32.mrb[0].mxu0
      %4359 = vmatprep.mubr.bf16.mxu0 0
      %4360 = vmatmul.mubr.bf16.gmra.mrb[0].mxu0 %v1510
      %v4361 = vpop.f32.mrb[0].mxu0
      %v4362 = vadd.f32 0.0, %v4361
      %v4363 = vpop.f32.mrb[0].mxu0
      %v4364 = vpop.f32.mrb[0].mxu0
      %v4365 = vadd.f32 0.0, %v4364
      %v4366 = vpop.f32.mrb[0].mxu0
      %4367 = vmatprep.mubr.bf16.mxu0 0
      %4368 = vmatmul.mubr.bf16.gmra.mrb[0].mxu0 %v1511
      %v4369 = vpop.f32.mrb[0].mxu0
      %v4370 = vadd.f32 0.0, %v4369
      %v4371 = vpop.f32.mrb[0].mxu0
      %v4372 = vpop.f32.mrb[0].mxu0
      %v4373 = vadd.f32 0.0, %v4372
      %v4374 = vpop.f32.mrb[0].mxu0
      %4375 = vmatprep.mubr.bf16.mxu0 0
      %4376 = vmatmul.mubr.bf16.gmra.mrb[0].mxu0 %v4121
      %v4377 = vpop.f32.mrb[0].mxu0
      %v4378 = vadd.f32 0.0, %v4377
      %v4379 = vpop.f32.mrb[0].mxu0
      %v4380 = vpop.f32.mrb[0].mxu0
      %v4381 = vadd.f32 0.0, %v4380
      %v4382 = vpop.f32.mrb[0].mxu0
      %4383 = vmatprep.mubr.bf16.mxu0 0
      %4384 = vmatmul.mubr.bf16.gmra.mrb[0].mxu0 %v4122
      %v4385 = vpop.f32.mrb[0].mxu0
      %v4386 = vadd.f32 0.0, %v4385
      %v4387 = vpop.f32.mrb[0].mxu0
      %v4388 = vpop.f32.mrb[0].mxu0
      %v4389 = vadd.f32 0.0, %v4388
      %v4390 = vpop.f32.mrb[0].mxu0
      %4391 = vmatprep.mubr.bf16.mxu0 0
      %4392 = vmatmul.mubr.bf16.gmra.mrb[0].mxu0 %v4123
      %v4393 = vpop.f32.mrb[0].mxu0
      %v4394 = vadd.f32 0.0, %v4393
      %v4395 = vpop.f32.mrb[0].mxu0
      %v4396 = vpop.f32.mrb[0].mxu0
      %v4397 = vadd.f32 0.0, %v4396
      %v4398 = vpop.f32.mrb[0].mxu0
      %4399 = vdwg.mxu0
      %v4400 = vadd.f32 %v4051, %v4210
      %v4401 = vadd.f32 %v4052, %v4213
      %v4402 = vadd.f32 %v4053, %v4218
      %v4403 = vadd.f32 %v4054, %v4221
      %v4404 = vadd.f32 %v4055, %v4226
      %v4405 = vadd.f32 %v4056, %v4229
      %v4406 = vadd.f32 %v4057, %v4234
      %v4407 = vadd.f32 %v4058, %v4237
      %v4408 = vadd.f32 %v4059, %v4242
      %v4409 = vadd.f32 %v4060, %v4245
      %v4410 = vadd.f32 %v4061, %v4250
      %v4411 = vadd.f32 %v4062, %v4253
      %v4412 = vadd.f32 %v4063, %v4258
      %v4413 = vadd.f32 %v4064, %v4261
      %v4414 = vadd.f32 %v4065, %v4266
      %v4415 = vadd.f32 %v4066, %v4269
      %v4416 = vadd.f32 %v4067, %v4274
      %v4417 = vadd.f32 %v4068, %v4277
      %v4418 = vadd.f32 %v4069, %v4282
      %v4419 = vadd.f32 %v4070, %v4285
      %v4420 = vadd.f32 %v4071, %v4290
      %v4421 = vadd.f32 %v4072, %v4293
      %v4422 = vadd.f32 %v4073, %v4298
      %v4423 = vadd.f32 %v4074, %v4301
      %v4424 = vadd.f32 %v4075, %v4306
      %v4425 = vadd.f32 %v4076, %v4309
      %v4426 = vadd.f32 %v4077, %v4314
      %v4427 = vadd.f32 %v4078, %v4317
      %v4428 = vadd.f32 %v4079, %v4322
      %v4429 = vadd.f32 %v4080, %v4325
      %v4430 = vadd.f32 %v4081, %v4330
      %v4431 = vadd.f32 %v4082, %v4333
      %v4432 = vadd.f32 %v4083, %v4338
      %v4433 = vadd.f32 %v4084, %v4341
      %v4434 = vadd.f32 %v4085, %v4346
      %v4435 = vadd.f32 %v4086, %v4349
      %v4436 = vadd.f32 %v4087, %v4354
      %v4437 = vadd.f32 %v4088, %v4357
      %v4438 = vadd.f32 %v4089, %v4362
      %v4439 = vadd.f32 %v4090, %v4365
      %v4440 = vadd.f32 %v4091, %v4370
      %v4441 = vadd.f32 %v4092, %v4373
      %v4442 = vadd.f32 %v4093, %v4378
      %v4443 = vadd.f32 %v4094, %v4381
      %v4444 = vadd.f32 %v4095, %v4386
      %v4445 = vadd.f32 %v4096, %v4389
      %v4446 = vadd.f32 %v4097, %v4394
      %v4447 = vadd.f32 %v4098, %v4397
      %v4449 = vunpack.c.l.b16 %v1270
      %v4450 = vunpack.c.h.b16 %v1270
      %v4451 = vunpack.c.l.b16 %v1310
      %s4452 = scalar_lea.vmem %s5, 512
      %v4453 = vld [vmem:[%s4452] sm:$0xf]
      %v4454 = vld [vmem:[%s4452 + $0x4] sm:$0xf]
      %v4455 = vld [vmem:[%s4452 + $0x8] sm:$0xf]
      %v4456 = vld [vmem:[%s4452 + $0xc] sm:$0xf]
      %v4457 = vld [vmem:[%s4452 + $0x10] sm:$0xf]
      %v4458 = vld [vmem:[%s4452 + $0x14] sm:$0xf]
      %v4459 = vld [vmem:[%s4452 + $0x18] sm:$0xf]
      %v4460 = vld [vmem:[%s4452 + $0x1c] sm:$0xf]
      %v4461 = vld [vmem:[%s4452 + $0x20] sm:$0xf]
      %v4462 = vld [vmem:[%s4452 + $0x24] sm:$0xf]
      %v4463 = vld [vmem:[%s4452 + $0x28] sm:$0xf]
      %v4464 = vld [vmem:[%s4452 + $0x2c] sm:$0xf]
      %v4465 = vld [vmem:[%s4452 + $0x30] sm:$0xf]
      %v4466 = vld [vmem:[%s4452 + $0x34] sm:$0xf]
      %v4467 = vld [vmem:[%s4452 + $0x38] sm:$0xf]
      %v4468 = vld [vmem:[%s4452 + $0x3c] sm:$0xf]
      %v4469 = vpack.c.b16 %v3363, %v3362
      %v4470 = vpack.c.b16 %v4449, %v3364
      %v4471 = vpack.c.b16 %v4451, %v4450
      %v4491 = vunpack.c.l.b16 %v4453
      %v4492 = vunpack.c.l.b16 %v4454
      %v4493 = vunpack.c.l.b16 %v4455
      %v4494 = vunpack.c.l.b16 %v4456
      %v4495 = vunpack.c.l.b16 %v4457
      %v4496 = vunpack.c.l.b16 %v4458
      %v4497 = vunpack.c.l.b16 %v4459
      %v4498 = vunpack.c.l.b16 %v4460
      %v4499 = vunpack.c.l.b16 %v4461
      %v4500 = vunpack.c.l.b16 %v4462
      %v4501 = vunpack.c.l.b16 %v4463
      %v4502 = vunpack.c.l.b16 %v4464
      %v4503 = vunpack.c.l.b16 %v4465
      %v4504 = vunpack.c.l.b16 %v4466
      %v4505 = vunpack.c.l.b16 %v4467
      %v4506 = vunpack.c.l.b16 %v4468
      %v4507 = vpack.c.b16 %v4492, %v4491
      %v4508 = vpack.c.b16 %v4494, %v4493
      %v4509 = vpack.c.b16 %v4496, %v4495
      %v4510 = vpack.c.b16 %v4498, %v4497
      %v4511 = vpack.c.b16 %v4500, %v4499
      %v4512 = vpack.c.b16 %v4502, %v4501
      %v4513 = vpack.c.b16 %v4504, %v4503
      %v4514 = vpack.c.b16 %v4506, %v4505
      %4523 = vmatprep.subr.bf16.mxu0 0
      %4524 = vmatpush1.bf16.msra.mxu0 %v4507
      %4525 = vmatprep.subr.bf16.mxu0 0
      %4526 = vmatpush1.bf16.msra.mxu0 %v4508
      %4527 = vmatprep.subr.bf16.mxu0 0
      %4528 = vmatpush1.bf16.msra.mxu0 %v4509
      %4529 = vmatprep.subr.bf16.mxu0 0
      %4530 = vmatpush1.bf16.msra.mxu0 %v4510
      %4531 = vmatprep.subr.bf16.mxu0 0
      %4532 = vmatpush1.bf16.msra.mxu0 %v4511
      %4533 = vmatprep.subr.bf16.mxu0 0
      %4534 = vmatpush1.bf16.msra.mxu0 %v4512
      %4535 = vmatprep.subr.bf16.mxu0 0
      %4536 = vmatpush1.bf16.msra.mxu0 %v4513
      %4537 = vmatprep.subr.bf16.mxu0 0
      %4538 = vmatpush1.bf16.msra.mxu0 %v4514
      %4539 = vmatprep.subr.bf16.mxu0 0
      %4540 = vmatpush1.bf16.msra.mxu0 0
      %4541 = vmatprep.subr.bf16.mxu0 0
      %4542 = vmatpush1.bf16.msra.mxu0 0
      %4543 = vmatprep.subr.bf16.mxu0 0
      %4544 = vmatpush1.bf16.msra.mxu0 0
      %4545 = vmatprep.subr.bf16.mxu0 0
      %4546 = vmatpush1.bf16.msra.mxu0 0
      %4547 = vmatprep.subr.bf16.mxu0 0
      %4548 = vmatpush1.bf16.msra.mxu0 0
      %4549 = vmatprep.subr.bf16.mxu0 0
      %4550 = vmatpush1.bf16.msra.mxu0 0
      %4551 = vmatprep.subr.bf16.mxu0 0
      %4552 = vmatpush1.bf16.msra.mxu0 0
      %4553 = vmatprep.subr.bf16.mxu0 0
      %4554 = vmatpush1.bf16.msra.mxu0 0
      %4555 = vmatprep.mubr.bf16.mxu0 0
      %4556 = vmatmul.mubr.bf16.gmra.mrb[0].mxu0 %v2214
      %v4557 = vpop.f32.mrb[0].mxu0
      %v4558 = vadd.f32 0.0, %v4557
      %v4559 = vpop.f32.mrb[0].mxu0
      %v4560 = vpop.f32.mrb[0].mxu0
      %v4561 = vadd.f32 0.0, %v4560
      %v4562 = vpop.f32.mrb[0].mxu0
      %4563 = vmatprep.mubr.bf16.mxu0 0
      %4564 = vmatmul.mubr.bf16.gmra.mrb[0].mxu0 %v2215
      %v4565 = vpop.f32.mrb[0].mxu0
      %v4566 = vadd.f32 0.0, %v4565
      %v4567 = vpop.f32.mrb[0].mxu0
      %v4568 = vpop.f32.mrb[0].mxu0
      %v4569 = vadd.f32 0.0, %v4568
      %v4570 = vpop.f32.mrb[0].mxu0
      %4571 = vmatprep.mubr.bf16.mxu0 0
      %4572 = vmatmul.mubr.bf16.gmra.mrb[0].mxu0 %v2216
      %v4573 = vpop.f32.mrb[0].mxu0
      %v4574 = vadd.f32 0.0, %v4573
      %v4575 = vpop.f32.mrb[0].mxu0
      %v4576 = vpop.f32.mrb[0].mxu0
      %v4577 = vadd.f32 0.0, %v4576
      %v4578 = vpop.f32.mrb[0].mxu0
      %4579 = vmatprep.mubr.bf16.mxu0 0
      %4580 = vmatmul.mubr.bf16.gmra.mrb[0].mxu0 %v2217
      %v4581 = vpop.f32.mrb[0].mxu0
      %v4582 = vadd.f32 0.0, %v4581
      %v4583 = vpop.f32.mrb[0].mxu0
      %v4584 = vpop.f32.mrb[0].mxu0
      %v4585 = vadd.f32 0.0, %v4584
      %v4586 = vpop.f32.mrb[0].mxu0
      %4587 = vmatprep.mubr.bf16.mxu0 0
      %4588 = vmatmul.mubr.bf16.gmra.mrb[0].mxu0 %v2218
      %v4589 = vpop.f32.mrb[0].mxu0
      %v4590 = vadd.f32 0.0, %v4589
      %v4591 = vpop.f32.mrb[0].mxu0
      %v4592 = vpop.f32.mrb[0].mxu0
      %v4593 = vadd.f32 0.0, %v4592
      %v4594 = vpop.f32.mrb[0].mxu0
      %4595 = vmatprep.mubr.bf16.mxu0 0
      %4596 = vmatmul.mubr.bf16.gmra.mrb[0].mxu0 %v2219
      %v4597 = vpop.f32.mrb[0].mxu0
      %v4598 = vadd.f32 0.0, %v4597
      %v4599 = vpop.f32.mrb[0].mxu0
      %v4600 = vpop.f32.mrb[0].mxu0
      %v4601 = vadd.f32 0.0, %v4600
      %v4602 = vpop.f32.mrb[0].mxu0
      %4603 = vmatprep.mubr.bf16.mxu0 0
      %4604 = vmatmul.mubr.bf16.gmra.mrb[0].mxu0 %v2220
      %v4605 = vpop.f32.mrb[0].mxu0
      %v4606 = vadd.f32 0.0, %v4605
      %v4607 = vpop.f32.mrb[0].mxu0
      %v4608 = vpop.f32.mrb[0].mxu0
      %v4609 = vadd.f32 0.0, %v4608
      %v4610 = vpop.f32.mrb[0].mxu0
      %4611 = vmatprep.mubr.bf16.mxu0 0
      %4612 = vmatmul.mubr.bf16.gmra.mrb[0].mxu0 %v2221
      %v4613 = vpop.f32.mrb[0].mxu0
      %v4614 = vadd.f32 0.0, %v4613
      %v4615 = vpop.f32.mrb[0].mxu0
      %v4616 = vpop.f32.mrb[0].mxu0
      %v4617 = vadd.f32 0.0, %v4616
      %v4618 = vpop.f32.mrb[0].mxu0
      %4619 = vmatprep.mubr.bf16.mxu0 0
      %4620 = vmatmul.mubr.bf16.gmra.mrb[0].mxu0 %v2222
      %v4621 = vpop.f32.mrb[0].mxu0
      %v4622 = vadd.f32 0.0, %v4621
      %v4623 = vpop.f32.mrb[0].mxu0
      %v4624 = vpop.f32.mrb[0].mxu0
      %v4625 = vadd.f32 0.0, %v4624
      %v4626 = vpop.f32.mrb[0].mxu0
      %4627 = vmatprep.mubr.bf16.mxu0 0
      %4628 = vmatmul.mubr.bf16.gmra.mrb[0].mxu0 %v2223
      %v4629 = vpop.f32.mrb[0].mxu0
      %v4630 = vadd.f32 0.0, %v4629
      %v4631 = vpop.f32.mrb[0].mxu0
      %v4632 = vpop.f32.mrb[0].mxu0
      %v4633 = vadd.f32 0.0, %v4632
      %v4634 = vpop.f32.mrb[0].mxu0
      %4635 = vmatprep.mubr.bf16.mxu0 0
      %4636 = vmatmul.mubr.bf16.gmra.mrb[0].mxu0 %v2224
      %v4637 = vpop.f32.mrb[0].mxu0
      %v4638 = vadd.f32 0.0, %v4637
      %v4639 = vpop.f32.mrb[0].mxu0
      %v4640 = vpop.f32.mrb[0].mxu0
      %v4641 = vadd.f32 0.0, %v4640
      %v4642 = vpop.f32.mrb[0].mxu0
      %4643 = vmatprep.mubr.bf16.mxu0 0
      %4644 = vmatmul.mubr.bf16.gmra.mrb[0].mxu0 %v2225
      %v4645 = vpop.f32.mrb[0].mxu0
      %v4646 = vadd.f32 0.0, %v4645
      %v4647 = vpop.f32.mrb[0].mxu0
      %v4648 = vpop.f32.mrb[0].mxu0
      %v4649 = vadd.f32 0.0, %v4648
      %v4650 = vpop.f32.mrb[0].mxu0
      %4651 = vmatprep.mubr.bf16.mxu0 0
      %4652 = vmatmul.mubr.bf16.gmra.mrb[0].mxu0 %v2226
      %v4653 = vpop.f32.mrb[0].mxu0
      %v4654 = vadd.f32 0.0, %v4653
      %v4655 = vpop.f32.mrb[0].mxu0
      %v4656 = vpop.f32.mrb[0].mxu0
      %v4657 = vadd.f32 0.0, %v4656
      %v4658 = vpop.f32.mrb[0].mxu0
      %4659 = vmatprep.mubr.bf16.mxu0 0
      %4660 = vmatmul.mubr.bf16.gmra.mrb[0].mxu0 %v2227
      %v4661 = vpop.f32.mrb[0].mxu0
      %v4662 = vadd.f32 0.0, %v4661
      %v4663 = vpop.f32.mrb[0].mxu0
      %v4664 = vpop.f32.mrb[0].mxu0
      %v4665 = vadd.f32 0.0, %v4664
      %v4666 = vpop.f32.mrb[0].mxu0
      %4667 = vmatprep.mubr.bf16.mxu0 0
      %4668 = vmatmul.mubr.bf16.gmra.mrb[0].mxu0 %v2228
      %v4669 = vpop.f32.mrb[0].mxu0
      %v4670 = vadd.f32 0.0, %v4669
      %v4671 = vpop.f32.mrb[0].mxu0
      %v4672 = vpop.f32.mrb[0].mxu0
      %v4673 = vadd.f32 0.0, %v4672
      %v4674 = vpop.f32.mrb[0].mxu0
      %4675 = vmatprep.mubr.bf16.mxu0 0
      %4676 = vmatmul.mubr.bf16.gmra.mrb[0].mxu0 %v2229
      %v4677 = vpop.f32.mrb[0].mxu0
      %v4678 = vadd.f32 0.0, %v4677
      %v4679 = vpop.f32.mrb[0].mxu0
      %v4680 = vpop.f32.mrb[0].mxu0
      %v4681 = vadd.f32 0.0, %v4680
      %v4682 = vpop.f32.mrb[0].mxu0
      %4683 = vmatprep.mubr.bf16.mxu0 0
      %4684 = vmatmul.mubr.bf16.gmra.mrb[0].mxu0 %v2230
      %v4685 = vpop.f32.mrb[0].mxu0
      %v4686 = vadd.f32 0.0, %v4685
      %v4687 = vpop.f32.mrb[0].mxu0
      %v4688 = vpop.f32.mrb[0].mxu0
      %v4689 = vadd.f32 0.0, %v4688
      %v4690 = vpop.f32.mrb[0].mxu0
      %4691 = vmatprep.mubr.bf16.mxu0 0
      %4692 = vmatmul.mubr.bf16.gmra.mrb[0].mxu0 %v2231
      %v4693 = vpop.f32.mrb[0].mxu0
      %v4694 = vadd.f32 0.0, %v4693
      %v4695 = vpop.f32.mrb[0].mxu0
      %v4696 = vpop.f32.mrb[0].mxu0
      %v4697 = vadd.f32 0.0, %v4696
      %v4698 = vpop.f32.mrb[0].mxu0
      %4699 = vmatprep.mubr.bf16.mxu0 0
      %4700 = vmatmul.mubr.bf16.gmra.mrb[0].mxu0 %v2232
      %v4701 = vpop.f32.mrb[0].mxu0
      %v4702 = vadd.f32 0.0, %v4701
      %v4703 = vpop.f32.mrb[0].mxu0
      %v4704 = vpop.f32.mrb[0].mxu0
      %v4705 = vadd.f32 0.0, %v4704
      %v4706 = vpop.f32.mrb[0].mxu0
      %4707 = vmatprep.mubr.bf16.mxu0 0
      %4708 = vmatmul.mubr.bf16.gmra.mrb[0].mxu0 %v2233
      %v4709 = vpop.f32.mrb[0].mxu0
      %v4710 = vadd.f32 0.0, %v4709
      %v4711 = vpop.f32.mrb[0].mxu0
      %v4712 = vpop.f32.mrb[0].mxu0
      %v4713 = vadd.f32 0.0, %v4712
      %v4714 = vpop.f32.mrb[0].mxu0
      %4715 = vmatprep.mubr.bf16.mxu0 0
      %4716 = vmatmul.mubr.bf16.gmra.mrb[0].mxu0 %v2234
      %v4717 = vpop.f32.mrb[0].mxu0
      %v4718 = vadd.f32 0.0, %v4717
      %v4719 = vpop.f32.mrb[0].mxu0
      %v4720 = vpop.f32.mrb[0].mxu0
      %v4721 = vadd.f32 0.0, %v4720
      %v4722 = vpop.f32.mrb[0].mxu0
      %4723 = vmatprep.mubr.bf16.mxu0 0
      %4724 = vmatmul.mubr.bf16.gmra.mrb[0].mxu0 %v4469
      %v4725 = vpop.f32.mrb[0].mxu0
      %v4726 = vadd.f32 0.0, %v4725
      %v4727 = vpop.f32.mrb[0].mxu0
      %v4728 = vpop.f32.mrb[0].mxu0
      %v4729 = vadd.f32 0.0, %v4728
      %v4730 = vpop.f32.mrb[0].mxu0
      %4731 = vmatprep.mubr.bf16.mxu0 0
      %4732 = vmatmul.mubr.bf16.gmra.mrb[0].mxu0 %v4470
      %v4733 = vpop.f32.mrb[0].mxu0
      %v4734 = vadd.f32 0.0, %v4733
      %v4735 = vpop.f32.mrb[0].mxu0
      %v4736 = vpop.f32.mrb[0].mxu0
      %v4737 = vadd.f32 0.0, %v4736
      %v4738 = vpop.f32.mrb[0].mxu0
      %4739 = vmatprep.mubr.bf16.mxu0 0
      %4740 = vmatmul.mubr.bf16.gmra.mrb[0].mxu0 %v4471
      %v4741 = vpop.f32.mrb[0].mxu0
      %v4742 = vadd.f32 0.0, %v4741
      %v4743 = vpop.f32.mrb[0].mxu0
      %v4744 = vpop.f32.mrb[0].mxu0
      %v4745 = vadd.f32 0.0, %v4744
      %v4746 = vpop.f32.mrb[0].mxu0
      %4747 = vdwg.mxu0
      %v4748 = vadd.f32 %v4400, %v4558
      %v4749 = vadd.f32 %v4401, %v4561
      %v4750 = vadd.f32 %v4402, %v4566
      %v4751 = vadd.f32 %v4403, %v4569
      %v4752 = vadd.f32 %v4404, %v4574
      %v4753 = vadd.f32 %v4405, %v4577
      %v4754 = vadd.f32 %v4406, %v4582
      %v4755 = vadd.f32 %v4407, %v4585
      %v4756 = vadd.f32 %v4408, %v4590
      %v4757 = vadd.f32 %v4409, %v4593
      %v4758 = vadd.f32 %v4410, %v4598
      %v4759 = vadd.f32 %v4411, %v4601
      %v4760 = vadd.f32 %v4412, %v4606
      %v4761 = vadd.f32 %v4413, %v4609
      %v4762 = vadd.f32 %v4414, %v4614
      %v4763 = vadd.f32 %v4415, %v4617
      %v4764 = vadd.f32 %v4416, %v4622
      %v4765 = vadd.f32 %v4417, %v4625
      %v4766 = vadd.f32 %v4418, %v4630
      %v4767 = vadd.f32 %v4419, %v4633
      %v4768 = vadd.f32 %v4420, %v4638
      %v4769 = vadd.f32 %v4421, %v4641
      %v4770 = vadd.f32 %v4422, %v4646
      %v4771 = vadd.f32 %v4423, %v4649
      %v4772 = vadd.f32 %v4424, %v4654
      %v4773 = vadd.f32 %v4425, %v4657
      %v4774 = vadd.f32 %v4426, %v4662
      %v4775 = vadd.f32 %v4427, %v4665
      %v4776 = vadd.f32 %v4428, %v4670
      %v4777 = vadd.f32 %v4429, %v4673
      %v4778 = vadd.f32 %v4430, %v4678
      %v4779 = vadd.f32 %v4431, %v4681
      %v4780 = vadd.f32 %v4432, %v4686
      %v4781 = vadd.f32 %v4433, %v4689
      %v4782 = vadd.f32 %v4434, %v4694
      %v4783 = vadd.f32 %v4435, %v4697
      %v4784 = vadd.f32 %v4436, %v4702
      %v4785 = vadd.f32 %v4437, %v4705
      %v4786 = vadd.f32 %v4438, %v4710
      %v4787 = vadd.f32 %v4439, %v4713
      %v4788 = vadd.f32 %v4440, %v4718
      %v4789 = vadd.f32 %v4441, %v4721
      %v4790 = vadd.f32 %v4442, %v4726
      %v4791 = vadd.f32 %v4443, %v4729
      %v4792 = vadd.f32 %v4444, %v4734
      %v4793 = vadd.f32 %v4445, %v4737
      %v4794 = vadd.f32 %v4446, %v4742
      %v4795 = vadd.f32 %v4447, %v4745
      %v4796 = vsel %vm743, %v4748, 0.0
      %v4797 = vsel %vm744, %v4749, 0.0
      %v4798 = vsel %vm745, %v4750, 0.0
      %v4799 = vsel %vm743, %v4751, 0.0
      %v4800 = vsel %vm744, %v4752, 0.0
      %v4801 = vsel %vm745, %v4753, 0.0
      %v4802 = vsel %vm743, %v4754, 0.0
      %v4803 = vsel %vm744, %v4755, 0.0
      %v4804 = vsel %vm745, %v4756, 0.0
      %v4805 = vsel %vm743, %v4757, 0.0
      %v4806 = vsel %vm744, %v4758, 0.0
      %v4807 = vsel %vm745, %v4759, 0.0
      %v4808 = vsel %vm743, %v4760, 0.0
      %v4809 = vsel %vm744, %v4761, 0.0
      %v4810 = vsel %vm745, %v4762, 0.0
      %v4811 = vsel %vm743, %v4763, 0.0
      %v4812 = vsel %vm744, %v4764, 0.0
      %v4813 = vsel %vm745, %v4765, 0.0
      %v4814 = vsel %vm743, %v4766, 0.0
      %v4815 = vsel %vm744, %v4767, 0.0
      %v4816 = vsel %vm745, %v4768, 0.0
      %v4817 = vsel %vm743, %v4769, 0.0
      %v4818 = vsel %vm744, %v4770, 0.0
      %v4819 = vsel %vm745, %v4771, 0.0
      %v4820 = vsel %vm743, %v4772, 0.0
      %v4821 = vsel %vm744, %v4773, 0.0
      %v4822 = vsel %vm745, %v4774, 0.0
      %v4823 = vsel %vm743, %v4775, 0.0
      %v4824 = vsel %vm744, %v4776, 0.0
      %v4825 = vsel %vm745, %v4777, 0.0
      %v4826 = vsel %vm743, %v4778, 0.0
      %v4827 = vsel %vm744, %v4779, 0.0
      %v4828 = vsel %vm745, %v4780, 0.0
      %v4829 = vsel %vm743, %v4781, 0.0
      %v4830 = vsel %vm744, %v4782, 0.0
      %v4831 = vsel %vm745, %v4783, 0.0
      %v4832 = vsel %vm743, %v4784, 0.0
      %v4833 = vsel %vm744, %v4785, 0.0
      %v4834 = vsel %vm745, %v4786, 0.0
      %v4835 = vsel %vm743, %v4787, 0.0
      %v4836 = vsel %vm744, %v4788, 0.0
      %v4837 = vsel %vm745, %v4789, 0.0
      %v4838 = vsel %vm743, %v4790, 0.0
      %v4839 = vsel %vm744, %v4791, 0.0
      %v4840 = vsel %vm745, %v4792, 0.0
      %v4841 = vsel %vm743, %v4793, 0.0
      %v4842 = vsel %vm744, %v4794, 0.0
      %v4843 = vsel %vm745, %v4795, 0.0
      %v4844 = vadd.f32 %v4796, %v4797
      %v4845 = vadd.f32 %v4844, %v4798
      %v4846 = vadd.f32 %v4845, %v4799
      %v4847 = vadd.f32 %v4846, %v4800
      %v4848 = vadd.f32 %v4847, %v4801
      %v4849 = vadd.f32 %v4848, %v4802
      %v4850 = vadd.f32 %v4849, %v4803
      %v4851 = vadd.f32 %v4850, %v4804
      %v4852 = vadd.f32 %v4851, %v4805
      %v4853 = vadd.f32 %v4852, %v4806
      %v4854 = vadd.f32 %v4853, %v4807
      %v4855 = vadd.f32 %v4854, %v4808
      %v4856 = vadd.f32 %v4855, %v4809
      %v4857 = vadd.f32 %v4856, %v4810
      %v4858 = vadd.f32 %v4857, %v4811
      %v4859 = vadd.f32 %v4858, %v4812
      %v4860 = vadd.f32 %v4859, %v4813
      %v4861 = vadd.f32 %v4860, %v4814
      %v4862 = vadd.f32 %v4861, %v4815
      %v4863 = vadd.f32 %v4862, %v4816
      %v4864 = vadd.f32 %v4863, %v4817
      %v4865 = vadd.f32 %v4864, %v4818
      %v4866 = vadd.f32 %v4865, %v4819
      %v4867 = vadd.f32 %v4866, %v4820
      %v4868 = vadd.f32 %v4867, %v4821
      %v4869 = vadd.f32 %v4868, %v4822
      %v4870 = vadd.f32 %v4869, %v4823
      %v4871 = vadd.f32 %v4870, %v4824
      %v4872 = vadd.f32 %v4871, %v4825
      %v4873 = vadd.f32 %v4872, %v4826
      %v4874 = vadd.f32 %v4873, %v4827
      %v4875 = vadd.f32 %v4874, %v4828
      %v4876 = vadd.f32 %v4875, %v4829
      %v4877 = vadd.f32 %v4876, %v4830
      %v4878 = vadd.f32 %v4877, %v4831
      %v4879 = vadd.f32 %v4878, %v4832
      %v4880 = vadd.f32 %v4879, %v4833
      %v4881 = vadd.f32 %v4880, %v4834
      %v4882 = vadd.f32 %v4881, %v4835
      %v4883 = vadd.f32 %v4882, %v4836
      %v4884 = vadd.f32 %v4883, %v4837
      %v4885 = vadd.f32 %v4884, %v4838
      %v4886 = vadd.f32 %v4885, %v4839
      %v4887 = vadd.f32 %v4886, %v4840
      %v4888 = vadd.f32 %v4887, %v4841
      %v4889 = vadd.f32 %v4888, %v4842
      %v4890 = vadd.f32 %v4889, %v4843
      %v4891 = vrot.slane %v4890, 4
      %v4892 = vadd.f32 %v4890, %v4891
      %v4893 = vrot.slane %v4892, 2
      %v4894 = vadd.f32 %v4892, %v4893
      %v4895 = vrot.slane %v4894, 1
      %v4896 = vadd.f32 %v4894, %v4895
      %v4897 = vmul.f32 %v4796, %v4796
      %v4898 = vmul.f32 %v4797, %v4797
      %v4899 = vmul.f32 %v4798, %v4798
      %v4900 = vmul.f32 %v4799, %v4799
      %v4901 = vmul.f32 %v4800, %v4800
      %v4902 = vmul.f32 %v4801, %v4801
      %v4903 = vmul.f32 %v4802, %v4802
      %v4904 = vmul.f32 %v4803, %v4803
      %v4905 = vmul.f32 %v4804, %v4804
      %v4906 = vmul.f32 %v4805, %v4805
      %v4907 = vmul.f32 %v4806, %v4806
      %v4908 = vmul.f32 %v4807, %v4807
      %v4909 = vmul.f32 %v4808, %v4808
      %v4910 = vmul.f32 %v4809, %v4809
      %v4911 = vmul.f32 %v4810, %v4810
      %v4912 = vmul.f32 %v4811, %v4811
      %v4913 = vmul.f32 %v4812, %v4812
      %v4914 = vmul.f32 %v4813, %v4813
      %v4915 = vmul.f32 %v4814, %v4814
      %v4916 = vmul.f32 %v4815, %v4815
      %v4917 = vmul.f32 %v4816, %v4816
      %v4918 = vmul.f32 %v4817, %v4817
      %v4919 = vmul.f32 %v4818, %v4818
      %v4920 = vmul.f32 %v4819, %v4819
      %v4921 = vmul.f32 %v4820, %v4820
      %v4922 = vmul.f32 %v4821, %v4821
      %v4923 = vmul.f32 %v4822, %v4822
      %v4924 = vmul.f32 %v4823, %v4823
      %v4925 = vmul.f32 %v4824, %v4824
      %v4926 = vmul.f32 %v4825, %v4825
      %v4927 = vmul.f32 %v4826, %v4826
      %v4928 = vmul.f32 %v4827, %v4827
      %v4929 = vmul.f32 %v4828, %v4828
      %v4930 = vmul.f32 %v4829, %v4829
      %v4931 = vmul.f32 %v4830, %v4830
      %v4932 = vmul.f32 %v4831, %v4831
      %v4933 = vmul.f32 %v4832, %v4832
      %v4934 = vmul.f32 %v4833, %v4833
      %v4935 = vmul.f32 %v4834, %v4834
      %v4936 = vmul.f32 %v4835, %v4835
      %v4937 = vmul.f32 %v4836, %v4836
      %v4938 = vmul.f32 %v4837, %v4837
      %v4939 = vmul.f32 %v4838, %v4838
      %v4940 = vmul.f32 %v4839, %v4839
      %v4941 = vmul.f32 %v4840, %v4840
      %v4942 = vmul.f32 %v4841, %v4841
      %v4943 = vmul.f32 %v4842, %v4842
      %v4944 = vmul.f32 %v4843, %v4843
      %v4945 = vadd.f32 %v4897, %v4898
      %v4946 = vadd.f32 %v4945, %v4899
      %v4947 = vadd.f32 %v4946, %v4900
      %v4948 = vadd.f32 %v4947, %v4901
      %v4949 = vadd.f32 %v4948, %v4902
      %v4950 = vadd.f32 %v4949, %v4903
      %v4951 = vadd.f32 %v4950, %v4904
      %v4952 = vadd.f32 %v4951, %v4905
      %v4953 = vadd.f32 %v4952, %v4906
      %v4954 = vadd.f32 %v4953, %v4907
      %v4955 = vadd.f32 %v4954, %v4908
      %v4956 = vadd.f32 %v4955, %v4909
      %v4957 = vadd.f32 %v4956, %v4910
      %v4958 = vadd.f32 %v4957, %v4911
      %v4959 = vadd.f32 %v4958, %v4912
      %v4960 = vadd.f32 %v4959, %v4913
      %v4961 = vadd.f32 %v4960, %v4914
      %v4962 = vadd.f32 %v4961, %v4915
      %v4963 = vadd.f32 %v4962, %v4916
      %v4964 = vadd.f32 %v4963, %v4917
      %v4965 = vadd.f32 %v4964, %v4918
      %v4966 = vadd.f32 %v4965, %v4919
      %v4967 = vadd.f32 %v4966, %v4920
      %v4968 = vadd.f32 %v4967, %v4921
      %v4969 = vadd.f32 %v4968, %v4922
      %v4970 = vadd.f32 %v4969, %v4923
      %v4971 = vadd.f32 %v4970, %v4924
      %v4972 = vadd.f32 %v4971, %v4925
      %v4973 = vadd.f32 %v4972, %v4926
      %v4974 = vadd.f32 %v4973, %v4927
      %v4975 = vadd.f32 %v4974, %v4928
      %v4976 = vadd.f32 %v4975, %v4929
      %v4977 = vadd.f32 %v4976, %v4930
      %v4978 = vadd.f32 %v4977, %v4931
      %v4979 = vadd.f32 %v4978, %v4932
      %v4980 = vadd.f32 %v4979, %v4933
      %v4981 = vadd.f32 %v4980, %v4934
      %v4982 = vadd.f32 %v4981, %v4935
      %v4983 = vadd.f32 %v4982, %v4936
      %v4984 = vadd.f32 %v4983, %v4937
      %v4985 = vadd.f32 %v4984, %v4938
      %v4986 = vadd.f32 %v4985, %v4939
      %v4987 = vadd.f32 %v4986, %v4940
      %v4988 = vadd.f32 %v4987, %v4941
      %v4989 = vadd.f32 %v4988, %v4942
      %v4990 = vadd.f32 %v4989, %v4943
      %v4991 = vadd.f32 %v4990, %v4944
      %v4992 = vrot.slane %v4991, 4
      %v4993 = vadd.f32 %v4991, %v4992
      %v4994 = vrot.slane %v4993, 2
      %v4995 = vadd.f32 %v4993, %v4994
      %v4996 = vrot.slane %v4995, 1
      %v4997 = vadd.f32 %v4995, %v4996
      %vm4998 = vcmask 1040384
      %v4999 = vsel %vm4998, %v4896, %v4997
      %5000 = vst [vmem:[%s465] sm:$0x3] %v4999
      %v5001 = vpack.c.bf16 %v4797, %v4796
      %v5002 = vpack.c.bf16 %v4798, %v4798
      %v5003 = vpack.c.bf16 %v4800, %v4799
      %v5004 = vpack.c.bf16 %v4801, %v4801
      %v5005 = vpack.c.bf16 %v4803, %v4802
      %v5006 = vpack.c.bf16 %v4804, %v4804
      %v5007 = vpack.c.bf16 %v4806, %v4805
      %v5008 = vpack.c.bf16 %v4807, %v4807
      %v5009 = vpack.c.bf16 %v4809, %v4808
      %v5010 = vpack.c.bf16 %v4810, %v4810
      %v5011 = vpack.c.bf16 %v4812, %v4811
      %v5012 = vpack.c.bf16 %v4813, %v4813
      %v5013 = vpack.c.bf16 %v4815, %v4814
      %v5014 = vpack.c.bf16 %v4816, %v4816
      %v5015 = vpack.c.bf16 %v4818, %v4817
      %v5016 = vpack.c.bf16 %v4819, %v4819
      %v5017 = vpack.c.bf16 %v4821, %v4820
      %v5018 = vpack.c.bf16 %v4822, %v4822
      %v5019 = vpack.c.bf16 %v4824, %v4823
      %v5020 = vpack.c.bf16 %v4825, %v4825
      %v5021 = vpack.c.bf16 %v4827, %v4826
      %v5022 = vpack.c.bf16 %v4828, %v4828
      %v5023 = vpack.c.bf16 %v4830, %v4829
      %v5024 = vpack.c.bf16 %v4831, %v4831
      %v5025 = vpack.c.bf16 %v4833, %v4832
      %v5026 = vpack.c.bf16 %v4834, %v4834
      %v5027 = vpack.c.bf16 %v4836, %v4835
      %v5028 = vpack.c.bf16 %v4837, %v4837
      %v5029 = vpack.c.bf16 %v4839, %v4838
      %v5030 = vpack.c.bf16 %v4840, %v4840
      %v5031 = vpack.c.bf16 %v4842, %v4841
      %v5032 = vpack.c.bf16 %v4843, %v4843
      %v5065 = vunpack.c.l.b16 %v5001
      %v5066 = vunpack.c.h.b16 %v5001
      %v5067 = vunpack.c.l.b16 %v5002
      %v5068 = vunpack.c.l.b16 %v5003
      %v5069 = vunpack.c.h.b16 %v5003
      %v5070 = vunpack.c.l.b16 %v5004
      %v5071 = vunpack.c.l.b16 %v5005
      %v5072 = vunpack.c.h.b16 %v5005
      %v5073 = vunpack.c.l.b16 %v5006
      %v5074 = vunpack.c.l.b16 %v5007
      %v5075 = vunpack.c.h.b16 %v5007
      %v5076 = vunpack.c.l.b16 %v5008
      %v5077 = vunpack.c.l.b16 %v5009
      %v5078 = vunpack.c.h.b16 %v5009
      %v5079 = vunpack.c.l.b16 %v5010
      %v5080 = vunpack.c.l.b16 %v5011
      %v5081 = vunpack.c.h.b16 %v5011
      %v5082 = vunpack.c.l.b16 %v5012
      %v5083 = vunpack.c.l.b16 %v5013
      %v5084 = vunpack.c.h.b16 %v5013
      %v5085 = vunpack.c.l.b16 %v5014
      %v5086 = vunpack.c.l.b16 %v5015
      %v5087 = vunpack.c.h.b16 %v5015
      %v5088 = vunpack.c.l.b16 %v5016
      %v5089 = vunpack.c.l.b16 %v5017
      %v5090 = vunpack.c.h.b16 %v5017
      %v5091 = vunpack.c.l.b16 %v5018
      %v5092 = vunpack.c.l.b16 %v5019
      %v5093 = vunpack.c.h.b16 %v5019
      %v5094 = vunpack.c.l.b16 %v5020
      %v5095 = vunpack.c.l.b16 %v5021
      %v5096 = vunpack.c.h.b16 %v5021
      %v5097 = vunpack.c.l.b16 %v5022
      %v5098 = vunpack.c.l.b16 %v5023
      %v5099 = vunpack.c.h.b16 %v5023
      %v5100 = vunpack.c.l.b16 %v5024
      %v5101 = vunpack.c.l.b16 %v5025
      %v5102 = vunpack.c.h.b16 %v5025
      %v5103 = vunpack.c.l.b16 %v5026
      %v5104 = vunpack.c.l.b16 %v5027
      %v5105 = vunpack.c.h.b16 %v5027
      %v5106 = vunpack.c.l.b16 %v5028
      %v5107 = vunpack.c.l.b16 %v5029
      %v5108 = vunpack.c.h.b16 %v5029
      %v5109 = vunpack.c.l.b16 %v5030
      %v5110 = vunpack.c.l.b16 %v5031
      %v5111 = vunpack.c.h.b16 %v5031
      %v5112 = vunpack.c.l.b16 %v5032
      %v5113 = vpack.c.b16 %v5065, %v5065
      %v5114 = vpack.c.b16 %v5066, %v5066
      %v5115 = vpack.c.b16 %v5067, %v5067
      %v5116 = vpack.c.b16 %v5068, %v5068
      %v5117 = vpack.c.b16 %v5069, %v5069
      %v5118 = vpack.c.b16 %v5070, %v5070
      %v5119 = vpack.c.b16 %v5071, %v5071
      %v5120 = vpack.c.b16 %v5072, %v5072
      %v5121 = vpack.c.b16 %v5073, %v5073
      %v5122 = vpack.c.b16 %v5074, %v5074
      %v5123 = vpack.c.b16 %v5075, %v5075
      %v5124 = vpack.c.b16 %v5076, %v5076
      %v5125 = vpack.c.b16 %v5077, %v5077
      %v5126 = vpack.c.b16 %v5078, %v5078
      %v5127 = vpack.c.b16 %v5079, %v5079
      %v5128 = vpack.c.b16 %v5080, %v5080
      %v5129 = vpack.c.b16 %v5081, %v5081
      %v5130 = vpack.c.b16 %v5082, %v5082
      %v5131 = vpack.c.b16 %v5083, %v5083
      %v5132 = vpack.c.b16 %v5084, %v5084
      %v5133 = vpack.c.b16 %v5085, %v5085
      %v5134 = vpack.c.b16 %v5086, %v5086
      %v5135 = vpack.c.b16 %v5087, %v5087
      %v5136 = vpack.c.b16 %v5088, %v5088
      %v5137 = vpack.c.b16 %v5089, %v5089
      %v5138 = vpack.c.b16 %v5090, %v5090
      %v5139 = vpack.c.b16 %v5091, %v5091
      %v5140 = vpack.c.b16 %v5092, %v5092
      %v5141 = vpack.c.b16 %v5093, %v5093
      %v5142 = vpack.c.b16 %v5094, %v5094
      %v5143 = vpack.c.b16 %v5095, %v5095
      %v5144 = vpack.c.b16 %v5096, %v5096
      %v5145 = vpack.c.b16 %v5097, %v5097
      %v5146 = vpack.c.b16 %v5098, %v5098
      %v5147 = vpack.c.b16 %v5099, %v5099
      %v5148 = vpack.c.b16 %v5100, %v5100
      %v5149 = vpack.c.b16 %v5101, %v5101
      %v5150 = vpack.c.b16 %v5102, %v5102
      %v5151 = vpack.c.b16 %v5103, %v5103
      %v5152 = vpack.c.b16 %v5104, %v5104
      %v5153 = vpack.c.b16 %v5105, %v5105
      %v5154 = vpack.c.b16 %v5106, %v5106
      %v5155 = vpack.c.b16 %v5107, %v5107
      %v5156 = vpack.c.b16 %v5108, %v5108
      %v5157 = vpack.c.b16 %v5109, %v5109
      %v5158 = vpack.c.b16 %v5110, %v5110
      %v5159 = vpack.c.b16 %v5111, %v5111
      %v5160 = vpack.c.b16 %v5112, %v5112
      %vm5161 = vsmask.f32 7440
      %vm5162 = vmor %vm1291, %vm5161
      %v5164 = vshrl.u32 %v5113, 16
      %v5166 = vrot.slane %v5164, 4
      %v5167 = vshll.u32 %v5113, 16
      %v5169 = vrot.slane %v5167, 5
      %v5170 = vor.u32 %v5166, %v5169
      %v5171 = vrot.slane %v5170, 4
      %v5173 = vshll.u32 %v5114, 16
      %v5175 = vrot.slane %v5173, 5
      %v5176 = vsel %vm5162, %v5171, %v5175
      %v5177 = vshrl.u32 %v5114, 16
      %v5179 = vrot.slane %v5177, 4
      %v5180 = vor.u32 %v5179, %v5175
      %v5181 = vrot.slane %v5180, 4
      %v5183 = vshll.u32 %v5115, 16
      %v5185 = vrot.slane %v5183, 5
      %v5186 = vsel %vm5162, %v5181, %v5185
      %v5188 = vshrl.u32 %v5116, 16
      %v5190 = vrot.slane %v5188, 4
      %v5191 = vshll.u32 %v5116, 16
      %v5193 = vrot.slane %v5191, 5
      %v5194 = vor.u32 %v5190, %v5193
      %v5195 = vrot.slane %v5194, 4
      %v5197 = vshll.u32 %v5117, 16
      %v5199 = vrot.slane %v5197, 5
      %v5200 = vsel %vm5162, %v5195, %v5199
      %v5201 = vshrl.u32 %v5117, 16
      %v5203 = vrot.slane %v5201, 4
      %v5204 = vor.u32 %v5203, %v5199
      %v5205 = vrot.slane %v5204, 4
      %v5207 = vshll.u32 %v5118, 16
      %v5209 = vrot.slane %v5207, 5
      %v5210 = vsel %vm5162, %v5205, %v5209
      %v5212 = vshrl.u32 %v5119, 16
      %v5214 = vrot.slane %v5212, 4
      %v5215 = vshll.u32 %v5119, 16
      %v5217 = vrot.slane %v5215, 5
      %v5218 = vor.u32 %v5214, %v5217
      %v5219 = vrot.slane %v5218, 4
      %v5221 = vshll.u32 %v5120, 16
      %v5223 = vrot.slane %v5221, 5
      %v5224 = vsel %vm5162, %v5219, %v5223
      %v5225 = vshrl.u32 %v5120, 16
      %v5227 = vrot.slane %v5225, 4
      %v5228 = vor.u32 %v5227, %v5223
      %v5229 = vrot.slane %v5228, 4
      %v5231 = vshll.u32 %v5121, 16
      %v5233 = vrot.slane %v5231, 5
      %v5234 = vsel %vm5162, %v5229, %v5233
      %v5236 = vshrl.u32 %v5122, 16
      %v5238 = vrot.slane %v5236, 4
      %v5239 = vshll.u32 %v5122, 16
      %v5241 = vrot.slane %v5239, 5
      %v5242 = vor.u32 %v5238, %v5241
      %v5243 = vrot.slane %v5242, 4
      %v5245 = vshll.u32 %v5123, 16
      %v5247 = vrot.slane %v5245, 5
      %v5248 = vsel %vm5162, %v5243, %v5247
      %v5249 = vshrl.u32 %v5123, 16
      %v5251 = vrot.slane %v5249, 4
      %v5252 = vor.u32 %v5251, %v5247
      %v5253 = vrot.slane %v5252, 4
      %v5255 = vshll.u32 %v5124, 16
      %v5257 = vrot.slane %v5255, 5
      %v5258 = vsel %vm5162, %v5253, %v5257
      %v5260 = vshrl.u32 %v5125, 16
      %v5262 = vrot.slane %v5260, 4
      %v5263 = vshll.u32 %v5125, 16
      %v5265 = vrot.slane %v5263, 5
      %v5266 = vor.u32 %v5262, %v5265
      %v5267 = vrot.slane %v5266, 4
      %v5269 = vshll.u32 %v5126, 16
      %v5271 = vrot.slane %v5269, 5
      %v5272 = vsel %vm5162, %v5267, %v5271
      %v5273 = vshrl.u32 %v5126, 16
      %v5275 = vrot.slane %v5273, 4
      %v5276 = vor.u32 %v5275, %v5271
      %v5277 = vrot.slane %v5276, 4
      %v5279 = vshll.u32 %v5127, 16
      %v5281 = vrot.slane %v5279, 5
      %v5282 = vsel %vm5162, %v5277, %v5281
      %v5284 = vshrl.u32 %v5128, 16
      %v5286 = vrot.slane %v5284, 4
      %v5287 = vshll.u32 %v5128, 16
      %v5289 = vrot.slane %v5287, 5
      %v5290 = vor.u32 %v5286, %v5289
      %v5291 = vrot.slane %v5290, 4
      %v5293 = vshll.u32 %v5129, 16
      %v5295 = vrot.slane %v5293, 5
      %v5296 = vsel %vm5162, %v5291, %v5295
      %v5297 = vshrl.u32 %v5129, 16
      %v5299 = vrot.slane %v5297, 4
      %v5300 = vor.u32 %v5299, %v5295
      %v5301 = vrot.slane %v5300, 4
      %v5303 = vshll.u32 %v5130, 16
      %v5305 = vrot.slane %v5303, 5
      %v5306 = vsel %vm5162, %v5301, %v5305
      %v5308 = vshrl.u32 %v5131, 16
      %v5310 = vrot.slane %v5308, 4
      %v5311 = vshll.u32 %v5131, 16
      %v5313 = vrot.slane %v5311, 5
      %v5314 = vor.u32 %v5310, %v5313
      %v5315 = vrot.slane %v5314, 4
      %v5317 = vshll.u32 %v5132, 16
      %v5319 = vrot.slane %v5317, 5
      %v5320 = vsel %vm5162, %v5315, %v5319
      %v5321 = vshrl.u32 %v5132, 16
      %v5323 = vrot.slane %v5321, 4
      %v5324 = vor.u32 %v5323, %v5319
      %v5325 = vrot.slane %v5324, 4
      %v5327 = vshll.u32 %v5133, 16
      %v5329 = vrot.slane %v5327, 5
      %v5330 = vsel %vm5162, %v5325, %v5329
      %v5332 = vshrl.u32 %v5134, 16
      %v5334 = vrot.slane %v5332, 4
      %v5335 = vshll.u32 %v5134, 16
      %v5337 = vrot.slane %v5335, 5
      %v5338 = vor.u32 %v5334, %v5337
      %v5339 = vrot.slane %v5338, 4
      %v5341 = vshll.u32 %v5135, 16
      %v5343 = vrot.slane %v5341, 5
      %v5344 = vsel %vm5162, %v5339, %v5343
      %v5345 = vshrl.u32 %v5135, 16
      %v5347 = vrot.slane %v5345, 4
      %v5348 = vor.u32 %v5347, %v5343
      %v5349 = vrot.slane %v5348, 4
      %v5351 = vshll.u32 %v5136, 16
      %v5353 = vrot.slane %v5351, 5
      %v5354 = vsel %vm5162, %v5349, %v5353
      %v5356 = vshrl.u32 %v5137, 16
      %v5358 = vrot.slane %v5356, 4
      %v5359 = vshll.u32 %v5137, 16
      %v5361 = vrot.slane %v5359, 5
      %v5362 = vor.u32 %v5358, %v5361
      %v5363 = vrot.slane %v5362, 4
      %v5365 = vshll.u32 %v5138, 16
      %v5367 = vrot.slane %v5365, 5
      %v5368 = vsel %vm5162, %v5363, %v5367
      %v5369 = vshrl.u32 %v5138, 16
      %v5371 = vrot.slane %v5369, 4
      %v5372 = vor.u32 %v5371, %v5367
      %v5373 = vrot.slane %v5372, 4
      %v5375 = vshll.u32 %v5139, 16
      %v5377 = vrot.slane %v5375, 5
      %v5378 = vsel %vm5162, %v5373, %v5377
      %v5380 = vshrl.u32 %v5140, 16
      %v5382 = vrot.slane %v5380, 4
      %v5383 = vshll.u32 %v5140, 16
      %v5385 = vrot.slane %v5383, 5
      %v5386 = vor.u32 %v5382, %v5385
      %v5387 = vrot.slane %v5386, 4
      %v5389 = vshll.u32 %v5141, 16
      %v5391 = vrot.slane %v5389, 5
      %v5392 = vsel %vm5162, %v5387, %v5391
      %v5393 = vshrl.u32 %v5141, 16
      %v5395 = vrot.slane %v5393, 4
      %v5396 = vor.u32 %v5395, %v5391
      %v5397 = vrot.slane %v5396, 4
      %v5399 = vshll.u32 %v5142, 16
      %v5401 = vrot.slane %v5399, 5
      %v5402 = vsel %vm5162, %v5397, %v5401
      %v5404 = vshrl.u32 %v5143, 16
      %v5406 = vrot.slane %v5404, 4
      %v5407 = vshll.u32 %v5143, 16
      %v5409 = vrot.slane %v5407, 5
      %v5410 = vor.u32 %v5406, %v5409
      %v5411 = vrot.slane %v5410, 4
      %v5413 = vshll.u32 %v5144, 16
      %v5415 = vrot.slane %v5413, 5
      %v5416 = vsel %vm5162, %v5411, %v5415
      %v5417 = vshrl.u32 %v5144, 16
      %v5419 = vrot.slane %v5417, 4
      %v5420 = vor.u32 %v5419, %v5415
      %v5421 = vrot.slane %v5420, 4
      %v5423 = vshll.u32 %v5145, 16
      %v5425 = vrot.slane %v5423, 5
      %v5426 = vsel %vm5162, %v5421, %v5425
      %v5428 = vshrl.u32 %v5146, 16
      %v5430 = vrot.slane %v5428, 4
      %v5431 = vshll.u32 %v5146, 16
      %v5433 = vrot.slane %v5431, 5
      %v5434 = vor.u32 %v5430, %v5433
      %v5435 = vrot.slane %v5434, 4
      %v5437 = vshll.u32 %v5147, 16
      %v5439 = vrot.slane %v5437, 5
      %v5440 = vsel %vm5162, %v5435, %v5439
      %v5441 = vshrl.u32 %v5147, 16
      %v5443 = vrot.slane %v5441, 4
      %v5444 = vor.u32 %v5443, %v5439
      %v5445 = vrot.slane %v5444, 4
      %v5447 = vshll.u32 %v5148, 16
      %v5449 = vrot.slane %v5447, 5
      %v5450 = vsel %vm5162, %v5445, %v5449
      %v5452 = vshrl.u32 %v5149, 16
      %v5454 = vrot.slane %v5452, 4
      %v5455 = vshll.u32 %v5149, 16
      %v5457 = vrot.slane %v5455, 5
      %v5458 = vor.u32 %v5454, %v5457
      %v5459 = vrot.slane %v5458, 4
      %v5461 = vshll.u32 %v5150, 16
      %v5463 = vrot.slane %v5461, 5
      %v5464 = vsel %vm5162, %v5459, %v5463
      %v5465 = vshrl.u32 %v5150, 16
      %v5467 = vrot.slane %v5465, 4
      %v5468 = vor.u32 %v5467, %v5463
      %v5469 = vrot.slane %v5468, 4
      %v5471 = vshll.u32 %v5151, 16
      %v5473 = vrot.slane %v5471, 5
      %v5474 = vsel %vm5162, %v5469, %v5473
      %v5476 = vshrl.u32 %v5152, 16
      %v5478 = vrot.slane %v5476, 4
      %v5479 = vshll.u32 %v5152, 16
      %v5481 = vrot.slane %v5479, 5
      %v5482 = vor.u32 %v5478, %v5481
      %v5483 = vrot.slane %v5482, 4
      %v5485 = vshll.u32 %v5153, 16
      %v5487 = vrot.slane %v5485, 5
      %v5488 = vsel %vm5162, %v5483, %v5487
      %v5489 = vshrl.u32 %v5153, 16
      %v5491 = vrot.slane %v5489, 4
      %v5492 = vor.u32 %v5491, %v5487
      %v5493 = vrot.slane %v5492, 4
      %v5495 = vshll.u32 %v5154, 16
      %v5497 = vrot.slane %v5495, 5
      %v5498 = vsel %vm5162, %v5493, %v5497
      %v5500 = vshrl.u32 %v5155, 16
      %v5502 = vrot.slane %v5500, 4
      %v5503 = vshll.u32 %v5155, 16
      %v5505 = vrot.slane %v5503, 5
      %v5506 = vor.u32 %v5502, %v5505
      %v5507 = vrot.slane %v5506, 4
      %v5509 = vshll.u32 %v5156, 16
      %v5511 = vrot.slane %v5509, 5
      %v5512 = vsel %vm5162, %v5507, %v5511
      %v5513 = vshrl.u32 %v5156, 16
      %v5515 = vrot.slane %v5513, 4
      %v5516 = vor.u32 %v5515, %v5511
      %v5517 = vrot.slane %v5516, 4
      %v5519 = vshll.u32 %v5157, 16
      %v5521 = vrot.slane %v5519, 5
      %v5522 = vsel %vm5162, %v5517, %v5521
      %v5524 = vshrl.u32 %v5158, 16
      %v5526 = vrot.slane %v5524, 4
      %v5527 = vshll.u32 %v5158, 16
      %v5529 = vrot.slane %v5527, 5
      %v5530 = vor.u32 %v5526, %v5529
      %v5531 = vrot.slane %v5530, 4
      %v5533 = vshll.u32 %v5159, 16
      %v5535 = vrot.slane %v5533, 5
      %v5536 = vsel %vm5162, %v5531, %v5535
      %v5537 = vshrl.u32 %v5159, 16
      %v5539 = vrot.slane %v5537, 4
      %v5540 = vor.u32 %v5539, %v5535
      %v5541 = vrot.slane %v5540, 4
      %v5543 = vshll.u32 %v5160, 16
      %v5545 = vrot.slane %v5543, 5
      %v5546 = vsel %vm5162, %v5541, %v5545
      %5579 = vst [vmem:[%s457] sm:$0xf] %v5176
      %5580 = vst [vmem:[%s457 + $0x4] sm:$0xf] %v5186
      %5581 = vst [vmem:[%s457 + $0x8] sm:$0xf] %v5200
      %5582 = vst [vmem:[%s457 + $0xc] sm:$0xf] %v5210
      %5583 = vst [vmem:[%s457 + $0x10] sm:$0xf] %v5224
      %5584 = vst [vmem:[%s457 + $0x14] sm:$0xf] %v5234
      %5585 = vst [vmem:[%s457 + $0x18] sm:$0xf] %v5248
      %5586 = vst [vmem:[%s457 + $0x1c] sm:$0xf] %v5258
      %5587 = vst [vmem:[%s457 + $0x20] sm:$0xf] %v5272
      %5588 = vst [vmem:[%s457 + $0x24] sm:$0xf] %v5282
      %5589 = vst [vmem:[%s457 + $0x28] sm:$0xf] %v5296
      %5590 = vst [vmem:[%s457 + $0x2c] sm:$0xf] %v5306
      %5591 = vst [vmem:[%s457 + $0x30] sm:$0xf] %v5320
      %5592 = vst [vmem:[%s457 + $0x34] sm:$0xf] %v5330
      %5593 = vst [vmem:[%s457 + $0x38] sm:$0xf] %v5344
      %5594 = vst [vmem:[%s457 + $0x3c] sm:$0xf] %v5354
      %5595 = vst [vmem:[%s457 + $0x40] sm:$0xf] %v5368
      %5596 = vst [vmem:[%s457 + $0x44] sm:$0xf] %v5378
      %5597 = vst [vmem:[%s457 + $0x48] sm:$0xf] %v5392
      %5598 = vst [vmem:[%s457 + $0x4c] sm:$0xf] %v5402
      %5599 = vst [vmem:[%s457 + $0x50] sm:$0xf] %v5416
      %5600 = vst [vmem:[%s457 + $0x54] sm:$0xf] %v5426
      %5601 = vst [vmem:[%s457 + $0x58] sm:$0xf] %v5440
      %5602 = vst [vmem:[%s457 + $0x5c] sm:$0xf] %v5450
      %5603 = vst [vmem:[%s457 + $0x60] sm:$0xf] %v5464
      %5604 = vst [vmem:[%s457 + $0x64] sm:$0xf] %v5474
      %5605 = vst [vmem:[%s457 + $0x68] sm:$0xf] %v5488
      %5606 = vst [vmem:[%s457 + $0x6c] sm:$0xf] %v5498
      %5607 = vst [vmem:[%s457 + $0x70] sm:$0xf] %v5512
      %5608 = vst [vmem:[%s457 + $0x74] sm:$0xf] %v5522
      %5609 = vst [vmem:[%s457 + $0x78] sm:$0xf] %v5536
      %5610 = vst [vmem:[%s457 + $0x7c] sm:$0xf] %v5546
      %s5611 = smul.u32 16, %s24
      %p5612 = scmp.lt.s32.totalorder %s23, 1
      %s5613 = scalar_select %p5612, %s23, 1
      %p5614 = scmp.lt.s32.totalorder %s5611, 15
      %s5615 = scalar_select %p5614, %s5611, 15
      %s5616 = smul.addr %s5615, 2
      %s5617 = smul.addr %s5613, 32
      %s5618 = sadd.s32 %s5616, %s5617
      %s5619 = smul.addr %s5618, 4
      %s5620 = scalar_lea.vmem %s6, %s5619
      %p5621 = scmp.lt.s32.totalorder %s23, 1
      %s5622 = scalar_select %p5621, %s23, 1
      %p5623 = scmp.lt.s32.totalorder %s24, 0
      %s5624 = scalar_select %p5623, %s24, 0
      %s5625 = sadd.s32 %s5624, %s5622
      %s5626 = smul.addr %s5625, 2
      %s5627 = scalar_lea.vmem %s7, %s5626
      // Predicated region
      $region45: #{basic_block_forward.4} parent=43 // pred_check
        %p5628 = pneg %p214
      $region46: #{basic_block_forward.4} parent=43 // pred_check_branch
        %5630 = sbr.rel (%p5628) target = $region48
      $region47: #{basic_block_forward.4} parent=43 // pred_region
        %s5631 = smul.u32 16, %s24
      $region48: #{basic_block_forward.4} parent=43 // pred_fallthru
        _
      // Predicated region
      $region49: #{basic_block_forward.4} parent=43 // pred_check
        %p5632 = pneg %p242
      $region50: #{basic_block_forward.4} parent=43 // pred_check_branch
        %5634 = sbr.rel (%p5632) target = $region52
      $region51: #{basic_block_forward.4} parent=43 // pred_region
        _
      $region52: #{basic_block_forward.4} parent=43 // pred_fallthru
        _
    $region44: #{basic_block_forward.4} parent=5 // pred_fallthru
      _
    %p5635 = scmp.le.s32.totalorder 2, %s14
    // Predicated region
    $region53: #{basic_block_forward.4} parent=5 // pred_check
      %p5636 = pneg %p5635
    $region54: #{basic_block_forward.4} parent=5 // pred_check_branch
      %5638 = sbr.rel (%p5636) target = $region56
    $region55: #{basic_block_forward.4} parent=5 // pred_region
      %s5639 = ssub.s32 %s14, 2
      // Predicated region
      $region57: #{basic_block_forward.4} parent=55 // pred_check
        %p5640 = pneg %p220
      $region58: #{basic_block_forward.4} parent=55 // pred_check_branch
        %5642 = sbr.rel (%p5640) target = $region60
      $region59: #{basic_block_forward.4} parent=55 // pred_region
        %s5643 = smul.u32 16, %s26
        %p5644 = scmp.lt.s32.totalorder %s25, 1
        %s5645 = scalar_select %p5644, %s25, 1
        %p5646 = scmp.lt.s32.totalorder %s5643, 15
        %s5647 = scalar_select %p5646, %s5643, 15
        %s5648 = smul.addr %s5647, 2
        %s5649 = smul.addr %s5645, 32
        %s5650 = sadd.s32 %s5648, %s5649
        %s5651 = smul.addr %s5650, 4
        %s5652 = scalar_lea.vmem %s6, %s5651
      $region60: #{basic_block_forward.4} parent=55 // pred_fallthru
        _
      // Predicated region
      $region61: #{basic_block_forward.4} parent=55 // pred_check
        %p5653 = pneg %p248
      $region62: #{basic_block_forward.4} parent=55 // pred_check_branch
        %5655 = sbr.rel (%p5653) target = $region64
      $region63: #{basic_block_forward.4} parent=55 // pred_region
        %p5656 = scmp.lt.s32.totalorder %s25, 1
        %s5657 = scalar_select %p5656, %s25, 1
        %p5658 = scmp.lt.s32.totalorder %s26, 0
        %s5659 = scalar_select %p5658, %s26, 0
        %s5660 = sadd.s32 %s5659, %s5657
        %s5661 = smul.addr %s5660, 2
        %s5662 = scalar_lea.vmem %s7, %s5661
      $region64: #{basic_block_forward.4} parent=55 // pred_fallthru
        _
    $region56: #{basic_block_forward.4} parent=5 // pred_fallthru
      _
  $region6: #{basic_block_forward.4} parent=0 // loop_footer
    %s18 = sadd.s32 1, %s14
  $region7: #{basic_block_forward.4} parent=0 // loop_footer_branch
    %13 = sbr.rel target = $region3
  $region8: #{basic_block_forward.4} parent=0 // loop_exit
    _

</llo_original>
